<compile_context>
chip_gen: v5e
topology: v5e:2x2
jax: 0.10.0
libtpu: 0.0.40
codegen_flags: <defaults>
</compile_context>

<pallas_src>
import functools

import jax
import jax.numpy as jnp
from jax import lax
from jax.experimental import pallas as pl
from jax.experimental.pallas import tpu as pltpu

IN_CHANNELS = 15
RES_ARCH = ((2, 32, True), (2, 64, True), (2, 128, False), (2, 256, False))


def block_configs(in_channels=IN_CHANNELS):
    """Static per-residual-unit config: (cin, cout, use_1x1conv, stride)."""
    cfgs = []
    cin = in_channels
    for num_residuals, cout, half in RES_ARCH:
        blk = []
        for i in range(num_residuals):
            if i == 0:
                blk.append((cin, cout, True, 2 if half else 1))
            else:
                blk.append((cout, cout, False, 1))
        cfgs.append(blk)
        cin = cout
    return cfgs, cin


# ---------------------------------------------------------------------------
# Fused (matmul + folded-BN affine [+ residual] [+ ReLU]) Pallas kernels.
# ---------------------------------------------------------------------------
def _mm_affine_kernel(p_ref, w_ref, s_ref, b_ref, o_ref, *, relu):
    acc = jnp.dot(p_ref[...], w_ref[...], preferred_element_type=jnp.float32)
    acc = acc * s_ref[...] + b_ref[...]
    if relu:
        acc = jnp.maximum(acc, 0.0)
    o_ref[...] = acc.astype(o_ref.dtype)


def _mm_affine_res_kernel(p_ref, w_ref, s_ref, b_ref, r_ref, o_ref, *, relu):
    acc = jnp.dot(p_ref[...], w_ref[...], preferred_element_type=jnp.float32)
    acc = acc * s_ref[...] + b_ref[...]
    acc = acc + r_ref[...].astype(jnp.float32)
    if relu:
        acc = jnp.maximum(acc, 0.0)
    o_ref[...] = acc.astype(o_ref.dtype)


def fused_matmul_affine(patches, w_mat, scale, shift, residual=None, relu=True,
                        tile_m=512):
    """out = maybe_relu(patches @ w_mat * scale + shift [+ residual])."""
    M, K = patches.shape
    N = w_mat.shape[1]
    tm = M if M <= tile_m else tile_m
    m_pad = (-M) % tm
    if m_pad:
        patches = jnp.pad(patches, ((0, m_pad), (0, 0)))
        if residual is not None:
            residual = jnp.pad(residual, ((0, m_pad), (0, 0)))
    mp = M + m_pad
    grid = (mp // tm,)

    scale2 = scale.reshape(1, N).astype(jnp.float32)
    shift2 = shift.reshape(1, N).astype(jnp.float32)

    in_specs = [
        pl.BlockSpec((tm, K), lambda i: (i, 0)),   # patches (M tiled)
        pl.BlockSpec((K, N), lambda i: (0, 0)),    # weight (fully resident)
        pl.BlockSpec((1, N), lambda i: (0, 0)),    # scale
        pl.BlockSpec((1, N), lambda i: (0, 0)),    # shift
    ]
    args = [patches, w_mat.astype(jnp.float32), scale2, shift2]
    if residual is not None:
        in_specs.append(pl.BlockSpec((tm, N), lambda i: (i, 0)))
        args.append(residual.astype(jnp.float32))
        kernel = functools.partial(_mm_affine_res_kernel, relu=relu)
    else:
        kernel = functools.partial(_mm_affine_kernel, relu=relu)

    out = pl.pallas_call(
        kernel,
        out_shape=jax.ShapeDtypeStruct((mp, N), jnp.float32),
        grid_spec=pltpu.PrefetchScalarGridSpec(
            num_scalar_prefetch=0,
            grid=grid,
            in_specs=in_specs,
            out_specs=pl.BlockSpec((tm, N), lambda i: (i, 0)),
        ),
        compiler_params=pltpu.CompilerParams(
            dimension_semantics=("parallel",)),
    )(*args)
    return out[:M] if m_pad else out


# ---------------------------------------------------------------------------
# Head kernel: avg-pool + concat(mbh) + Linear(257->128) + Linear(128->1).
# The concat is expressed by splitting W1 into a feature part and an mbh row.
# ---------------------------------------------------------------------------
def _head_kernel(f_ref, mbh_ref, w1_ref, w1m_ref, b1_ref, w2_ref, b2_ref,
                 o_ref, *, inv_hw):
    feats = f_ref[...].astype(jnp.float32)                    # [B, HW, C]
    pooled = jnp.sum(feats, axis=1) * inv_hw                  # [B, C]
    h = jnp.dot(pooled, w1_ref[...], preferred_element_type=jnp.float32)
    h = h + mbh_ref[...] * w1m_ref[...] + b1_ref[...]         # [B, hidden]
    out = jnp.sum(h * w2_ref[...], axis=1, keepdims=True) + b2_ref[...]
    o_ref[...] = out.astype(o_ref.dtype)


def head_forward(feats_nhwc, mbh, params):
    B, H, W, C = feats_nhwc.shape
    HW = H * W
    hidden = params["w1_feat"].shape[1]
    feats = feats_nhwc.reshape(B, HW, C)
    mbh_col = jnp.broadcast_to(
        jnp.asarray(mbh, jnp.float32).reshape(1, 1), (B, 1))
    w2_row = params["w2"].reshape(1, hidden).astype(jnp.float32)

    return pl.pallas_call(
        functools.partial(_head_kernel, inv_hw=1.0 / float(HW)),
        out_shape=jax.ShapeDtypeStruct((B, 1), jnp.float32),
        grid_spec=pltpu.PrefetchScalarGridSpec(
            num_scalar_prefetch=0,
            grid=(1,),
            in_specs=[
                pl.BlockSpec((B, HW, C), lambda i: (0, 0, 0)),
                pl.BlockSpec((B, 1), lambda i: (0, 0)),
                pl.BlockSpec((C, hidden), lambda i: (0, 0)),
                pl.BlockSpec((1, hidden), lambda i: (0, 0)),
                pl.BlockSpec((1, hidden), lambda i: (0, 0)),
                pl.BlockSpec((1, hidden), lambda i: (0, 0)),
                pl.BlockSpec((1, 1), lambda i: (0, 0)),
            ],
            out_specs=pl.BlockSpec((B, 1), lambda i: (0, 0)),
        ),
        compiler_params=pltpu.CompilerParams(
            dimension_semantics=("arbitrary",)),
    )(feats, mbh_col, params["w1_feat"], params["w1_mbh"], params["b1"],
      w2_row, params["b2"])


# ---------------------------------------------------------------------------
# Wrapper-side layout plumbing (im2col, BN fold) and the residual block.
# ---------------------------------------------------------------------------
def _im2col(x, ksize, stride, pad):
    """x: [B, H, W, C] -> ([B*Hout*Wout, ksize*ksize*C], Hout, Wout)."""
    B, H, W, C = x.shape
    if pad:
        x = jnp.pad(x, ((0, 0), (pad, pad), (pad, pad), (0, 0)))
    Hout = (H + 2 * pad - ksize) // stride + 1
    Wout = (W + 2 * pad - ksize) // stride + 1
    cols = []
    for dh in range(ksize):
        for dw in range(ksize):
            cols.append(x[:, dh:dh + stride * Hout:stride,
                          dw:dw + stride * Wout:stride, :])
    patches = jnp.concatenate(cols, axis=-1)
    return patches.reshape(B * Hout * Wout, ksize * ksize * C), Hout, Wout


def _fold_bn(conv_bias, gamma, beta, mean, var, eps=1e-5):
    scale = gamma / jnp.sqrt(var + eps)
    shift = (conv_bias - mean) * scale + beta
    return scale, shift


def residual_forward(x, p, use_1x1conv, stride):
    """One Residual unit: relu(bn2(conv2(relu(bn1(conv1(x))))) + shortcut)."""
    B = x.shape[0]
    cout = p["conv1_w"].shape[-1]

    # conv1 (3x3, stride) + bn1 + relu
    cols1, H1, W1 = _im2col(x, 3, stride, 1)
    s1, b1 = _fold_bn(p["conv1_b"], *p["bn1"])
    y = fused_matmul_affine(cols1, p["conv1_w"].reshape(-1, cout), s1, b1,
                            residual=None, relu=True)
    y = y.reshape(B, H1, W1, cout)

    # shortcut (identity, or 1x1 conv with matching stride)
    if use_1x1conv:
        xs = x[:, ::stride, ::stride, :]
        cin = xs.shape[-1]
        shortcut = fused_matmul_affine(
            xs.reshape(-1, cin), p["conv3_w"].reshape(cin, cout),
            jnp.ones((cout,), jnp.float32), p["conv3_b"],
            residual=None, relu=False)
    else:
        shortcut = x.reshape(-1, cout)

    # conv2 (3x3, stride 1) + bn2 + add shortcut + relu
    cols2, H2, W2 = _im2col(y, 3, 1, 1)
    s2, b2 = _fold_bn(p["conv2_b"], *p["bn2"])
    out = fused_matmul_affine(cols2, p["conv2_w"].reshape(-1, cout), s2, b2,
                              residual=shortcut, relu=True)
    return out.reshape(B, H2, W2, cout)


@jax.jit
def macnet_forward(x_nchw, mbh, params):
    cfgs, _ = block_configs()
    x = jnp.transpose(x_nchw, (0, 2, 3, 1)).astype(jnp.float32)   # NCHW->NHWC
    for blk_cfg, blk_params in zip(cfgs, params["blocks"]):
        for (cin, cout, use_1x1, stride), p in zip(blk_cfg, blk_params):
            x = residual_forward(x, p, use_1x1, stride)
    return head_forward(x, mbh, params)


# ---------------------------------------------------------------------------
# Parameters (deterministic random init, inference-mode BN stats).
# ---------------------------------------------------------------------------
def init_params(key, in_channels=IN_CHANNELS):
    def nrm(k, shape, scale):
        return scale * jax.random.normal(k, shape, dtype=jnp.float32)

    cfgs, feat_c = block_configs(in_channels)
    blocks = []
    for blk_cfg in cfgs:
        blk = []
        for (cin, cout, use_1x1, stride) in blk_cfg:
            key, *ks = jax.random.split(key, 17)
            p = {
                "conv1_w": nrm(ks[0], (3, 3, cin, cout), (9 * cin) ** -0.5),
                "conv1_b": nrm(ks[1], (cout,), 0.02),
                "conv2_w": nrm(ks[2], (3, 3, cout, cout), (9 * cout) ** -0.5),
                "conv2_b": nrm(ks[3], (cout,), 0.02),
                # (gamma, beta, running_mean, running_var)
                "bn1": (1.0 + nrm(ks[4], (cout,), 0.1),
                        nrm(ks[5], (cout,), 0.1),
                        nrm(ks[6], (cout,), 0.1),
                        1.0 + 0.5 * jax.random.uniform(ks[7], (cout,),
                                                       dtype=jnp.float32)),
                "bn2": (1.0 + nrm(ks[8], (cout,), 0.1),
                        nrm(ks[9], (cout,), 0.1),
                        nrm(ks[10], (cout,), 0.1),
                        1.0 + 0.5 * jax.random.uniform(ks[11], (cout,),
                                                       dtype=jnp.float32)),
            }
            if use_1x1:
                p["conv3_w"] = nrm(ks[12], (1, 1, cin, cout), cin ** -0.5)
                p["conv3_b"] = nrm(ks[13], (cout,), 0.02)
            blk.append(p)
        blocks.append(blk)

    hidden = feat_c // 2
    key, k1, k2, k3, k4, k5 = jax.random.split(key, 6)
    return {
        "blocks": blocks,
        "w1_feat": nrm(k1, (feat_c, hidden), (feat_c + 1) ** -0.5),
        "w1_mbh": nrm(k2, (1, hidden), (feat_c + 1) ** -0.5),
        "b1": nrm(k3, (1, hidden), 0.02),
        "w2": nrm(k4, (hidden, 1), hidden ** -0.5),
        "b2": nrm(k5, (1, 1), 0.02),
    }


# ---------------------------------------------------------------------------
# Pure-JAX reference (same inference-mode BN semantics) for validation.
# ---------------------------------------------------------------------------
def _conv2d_ref(x, w, b, stride, pad):
    out = lax.conv_general_dilated(
        x, w, window_strides=(stride, stride),
        padding=((pad, pad), (pad, pad)),
        dimension_numbers=("NHWC", "HWIO", "NHWC"),
        precision=lax.Precision.HIGHEST)
    return out + b


def _bn_ref(x, bn, eps=1e-5):
    gamma, beta, mean, var = bn
    return (x - mean) * (gamma / jnp.sqrt(var + eps)) + beta


def _residual_ref(x, p, use_1x1conv, stride):
    y = jax.nn.relu(_bn_ref(_conv2d_ref(x, p["conv1_w"], p["conv1_b"],
                                        stride, 1), p["bn1"]))
    y = _bn_ref(_conv2d_ref(y, p["conv2_w"], p["conv2_b"], 1, 1), p["bn2"])
    if use_1x1conv:
        x = _conv2d_ref(x, p["conv3_w"], p["conv3_b"], stride, 0)
    return jax.nn.relu(y + x)


def macnet_ref(x_nchw, mbh, params):
    cfgs, _ = block_configs()
    x = jnp.transpose(x_nchw, (0, 2, 3, 1)).astype(jnp.float32)
    for blk_cfg, blk_params in zip(cfgs, params["blocks"]):
        for (cin, cout, use_1x1, stride), p in zip(blk_cfg, blk_params):
            x = _residual_ref(x, p, use_1x1, stride)
    pooled = jnp.mean(x, axis=(1, 2))                              # [B, C]
    B = pooled.shape[0]
    mbh_col = jnp.broadcast_to(
        jnp.asarray(mbh, jnp.float32).reshape(1, 1), (B, 1))
    feat = jnp.concatenate([pooled, mbh_col], axis=1)
    w1 = jnp.concatenate([params["w1_feat"], params["w1_mbh"]], axis=0)
    h = feat @ w1 + params["b1"]
    return h @ params["w2"] + params["b2"]


if __name__ == "__main__":
    key = jax.random.PRNGKey(0)
    kx, kp = jax.random.split(key)
    # NCHW input: batch=2, channels=15 (module default), spatial 16x16.
    x = jax.random.normal(kx, (2, IN_CHANNELS, 16, 16), dtype=jnp.float32)
    mbh = jnp.asarray([0.5], dtype=jnp.float32)   # single mbh scalar feature
    params = init_params(kp)

    out = macnet_forward(x, mbh, params)
    out = jax.block_until_ready(out)
    assert out.shape == (2, 1), out.shape

    ref = macnet_ref(x, mbh, params)
    assert jnp.allclose(out, ref, rtol=1e-2, atol=1e-2), (out, ref)

    print("KERNEL_OK")
</pallas_src>

<mosaic_0001>
module attributes {stable_mosaic.version = 11 : i64} {
  func.func @_mm_affine_kernel(%arg0: i32, %arg1: memref<128x15xf32, #tpu.memory_space<vmem>>, %arg2: memref<15x32xf32, #tpu.memory_space<vmem>>, %arg3: memref<1x32xf32, #tpu.memory_space<vmem>>, %arg4: memref<1x32xf32, #tpu.memory_space<vmem>>, %arg5: memref<128x32xf32, #tpu.memory_space<vmem>>) attributes {dimension_semantics = [#tpu.dimension_semantics<parallel>], iteration_bounds = array<i64: 1>, scalar_prefetch = 0 : i64, scratch_operands = 0 : i64, tpu.core_type = #tpu.core_type<tc>, window_params = [{transform_indices = @transform_0, window_bounds = array<i64: 128, 15>}, {pipeline_mode = #tpu.pipeline_mode<synchronous>, transform_indices = @transform_1, window_bounds = array<i64: 15, 32>}, {pipeline_mode = #tpu.pipeline_mode<synchronous>, transform_indices = @transform_2, window_bounds = array<i64: 1, 32>}, {pipeline_mode = #tpu.pipeline_mode<synchronous>, transform_indices = @transform_3, window_bounds = array<i64: 1, 32>}, {transform_indices = @transform_4, window_bounds = array<i64: 128, 32>}]} {
    %c0 = arith.constant 0 : index
    %c0_0 = arith.constant 0 : index
    %0 = vector.load %arg1[%c0, %c0_0] : memref<128x15xf32, #tpu.memory_space<vmem>>, vector<128x15xf32>
    %c0_1 = arith.constant 0 : index
    %c0_2 = arith.constant 0 : index
    %1 = vector.load %arg2[%c0_1, %c0_2] : memref<15x32xf32, #tpu.memory_space<vmem>>, vector<15x32xf32>
    %cst = arith.constant dense<0.000000e+00> : vector<128x32xf32>
    %2 = tpu.matmul %0, %1, %cst {dimension_numbers = #tpu.dot_dimension_numbers<[1], [0], [0], [1], [0, 0, 1, 1], [], []>} : vector<128x15xf32>, vector<15x32xf32>, vector<128x32xf32> -> vector<128x32xf32>
    %c0_3 = arith.constant 0 : index
    %c0_4 = arith.constant 0 : index
    %3 = vector.load %arg3[%c0_3, %c0_4] : memref<1x32xf32, #tpu.memory_space<vmem>>, vector<1x32xf32>
    %4 = vector.broadcast %3 : vector<1x32xf32> to vector<128x32xf32>
    %5 = arith.mulf %2, %4 : vector<128x32xf32>
    %c0_5 = arith.constant 0 : index
    %c0_6 = arith.constant 0 : index
    %6 = vector.load %arg4[%c0_5, %c0_6] : memref<1x32xf32, #tpu.memory_space<vmem>>, vector<1x32xf32>
    %7 = vector.broadcast %6 : vector<1x32xf32> to vector<128x32xf32>
    %8 = arith.addf %5, %7 : vector<128x32xf32>
    %c0_7 = arith.constant 0 : index
    %c0_8 = arith.constant 0 : index
    %9 = vector.load %arg5[%c0_7, %c0_8] : memref<128x32xf32, #tpu.memory_space<vmem>>, vector<128x32xf32>
    tpu.vector_store %arg5[%c0_7, %c0_8], %8 {strides = array<i32>} : memref<128x32xf32, #tpu.memory_space<vmem>>, vector<128x32xf32>,
    return
  }
  func.func @transform_0(%arg0: i32) -> (i32, i32) {
    %c0_i32 = arith.constant 0 : i32
    %c0_i32_0 = arith.constant 0 : i32
    return %arg0, %c0_i32 : i32, i32
  }
  func.func @transform_1(%arg0: i32) -> (i32, i32) {
    %c0_i32 = arith.constant 0 : i32
    %c0_i32_0 = arith.constant 0 : i32
    %c0_i32_1 = arith.constant 0 : i32
    return %c0_i32, %c0_i32_0 : i32, i32
  }
  func.func @transform_2(%arg0: i32) -> (i32, i32) {
    %c0_i32 = arith.constant 0 : i32
    %c0_i32_0 = arith.constant 0 : i32
    %c0_i32_1 = arith.constant 0 : i32
    return %c0_i32, %c0_i32_0 : i32, i32
  }
  func.func @transform_3(%arg0: i32) -> (i32, i32) {
    %c0_i32 = arith.constant 0 : i32
    %c0_i32_0 = arith.constant 0 : i32
    %c0_i32_1 = arith.constant 0 : i32
    return %c0_i32, %c0_i32_0 : i32, i32
  }
  func.func @transform_4(%arg0: i32) -> (i32, i32) {
    %c0_i32 = arith.constant 0 : i32
    %c0_i32_0 = arith.constant 0 : i32
    return %arg0, %c0_i32 : i32, i32
  }
}

module attributes {stable_mosaic.version = 11 : i64} {
  func.func @_mm_affine_kernel(%arg0: i32, %arg1: memref<128x135xf32, #tpu.memory_space<vmem>>, %arg2: memref<135x32xf32, #tpu.memory_space<vmem>>, %arg3: memref<1x32xf32, #tpu.memory_space<vmem>>, %arg4: memref<1x32xf32, #tpu.memory_space<vmem>>, %arg5: memref<128x32xf32, #tpu.memory_space<vmem>>) attributes {dimension_semantics = [#tpu.dimension_semantics<parallel>], iteration_bounds = array<i64: 1>, scalar_prefetch = 0 : i64, scratch_operands = 0 : i64, tpu.core_type = #tpu.core_type<tc>, window_params = [{transform_indices = @transform_0, window_bounds = array<i64: 128, 135>}, {pipeline_mode = #tpu.pipeline_mode<synchronous>, transform_indices = @transform_1, window_bounds = array<i64: 135, 32>}, {pipeline_mode = #tpu.pipeline_mode<synchronous>, transform_indices = @transform_2, window_bounds = array<i64: 1, 32>}, {pipeline_mode = #tpu.pipeline_mode<synchronous>, transform_indices = @transform_3, window_bounds = array<i64: 1, 32>}, {transform_indices = @transform_4, window_bounds = array<i64: 128, 32>}]} {
    %c0 = arith.constant 0 : index
    %c0_0 = arith.constant 0 : index
    %0 = vector.load %arg1[%c0, %c0_0] : memref<128x135xf32, #tpu.memory_space<vmem>>, vector<128x135xf32>
    %c0_1 = arith.constant 0 : index
    %c0_2 = arith.constant 0 : index
    %1 = vector.load %arg2[%c0_1, %c0_2] : memref<135x32xf32, #tpu.memory_space<vmem>>, vector<135x32xf32>
    %cst = arith.constant dense<0.000000e+00> : vector<128x32xf32>
    %2 = tpu.matmul %0, %1, %cst {dimension_numbers = #tpu.dot_dimension_numbers<[1], [0], [0], [1], [0, 0, 1, 1], [], []>} : vector<128x135xf32>, vector<135x32xf32>, vector<128x32xf32> -> vector<128x32xf32>
    %c0_3 = arith.constant 0 : index
    %c0_4 = arith.constant 0 : index
    %3 = vector.load %arg3[%c0_3, %c0_4] : memref<1x32xf32, #tpu.memory_space<vmem>>, vector<1x32xf32>
    %4 = vector.broadcast %3 : vector<1x32xf32> to vector<128x32xf32>
    %5 = arith.mulf %2, %4 : vector<128x32xf32>
    %c0_5 = arith.constant 0 : index
    %c0_6 = arith.constant 0 : index
    %6 = vector.load %arg4[%c0_5, %c0_6] : memref<1x32xf32, #tpu.memory_space<vmem>>, vector<1x32xf32>
    %7 = vector.broadcast %6 : vector<1x32xf32> to vector<128x32xf32>
    %8 = arith.addf %5, %7 : vector<128x32xf32>
    %cst_7 = arith.constant 0.000000e+00 : f32
    %9 = vector.broadcast %cst_7 : f32 to vector<128x32xf32>
    %10 = arith.maximumf %8, %9 : vector<128x32xf32>
    %c0_8 = arith.constant 0 : index
    %c0_9 = arith.constant 0 : index
    %11 = vector.load %arg5[%c0_8, %c0_9] : memref<128x32xf32, #tpu.memory_space<vmem>>, vector<128x32xf32>
    tpu.vector_store %arg5[%c0_8, %c0_9], %10 {strides = array<i32>} : memref<128x32xf32, #tpu.memory_space<vmem>>, vector<128x32xf32>,
    return
  }
  func.func @transform_0(%arg0: i32) -> (i32, i32) {
    %c0_i32 = arith.constant 0 : i32
    %c0_i32_0 = arith.constant 0 : i32
    return %arg0, %c0_i32 : i32, i32
  }
  func.func @transform_1(%arg0: i32) -> (i32, i32) {
    %c0_i32 = arith.constant 0 : i32
    %c0_i32_0 = arith.constant 0 : i32
    %c0_i32_1 = arith.constant 0 : i32
    return %c0_i32, %c0_i32_0 : i32, i32
  }
  func.func @transform_2(%arg0: i32) -> (i32, i32) {
    %c0_i32 = arith.constant 0 : i32
    %c0_i32_0 = arith.constant 0 : i32
    %c0_i32_1 = arith.constant 0 : i32
    return %c0_i32, %c0_i32_0 : i32, i32
  }
  func.func @transform_3(%arg0: i32) -> (i32, i32) {
    %c0_i32 = arith.constant 0 : i32
    %c0_i32_0 = arith.constant 0 : i32
    %c0_i32_1 = arith.constant 0 : i32
    return %c0_i32, %c0_i32_0 : i32, i32
  }
  func.func @transform_4(%arg0: i32) -> (i32, i32) {
    %c0_i32 = arith.constant 0 : i32
    %c0_i32_0 = arith.constant 0 : i32
    return %arg0, %c0_i32 : i32, i32
  }
}

module attributes {stable_mosaic.version = 11 : i64} {
  func.func @_mm_affine_res_kernel(%arg0: i32, %arg1: memref<128x288xf32, #tpu.memory_space<vmem>>, %arg2: memref<288x32xf32, #tpu.memory_space<vmem>>, %arg3: memref<1x32xf32, #tpu.memory_space<vmem>>, %arg4: memref<1x32xf32, #tpu.memory_space<vmem>>, %arg5: memref<128x32xf32, #tpu.memory_space<vmem>>, %arg6: memref<128x32xf32, #tpu.memory_space<vmem>>) attributes {dimension_semantics = [#tpu.dimension_semantics<parallel>], iteration_bounds = array<i64: 1>, scalar_prefetch = 0 : i64, scratch_operands = 0 : i64, tpu.core_type = #tpu.core_type<tc>, window_params = [{transform_indices = @transform_0, window_bounds = array<i64: 128, 288>}, {pipeline_mode = #tpu.pipeline_mode<synchronous>, transform_indices = @transform_1, window_bounds = array<i64: 288, 32>}, {pipeline_mode = #tpu.pipeline_mode<synchronous>, transform_indices = @transform_2, window_bounds = array<i64: 1, 32>}, {pipeline_mode = #tpu.pipeline_mode<synchronous>, transform_indices = @transform_3, window_bounds = array<i64: 1, 32>}, {transform_indices = @transform_4, window_bounds = array<i64: 128, 32>}, {transform_indices = @transform_5, window_bounds = array<i64: 128, 32>}]} {
    %c0 = arith.constant 0 : index
    %c0_0 = arith.constant 0 : index
    %0 = vector.load %arg1[%c0, %c0_0] : memref<128x288xf32, #tpu.memory_space<vmem>>, vector<128x288xf32>
    %c0_1 = arith.constant 0 : index
    %c0_2 = arith.constant 0 : index
    %1 = vector.load %arg2[%c0_1, %c0_2] : memref<288x32xf32, #tpu.memory_space<vmem>>, vector<288x32xf32>
    %cst = arith.constant dense<0.000000e+00> : vector<128x32xf32>
    %2 = tpu.matmul %0, %1, %cst {dimension_numbers = #tpu.dot_dimension_numbers<[1], [0], [0], [1], [0, 0, 1, 1], [], []>} : vector<128x288xf32>, vector<288x32xf32>, vector<128x32xf32> -> vector<128x32xf32>
    %c0_3 = arith.constant 0 : index
    %c0_4 = arith.constant 0 : index
    %3 = vector.load %arg3[%c0_3, %c0_4] : memref<1x32xf32, #tpu.memory_space<vmem>>, vector<1x32xf32>
    %4 = vector.broadcast %3 : vector<1x32xf32> to vector<128x32xf32>
    %5 = arith.mulf %2, %4 : vector<128x32xf32>
    %c0_5 = arith.constant 0 : index
    %c0_6 = arith.constant 0 : index
    %6 = vector.load %arg4[%c0_5, %c0_6] : memref<1x32xf32, #tpu.memory_space<vmem>>, vector<1x32xf32>
    %7 = vector.broadcast %6 : vector<1x32xf32> to vector<128x32xf32>
    %8 = arith.addf %5, %7 : vector<128x32xf32>
    %c0_7 = arith.constant 0 : index
    %c0_8 = arith.constant 0 : index
    %9 = vector.load %arg5[%c0_7, %c0_8] : memref<128x32xf32, #tpu.memory_space<vmem>>, vector<128x32xf32>
    %10 = arith.addf %8, %9 : vector<128x32xf32>
    %cst_9 = arith.constant 0.000000e+00 : f32
    %11 = vector.broadcast %cst_9 : f32 to vector<128x32xf32>
    %12 = arith.maximumf %10, %11 : vector<128x32xf32>
    %c0_10 = arith.constant 0 : index
    %c0_11 = arith.constant 0 : index
    %13 = vector.load %arg6[%c0_10, %c0_11] : memref<128x32xf32, #tpu.memory_space<vmem>>, vector<128x32xf32>
    tpu.vector_store %arg6[%c0_10, %c0_11], %12 {strides = array<i32>} : memref<128x32xf32, #tpu.memory_space<vmem>>, vector<128x32xf32>,
    return
  }
  func.func @transform_0(%arg0: i32) -> (i32, i32) {
    %c0_i32 = arith.constant 0 : i32
    %c0_i32_0 = arith.constant 0 : i32
    return %arg0, %c0_i32 : i32, i32
  }
  func.func @transform_1(%arg0: i32) -> (i32, i32) {
    %c0_i32 = arith.constant 0 : i32
    %c0_i32_0 = arith.constant 0 : i32
    %c0_i32_1 = arith.constant 0 : i32
    return %c0_i32, %c0_i32_0 : i32, i32
  }
  func.func @transform_2(%arg0: i32) -> (i32, i32) {
    %c0_i32 = arith.constant 0 : i32
    %c0_i32_0 = arith.constant 0 : i32
    %c0_i32_1 = arith.constant 0 : i32
    return %c0_i32, %c0_i32_0 : i32, i32
  }
  func.func @transform_3(%arg0: i32) -> (i32, i32) {
    %c0_i32 = arith.constant 0 : i32
    %c0_i32_0 = arith.constant 0 : i32
    %c0_i32_1 = arith.constant 0 : i32
    return %c0_i32, %c0_i32_0 : i32, i32
  }
  func.func @transform_4(%arg0: i32) -> (i32, i32) {
    %c0_i32 = arith.constant 0 : i32
    %c0_i32_0 = arith.constant 0 : i32
    return %arg0, %c0_i32 : i32, i32
  }
  func.func @transform_5(%arg0: i32) -> (i32, i32) {
    %c0_i32 = arith.constant 0 : i32
    %c0_i32_0 = arith.constant 0 : i32
    return %arg0, %c0_i32 : i32, i32
  }
}

module attributes {stable_mosaic.version = 11 : i64} {
  func.func @_mm_affine_kernel(%arg0: i32, %arg1: memref<128x288xf32, #tpu.memory_space<vmem>>, %arg2: memref<288x32xf32, #tpu.memory_space<vmem>>, %arg3: memref<1x32xf32, #tpu.memory_space<vmem>>, %arg4: memref<1x32xf32, #tpu.memory_space<vmem>>, %arg5: memref<128x32xf32, #tpu.memory_space<vmem>>) attributes {dimension_semantics = [#tpu.dimension_semantics<parallel>], iteration_bounds = array<i64: 1>, scalar_prefetch = 0 : i64, scratch_operands = 0 : i64, tpu.core_type = #tpu.core_type<tc>, window_params = [{transform_indices = @transform_0, window_bounds = array<i64: 128, 288>}, {pipeline_mode = #tpu.pipeline_mode<synchronous>, transform_indices = @transform_1, window_bounds = array<i64: 288, 32>}, {pipeline_mode = #tpu.pipeline_mode<synchronous>, transform_indices = @transform_2, window_bounds = array<i64: 1, 32>}, {pipeline_mode = #tpu.pipeline_mode<synchronous>, transform_indices = @transform_3, window_bounds = array<i64: 1, 32>}, {transform_indices = @transform_4, window_bounds = array<i64: 128, 32>}]} {
    %c0 = arith.constant 0 : index
    %c0_0 = arith.constant 0 : index
    %0 = vector.load %arg1[%c0, %c0_0] : memref<128x288xf32, #tpu.memory_space<vmem>>, vector<128x288xf32>
    %c0_1 = arith.constant 0 : index
    %c0_2 = arith.constant 0 : index
    %1 = vector.load %arg2[%c0_1, %c0_2] : memref<288x32xf32, #tpu.memory_space<vmem>>, vector<288x32xf32>
    %cst = arith.constant dense<0.000000e+00> : vector<128x32xf32>
    %2 = tpu.matmul %0, %1, %cst {dimension_numbers = #tpu.dot_dimension_numbers<[1], [0], [0], [1], [0, 0, 1, 1], [], []>} : vector<128x288xf32>, vector<288x32xf32>, vector<128x32xf32> -> vector<128x32xf32>
    %c0_3 = arith.constant 0 : index
    %c0_4 = arith.constant 0 : index
    %3 = vector.load %arg3[%c0_3, %c0_4] : memref<1x32xf32, #tpu.memory_space<vmem>>, vector<1x32xf32>
    %4 = vector.broadcast %3 : vector<1x32xf32> to vector<128x32xf32>
    %5 = arith.mulf %2, %4 : vector<128x32xf32>
    %c0_5 = arith.constant 0 : index
    %c0_6 = arith.constant 0 : index
    %6 = vector.load %arg4[%c0_5, %c0_6] : memref<1x32xf32, #tpu.memory_space<vmem>>, vector<1x32xf32>
    %7 = vector.broadcast %6 : vector<1x32xf32> to vector<128x32xf32>
    %8 = arith.addf %5, %7 : vector<128x32xf32>
    %cst_7 = arith.constant 0.000000e+00 : f32
    %9 = vector.broadcast %cst_7 : f32 to vector<128x32xf32>
    %10 = arith.maximumf %8, %9 : vector<128x32xf32>
    %c0_8 = arith.constant 0 : index
    %c0_9 = arith.constant 0 : index
    %11 = vector.load %arg5[%c0_8, %c0_9] : memref<128x32xf32, #tpu.memory_space<vmem>>, vector<128x32xf32>
    tpu.vector_store %arg5[%c0_8, %c0_9], %10 {strides = array<i32>} : memref<128x32xf32, #tpu.memory_space<vmem>>, vector<128x32xf32>,
    return
  }
  func.func @transform_0(%arg0: i32) -> (i32, i32) {
    %c0_i32 = arith.constant 0 : i32
    %c0_i32_0 = arith.constant 0 : i32
    return %arg0, %c0_i32 : i32, i32
  }
  func.func @transform_1(%arg0: i32) -> (i32, i32) {
    %c0_i32 = arith.constant 0 : i32
    %c0_i32_0 = arith.constant 0 : i32
    %c0_i32_1 = arith.constant 0 : i32
    return %c0_i32, %c0_i32_0 : i32, i32
  }
  func.func @transform_2(%arg0: i32) -> (i32, i32) {
    %c0_i32 = arith.constant 0 : i32
    %c0_i32_0 = arith.constant 0 : i32
    %c0_i32_1 = arith.constant 0 : i32
    return %c0_i32, %c0_i32_0 : i32, i32
  }
  func.func @transform_3(%arg0: i32) -> (i32, i32) {
    %c0_i32 = arith.constant 0 : i32
    %c0_i32_0 = arith.constant 0 : i32
    %c0_i32_1 = arith.constant 0 : i32
    return %c0_i32, %c0_i32_0 : i32, i32
  }
  func.func @transform_4(%arg0: i32) -> (i32, i32) {
    %c0_i32 = arith.constant 0 : i32
    %c0_i32_0 = arith.constant 0 : i32
    return %arg0, %c0_i32 : i32, i32
  }
}

module attributes {stable_mosaic.version = 11 : i64} {
  func.func @_mm_affine_kernel(%arg0: i32, %arg1: memref<32x32xf32, #tpu.memory_space<vmem>>, %arg2: memref<32x64xf32, #tpu.memory_space<vmem>>, %arg3: memref<1x64xf32, #tpu.memory_space<vmem>>, %arg4: memref<1x64xf32, #tpu.memory_space<vmem>>, %arg5: memref<32x64xf32, #tpu.memory_space<vmem>>) attributes {dimension_semantics = [#tpu.dimension_semantics<parallel>], iteration_bounds = array<i64: 1>, scalar_prefetch = 0 : i64, scratch_operands = 0 : i64, tpu.core_type = #tpu.core_type<tc>, window_params = [{transform_indices = @transform_0, window_bounds = array<i64: 32, 32>}, {pipeline_mode = #tpu.pipeline_mode<synchronous>, transform_indices = @transform_1, window_bounds = array<i64: 32, 64>}, {pipeline_mode = #tpu.pipeline_mode<synchronous>, transform_indices = @transform_2, window_bounds = array<i64: 1, 64>}, {pipeline_mode = #tpu.pipeline_mode<synchronous>, transform_indices = @transform_3, window_bounds = array<i64: 1, 64>}, {transform_indices = @transform_4, window_bounds = array<i64: 32, 64>}]} {
    %c0 = arith.constant 0 : index
    %c0_0 = arith.constant 0 : index
    %0 = vector.load %arg1[%c0, %c0_0] : memref<32x32xf32, #tpu.memory_space<vmem>>, vector<32x32xf32>
    %c0_1 = arith.constant 0 : index
    %c0_2 = arith.constant 0 : index
    %1 = vector.load %arg2[%c0_1, %c0_2] : memref<32x64xf32, #tpu.memory_space<vmem>>, vector<32x64xf32>
    %cst = arith.constant dense<0.000000e+00> : vector<32x64xf32>
    %2 = tpu.matmul %0, %1, %cst {dimension_numbers = #tpu.dot_dimension_numbers<[1], [0], [0], [1], [0, 0, 1, 1], [], []>} : vector<32x32xf32>, vector<32x64xf32>, vector<32x64xf32> -> vector<32x64xf32>
    %c0_3 = arith.constant 0 : index
    %c0_4 = arith.constant 0 : index
    %3 = vector.load %arg3[%c0_3, %c0_4] : memref<1x64xf32, #tpu.memory_space<vmem>>, vector<1x64xf32>
    %4 = vector.broadcast %3 : vector<1x64xf32> to vector<32x64xf32>
    %5 = arith.mulf %2, %4 : vector<32x64xf32>
    %c0_5 = arith.constant 0 : index
    %c0_6 = arith.constant 0 : index
    %6 = vector.load %arg4[%c0_5, %c0_6] : memref<1x64xf32, #tpu.memory_space<vmem>>, vector<1x64xf32>
    %7 = vector.broadcast %6 : vector<1x64xf32> to vector<32x64xf32>
    %8 = arith.addf %5, %7 : vector<32x64xf32>
    %c0_7 = arith.constant 0 : index
    %c0_8 = arith.constant 0 : index
    %9 = vector.load %arg5[%c0_7, %c0_8] : memref<32x64xf32, #tpu.memory_space<vmem>>, vector<32x64xf32>
    tpu.vector_store %arg5[%c0_7, %c0_8], %8 {strides = array<i32>} : memref<32x64xf32, #tpu.memory_space<vmem>>, vector<32x64xf32>,
    return
  }
  func.func @transform_0(%arg0: i32) -> (i32, i32) {
    %c0_i32 = arith.constant 0 : i32
    %c0_i32_0 = arith.constant 0 : i32
    return %arg0, %c0_i32 : i32, i32
  }
  func.func @transform_1(%arg0: i32) -> (i32, i32) {
    %c0_i32 = arith.constant 0 : i32
    %c0_i32_0 = arith.constant 0 : i32
    %c0_i32_1 = arith.constant 0 : i32
    return %c0_i32, %c0_i32_0 : i32, i32
  }
  func.func @transform_2(%arg0: i32) -> (i32, i32) {
    %c0_i32 = arith.constant 0 : i32
    %c0_i32_0 = arith.constant 0 : i32
    %c0_i32_1 = arith.constant 0 : i32
    return %c0_i32, %c0_i32_0 : i32, i32
  }
  func.func @transform_3(%arg0: i32) -> (i32, i32) {
    %c0_i32 = arith.constant 0 : i32
    %c0_i32_0 = arith.constant 0 : i32
    %c0_i32_1 = arith.constant 0 : i32
    return %c0_i32, %c0_i32_0 : i32, i32
  }
  func.func @transform_4(%arg0: i32) -> (i32, i32) {
    %c0_i32 = arith.constant 0 : i32
    %c0_i32_0 = arith.constant 0 : i32
    return %arg0, %c0_i32 : i32, i32
  }
}

module attributes {stable_mosaic.version = 11 : i64} {
  func.func @_mm_affine_kernel(%arg0: i32, %arg1: memref<32x288xf32, #tpu.memory_space<vmem>>, %arg2: memref<288x64xf32, #tpu.memory_space<vmem>>, %arg3: memref<1x64xf32, #tpu.memory_space<vmem>>, %arg4: memref<1x64xf32, #tpu.memory_space<vmem>>, %arg5: memref<32x64xf32, #tpu.memory_space<vmem>>) attributes {dimension_semantics = [#tpu.dimension_semantics<parallel>], iteration_bounds = array<i64: 1>, scalar_prefetch = 0 : i64, scratch_operands = 0 : i64, tpu.core_type = #tpu.core_type<tc>, window_params = [{transform_indices = @transform_0, window_bounds = array<i64: 32, 288>}, {pipeline_mode = #tpu.pipeline_mode<synchronous>, transform_indices = @transform_1, window_bounds = array<i64: 288, 64>}, {pipeline_mode = #tpu.pipeline_mode<synchronous>, transform_indices = @transform_2, window_bounds = array<i64: 1, 64>}, {pipeline_mode = #tpu.pipeline_mode<synchronous>, transform_indices = @transform_3, window_bounds = array<i64: 1, 64>}, {transform_indices = @transform_4, window_bounds = array<i64: 32, 64>}]} {
    %c0 = arith.constant 0 : index
    %c0_0 = arith.constant 0 : index
    %0 = vector.load %arg1[%c0, %c0_0] : memref<32x288xf32, #tpu.memory_space<vmem>>, vector<32x288xf32>
    %c0_1 = arith.constant 0 : index
    %c0_2 = arith.constant 0 : index
    %1 = vector.load %arg2[%c0_1, %c0_2] : memref<288x64xf32, #tpu.memory_space<vmem>>, vector<288x64xf32>
    %cst = arith.constant dense<0.000000e+00> : vector<32x64xf32>
    %2 = tpu.matmul %0, %1, %cst {dimension_numbers = #tpu.dot_dimension_numbers<[1], [0], [0], [1], [0, 0, 1, 1], [], []>} : vector<32x288xf32>, vector<288x64xf32>, vector<32x64xf32> -> vector<32x64xf32>
    %c0_3 = arith.constant 0 : index
    %c0_4 = arith.constant 0 : index
    %3 = vector.load %arg3[%c0_3, %c0_4] : memref<1x64xf32, #tpu.memory_space<vmem>>, vector<1x64xf32>
    %4 = vector.broadcast %3 : vector<1x64xf32> to vector<32x64xf32>
    %5 = arith.mulf %2, %4 : vector<32x64xf32>
    %c0_5 = arith.constant 0 : index
    %c0_6 = arith.constant 0 : index
    %6 = vector.load %arg4[%c0_5, %c0_6] : memref<1x64xf32, #tpu.memory_space<vmem>>, vector<1x64xf32>
    %7 = vector.broadcast %6 : vector<1x64xf32> to vector<32x64xf32>
    %8 = arith.addf %5, %7 : vector<32x64xf32>
    %cst_7 = arith.constant 0.000000e+00 : f32
    %9 = vector.broadcast %cst_7 : f32 to vector<32x64xf32>
    %10 = arith.maximumf %8, %9 : vector<32x64xf32>
    %c0_8 = arith.constant 0 : index
    %c0_9 = arith.constant 0 : index
    %11 = vector.load %arg5[%c0_8, %c0_9] : memref<32x64xf32, #tpu.memory_space<vmem>>, vector<32x64xf32>
    tpu.vector_store %arg5[%c0_8, %c0_9], %10 {strides = array<i32>} : memref<32x64xf32, #tpu.memory_space<vmem>>, vector<32x64xf32>,
    return
  }
  func.func @transform_0(%arg0: i32) -> (i32, i32) {
    %c0_i32 = arith.constant 0 : i32
    %c0_i32_0 = arith.constant 0 : i32
    return %arg0, %c0_i32 : i32, i32
  }
  func.func @transform_1(%arg0: i32) -> (i32, i32) {
    %c0_i32 = arith.constant 0 : i32
    %c0_i32_0 = arith.constant 0 : i32
    %c0_i32_1 = arith.constant 0 : i32
    return %c0_i32, %c0_i32_0 : i32, i32
  }
  func.func @transform_2(%arg0: i32) -> (i32, i32) {
    %c0_i32 = arith.constant 0 : i32
    %c0_i32_0 = arith.constant 0 : i32
    %c0_i32_1 = arith.constant 0 : i32
    return %c0_i32, %c0_i32_0 : i32, i32
  }
  func.func @transform_3(%arg0: i32) -> (i32, i32) {
    %c0_i32 = arith.constant 0 : i32
    %c0_i32_0 = arith.constant 0 : i32
    %c0_i32_1 = arith.constant 0 : i32
    return %c0_i32, %c0_i32_0 : i32, i32
  }
  func.func @transform_4(%arg0: i32) -> (i32, i32) {
    %c0_i32 = arith.constant 0 : i32
    %c0_i32_0 = arith.constant 0 : i32
    return %arg0, %c0_i32 : i32, i32
  }
}

module attributes {stable_mosaic.version = 11 : i64} {
  func.func @_mm_affine_res_kernel(%arg0: i32, %arg1: memref<32x576xf32, #tpu.memory_space<vmem>>, %arg2: memref<576x64xf32, #tpu.memory_space<vmem>>, %arg3: memref<1x64xf32, #tpu.memory_space<vmem>>, %arg4: memref<1x64xf32, #tpu.memory_space<vmem>>, %arg5: memref<32x64xf32, #tpu.memory_space<vmem>>, %arg6: memref<32x64xf32, #tpu.memory_space<vmem>>) attributes {dimension_semantics = [#tpu.dimension_semantics<parallel>], iteration_bounds = array<i64: 1>, scalar_prefetch = 0 : i64, scratch_operands = 0 : i64, tpu.core_type = #tpu.core_type<tc>, window_params = [{transform_indices = @transform_0, window_bounds = array<i64: 32, 576>}, {pipeline_mode = #tpu.pipeline_mode<synchronous>, transform_indices = @transform_1, window_bounds = array<i64: 576, 64>}, {pipeline_mode = #tpu.pipeline_mode<synchronous>, transform_indices = @transform_2, window_bounds = array<i64: 1, 64>}, {pipeline_mode = #tpu.pipeline_mode<synchronous>, transform_indices = @transform_3, window_bounds = array<i64: 1, 64>}, {transform_indices = @transform_4, window_bounds = array<i64: 32, 64>}, {transform_indices = @transform_5, window_bounds = array<i64: 32, 64>}]} {
    %c0 = arith.constant 0 : index
    %c0_0 = arith.constant 0 : index
    %0 = vector.load %arg1[%c0, %c0_0] : memref<32x576xf32, #tpu.memory_space<vmem>>, vector<32x576xf32>
    %c0_1 = arith.constant 0 : index
    %c0_2 = arith.constant 0 : index
    %1 = vector.load %arg2[%c0_1, %c0_2] : memref<576x64xf32, #tpu.memory_space<vmem>>, vector<576x64xf32>
    %cst = arith.constant dense<0.000000e+00> : vector<32x64xf32>
    %2 = tpu.matmul %0, %1, %cst {dimension_numbers = #tpu.dot_dimension_numbers<[1], [0], [0], [1], [0, 0, 1, 1], [], []>} : vector<32x576xf32>, vector<576x64xf32>, vector<32x64xf32> -> vector<32x64xf32>
    %c0_3 = arith.constant 0 : index
    %c0_4 = arith.constant 0 : index
    %3 = vector.load %arg3[%c0_3, %c0_4] : memref<1x64xf32, #tpu.memory_space<vmem>>, vector<1x64xf32>
    %4 = vector.broadcast %3 : vector<1x64xf32> to vector<32x64xf32>
    %5 = arith.mulf %2, %4 : vector<32x64xf32>
    %c0_5 = arith.constant 0 : index
    %c0_6 = arith.constant 0 : index
    %6 = vector.load %arg4[%c0_5, %c0_6] : memref<1x64xf32, #tpu.memory_space<vmem>>, vector<1x64xf32>
    %7 = vector.broadcast %6 : vector<1x64xf32> to vector<32x64xf32>
    %8 = arith.addf %5, %7 : vector<32x64xf32>
    %c0_7 = arith.constant 0 : index
    %c0_8 = arith.constant 0 : index
    %9 = vector.load %arg5[%c0_7, %c0_8] : memref<32x64xf32, #tpu.memory_space<vmem>>, vector<32x64xf32>
    %10 = arith.addf %8, %9 : vector<32x64xf32>
    %cst_9 = arith.constant 0.000000e+00 : f32
    %11 = vector.broadcast %cst_9 : f32 to vector<32x64xf32>
    %12 = arith.maximumf %10, %11 : vector<32x64xf32>
    %c0_10 = arith.constant 0 : index
    %c0_11 = arith.constant 0 : index
    %13 = vector.load %arg6[%c0_10, %c0_11] : memref<32x64xf32, #tpu.memory_space<vmem>>, vector<32x64xf32>
    tpu.vector_store %arg6[%c0_10, %c0_11], %12 {strides = array<i32>} : memref<32x64xf32, #tpu.memory_space<vmem>>, vector<32x64xf32>,
    return
  }
  func.func @transform_0(%arg0: i32) -> (i32, i32) {
    %c0_i32 = arith.constant 0 : i32
    %c0_i32_0 = arith.constant 0 : i32
    return %arg0, %c0_i32 : i32, i32
  }
  func.func @transform_1(%arg0: i32) -> (i32, i32) {
    %c0_i32 = arith.constant 0 : i32
    %c0_i32_0 = arith.constant 0 : i32
    %c0_i32_1 = arith.constant 0 : i32
    return %c0_i32, %c0_i32_0 : i32, i32
  }
  func.func @transform_2(%arg0: i32) -> (i32, i32) {
    %c0_i32 = arith.constant 0 : i32
    %c0_i32_0 = arith.constant 0 : i32
    %c0_i32_1 = arith.constant 0 : i32
    return %c0_i32, %c0_i32_0 : i32, i32
  }
  func.func @transform_3(%arg0: i32) -> (i32, i32) {
    %c0_i32 = arith.constant 0 : i32
    %c0_i32_0 = arith.constant 0 : i32
    %c0_i32_1 = arith.constant 0 : i32
    return %c0_i32, %c0_i32_0 : i32, i32
  }
  func.func @transform_4(%arg0: i32) -> (i32, i32) {
    %c0_i32 = arith.constant 0 : i32
    %c0_i32_0 = arith.constant 0 : i32
    return %arg0, %c0_i32 : i32, i32
  }
  func.func @transform_5(%arg0: i32) -> (i32, i32) {
    %c0_i32 = arith.constant 0 : i32
    %c0_i32_0 = arith.constant 0 : i32
    return %arg0, %c0_i32 : i32, i32
  }
}

module attributes {stable_mosaic.version = 11 : i64} {
  func.func @_mm_affine_kernel(%arg0: i32, %arg1: memref<32x64xf32, #tpu.memory_space<vmem>>, %arg2: memref<64x128xf32, #tpu.memory_space<vmem>>, %arg3: memref<1x128xf32, #tpu.memory_space<vmem>>, %arg4: memref<1x128xf32, #tpu.memory_space<vmem>>, %arg5: memref<32x128xf32, #tpu.memory_space<vmem>>) attributes {dimension_semantics = [#tpu.dimension_semantics<parallel>], iteration_bounds = array<i64: 1>, scalar_prefetch = 0 : i64, scratch_operands = 0 : i64, tpu.core_type = #tpu.core_type<tc>, window_params = [{transform_indices = @transform_0, window_bounds = array<i64: 32, 64>}, {pipeline_mode = #tpu.pipeline_mode<synchronous>, transform_indices = @transform_1, window_bounds = array<i64: 64, 128>}, {pipeline_mode = #tpu.pipeline_mode<synchronous>, transform_indices = @transform_2, window_bounds = array<i64: 1, 128>}, {pipeline_mode = #tpu.pipeline_mode<synchronous>, transform_indices = @transform_3, window_bounds = array<i64: 1, 128>}, {transform_indices = @transform_4, window_bounds = array<i64: 32, 128>}]} {
    %c0 = arith.constant 0 : index
    %c0_0 = arith.constant 0 : index
    %0 = vector.load %arg1[%c0, %c0_0] : memref<32x64xf32, #tpu.memory_space<vmem>>, vector<32x64xf32>
    %c0_1 = arith.constant 0 : index
    %c0_2 = arith.constant 0 : index
    %1 = vector.load %arg2[%c0_1, %c0_2] : memref<64x128xf32, #tpu.memory_space<vmem>>, vector<64x128xf32>
    %cst = arith.constant dense<0.000000e+00> : vector<32x128xf32>
    %2 = tpu.matmul %0, %1, %cst {dimension_numbers = #tpu.dot_dimension_numbers<[1], [0], [0], [1], [0, 0, 1, 1], [], []>} : vector<32x64xf32>, vector<64x128xf32>, vector<32x128xf32> -> vector<32x128xf32>
    %c0_3 = arith.constant 0 : index
    %c0_4 = arith.constant 0 : index
    %3 = vector.load %arg3[%c0_3, %c0_4] : memref<1x128xf32, #tpu.memory_space<vmem>>, vector<1x128xf32>
    %4 = vector.broadcast %3 : vector<1x128xf32> to vector<32x128xf32>
    %5 = arith.mulf %2, %4 : vector<32x128xf32>
    %c0_5 = arith.constant 0 : index
    %c0_6 = arith.constant 0 : index
    %6 = vector.load %arg4[%c0_5, %c0_6] : memref<1x128xf32, #tpu.memory_space<vmem>>, vector<1x128xf32>
    %7 = vector.broadcast %6 : vector<1x128xf32> to vector<32x128xf32>
    %8 = arith.addf %5, %7 : vector<32x128xf32>
    %c0_7 = arith.constant 0 : index
    %c0_8 = arith.constant 0 : index
    %9 = vector.load %arg5[%c0_7, %c0_8] : memref<32x128xf32, #tpu.memory_space<vmem>>, vector<32x128xf32>
    tpu.vector_store %arg5[%c0_7, %c0_8], %8 {strides = array<i32>} : memref<32x128xf32, #tpu.memory_space<vmem>>, vector<32x128xf32>,
    return
  }
  func.func @transform_0(%arg0: i32) -> (i32, i32) {
    %c0_i32 = arith.constant 0 : i32
    %c0_i32_0 = arith.constant 0 : i32
    return %arg0, %c0_i32 : i32, i32
  }
  func.func @transform_1(%arg0: i32) -> (i32, i32) {
    %c0_i32 = arith.constant 0 : i32
    %c0_i32_0 = arith.constant 0 : i32
    %c0_i32_1 = arith.constant 0 : i32
    return %c0_i32, %c0_i32_0 : i32, i32
  }
  func.func @transform_2(%arg0: i32) -> (i32, i32) {
    %c0_i32 = arith.constant 0 : i32
    %c0_i32_0 = arith.constant 0 : i32
    %c0_i32_1 = arith.constant 0 : i32
    return %c0_i32, %c0_i32_0 : i32, i32
  }
  func.func @transform_3(%arg0: i32) -> (i32, i32) {
    %c0_i32 = arith.constant 0 : i32
    %c0_i32_0 = arith.constant 0 : i32
    %c0_i32_1 = arith.constant 0 : i32
    return %c0_i32, %c0_i32_0 : i32, i32
  }
  func.func @transform_4(%arg0: i32) -> (i32, i32) {
    %c0_i32 = arith.constant 0 : i32
    %c0_i32_0 = arith.constant 0 : i32
    return %arg0, %c0_i32 : i32, i32
  }
}

module attributes {stable_mosaic.version = 11 : i64} {
  func.func @_mm_affine_kernel(%arg0: i32, %arg1: memref<32x576xf32, #tpu.memory_space<vmem>>, %arg2: memref<576x64xf32, #tpu.memory_space<vmem>>, %arg3: memref<1x64xf32, #tpu.memory_space<vmem>>, %arg4: memref<1x64xf32, #tpu.memory_space<vmem>>, %arg5: memref<32x64xf32, #tpu.memory_space<vmem>>) attributes {dimension_semantics = [#tpu.dimension_semantics<parallel>], iteration_bounds = array<i64: 1>, scalar_prefetch = 0 : i64, scratch_operands = 0 : i64, tpu.core_type = #tpu.core_type<tc>, window_params = [{transform_indices = @transform_0, window_bounds = array<i64: 32, 576>}, {pipeline_mode = #tpu.pipeline_mode<synchronous>, transform_indices = @transform_1, window_bounds = array<i64: 576, 64>}, {pipeline_mode = #tpu.pipeline_mode<synchronous>, transform_indices = @transform_2, window_bounds = array<i64: 1, 64>}, {pipeline_mode = #tpu.pipeline_mode<synchronous>, transform_indices = @transform_3, window_bounds = array<i64: 1, 64>}, {transform_indices = @transform_4, window_bounds = array<i64: 32, 64>}]} {
    %c0 = arith.constant 0 : index
    %c0_0 = arith.constant 0 : index
    %0 = vector.load %arg1[%c0, %c0_0] : memref<32x576xf32, #tpu.memory_space<vmem>>, vector<32x576xf32>
    %c0_1 = arith.constant 0 : index
    %c0_2 = arith.constant 0 : index
    %1 = vector.load %arg2[%c0_1, %c0_2] : memref<576x64xf32, #tpu.memory_space<vmem>>, vector<576x64xf32>
    %cst = arith.constant dense<0.000000e+00> : vector<32x64xf32>
    %2 = tpu.matmul %0, %1, %cst {dimension_numbers = #tpu.dot_dimension_numbers<[1], [0], [0], [1], [0, 0, 1, 1], [], []>} : vector<32x576xf32>, vector<576x64xf32>, vector<32x64xf32> -> vector<32x64xf32>
    %c0_3 = arith.constant 0 : index
    %c0_4 = arith.constant 0 : index
    %3 = vector.load %arg3[%c0_3, %c0_4] : memref<1x64xf32, #tpu.memory_space<vmem>>, vector<1x64xf32>
    %4 = vector.broadcast %3 : vector<1x64xf32> to vector<32x64xf32>
    %5 = arith.mulf %2, %4 : vector<32x64xf32>
    %c0_5 = arith.constant 0 : index
    %c0_6 = arith.constant 0 : index
    %6 = vector.load %arg4[%c0_5, %c0_6] : memref<1x64xf32, #tpu.memory_space<vmem>>, vector<1x64xf32>
    %7 = vector.broadcast %6 : vector<1x64xf32> to vector<32x64xf32>
    %8 = arith.addf %5, %7 : vector<32x64xf32>
    %cst_7 = arith.constant 0.000000e+00 : f32
    %9 = vector.broadcast %cst_7 : f32 to vector<32x64xf32>
    %10 = arith.maximumf %8, %9 : vector<32x64xf32>
    %c0_8 = arith.constant 0 : index
    %c0_9 = arith.constant 0 : index
    %11 = vector.load %arg5[%c0_8, %c0_9] : memref<32x64xf32, #tpu.memory_space<vmem>>, vector<32x64xf32>
    tpu.vector_store %arg5[%c0_8, %c0_9], %10 {strides = array<i32>} : memref<32x64xf32, #tpu.memory_space<vmem>>, vector<32x64xf32>,
    return
  }
  func.func @transform_0(%arg0: i32) -> (i32, i32) {
    %c0_i32 = arith.constant 0 : i32
    %c0_i32_0 = arith.constant 0 : i32
    return %arg0, %c0_i32 : i32, i32
  }
  func.func @transform_1(%arg0: i32) -> (i32, i32) {
    %c0_i32 = arith.constant 0 : i32
    %c0_i32_0 = arith.constant 0 : i32
    %c0_i32_1 = arith.constant 0 : i32
    return %c0_i32, %c0_i32_0 : i32, i32
  }
  func.func @transform_2(%arg0: i32) -> (i32, i32) {
    %c0_i32 = arith.constant 0 : i32
    %c0_i32_0 = arith.constant 0 : i32
    %c0_i32_1 = arith.constant 0 : i32
    return %c0_i32, %c0_i32_0 : i32, i32
  }
  func.func @transform_3(%arg0: i32) -> (i32, i32) {
    %c0_i32 = arith.constant 0 : i32
    %c0_i32_0 = arith.constant 0 : i32
    %c0_i32_1 = arith.constant 0 : i32
    return %c0_i32, %c0_i32_0 : i32, i32
  }
  func.func @transform_4(%arg0: i32) -> (i32, i32) {
    %c0_i32 = arith.constant 0 : i32
    %c0_i32_0 = arith.constant 0 : i32
    return %arg0, %c0_i32 : i32, i32
  }
}

module attributes {stable_mosaic.version = 11 : i64} {
  func.func @_mm_affine_kernel(%arg0: i32, %arg1: memref<32x576xf32, #tpu.memory_space<vmem>>, %arg2: memref<576x128xf32, #tpu.memory_space<vmem>>, %arg3: memref<1x128xf32, #tpu.memory_space<vmem>>, %arg4: memref<1x128xf32, #tpu.memory_space<vmem>>, %arg5: memref<32x128xf32, #tpu.memory_space<vmem>>) attributes {dimension_semantics = [#tpu.dimension_semantics<parallel>], iteration_bounds = array<i64: 1>, scalar_prefetch = 0 : i64, scratch_operands = 0 : i64, tpu.core_type = #tpu.core_type<tc>, window_params = [{transform_indices = @transform_0, window_bounds = array<i64: 32, 576>}, {pipeline_mode = #tpu.pipeline_mode<synchronous>, transform_indices = @transform_1, window_bounds = array<i64: 576, 128>}, {pipeline_mode = #tpu.pipeline_mode<synchronous>, transform_indices = @transform_2, window_bounds = array<i64: 1, 128>}, {pipeline_mode = #tpu.pipeline_mode<synchronous>, transform_indices = @transform_3, window_bounds = array<i64: 1, 128>}, {transform_indices = @transform_4, window_bounds = array<i64: 32, 128>}]} {
    %c0 = arith.constant 0 : index
    %c0_0 = arith.constant 0 : index
    %0 = vector.load %arg1[%c0, %c0_0] : memref<32x576xf32, #tpu.memory_space<vmem>>, vector<32x576xf32>
    %c0_1 = arith.constant 0 : index
    %c0_2 = arith.constant 0 : index
    %1 = vector.load %arg2[%c0_1, %c0_2] : memref<576x128xf32, #tpu.memory_space<vmem>>, vector<576x128xf32>
    %cst = arith.constant dense<0.000000e+00> : vector<32x128xf32>
    %2 = tpu.matmul %0, %1, %cst {dimension_numbers = #tpu.dot_dimension_numbers<[1], [0], [0], [1], [0, 0, 1, 1], [], []>} : vector<32x576xf32>, vector<576x128xf32>, vector<32x128xf32> -> vector<32x128xf32>
    %c0_3 = arith.constant 0 : index
    %c0_4 = arith.constant 0 : index
    %3 = vector.load %arg3[%c0_3, %c0_4] : memref<1x128xf32, #tpu.memory_space<vmem>>, vector<1x128xf32>
    %4 = vector.broadcast %3 : vector<1x128xf32> to vector<32x128xf32>
    %5 = arith.mulf %2, %4 : vector<32x128xf32>
    %c0_5 = arith.constant 0 : index
    %c0_6 = arith.constant 0 : index
    %6 = vector.load %arg4[%c0_5, %c0_6] : memref<1x128xf32, #tpu.memory_space<vmem>>, vector<1x128xf32>
    %7 = vector.broadcast %6 : vector<1x128xf32> to vector<32x128xf32>
    %8 = arith.addf %5, %7 : vector<32x128xf32>
    %cst_7 = arith.constant 0.000000e+00 : f32
    %9 = vector.broadcast %cst_7 : f32 to vector<32x128xf32>
    %10 = arith.maximumf %8, %9 : vector<32x128xf32>
    %c0_8 = arith.constant 0 : index
    %c0_9 = arith.constant 0 : index
    %11 = vector.load %arg5[%c0_8, %c0_9] : memref<32x128xf32, #tpu.memory_space<vmem>>, vector<32x128xf32>
    tpu.vector_store %arg5[%c0_8, %c0_9], %10 {strides = array<i32>} : memref<32x128xf32, #tpu.memory_space<vmem>>, vector<32x128xf32>,
    return
  }
  func.func @transform_0(%arg0: i32) -> (i32, i32) {
    %c0_i32 = arith.constant 0 : i32
    %c0_i32_0 = arith.constant 0 : i32
    return %arg0, %c0_i32 : i32, i32
  }
  func.func @transform_1(%arg0: i32) -> (i32, i32) {
    %c0_i32 = arith.constant 0 : i32
    %c0_i32_0 = arith.constant 0 : i32
    %c0_i32_1 = arith.constant 0 : i32
    return %c0_i32, %c0_i32_0 : i32, i32
  }
  func.func @transform_2(%arg0: i32) -> (i32, i32) {
    %c0_i32 = arith.constant 0 : i32
    %c0_i32_0 = arith.constant 0 : i32
    %c0_i32_1 = arith.constant 0 : i32
    return %c0_i32, %c0_i32_0 : i32, i32
  }
  func.func @transform_3(%arg0: i32) -> (i32, i32) {
    %c0_i32 = arith.constant 0 : i32
    %c0_i32_0 = arith.constant 0 : i32
    %c0_i32_1 = arith.constant 0 : i32
    return %c0_i32, %c0_i32_0 : i32, i32
  }
  func.func @transform_4(%arg0: i32) -> (i32, i32) {
    %c0_i32 = arith.constant 0 : i32
    %c0_i32_0 = arith.constant 0 : i32
    return %arg0, %c0_i32 : i32, i32
  }
}

module attributes {stable_mosaic.version = 11 : i64} {
  func.func @_mm_affine_kernel(%arg0: i32, %arg1: memref<32x1152xf32, #tpu.memory_space<vmem>>, %arg2: memref<1152x128xf32, #tpu.memory_space<vmem>>, %arg3: memref<1x128xf32, #tpu.memory_space<vmem>>, %arg4: memref<1x128xf32, #tpu.memory_space<vmem>>, %arg5: memref<32x128xf32, #tpu.memory_space<vmem>>) attributes {dimension_semantics = [#tpu.dimension_semantics<parallel>], iteration_bounds = array<i64: 1>, scalar_prefetch = 0 : i64, scratch_operands = 0 : i64, tpu.core_type = #tpu.core_type<tc>, window_params = [{transform_indices = @transform_0, window_bounds = array<i64: 32, 1152>}, {pipeline_mode = #tpu.pipeline_mode<synchronous>, transform_indices = @transform_1, window_bounds = array<i64: 1152, 128>}, {pipeline_mode = #tpu.pipeline_mode<synchronous>, transform_indices = @transform_2, window_bounds = array<i64: 1, 128>}, {pipeline_mode = #tpu.pipeline_mode<synchronous>, transform_indices = @transform_3, window_bounds = array<i64: 1, 128>}, {transform_indices = @transform_4, window_bounds = array<i64: 32, 128>}]} {
    %c0 = arith.constant 0 : index
    %c0_0 = arith.constant 0 : index
    %0 = vector.load %arg1[%c0, %c0_0] : memref<32x1152xf32, #tpu.memory_space<vmem>>, vector<32x1152xf32>
    %c0_1 = arith.constant 0 : index
    %c0_2 = arith.constant 0 : index
    %1 = vector.load %arg2[%c0_1, %c0_2] : memref<1152x128xf32, #tpu.memory_space<vmem>>, vector<1152x128xf32>
    %cst = arith.constant dense<0.000000e+00> : vector<32x128xf32>
    %2 = tpu.matmul %0, %1, %cst {dimension_numbers = #tpu.dot_dimension_numbers<[1], [0], [0], [1], [0, 0, 1, 1], [], []>} : vector<32x1152xf32>, vector<1152x128xf32>, vector<32x128xf32> -> vector<32x128xf32>
    %c0_3 = arith.constant 0 : index
    %c0_4 = arith.constant 0 : index
    %3 = vector.load %arg3[%c0_3, %c0_4] : memref<1x128xf32, #tpu.memory_space<vmem>>, vector<1x128xf32>
    %4 = vector.broadcast %3 : vector<1x128xf32> to vector<32x128xf32>
    %5 = arith.mulf %2, %4 : vector<32x128xf32>
    %c0_5 = arith.constant 0 : index
    %c0_6 = arith.constant 0 : index
    %6 = vector.load %arg4[%c0_5, %c0_6] : memref<1x128xf32, #tpu.memory_space<vmem>>, vector<1x128xf32>
    %7 = vector.broadcast %6 : vector<1x128xf32> to vector<32x128xf32>
    %8 = arith.addf %5, %7 : vector<32x128xf32>
    %cst_7 = arith.constant 0.000000e+00 : f32
    %9 = vector.broadcast %cst_7 : f32 to vector<32x128xf32>
    %10 = arith.maximumf %8, %9 : vector<32x128xf32>
    %c0_8 = arith.constant 0 : index
    %c0_9 = arith.constant 0 : index
    %11 = vector.load %arg5[%c0_8, %c0_9] : memref<32x128xf32, #tpu.memory_space<vmem>>, vector<32x128xf32>
    tpu.vector_store %arg5[%c0_8, %c0_9], %10 {strides = array<i32>} : memref<32x128xf32, #tpu.memory_space<vmem>>, vector<32x128xf32>,
    return
  }
  func.func @transform_0(%arg0: i32) -> (i32, i32) {
    %c0_i32 = arith.constant 0 : i32
    %c0_i32_0 = arith.constant 0 : i32
    return %arg0, %c0_i32 : i32, i32
  }
  func.func @transform_1(%arg0: i32) -> (i32, i32) {
    %c0_i32 = arith.constant 0 : i32
    %c0_i32_0 = arith.constant 0 : i32
    %c0_i32_1 = arith.constant 0 : i32
    return %c0_i32, %c0_i32_0 : i32, i32
  }
  func.func @transform_2(%arg0: i32) -> (i32, i32) {
    %c0_i32 = arith.constant 0 : i32
    %c0_i32_0 = arith.constant 0 : i32
    %c0_i32_1 = arith.constant 0 : i32
    return %c0_i32, %c0_i32_0 : i32, i32
  }
  func.func @transform_3(%arg0: i32) -> (i32, i32) {
    %c0_i32 = arith.constant 0 : i32
    %c0_i32_0 = arith.constant 0 : i32
    %c0_i32_1 = arith.constant 0 : i32
    return %c0_i32, %c0_i32_0 : i32, i32
  }
  func.func @transform_4(%arg0: i32) -> (i32, i32) {
    %c0_i32 = arith.constant 0 : i32
    %c0_i32_0 = arith.constant 0 : i32
    return %arg0, %c0_i32 : i32, i32
  }
}

module attributes {stable_mosaic.version = 11 : i64} {
  func.func @_mm_affine_res_kernel(%arg0: i32, %arg1: memref<32x1152xf32, #tpu.memory_space<vmem>>, %arg2: memref<1152x128xf32, #tpu.memory_space<vmem>>, %arg3: memref<1x128xf32, #tpu.memory_space<vmem>>, %arg4: memref<1x128xf32, #tpu.memory_space<vmem>>, %arg5: memref<32x128xf32, #tpu.memory_space<vmem>>, %arg6: memref<32x128xf32, #tpu.memory_space<vmem>>) attributes {dimension_semantics = [#tpu.dimension_semantics<parallel>], iteration_bounds = array<i64: 1>, scalar_prefetch = 0 : i64, scratch_operands = 0 : i64, tpu.core_type = #tpu.core_type<tc>, window_params = [{transform_indices = @transform_0, window_bounds = array<i64: 32, 1152>}, {pipeline_mode = #tpu.pipeline_mode<synchronous>, transform_indices = @transform_1, window_bounds = array<i64: 1152, 128>}, {pipeline_mode = #tpu.pipeline_mode<synchronous>, transform_indices = @transform_2, window_bounds = array<i64: 1, 128>}, {pipeline_mode = #tpu.pipeline_mode<synchronous>, transform_indices = @transform_3, window_bounds = array<i64: 1, 128>}, {transform_indices = @transform_4, window_bounds = array<i64: 32, 128>}, {transform_indices = @transform_5, window_bounds = array<i64: 32, 128>}]} {
    %c0 = arith.constant 0 : index
    %c0_0 = arith.constant 0 : index
    %0 = vector.load %arg1[%c0, %c0_0] : memref<32x1152xf32, #tpu.memory_space<vmem>>, vector<32x1152xf32>
    %c0_1 = arith.constant 0 : index
    %c0_2 = arith.constant 0 : index
    %1 = vector.load %arg2[%c0_1, %c0_2] : memref<1152x128xf32, #tpu.memory_space<vmem>>, vector<1152x128xf32>
    %cst = arith.constant dense<0.000000e+00> : vector<32x128xf32>
    %2 = tpu.matmul %0, %1, %cst {dimension_numbers = #tpu.dot_dimension_numbers<[1], [0], [0], [1], [0, 0, 1, 1], [], []>} : vector<32x1152xf32>, vector<1152x128xf32>, vector<32x128xf32> -> vector<32x128xf32>
    %c0_3 = arith.constant 0 : index
    %c0_4 = arith.constant 0 : index
    %3 = vector.load %arg3[%c0_3, %c0_4] : memref<1x128xf32, #tpu.memory_space<vmem>>, vector<1x128xf32>
    %4 = vector.broadcast %3 : vector<1x128xf32> to vector<32x128xf32>
    %5 = arith.mulf %2, %4 : vector<32x128xf32>
    %c0_5 = arith.constant 0 : index
    %c0_6 = arith.constant 0 : index
    %6 = vector.load %arg4[%c0_5, %c0_6] : memref<1x128xf32, #tpu.memory_space<vmem>>, vector<1x128xf32>
    %7 = vector.broadcast %6 : vector<1x128xf32> to vector<32x128xf32>
    %8 = arith.addf %5, %7 : vector<32x128xf32>
    %c0_7 = arith.constant 0 : index
    %c0_8 = arith.constant 0 : index
    %9 = vector.load %arg5[%c0_7, %c0_8] : memref<32x128xf32, #tpu.memory_space<vmem>>, vector<32x128xf32>
    %10 = arith.addf %8, %9 : vector<32x128xf32>
    %cst_9 = arith.constant 0.000000e+00 : f32
    %11 = vector.broadcast %cst_9 : f32 to vector<32x128xf32>
    %12 = arith.maximumf %10, %11 : vector<32x128xf32>
    %c0_10 = arith.constant 0 : index
    %c0_11 = arith.constant 0 : index
    %13 = vector.load %arg6[%c0_10, %c0_11] : memref<32x128xf32, #tpu.memory_space<vmem>>, vector<32x128xf32>
    tpu.vector_store %arg6[%c0_10, %c0_11], %12 {strides = array<i32>} : memref<32x128xf32, #tpu.memory_space<vmem>>, vector<32x128xf32>,
    return
  }
  func.func @transform_0(%arg0: i32) -> (i32, i32) {
    %c0_i32 = arith.constant 0 : i32
    %c0_i32_0 = arith.constant 0 : i32
    return %arg0, %c0_i32 : i32, i32
  }
  func.func @transform_1(%arg0: i32) -> (i32, i32) {
    %c0_i32 = arith.constant 0 : i32
    %c0_i32_0 = arith.constant 0 : i32
    %c0_i32_1 = arith.constant 0 : i32
    return %c0_i32, %c0_i32_0 : i32, i32
  }
  func.func @transform_2(%arg0: i32) -> (i32, i32) {
    %c0_i32 = arith.constant 0 : i32
    %c0_i32_0 = arith.constant 0 : i32
    %c0_i32_1 = arith.constant 0 : i32
    return %c0_i32, %c0_i32_0 : i32, i32
  }
  func.func @transform_3(%arg0: i32) -> (i32, i32) {
    %c0_i32 = arith.constant 0 : i32
    %c0_i32_0 = arith.constant 0 : i32
    %c0_i32_1 = arith.constant 0 : i32
    return %c0_i32, %c0_i32_0 : i32, i32
  }
  func.func @transform_4(%arg0: i32) -> (i32, i32) {
    %c0_i32 = arith.constant 0 : i32
    %c0_i32_0 = arith.constant 0 : i32
    return %arg0, %c0_i32 : i32, i32
  }
  func.func @transform_5(%arg0: i32) -> (i32, i32) {
    %c0_i32 = arith.constant 0 : i32
    %c0_i32_0 = arith.constant 0 : i32
    return %arg0, %c0_i32 : i32, i32
  }
}

module attributes {stable_mosaic.version = 11 : i64} {
  func.func @_mm_affine_kernel(%arg0: i32, %arg1: memref<32x128xf32, #tpu.memory_space<vmem>>, %arg2: memref<128x256xf32, #tpu.memory_space<vmem>>, %arg3: memref<1x256xf32, #tpu.memory_space<vmem>>, %arg4: memref<1x256xf32, #tpu.memory_space<vmem>>, %arg5: memref<32x256xf32, #tpu.memory_space<vmem>>) attributes {dimension_semantics = [#tpu.dimension_semantics<parallel>], iteration_bounds = array<i64: 1>, scalar_prefetch = 0 : i64, scratch_operands = 0 : i64, tpu.core_type = #tpu.core_type<tc>, window_params = [{transform_indices = @transform_0, window_bounds = array<i64: 32, 128>}, {pipeline_mode = #tpu.pipeline_mode<synchronous>, transform_indices = @transform_1, window_bounds = array<i64: 128, 256>}, {pipeline_mode = #tpu.pipeline_mode<synchronous>, transform_indices = @transform_2, window_bounds = array<i64: 1, 256>}, {pipeline_mode = #tpu.pipeline_mode<synchronous>, transform_indices = @transform_3, window_bounds = array<i64: 1, 256>}, {transform_indices = @transform_4, window_bounds = array<i64: 32, 256>}]} {
    %c0 = arith.constant 0 : index
    %c0_0 = arith.constant 0 : index
    %0 = vector.load %arg1[%c0, %c0_0] : memref<32x128xf32, #tpu.memory_space<vmem>>, vector<32x128xf32>
    %c0_1 = arith.constant 0 : index
    %c0_2 = arith.constant 0 : index
    %1 = vector.load %arg2[%c0_1, %c0_2] : memref<128x256xf32, #tpu.memory_space<vmem>>, vector<128x256xf32>
    %cst = arith.constant dense<0.000000e+00> : vector<32x256xf32>
    %2 = tpu.matmul %0, %1, %cst {dimension_numbers = #tpu.dot_dimension_numbers<[1], [0], [0], [1], [0, 0, 1, 1], [], []>} : vector<32x128xf32>, vector<128x256xf32>, vector<32x256xf32> -> vector<32x256xf32>
    %c0_3 = arith.constant 0 : index
    %c0_4 = arith.constant 0 : index
    %3 = vector.load %arg3[%c0_3, %c0_4] : memref<1x256xf32, #tpu.memory_space<vmem>>, vector<1x256xf32>
    %4 = vector.broadcast %3 : vector<1x256xf32> to vector<32x256xf32>
    %5 = arith.mulf %2, %4 : vector<32x256xf32>
    %c0_5 = arith.constant 0 : index
    %c0_6 = arith.constant 0 : index
    %6 = vector.load %arg4[%c0_5, %c0_6] : memref<1x256xf32, #tpu.memory_space<vmem>>, vector<1x256xf32>
    %7 = vector.broadcast %6 : vector<1x256xf32> to vector<32x256xf32>
    %8 = arith.addf %5, %7 : vector<32x256xf32>
    %c0_7 = arith.constant 0 : index
    %c0_8 = arith.constant 0 : index
    %9 = vector.load %arg5[%c0_7, %c0_8] : memref<32x256xf32, #tpu.memory_space<vmem>>, vector<32x256xf32>
    tpu.vector_store %arg5[%c0_7, %c0_8], %8 {strides = array<i32>} : memref<32x256xf32, #tpu.memory_space<vmem>>, vector<32x256xf32>,
    return
  }
  func.func @transform_0(%arg0: i32) -> (i32, i32) {
    %c0_i32 = arith.constant 0 : i32
    %c0_i32_0 = arith.constant 0 : i32
    return %arg0, %c0_i32 : i32, i32
  }
  func.func @transform_1(%arg0: i32) -> (i32, i32) {
    %c0_i32 = arith.constant 0 : i32
    %c0_i32_0 = arith.constant 0 : i32
    %c0_i32_1 = arith.constant 0 : i32
    return %c0_i32, %c0_i32_0 : i32, i32
  }
  func.func @transform_2(%arg0: i32) -> (i32, i32) {
    %c0_i32 = arith.constant 0 : i32
    %c0_i32_0 = arith.constant 0 : i32
    %c0_i32_1 = arith.constant 0 : i32
    return %c0_i32, %c0_i32_0 : i32, i32
  }
  func.func @transform_3(%arg0: i32) -> (i32, i32) {
    %c0_i32 = arith.constant 0 : i32
    %c0_i32_0 = arith.constant 0 : i32
    %c0_i32_1 = arith.constant 0 : i32
    return %c0_i32, %c0_i32_0 : i32, i32
  }
  func.func @transform_4(%arg0: i32) -> (i32, i32) {
    %c0_i32 = arith.constant 0 : i32
    %c0_i32_0 = arith.constant 0 : i32
    return %arg0, %c0_i32 : i32, i32
  }
}

module attributes {stable_mosaic.version = 11 : i64} {
  func.func @_mm_affine_kernel(%arg0: i32, %arg1: memref<32x1152xf32, #tpu.memory_space<vmem>>, %arg2: memref<1152x256xf32, #tpu.memory_space<vmem>>, %arg3: memref<1x256xf32, #tpu.memory_space<vmem>>, %arg4: memref<1x256xf32, #tpu.memory_space<vmem>>, %arg5: memref<32x256xf32, #tpu.memory_space<vmem>>) attributes {dimension_semantics = [#tpu.dimension_semantics<parallel>], iteration_bounds = array<i64: 1>, scalar_prefetch = 0 : i64, scratch_operands = 0 : i64, tpu.core_type = #tpu.core_type<tc>, window_params = [{transform_indices = @transform_0, window_bounds = array<i64: 32, 1152>}, {pipeline_mode = #tpu.pipeline_mode<synchronous>, transform_indices = @transform_1, window_bounds = array<i64: 1152, 256>}, {pipeline_mode = #tpu.pipeline_mode<synchronous>, transform_indices = @transform_2, window_bounds = array<i64: 1, 256>}, {pipeline_mode = #tpu.pipeline_mode<synchronous>, transform_indices = @transform_3, window_bounds = array<i64: 1, 256>}, {transform_indices = @transform_4, window_bounds = array<i64: 32, 256>}]} {
    %c0 = arith.constant 0 : index
    %c0_0 = arith.constant 0 : index
    %0 = vector.load %arg1[%c0, %c0_0] : memref<32x1152xf32, #tpu.memory_space<vmem>>, vector<32x1152xf32>
    %c0_1 = arith.constant 0 : index
    %c0_2 = arith.constant 0 : index
    %1 = vector.load %arg2[%c0_1, %c0_2] : memref<1152x256xf32, #tpu.memory_space<vmem>>, vector<1152x256xf32>
    %cst = arith.constant dense<0.000000e+00> : vector<32x256xf32>
    %2 = tpu.matmul %0, %1, %cst {dimension_numbers = #tpu.dot_dimension_numbers<[1], [0], [0], [1], [0, 0, 1, 1], [], []>} : vector<32x1152xf32>, vector<1152x256xf32>, vector<32x256xf32> -> vector<32x256xf32>
    %c0_3 = arith.constant 0 : index
    %c0_4 = arith.constant 0 : index
    %3 = vector.load %arg3[%c0_3, %c0_4] : memref<1x256xf32, #tpu.memory_space<vmem>>, vector<1x256xf32>
    %4 = vector.broadcast %3 : vector<1x256xf32> to vector<32x256xf32>
    %5 = arith.mulf %2, %4 : vector<32x256xf32>
    %c0_5 = arith.constant 0 : index
    %c0_6 = arith.constant 0 : index
    %6 = vector.load %arg4[%c0_5, %c0_6] : memref<1x256xf32, #tpu.memory_space<vmem>>, vector<1x256xf32>
    %7 = vector.broadcast %6 : vector<1x256xf32> to vector<32x256xf32>
    %8 = arith.addf %5, %7 : vector<32x256xf32>
    %cst_7 = arith.constant 0.000000e+00 : f32
    %9 = vector.broadcast %cst_7 : f32 to vector<32x256xf32>
    %10 = arith.maximumf %8, %9 : vector<32x256xf32>
    %c0_8 = arith.constant 0 : index
    %c0_9 = arith.constant 0 : index
    %11 = vector.load %arg5[%c0_8, %c0_9] : memref<32x256xf32, #tpu.memory_space<vmem>>, vector<32x256xf32>
    tpu.vector_store %arg5[%c0_8, %c0_9], %10 {strides = array<i32>} : memref<32x256xf32, #tpu.memory_space<vmem>>, vector<32x256xf32>,
    return
  }
  func.func @transform_0(%arg0: i32) -> (i32, i32) {
    %c0_i32 = arith.constant 0 : i32
    %c0_i32_0 = arith.constant 0 : i32
    return %arg0, %c0_i32 : i32, i32
  }
  func.func @transform_1(%arg0: i32) -> (i32, i32) {
    %c0_i32 = arith.constant 0 : i32
    %c0_i32_0 = arith.constant 0 : i32
    %c0_i32_1 = arith.constant 0 : i32
    return %c0_i32, %c0_i32_0 : i32, i32
  }
  func.func @transform_2(%arg0: i32) -> (i32, i32) {
    %c0_i32 = arith.constant 0 : i32
    %c0_i32_0 = arith.constant 0 : i32
    %c0_i32_1 = arith.constant 0 : i32
    return %c0_i32, %c0_i32_0 : i32, i32
  }
  func.func @transform_3(%arg0: i32) -> (i32, i32) {
    %c0_i32 = arith.constant 0 : i32
    %c0_i32_0 = arith.constant 0 : i32
    %c0_i32_1 = arith.constant 0 : i32
    return %c0_i32, %c0_i32_0 : i32, i32
  }
  func.func @transform_4(%arg0: i32) -> (i32, i32) {
    %c0_i32 = arith.constant 0 : i32
    %c0_i32_0 = arith.constant 0 : i32
    return %arg0, %c0_i32 : i32, i32
  }
}

module attributes {stable_mosaic.version = 11 : i64} {
  func.func @_mm_affine_res_kernel(%arg0: i32, %arg1: memref<32x2304xf32, #tpu.memory_space<vmem>>, %arg2: memref<2304x256xf32, #tpu.memory_space<vmem>>, %arg3: memref<1x256xf32, #tpu.memory_space<vmem>>, %arg4: memref<1x256xf32, #tpu.memory_space<vmem>>, %arg5: memref<32x256xf32, #tpu.memory_space<vmem>>, %arg6: memref<32x256xf32, #tpu.memory_space<vmem>>) attributes {dimension_semantics = [#tpu.dimension_semantics<parallel>], iteration_bounds = array<i64: 1>, scalar_prefetch = 0 : i64, scratch_operands = 0 : i64, tpu.core_type = #tpu.core_type<tc>, window_params = [{transform_indices = @transform_0, window_bounds = array<i64: 32, 2304>}, {pipeline_mode = #tpu.pipeline_mode<synchronous>, transform_indices = @transform_1, window_bounds = array<i64: 2304, 256>}, {pipeline_mode = #tpu.pipeline_mode<synchronous>, transform_indices = @transform_2, window_bounds = array<i64: 1, 256>}, {pipeline_mode = #tpu.pipeline_mode<synchronous>, transform_indices = @transform_3, window_bounds = array<i64: 1, 256>}, {transform_indices = @transform_4, window_bounds = array<i64: 32, 256>}, {transform_indices = @transform_5, window_bounds = array<i64: 32, 256>}]} {
    %c0 = arith.constant 0 : index
    %c0_0 = arith.constant 0 : index
    %0 = vector.load %arg1[%c0, %c0_0] : memref<32x2304xf32, #tpu.memory_space<vmem>>, vector<32x2304xf32>
    %c0_1 = arith.constant 0 : index
    %c0_2 = arith.constant 0 : index
    %1 = vector.load %arg2[%c0_1, %c0_2] : memref<2304x256xf32, #tpu.memory_space<vmem>>, vector<2304x256xf32>
    %cst = arith.constant dense<0.000000e+00> : vector<32x256xf32>
    %2 = tpu.matmul %0, %1, %cst {dimension_numbers = #tpu.dot_dimension_numbers<[1], [0], [0], [1], [0, 0, 1, 1], [], []>} : vector<32x2304xf32>, vector<2304x256xf32>, vector<32x256xf32> -> vector<32x256xf32>
    %c0_3 = arith.constant 0 : index
    %c0_4 = arith.constant 0 : index
    %3 = vector.load %arg3[%c0_3, %c0_4] : memref<1x256xf32, #tpu.memory_space<vmem>>, vector<1x256xf32>
    %4 = vector.broadcast %3 : vector<1x256xf32> to vector<32x256xf32>
    %5 = arith.mulf %2, %4 : vector<32x256xf32>
    %c0_5 = arith.constant 0 : index
    %c0_6 = arith.constant 0 : index
    %6 = vector.load %arg4[%c0_5, %c0_6] : memref<1x256xf32, #tpu.memory_space<vmem>>, vector<1x256xf32>
    %7 = vector.broadcast %6 : vector<1x256xf32> to vector<32x256xf32>
    %8 = arith.addf %5, %7 : vector<32x256xf32>
    %c0_7 = arith.constant 0 : index
    %c0_8 = arith.constant 0 : index
    %9 = vector.load %arg5[%c0_7, %c0_8] : memref<32x256xf32, #tpu.memory_space<vmem>>, vector<32x256xf32>
    %10 = arith.addf %8, %9 : vector<32x256xf32>
    %cst_9 = arith.constant 0.000000e+00 : f32
    %11 = vector.broadcast %cst_9 : f32 to vector<32x256xf32>
    %12 = arith.maximumf %10, %11 : vector<32x256xf32>
    %c0_10 = arith.constant 0 : index
    %c0_11 = arith.constant 0 : index
    %13 = vector.load %arg6[%c0_10, %c0_11] : memref<32x256xf32, #tpu.memory_space<vmem>>, vector<32x256xf32>
    tpu.vector_store %arg6[%c0_10, %c0_11], %12 {strides = array<i32>} : memref<32x256xf32, #tpu.memory_space<vmem>>, vector<32x256xf32>,
    return
  }
  func.func @transform_0(%arg0: i32) -> (i32, i32) {
    %c0_i32 = arith.constant 0 : i32
    %c0_i32_0 = arith.constant 0 : i32
    return %arg0, %c0_i32 : i32, i32
  }
  func.func @transform_1(%arg0: i32) -> (i32, i32) {
    %c0_i32 = arith.constant 0 : i32
    %c0_i32_0 = arith.constant 0 : i32
    %c0_i32_1 = arith.constant 0 : i32
    return %c0_i32, %c0_i32_0 : i32, i32
  }
  func.func @transform_2(%arg0: i32) -> (i32, i32) {
    %c0_i32 = arith.constant 0 : i32
    %c0_i32_0 = arith.constant 0 : i32
    %c0_i32_1 = arith.constant 0 : i32
    return %c0_i32, %c0_i32_0 : i32, i32
  }
  func.func @transform_3(%arg0: i32) -> (i32, i32) {
    %c0_i32 = arith.constant 0 : i32
    %c0_i32_0 = arith.constant 0 : i32
    %c0_i32_1 = arith.constant 0 : i32
    return %c0_i32, %c0_i32_0 : i32, i32
  }
  func.func @transform_4(%arg0: i32) -> (i32, i32) {
    %c0_i32 = arith.constant 0 : i32
    %c0_i32_0 = arith.constant 0 : i32
    return %arg0, %c0_i32 : i32, i32
  }
  func.func @transform_5(%arg0: i32) -> (i32, i32) {
    %c0_i32 = arith.constant 0 : i32
    %c0_i32_0 = arith.constant 0 : i32
    return %arg0, %c0_i32 : i32, i32
  }
}

module attributes {stable_mosaic.version = 11 : i64} {
  func.func @_mm_affine_kernel(%arg0: i32, %arg1: memref<32x2304xf32, #tpu.memory_space<vmem>>, %arg2: memref<2304x256xf32, #tpu.memory_space<vmem>>, %arg3: memref<1x256xf32, #tpu.memory_space<vmem>>, %arg4: memref<1x256xf32, #tpu.memory_space<vmem>>, %arg5: memref<32x256xf32, #tpu.memory_space<vmem>>) attributes {dimension_semantics = [#tpu.dimension_semantics<parallel>], iteration_bounds = array<i64: 1>, scalar_prefetch = 0 : i64, scratch_operands = 0 : i64, tpu.core_type = #tpu.core_type<tc>, window_params = [{transform_indices = @transform_0, window_bounds = array<i64: 32, 2304>}, {pipeline_mode = #tpu.pipeline_mode<synchronous>, transform_indices = @transform_1, window_bounds = array<i64: 2304, 256>}, {pipeline_mode = #tpu.pipeline_mode<synchronous>, transform_indices = @transform_2, window_bounds = array<i64: 1, 256>}, {pipeline_mode = #tpu.pipeline_mode<synchronous>, transform_indices = @transform_3, window_bounds = array<i64: 1, 256>}, {transform_indices = @transform_4, window_bounds = array<i64: 32, 256>}]} {
    %c0 = arith.constant 0 : index
    %c0_0 = arith.constant 0 : index
    %0 = vector.load %arg1[%c0, %c0_0] : memref<32x2304xf32, #tpu.memory_space<vmem>>, vector<32x2304xf32>
    %c0_1 = arith.constant 0 : index
    %c0_2 = arith.constant 0 : index
    %1 = vector.load %arg2[%c0_1, %c0_2] : memref<2304x256xf32, #tpu.memory_space<vmem>>, vector<2304x256xf32>
    %cst = arith.constant dense<0.000000e+00> : vector<32x256xf32>
    %2 = tpu.matmul %0, %1, %cst {dimension_numbers = #tpu.dot_dimension_numbers<[1], [0], [0], [1], [0, 0, 1, 1], [], []>} : vector<32x2304xf32>, vector<2304x256xf32>, vector<32x256xf32> -> vector<32x256xf32>
    %c0_3 = arith.constant 0 : index
    %c0_4 = arith.constant 0 : index
    %3 = vector.load %arg3[%c0_3, %c0_4] : memref<1x256xf32, #tpu.memory_space<vmem>>, vector<1x256xf32>
    %4 = vector.broadcast %3 : vector<1x256xf32> to vector<32x256xf32>
    %5 = arith.mulf %2, %4 : vector<32x256xf32>
    %c0_5 = arith.constant 0 : index
    %c0_6 = arith.constant 0 : index
    %6 = vector.load %arg4[%c0_5, %c0_6] : memref<1x256xf32, #tpu.memory_space<vmem>>, vector<1x256xf32>
    %7 = vector.broadcast %6 : vector<1x256xf32> to vector<32x256xf32>
    %8 = arith.addf %5, %7 : vector<32x256xf32>
    %cst_7 = arith.constant 0.000000e+00 : f32
    %9 = vector.broadcast %cst_7 : f32 to vector<32x256xf32>
    %10 = arith.maximumf %8, %9 : vector<32x256xf32>
    %c0_8 = arith.constant 0 : index
    %c0_9 = arith.constant 0 : index
    %11 = vector.load %arg5[%c0_8, %c0_9] : memref<32x256xf32, #tpu.memory_space<vmem>>, vector<32x256xf32>
    tpu.vector_store %arg5[%c0_8, %c0_9], %10 {strides = array<i32>} : memref<32x256xf32, #tpu.memory_space<vmem>>, vector<32x256xf32>,
    return
  }
  func.func @transform_0(%arg0: i32) -> (i32, i32) {
    %c0_i32 = arith.constant 0 : i32
    %c0_i32_0 = arith.constant 0 : i32
    return %arg0, %c0_i32 : i32, i32
  }
  func.func @transform_1(%arg0: i32) -> (i32, i32) {
    %c0_i32 = arith.constant 0 : i32
    %c0_i32_0 = arith.constant 0 : i32
    %c0_i32_1 = arith.constant 0 : i32
    return %c0_i32, %c0_i32_0 : i32, i32
  }
  func.func @transform_2(%arg0: i32) -> (i32, i32) {
    %c0_i32 = arith.constant 0 : i32
    %c0_i32_0 = arith.constant 0 : i32
    %c0_i32_1 = arith.constant 0 : i32
    return %c0_i32, %c0_i32_0 : i32, i32
  }
  func.func @transform_3(%arg0: i32) -> (i32, i32) {
    %c0_i32 = arith.constant 0 : i32
    %c0_i32_0 = arith.constant 0 : i32
    %c0_i32_1 = arith.constant 0 : i32
    return %c0_i32, %c0_i32_0 : i32, i32
  }
  func.func @transform_4(%arg0: i32) -> (i32, i32) {
    %c0_i32 = arith.constant 0 : i32
    %c0_i32_0 = arith.constant 0 : i32
    return %arg0, %c0_i32 : i32, i32
  }
}

module attributes {stable_mosaic.version = 11 : i64} {
  func.func @_head_kernel(%arg0: i32, %arg1: memref<2x16x256xf32, #tpu.memory_space<vmem>>, %arg2: memref<2x1xf32, #tpu.memory_space<vmem>>, %arg3: memref<256x128xf32, #tpu.memory_space<vmem>>, %arg4: memref<1x128xf32, #tpu.memory_space<vmem>>, %arg5: memref<1x128xf32, #tpu.memory_space<vmem>>, %arg6: memref<1x128xf32, #tpu.memory_space<vmem>>, %arg7: memref<1x1xf32, #tpu.memory_space<vmem>>, %arg8: memref<2x1xf32, #tpu.memory_space<vmem>>) attributes {dimension_semantics = [#tpu.dimension_semantics<arbitrary>], iteration_bounds = array<i64: 1>, scalar_prefetch = 0 : i64, scratch_operands = 0 : i64, tpu.core_type = #tpu.core_type<tc>, window_params = [{pipeline_mode = #tpu.pipeline_mode<synchronous>, transform_indices = @transform_0, window_bounds = array<i64: 2, 16, 256>}, {pipeline_mode = #tpu.pipeline_mode<synchronous>, transform_indices = @transform_1, window_bounds = array<i64: 2, 1>}, {pipeline_mode = #tpu.pipeline_mode<synchronous>, transform_indices = @transform_2, window_bounds = array<i64: 256, 128>}, {pipeline_mode = #tpu.pipeline_mode<synchronous>, transform_indices = @transform_3, window_bounds = array<i64: 1, 128>}, {pipeline_mode = #tpu.pipeline_mode<synchronous>, transform_indices = @transform_4, window_bounds = array<i64: 1, 128>}, {pipeline_mode = #tpu.pipeline_mode<synchronous>, transform_indices = @transform_5, window_bounds = array<i64: 1, 128>}, {pipeline_mode = #tpu.pipeline_mode<synchronous>, transform_indices = @transform_6, window_bounds = array<i64: 1, 1>}, {pipeline_mode = #tpu.pipeline_mode<synchronous>, transform_indices = @transform_7, window_bounds = array<i64: 2, 1>}]} {
    %c0 = arith.constant 0 : index
    %c0_0 = arith.constant 0 : index
    %c0_1 = arith.constant 0 : index
    %0 = vector.load %arg1[%c0, %c0_0, %c0_1] : memref<2x16x256xf32, #tpu.memory_space<vmem>>, vector<2x16x256xf32>
    %cst = arith.constant dense<0.000000e+00> : vector<2x256xf32>
    %1 = vector.multi_reduction <add>, %0, %cst [1] : vector<2x16x256xf32> to vector<2x256xf32>
    %cst_2 = arith.constant 6.250000e-02 : f32
    %2 = vector.broadcast %cst_2 : f32 to vector<2x256xf32>
    %3 = arith.mulf %1, %2 : vector<2x256xf32>
    %c0_3 = arith.constant 0 : index
    %c0_4 = arith.constant 0 : index
    %4 = vector.load %arg3[%c0_3, %c0_4] : memref<256x128xf32, #tpu.memory_space<vmem>>, vector<256x128xf32>
    %cst_5 = arith.constant dense<0.000000e+00> : vector<2x128xf32>
    %5 = tpu.matmul %3, %4, %cst_5 {dimension_numbers = #tpu.dot_dimension_numbers<[1], [0], [0], [1], [0, 0, 1, 1], [], []>} : vector<2x256xf32>, vector<256x128xf32>, vector<2x128xf32> -> vector<2x128xf32>
    %c0_6 = arith.constant 0 : index
    %c0_7 = arith.constant 0 : index
    %6 = vector.load %arg2[%c0_6, %c0_7] : memref<2x1xf32, #tpu.memory_space<vmem>>, vector<2x1xf32>
    %c0_8 = arith.constant 0 : index
    %c0_9 = arith.constant 0 : index
    %7 = vector.load %arg4[%c0_8, %c0_9] : memref<1x128xf32, #tpu.memory_space<vmem>>, vector<1x128xf32>
    %8 = vector.broadcast %6 : vector<2x1xf32> to vector<2x128xf32>
    %9 = vector.broadcast %7 : vector<1x128xf32> to vector<2x128xf32>
    %10 = arith.mulf %8, %9 : vector<2x128xf32>
    %11 = arith.addf %5, %10 : vector<2x128xf32>
    %c0_10 = arith.constant 0 : index
    %c0_11 = arith.constant 0 : index
    %12 = vector.load %arg5[%c0_10, %c0_11] : memref<1x128xf32, #tpu.memory_space<vmem>>, vector<1x128xf32>
    %13 = vector.broadcast %12 : vector<1x128xf32> to vector<2x128xf32>
    %14 = arith.addf %11, %13 : vector<2x128xf32>
    %c0_12 = arith.constant 0 : index
    %c0_13 = arith.constant 0 : index
    %15 = vector.load %arg6[%c0_12, %c0_13] : memref<1x128xf32, #tpu.memory_space<vmem>>, vector<1x128xf32>
    %16 = vector.broadcast %15 : vector<1x128xf32> to vector<2x128xf32>
    %17 = arith.mulf %14, %16 : vector<2x128xf32>
    %cst_14 = arith.constant dense<0.000000e+00> : vector<2xf32>
    %18 = vector.multi_reduction <add>, %17, %cst_14 [1] : vector<2x128xf32> to vector<2xf32>
    %19 = vector.shape_cast %18 : vector<2xf32> to vector<2x1xf32>
    %c0_15 = arith.constant 0 : index
    %c0_16 = arith.constant 0 : index
    %20 = vector.load %arg7[%c0_15, %c0_16] : memref<1x1xf32, #tpu.memory_space<vmem>>, vector<1x1xf32>
    %21 = vector.broadcast %20 : vector<1x1xf32> to vector<2x1xf32>
    %22 = arith.addf %19, %21 : vector<2x1xf32>
    %c0_17 = arith.constant 0 : index
    %c0_18 = arith.constant 0 : index
    %23 = vector.load %arg8[%c0_17, %c0_18] : memref<2x1xf32, #tpu.memory_space<vmem>>, vector<2x1xf32>
    tpu.vector_store %arg8[%c0_17, %c0_18], %22 {strides = array<i32>} : memref<2x1xf32, #tpu.memory_space<vmem>>, vector<2x1xf32>,
    return
  }
  func.func @transform_0(%arg0: i32) -> (i32, i32, i32) {
    %c0_i32 = arith.constant 0 : i32
    %c0_i32_0 = arith.constant 0 : i32
    %c0_i32_1 = arith.constant 0 : i32
    %c0_i32_2 = arith.constant 0 : i32
    return %c0_i32, %c0_i32_0, %c0_i32_1 : i32, i32, i32
  }
  func.func @transform_1(%arg0: i32) -> (i32, i32) {
    %c0_i32 = arith.constant 0 : i32
    %c0_i32_0 = arith.constant 0 : i32
    %c0_i32_1 = arith.constant 0 : i32
    return %c0_i32, %c0_i32_0 : i32, i32
  }
  func.func @transform_2(%arg0: i32) -> (i32, i32) {
    %c0_i32 = arith.constant 0 : i32
    %c0_i32_0 = arith.constant 0 : i32
    %c0_i32_1 = arith.constant 0 : i32
    return %c0_i32, %c0_i32_0 : i32, i32
  }
  func.func @transform_3(%arg0: i32) -> (i32, i32) {
    %c0_i32 = arith.constant 0 : i32
    %c0_i32_0 = arith.constant 0 : i32
    %c0_i32_1 = arith.constant 0 : i32
    return %c0_i32, %c0_i32_0 : i32, i32
  }
  func.func @transform_4(%arg0: i32) -> (i32, i32) {
    %c0_i32 = arith.constant 0 : i32
    %c0_i32_0 = arith.constant 0 : i32
    %c0_i32_1 = arith.constant 0 : i32
    return %c0_i32, %c0_i32_0 : i32, i32
  }
  func.func @transform_5(%arg0: i32) -> (i32, i32) {
    %c0_i32 = arith.constant 0 : i32
    %c0_i32_0 = arith.constant 0 : i32
    %c0_i32_1 = arith.constant 0 : i32
    return %c0_i32, %c0_i32_0 : i32, i32
  }
  func.func @transform_6(%arg0: i32) -> (i32, i32) {
    %c0_i32 = arith.constant 0 : i32
    %c0_i32_0 = arith.constant 0 : i32
    %c0_i32_1 = arith.constant 0 : i32
    return %c0_i32, %c0_i32_0 : i32, i32
  }
  func.func @transform_7(%arg0: i32) -> (i32, i32) {
    %c0_i32 = arith.constant 0 : i32
    %c0_i32_0 = arith.constant 0 : i32
    %c0_i32_1 = arith.constant 0 : i32
    return %c0_i32, %c0_i32_0 : i32, i32
  }
}

</mosaic_0001>

<llo_original>
// kernel: macnet_forward.22
$region0: #{macnet_forward.22}
  #allocation0 [shape = 'u32[]', space=smem, size = 0x4, offset = 0x4, fixed_abs, tag = 'smem constant byte address 0x4 - core index']
  #allocation1 [shape = 'u32[72,128]{1,0:T(1,128)}', space=vmem, size = 0x9000, scoped, tag = 'internal scratch']
  %s0 = inlined_call_operand.vmem [shape: f32[128,15], index: 0, kind: input, shape index: {}]
  %s1 = inlined_call_operand.vmem [shape: f32[15,32], index: 1, kind: input, shape index: {}]
  %s2 = inlined_call_operand.vmem [shape: f32[1,32], index: 2, kind: input, shape index: {}]
  %s3 = inlined_call_operand.hbm [shape: f32[1,32], index: 3, kind: input, shape index: {}]
  %s4 = inlined_call_operand.vmem [shape: f32[128,32], index: 4, kind: output, shape index: {}]
  %s5 = sld [smem:[#allocation0]]
  $region30: #{macnet_forward.22} parent=0
    _
  %s7 = ssub.s32 1, %s5
  %s8 = scalar_select 0, %s7, %s5
  $region1: #{macnet_forward.22} parent=0
    #allocation2 [shape = 'u8[512]{0}', space=vmem, size = 0x400, scoped, tag = 'input window, operand 3, single buffered']
    #allocation3 [shape = 's32[1]{0}', space=sflag, size = 0x4, scoped, tag = 'scoped memory for macnet_forward.22']
    %9 = vsyncpa [#allocation3], 0
    // Predicated region
    $region2: #{macnet_forward.22} parent=1 // pred_check
      _
    $region3: #{macnet_forward.22} parent=1 // pred_check_branch
      %11 = sbr.rel (0) target = $region5
    $region4: #{macnet_forward.22} parent=1 // pred_region
      _
    $region5: #{macnet_forward.22} parent=1 // pred_fallthru
      _
    // Predicated region
    $region6: #{macnet_forward.22} parent=1 // pred_check
      _
    $region7: #{macnet_forward.22} parent=1 // pred_check_branch
      %13 = sbr.rel (0) target = $region9
    $region8: #{macnet_forward.22} parent=1 // pred_region
      _
    $region9: #{macnet_forward.22} parent=1 // pred_fallthru
      _
    // Predicated region
    $region10: #{macnet_forward.22} parent=1 // pred_check
      _
    $region11: #{macnet_forward.22} parent=1 // pred_check_branch
      %15 = sbr.rel (0) target = $region13
    $region12: #{macnet_forward.22} parent=1 // pred_region
      _
    $region13: #{macnet_forward.22} parent=1 // pred_fallthru
      _
    // Predicated region
    $region14: #{macnet_forward.22} parent=1 // pred_check
      _
    $region15: #{macnet_forward.22} parent=1 // pred_check_branch
      %17 = sbr.rel (0) target = $region17
    $region16: #{macnet_forward.22} parent=1 // pred_region
      %19 = vsyncadd [#allocation3], 0
      %s21 = sshll.u32 %s3, 4
      %s22 = int_to_ptr.hbm [resolvable:$true] %s21
      %s23 = sshll.u32 [#allocation2], 4
      %s24 = int_to_ptr.vmem [resolvable:$true] %s23
      %26 = dma.hbm_to_vmem [thread:$0]  %s22, 16, %s24, [#allocation3]
    $region17: #{macnet_forward.22} parent=1 // pred_fallthru
      _
    // Predicated region
    $region18: #{macnet_forward.22} parent=1 // pred_check
      _
    $region19: #{macnet_forward.22} parent=1 // pred_check_branch
      %28 = sbr.rel (0) target = $region21
    $region20: #{macnet_forward.22} parent=1 // pred_region
      %30 = dma.done [#allocation3], 16
    $region21: #{macnet_forward.22} parent=1 // pred_fallthru
      _
    %v31 = vld [vmem:[%s0] sm:$0xff]
    %v32 = vld [vmem:[%s0 + $0x8] sm:$0xff]
    %v33 = vld [vmem:[%s0 + $0x10] sm:$0xff]
    %v34 = vld [vmem:[%s0 + $0x18] sm:$0xff]
    %v35 = vld [vmem:[%s0 + $0x20] sm:$0xff]
    %v36 = vld [vmem:[%s0 + $0x28] sm:$0xff]
    %v37 = vld [vmem:[%s0 + $0x30] sm:$0xff]
    %v38 = vld [vmem:[%s0 + $0x38] sm:$0xff]
    %v39 = vld [vmem:[%s0 + $0x40] sm:$0xff]
    %v40 = vld [vmem:[%s0 + $0x48] sm:$0xff]
    %v41 = vld [vmem:[%s0 + $0x50] sm:$0xff]
    %v42 = vld [vmem:[%s0 + $0x58] sm:$0xff]
    %v43 = vld [vmem:[%s0 + $0x60] sm:$0xff]
    %v44 = vld [vmem:[%s0 + $0x68] sm:$0xff]
    %v45 = vld [vmem:[%s0 + $0x70] sm:$0xff]
    %v46 = vld [vmem:[%s0 + $0x78] sm:$0xff]
    %v47 = vld [vmem:[%s1] sm:$0xff]
    %v48 = vld [vmem:[%s1 + $0x8] sm:$0x7f]
    %vm49 = vcmask 121856
    %v51 = vsel %vm49, %v31, 0
    %v54 = vsel %vm49, %v32, 0
    %v57 = vsel %vm49, %v33, 0
    %v60 = vsel %vm49, %v34, 0
    %v63 = vsel %vm49, %v35, 0
    %v66 = vsel %vm49, %v36, 0
    %v69 = vsel %vm49, %v37, 0
    %v72 = vsel %vm49, %v38, 0
    %v75 = vsel %vm49, %v39, 0
    %v78 = vsel %vm49, %v40, 0
    %v81 = vsel %vm49, %v41, 0
    %v84 = vsel %vm49, %v42, 0
    %v87 = vsel %vm49, %v43, 0
    %v90 = vsel %vm49, %v44, 0
    %v93 = vsel %vm49, %v45, 0
    %v96 = vsel %vm49, %v46, 0
    %vm98 = vcmask 1046528
    %v100 = vsel %vm98, %v48, 0
    %102 = vmatpush.msra.mxu0 0.0
    %103 = vmatpush.msra.mxu0 0.0
    %104 = vmatpush.msra.mxu0 0.0
    %105 = vmatpush.msra.mxu0 0.0
    %106 = vmatpush.msra.mxu0 0.0
    %107 = vmatpush.msra.mxu0 0.0
    %108 = vmatpush.msra.mxu0 0.0
    %109 = vmatpush.msra.mxu0 0.0
    %110 = vmatpush.msra.mxu0 0.0
    %111 = vmatpush.msra.mxu0 0.0
    %112 = vmatpush.msra.mxu0 0.0
    %113 = vmatpush.msra.mxu0 0.0
    %114 = vmatpush.msra.mxu0 0.0
    %115 = vmatpush.msra.mxu0 0.0
    %116 = vmatpush.msra.mxu0 %v100
    %117 = vmatpush.msra.mxu0 %v47
    %118 = vmatmul.f32.gmra.mxu0 %v51
    %v119 = vpop.f32.mrf.mxu0
    %v120 = vadd.f32 0.0, %v119
    %121 = vmatmul.f32.gmra.mxu0 %v54
    %v122 = vpop.f32.mrf.mxu0
    %v123 = vadd.f32 0.0, %v122
    %124 = vmatmul.f32.gmra.mxu0 %v57
    %v125 = vpop.f32.mrf.mxu0
    %v126 = vadd.f32 0.0, %v125
    %127 = vmatmul.f32.gmra.mxu0 %v60
    %v128 = vpop.f32.mrf.mxu0
    %v129 = vadd.f32 0.0, %v128
    %130 = vmatmul.f32.gmra.mxu0 %v63
    %v131 = vpop.f32.mrf.mxu0
    %v132 = vadd.f32 0.0, %v131
    %133 = vmatmul.f32.gmra.mxu0 %v66
    %v134 = vpop.f32.mrf.mxu0
    %v135 = vadd.f32 0.0, %v134
    %136 = vmatmul.f32.gmra.mxu0 %v69
    %v137 = vpop.f32.mrf.mxu0
    %v138 = vadd.f32 0.0, %v137
    %139 = vmatmul.f32.gmra.mxu0 %v72
    %v140 = vpop.f32.mrf.mxu0
    %v141 = vadd.f32 0.0, %v140
    %142 = vmatmul.f32.gmra.mxu0 %v75
    %v143 = vpop.f32.mrf.mxu0
    %v144 = vadd.f32 0.0, %v143
    %145 = vmatmul.f32.gmra.mxu0 %v78
    %v146 = vpop.f32.mrf.mxu0
    %v147 = vadd.f32 0.0, %v146
    %148 = vmatmul.f32.gmra.mxu0 %v81
    %v149 = vpop.f32.mrf.mxu0
    %v150 = vadd.f32 0.0, %v149
    %151 = vmatmul.f32.gmra.mxu0 %v84
    %v152 = vpop.f32.mrf.mxu0
    %v153 = vadd.f32 0.0, %v152
    %154 = vmatmul.f32.gmra.mxu0 %v87
    %v155 = vpop.f32.mrf.mxu0
    %v156 = vadd.f32 0.0, %v155
    %157 = vmatmul.f32.gmra.mxu0 %v90
    %v158 = vpop.f32.mrf.mxu0
    %v159 = vadd.f32 0.0, %v158
    %160 = vmatmul.f32.gmra.mxu0 %v93
    %v161 = vpop.f32.mrf.mxu0
    %v162 = vadd.f32 0.0, %v161
    %163 = vmatmul.f32.gmra.mxu0 %v96
    %v164 = vpop.f32.mrf.mxu0
    %v165 = vadd.f32 0.0, %v164
    %166 = vdwg.mxu0
    %v167 = vld [vmem:[%s2] sm:$0x1]
    %v169 = vperm.slane %v167, 0
    %v171 = vmul.f32 %v120, %v169
    %v172 = vmul.f32 %v123, %v169
    %v173 = vmul.f32 %v126, %v169
    %v174 = vmul.f32 %v129, %v169
    %v175 = vmul.f32 %v132, %v169
    %v176 = vmul.f32 %v135, %v169
    %v177 = vmul.f32 %v138, %v169
    %v178 = vmul.f32 %v141, %v169
    %v179 = vmul.f32 %v144, %v169
    %v180 = vmul.f32 %v147, %v169
    %v181 = vmul.f32 %v150, %v169
    %v182 = vmul.f32 %v153, %v169
    %v183 = vmul.f32 %v156, %v169
    %v184 = vmul.f32 %v159, %v169
    %v185 = vmul.f32 %v162, %v169
    %v186 = vmul.f32 %v165, %v169
    %v187 = vld [vmem:[#allocation2] sm:$0x1]
    %v189 = vperm.slane %v187, 0
    %v191 = vadd.f32 %v171, %v189
    %v192 = vadd.f32 %v172, %v189
    %v193 = vadd.f32 %v173, %v189
    %v194 = vadd.f32 %v174, %v189
    %v195 = vadd.f32 %v175, %v189
    %v196 = vadd.f32 %v176, %v189
    %v197 = vadd.f32 %v177, %v189
    %v198 = vadd.f32 %v178, %v189
    %v199 = vadd.f32 %v179, %v189
    %v200 = vadd.f32 %v180, %v189
    %v201 = vadd.f32 %v181, %v189
    %v202 = vadd.f32 %v182, %v189
    %v203 = vadd.f32 %v183, %v189
    %v204 = vadd.f32 %v184, %v189
    %v205 = vadd.f32 %v185, %v189
    %v206 = vadd.f32 %v186, %v189
    %vm207 = vcmask 261120
    %208 = vst.msk [vmem:[%s4] sm:$0xff] %vm207, %v191
    %209 = vst.msk [vmem:[%s4 + $0x8] sm:$0xff] %vm207, %v192
    %210 = vst.msk [vmem:[%s4 + $0x10] sm:$0xff] %vm207, %v193
    %211 = vst.msk [vmem:[%s4 + $0x18] sm:$0xff] %vm207, %v194
    %212 = vst.msk [vmem:[%s4 + $0x20] sm:$0xff] %vm207, %v195
    %213 = vst.msk [vmem:[%s4 + $0x28] sm:$0xff] %vm207, %v196
    %214 = vst.msk [vmem:[%s4 + $0x30] sm:$0xff] %vm207, %v197
    %215 = vst.msk [vmem:[%s4 + $0x38] sm:$0xff] %vm207, %v198
    %216 = vst.msk [vmem:[%s4 + $0x40] sm:$0xff] %vm207, %v199
    %217 = vst.msk [vmem:[%s4 + $0x48] sm:$0xff] %vm207, %v200
    %218 = vst.msk [vmem:[%s4 + $0x50] sm:$0xff] %vm207, %v201
    %219 = vst.msk [vmem:[%s4 + $0x58] sm:$0xff] %vm207, %v202
    %220 = vst.msk [vmem:[%s4 + $0x60] sm:$0xff] %vm207, %v203
    %221 = vst.msk [vmem:[%s4 + $0x68] sm:$0xff] %vm207, %v204
    %222 = vst.msk [vmem:[%s4 + $0x70] sm:$0xff] %vm207, %v205
    %223 = vst.msk [vmem:[%s4 + $0x78] sm:$0xff] %vm207, %v206
    // Predicated region
    $region22: #{macnet_forward.22} parent=1 // pred_check
      _
    $region23: #{macnet_forward.22} parent=1 // pred_check_branch
      %225 = sbr.rel (0) target = $region25
    $region24: #{macnet_forward.22} parent=1 // pred_region
      _
    $region25: #{macnet_forward.22} parent=1 // pred_fallthru
      _
    // Predicated region
    $region26: #{macnet_forward.22} parent=1 // pred_check
      _
    $region27: #{macnet_forward.22} parent=1 // pred_check_branch
      %227 = sbr.rel (0) target = $region29
    $region28: #{macnet_forward.22} parent=1 // pred_region
      _
    $region29: #{macnet_forward.22} parent=1 // pred_fallthru
      _
    %228 = vsyncpa [#allocation3], 1

// kernel: macnet_forward.21
$region0: #{macnet_forward.21}
  #allocation0 [shape = 'u32[]', space=smem, size = 0x4, offset = 0x4, fixed_abs, tag = 'smem constant byte address 0x4 - core index']
  #allocation1 [shape = 'u32[72,128]{1,0:T(1,128)}', space=vmem, size = 0x9000, scoped, tag = 'internal scratch']
  %s0 = inlined_call_operand.vmem [shape: f32[128,135], index: 0, kind: input, shape index: {}]
  %s1 = inlined_call_operand.vmem [shape: f32[135,32], index: 1, kind: input, shape index: {}]
  %s2 = inlined_call_operand.vmem [shape: f32[1,32], index: 2, kind: input, shape index: {}]
  %s3 = inlined_call_operand.vmem [shape: f32[1,32], index: 3, kind: input, shape index: {}]
  %s4 = inlined_call_operand.vmem [shape: f32[128,32], index: 4, kind: output, shape index: {}]
  %s5 = sld [smem:[#allocation0]]
  $region26: #{macnet_forward.21} parent=0
    _
  %s7 = ssub.s32 1, %s5
  %s8 = scalar_select 0, %s7, %s5
  // Predicated region
  $region2: #{macnet_forward.21} parent=0 // pred_check
    _
  $region3: #{macnet_forward.21} parent=0 // pred_check_branch
    %10 = sbr.rel (0) target = $region5
  $region4: #{macnet_forward.21} parent=0 // pred_region
    _
  $region5: #{macnet_forward.21} parent=0 // pred_fallthru
    _
  // Predicated region
  $region6: #{macnet_forward.21} parent=0 // pred_check
    _
  $region7: #{macnet_forward.21} parent=0 // pred_check_branch
    %12 = sbr.rel (0) target = $region9
  $region8: #{macnet_forward.21} parent=0 // pred_region
    _
  $region9: #{macnet_forward.21} parent=0 // pred_fallthru
    _
  // Predicated region
  $region10: #{macnet_forward.21} parent=0 // pred_check
    _
  $region11: #{macnet_forward.21} parent=0 // pred_check_branch
    %14 = sbr.rel (0) target = $region13
  $region12: #{macnet_forward.21} parent=0 // pred_region
    _
  $region13: #{macnet_forward.21} parent=0 // pred_fallthru
    _
  // Predicated region
  $region14: #{macnet_forward.21} parent=0 // pred_check
    _
  $region15: #{macnet_forward.21} parent=0 // pred_check_branch
    %16 = sbr.rel (0) target = $region17
  $region16: #{macnet_forward.21} parent=0 // pred_region
    _
  $region17: #{macnet_forward.21} parent=0 // pred_fallthru
    _
  %v17 = vld [vmem:[%s0] sm:$0xff]
  %v18 = vld [vmem:[%s0 + $0x8] sm:$0xff]
  %v19 = vld [vmem:[%s0 + $0x10] sm:$0xff]
  %v20 = vld [vmem:[%s0 + $0x18] sm:$0xff]
  %v21 = vld [vmem:[%s0 + $0x20] sm:$0xff]
  %v22 = vld [vmem:[%s0 + $0x28] sm:$0xff]
  %v23 = vld [vmem:[%s0 + $0x30] sm:$0xff]
  %v24 = vld [vmem:[%s0 + $0x38] sm:$0xff]
  %v25 = vld [vmem:[%s0 + $0x40] sm:$0xff]
  %v26 = vld [vmem:[%s0 + $0x48] sm:$0xff]
  %v27 = vld [vmem:[%s0 + $0x50] sm:$0xff]
  %v28 = vld [vmem:[%s0 + $0x58] sm:$0xff]
  %v29 = vld [vmem:[%s0 + $0x60] sm:$0xff]
  %v30 = vld [vmem:[%s0 + $0x68] sm:$0xff]
  %v31 = vld [vmem:[%s0 + $0x70] sm:$0xff]
  %v32 = vld [vmem:[%s0 + $0x78] sm:$0xff]
  %v33 = vld [vmem:[%s0 + $0x80] sm:$0xff]
  %v34 = vld [vmem:[%s0 + $0x88] sm:$0xff]
  %v35 = vld [vmem:[%s0 + $0x90] sm:$0xff]
  %v36 = vld [vmem:[%s0 + $0x98] sm:$0xff]
  %v37 = vld [vmem:[%s0 + $0xa0] sm:$0xff]
  %v38 = vld [vmem:[%s0 + $0xa8] sm:$0xff]
  %v39 = vld [vmem:[%s0 + $0xb0] sm:$0xff]
  %v40 = vld [vmem:[%s0 + $0xb8] sm:$0xff]
  %v41 = vld [vmem:[%s0 + $0xc0] sm:$0xff]
  %v42 = vld [vmem:[%s0 + $0xc8] sm:$0xff]
  %v43 = vld [vmem:[%s0 + $0xd0] sm:$0xff]
  %v44 = vld [vmem:[%s0 + $0xd8] sm:$0xff]
  %v45 = vld [vmem:[%s0 + $0xe0] sm:$0xff]
  %v46 = vld [vmem:[%s0 + $0xe8] sm:$0xff]
  %v47 = vld [vmem:[%s0 + $0xf0] sm:$0xff]
  %v48 = vld [vmem:[%s0 + $0xf8] sm:$0xff]
  %v49 = vld [vmem:[%s1] sm:$0xff]
  %v50 = vld [vmem:[%s1 + $0x8] sm:$0xff]
  %v51 = vld [vmem:[%s1 + $0x10] sm:$0xff]
  %v52 = vld [vmem:[%s1 + $0x18] sm:$0xff]
  %v53 = vld [vmem:[%s1 + $0x20] sm:$0xff]
  %v54 = vld [vmem:[%s1 + $0x28] sm:$0xff]
  %v55 = vld [vmem:[%s1 + $0x30] sm:$0xff]
  %v56 = vld [vmem:[%s1 + $0x38] sm:$0xff]
  %v57 = vld [vmem:[%s1 + $0x40] sm:$0xff]
  %v58 = vld [vmem:[%s1 + $0x48] sm:$0xff]
  %v59 = vld [vmem:[%s1 + $0x50] sm:$0xff]
  %v60 = vld [vmem:[%s1 + $0x58] sm:$0xff]
  %v61 = vld [vmem:[%s1 + $0x60] sm:$0xff]
  %v62 = vld [vmem:[%s1 + $0x68] sm:$0xff]
  %v63 = vld [vmem:[%s1 + $0x70] sm:$0xff]
  %v64 = vld [vmem:[%s1 + $0x78] sm:$0xff]
  %v65 = vld [vmem:[%s1 + $0x80] sm:$0x7f]
  %vm66 = vcmask 56320
  %v68 = vsel %vm66, %v18, 0
  %v71 = vsel %vm66, %v20, 0
  %v74 = vsel %vm66, %v22, 0
  %v77 = vsel %vm66, %v24, 0
  %v80 = vsel %vm66, %v26, 0
  %v83 = vsel %vm66, %v28, 0
  %v86 = vsel %vm66, %v30, 0
  %v89 = vsel %vm66, %v32, 0
  %v92 = vsel %vm66, %v34, 0
  %v95 = vsel %vm66, %v36, 0
  %v98 = vsel %vm66, %v38, 0
  %v101 = vsel %vm66, %v40, 0
  %v104 = vsel %vm66, %v42, 0
  %v107 = vsel %vm66, %v44, 0
  %v110 = vsel %vm66, %v46, 0
  %v113 = vsel %vm66, %v48, 0
  %vm115 = vcmask 1046528
  %v117 = vsel %vm115, %v65, 0
  %119 = vmatpush.msra.mxu0 %v64
  %120 = vmatpush.msra.mxu0 %v63
  %121 = vmatpush.msra.mxu0 %v62
  %122 = vmatpush.msra.mxu0 %v61
  %123 = vmatpush.msra.mxu0 %v60
  %124 = vmatpush.msra.mxu0 %v59
  %125 = vmatpush.msra.mxu0 %v58
  %126 = vmatpush.msra.mxu0 %v57
  %127 = vmatpush.msra.mxu0 %v56
  %128 = vmatpush.msra.mxu0 %v55
  %129 = vmatpush.msra.mxu0 %v54
  %130 = vmatpush.msra.mxu0 %v53
  %131 = vmatpush.msra.mxu0 %v52
  %132 = vmatpush.msra.mxu0 %v51
  %133 = vmatpush.msra.mxu0 %v50
  %134 = vmatpush.msra.mxu0 %v49
  %135 = vmatmul.f32.gmra.mxu0 %v17
  %v136 = vpop.f32.mrf.mxu0
  %v137 = vadd.f32 0.0, %v136
  %138 = vmatmul.f32.gmra.mxu0 %v19
  %v139 = vpop.f32.mrf.mxu0
  %v140 = vadd.f32 0.0, %v139
  %141 = vmatmul.f32.gmra.mxu0 %v21
  %v142 = vpop.f32.mrf.mxu0
  %v143 = vadd.f32 0.0, %v142
  %144 = vmatmul.f32.gmra.mxu0 %v23
  %v145 = vpop.f32.mrf.mxu0
  %v146 = vadd.f32 0.0, %v145
  %147 = vmatmul.f32.gmra.mxu0 %v25
  %v148 = vpop.f32.mrf.mxu0
  %v149 = vadd.f32 0.0, %v148
  %150 = vmatmul.f32.gmra.mxu0 %v27
  %v151 = vpop.f32.mrf.mxu0
  %v152 = vadd.f32 0.0, %v151
  %153 = vmatmul.f32.gmra.mxu0 %v29
  %v154 = vpop.f32.mrf.mxu0
  %v155 = vadd.f32 0.0, %v154
  %156 = vmatmul.f32.gmra.mxu0 %v31
  %v157 = vpop.f32.mrf.mxu0
  %v158 = vadd.f32 0.0, %v157
  %159 = vmatmul.f32.gmra.mxu0 %v33
  %v160 = vpop.f32.mrf.mxu0
  %v161 = vadd.f32 0.0, %v160
  %162 = vmatmul.f32.gmra.mxu0 %v35
  %v163 = vpop.f32.mrf.mxu0
  %v164 = vadd.f32 0.0, %v163
  %165 = vmatmul.f32.gmra.mxu0 %v37
  %v166 = vpop.f32.mrf.mxu0
  %v167 = vadd.f32 0.0, %v166
  %168 = vmatmul.f32.gmra.mxu0 %v39
  %v169 = vpop.f32.mrf.mxu0
  %v170 = vadd.f32 0.0, %v169
  %171 = vmatmul.f32.gmra.mxu0 %v41
  %v172 = vpop.f32.mrf.mxu0
  %v173 = vadd.f32 0.0, %v172
  %174 = vmatmul.f32.gmra.mxu0 %v43
  %v175 = vpop.f32.mrf.mxu0
  %v176 = vadd.f32 0.0, %v175
  %177 = vmatmul.f32.gmra.mxu0 %v45
  %v178 = vpop.f32.mrf.mxu0
  %v179 = vadd.f32 0.0, %v178
  %180 = vmatmul.f32.gmra.mxu0 %v47
  %v181 = vpop.f32.mrf.mxu0
  %v182 = vadd.f32 0.0, %v181
  %183 = vdwg.mxu0
  %184 = vmatpush.msra.mxu0 0.0
  %185 = vmatpush.msra.mxu0 0.0
  %186 = vmatpush.msra.mxu0 0.0
  %187 = vmatpush.msra.mxu0 0.0
  %188 = vmatpush.msra.mxu0 0.0
  %189 = vmatpush.msra.mxu0 0.0
  %190 = vmatpush.msra.mxu0 0.0
  %191 = vmatpush.msra.mxu0 0.0
  %192 = vmatpush.msra.mxu0 0.0
  %193 = vmatpush.msra.mxu0 0.0
  %194 = vmatpush.msra.mxu0 0.0
  %195 = vmatpush.msra.mxu0 0.0
  %196 = vmatpush.msra.mxu0 0.0
  %197 = vmatpush.msra.mxu0 0.0
  %198 = vmatpush.msra.mxu0 0.0
  %199 = vmatpush.msra.mxu0 %v117
  %200 = vmatmul.f32.gmra.mxu0 %v68
  %v201 = vpop.f32.mrf.mxu0
  %v202 = vadd.f32 %v137, %v201
  %203 = vmatmul.f32.gmra.mxu0 %v71
  %v204 = vpop.f32.mrf.mxu0
  %v205 = vadd.f32 %v140, %v204
  %206 = vmatmul.f32.gmra.mxu0 %v74
  %v207 = vpop.f32.mrf.mxu0
  %v208 = vadd.f32 %v143, %v207
  %209 = vmatmul.f32.gmra.mxu0 %v77
  %v210 = vpop.f32.mrf.mxu0
  %v211 = vadd.f32 %v146, %v210
  %212 = vmatmul.f32.gmra.mxu0 %v80
  %v213 = vpop.f32.mrf.mxu0
  %v214 = vadd.f32 %v149, %v213
  %215 = vmatmul.f32.gmra.mxu0 %v83
  %v216 = vpop.f32.mrf.mxu0
  %v217 = vadd.f32 %v152, %v216
  %218 = vmatmul.f32.gmra.mxu0 %v86
  %v219 = vpop.f32.mrf.mxu0
  %v220 = vadd.f32 %v155, %v219
  %221 = vmatmul.f32.gmra.mxu0 %v89
  %v222 = vpop.f32.mrf.mxu0
  %v223 = vadd.f32 %v158, %v222
  %224 = vmatmul.f32.gmra.mxu0 %v92
  %v225 = vpop.f32.mrf.mxu0
  %v226 = vadd.f32 %v161, %v225
  %227 = vmatmul.f32.gmra.mxu0 %v95
  %v228 = vpop.f32.mrf.mxu0
  %v229 = vadd.f32 %v164, %v228
  %230 = vmatmul.f32.gmra.mxu0 %v98
  %v231 = vpop.f32.mrf.mxu0
  %v232 = vadd.f32 %v167, %v231
  %233 = vmatmul.f32.gmra.mxu0 %v101
  %v234 = vpop.f32.mrf.mxu0
  %v235 = vadd.f32 %v170, %v234
  %236 = vmatmul.f32.gmra.mxu0 %v104
  %v237 = vpop.f32.mrf.mxu0
  %v238 = vadd.f32 %v173, %v237
  %239 = vmatmul.f32.gmra.mxu0 %v107
  %v240 = vpop.f32.mrf.mxu0
  %v241 = vadd.f32 %v176, %v240
  %242 = vmatmul.f32.gmra.mxu0 %v110
  %v243 = vpop.f32.mrf.mxu0
  %v244 = vadd.f32 %v179, %v243
  %245 = vmatmul.f32.gmra.mxu0 %v113
  %v246 = vpop.f32.mrf.mxu0
  %v247 = vadd.f32 %v182, %v246
  %248 = vdwg.mxu0
  %v249 = vld [vmem:[%s2] sm:$0x1]
  %v251 = vperm.slane %v249, 0
  %v253 = vmul.f32 %v202, %v251
  %v254 = vmul.f32 %v205, %v251
  %v255 = vmul.f32 %v208, %v251
  %v256 = vmul.f32 %v211, %v251
  %v257 = vmul.f32 %v214, %v251
  %v258 = vmul.f32 %v217, %v251
  %v259 = vmul.f32 %v220, %v251
  %v260 = vmul.f32 %v223, %v251
  %v261 = vmul.f32 %v226, %v251
  %v262 = vmul.f32 %v229, %v251
  %v263 = vmul.f32 %v232, %v251
  %v264 = vmul.f32 %v235, %v251
  %v265 = vmul.f32 %v238, %v251
  %v266 = vmul.f32 %v241, %v251
  %v267 = vmul.f32 %v244, %v251
  %v268 = vmul.f32 %v247, %v251
  %v269 = vld [vmem:[%s3] sm:$0x1]
  %v271 = vperm.slane %v269, 0
  %v273 = vadd.f32 %v253, %v271
  %v274 = vadd.f32 %v254, %v271
  %v275 = vadd.f32 %v255, %v271
  %v276 = vadd.f32 %v256, %v271
  %v277 = vadd.f32 %v257, %v271
  %v278 = vadd.f32 %v258, %v271
  %v279 = vadd.f32 %v259, %v271
  %v280 = vadd.f32 %v260, %v271
  %v281 = vadd.f32 %v261, %v271
  %v282 = vadd.f32 %v262, %v271
  %v283 = vadd.f32 %v263, %v271
  %v284 = vadd.f32 %v264, %v271
  %v285 = vadd.f32 %v265, %v271
  %v286 = vadd.f32 %v266, %v271
  %v287 = vadd.f32 %v267, %v271
  %v288 = vadd.f32 %v268, %v271
  %v289 = vmax.f32 %v273, 0.0
  %v290 = vmax.f32 %v274, 0.0
  %v291 = vmax.f32 %v275, 0.0
  %v292 = vmax.f32 %v276, 0.0
  %v293 = vmax.f32 %v277, 0.0
  %v294 = vmax.f32 %v278, 0.0
  %v295 = vmax.f32 %v279, 0.0
  %v296 = vmax.f32 %v280, 0.0
  %v297 = vmax.f32 %v281, 0.0
  %v298 = vmax.f32 %v282, 0.0
  %v299 = vmax.f32 %v283, 0.0
  %v300 = vmax.f32 %v284, 0.0
  %v301 = vmax.f32 %v285, 0.0
  %v302 = vmax.f32 %v286, 0.0
  %v303 = vmax.f32 %v287, 0.0
  %v304 = vmax.f32 %v288, 0.0
  %vm305 = vcmask 261120
  %306 = vst.msk [vmem:[%s4] sm:$0xff] %vm305, %v289
  %307 = vst.msk [vmem:[%s4 + $0x8] sm:$0xff] %vm305, %v290
  %308 = vst.msk [vmem:[%s4 + $0x10] sm:$0xff] %vm305, %v291
  %309 = vst.msk [vmem:[%s4 + $0x18] sm:$0xff] %vm305, %v292
  %310 = vst.msk [vmem:[%s4 + $0x20] sm:$0xff] %vm305, %v293
  %311 = vst.msk [vmem:[%s4 + $0x28] sm:$0xff] %vm305, %v294
  %312 = vst.msk [vmem:[%s4 + $0x30] sm:$0xff] %vm305, %v295
  %313 = vst.msk [vmem:[%s4 + $0x38] sm:$0xff] %vm305, %v296
  %314 = vst.msk [vmem:[%s4 + $0x40] sm:$0xff] %vm305, %v297
  %315 = vst.msk [vmem:[%s4 + $0x48] sm:$0xff] %vm305, %v298
  %316 = vst.msk [vmem:[%s4 + $0x50] sm:$0xff] %vm305, %v299
  %317 = vst.msk [vmem:[%s4 + $0x58] sm:$0xff] %vm305, %v300
  %318 = vst.msk [vmem:[%s4 + $0x60] sm:$0xff] %vm305, %v301
  %319 = vst.msk [vmem:[%s4 + $0x68] sm:$0xff] %vm305, %v302
  %320 = vst.msk [vmem:[%s4 + $0x70] sm:$0xff] %vm305, %v303
  %321 = vst.msk [vmem:[%s4 + $0x78] sm:$0xff] %vm305, %v304
  // Predicated region
  $region18: #{macnet_forward.21} parent=0 // pred_check
    _
  $region19: #{macnet_forward.21} parent=0 // pred_check_branch
    %323 = sbr.rel (0) target = $region21
  $region20: #{macnet_forward.21} parent=0 // pred_region
    _
  $region21: #{macnet_forward.21} parent=0 // pred_fallthru
    _
  // Predicated region
  $region22: #{macnet_forward.21} parent=0 // pred_check
    _
  $region23: #{macnet_forward.21} parent=0 // pred_check_branch
    %325 = sbr.rel (0) target = $region25
  $region24: #{macnet_forward.21} parent=0 // pred_region
    _
  $region25: #{macnet_forward.21} parent=0 // pred_fallthru
    _

// kernel: macnet_forward.24
$region0: #{macnet_forward.24}
  #allocation0 [shape = 'u32[]', space=smem, size = 0x4, offset = 0x4, fixed_abs, tag = 'smem constant byte address 0x4 - core index']
  #allocation1 [shape = 'u32[72,128]{1,0:T(1,128)}', space=vmem, size = 0x9000, scoped, tag = 'internal scratch']
  %s0 = inlined_call_operand.vmem [shape: f32[128,288], index: 0, kind: input, shape index: {}]
  %s1 = inlined_call_operand.vmem [shape: f32[288,32], index: 1, kind: input, shape index: {}]
  %s2 = inlined_call_operand.vmem [shape: f32[1,32], index: 2, kind: input, shape index: {}]
  %s3 = inlined_call_operand.vmem [shape: f32[1,32], index: 3, kind: input, shape index: {}]
  %s4 = inlined_call_operand.vmem [shape: f32[128,32], index: 4, kind: output, shape index: {}]
  %s5 = sld [smem:[#allocation0]]
  $region26: #{macnet_forward.24} parent=0
    _
  %s7 = ssub.s32 1, %s5
  %s8 = scalar_select 0, %s7, %s5
  // Predicated region
  $region2: #{macnet_forward.24} parent=0 // pred_check
    _
  $region3: #{macnet_forward.24} parent=0 // pred_check_branch
    %10 = sbr.rel (0) target = $region5
  $region4: #{macnet_forward.24} parent=0 // pred_region
    _
  $region5: #{macnet_forward.24} parent=0 // pred_fallthru
    _
  // Predicated region
  $region6: #{macnet_forward.24} parent=0 // pred_check
    _
  $region7: #{macnet_forward.24} parent=0 // pred_check_branch
    %12 = sbr.rel (0) target = $region9
  $region8: #{macnet_forward.24} parent=0 // pred_region
    _
  $region9: #{macnet_forward.24} parent=0 // pred_fallthru
    _
  // Predicated region
  $region10: #{macnet_forward.24} parent=0 // pred_check
    _
  $region11: #{macnet_forward.24} parent=0 // pred_check_branch
    %14 = sbr.rel (0) target = $region13
  $region12: #{macnet_forward.24} parent=0 // pred_region
    _
  $region13: #{macnet_forward.24} parent=0 // pred_fallthru
    _
  // Predicated region
  $region14: #{macnet_forward.24} parent=0 // pred_check
    _
  $region15: #{macnet_forward.24} parent=0 // pred_check_branch
    %16 = sbr.rel (0) target = $region17
  $region16: #{macnet_forward.24} parent=0 // pred_region
    _
  $region17: #{macnet_forward.24} parent=0 // pred_fallthru
    _
  %v17 = vld [vmem:[%s0] sm:$0xff]
  %v18 = vld [vmem:[%s0 + $0x8] sm:$0xff]
  %v19 = vld [vmem:[%s0 + $0x10] sm:$0xff]
  %v20 = vld [vmem:[%s0 + $0x18] sm:$0xff]
  %v21 = vld [vmem:[%s0 + $0x20] sm:$0xff]
  %v22 = vld [vmem:[%s0 + $0x28] sm:$0xff]
  %v23 = vld [vmem:[%s0 + $0x30] sm:$0xff]
  %v24 = vld [vmem:[%s0 + $0x38] sm:$0xff]
  %v25 = vld [vmem:[%s0 + $0x40] sm:$0xff]
  %v26 = vld [vmem:[%s0 + $0x48] sm:$0xff]
  %v27 = vld [vmem:[%s0 + $0x50] sm:$0xff]
  %v28 = vld [vmem:[%s0 + $0x58] sm:$0xff]
  %v29 = vld [vmem:[%s0 + $0x60] sm:$0xff]
  %v30 = vld [vmem:[%s0 + $0x68] sm:$0xff]
  %v31 = vld [vmem:[%s0 + $0x70] sm:$0xff]
  %v32 = vld [vmem:[%s0 + $0x78] sm:$0xff]
  %v33 = vld [vmem:[%s0 + $0x80] sm:$0xff]
  %v34 = vld [vmem:[%s0 + $0x88] sm:$0xff]
  %v35 = vld [vmem:[%s0 + $0x90] sm:$0xff]
  %v36 = vld [vmem:[%s0 + $0x98] sm:$0xff]
  %v37 = vld [vmem:[%s0 + $0xa0] sm:$0xff]
  %v38 = vld [vmem:[%s0 + $0xa8] sm:$0xff]
  %v39 = vld [vmem:[%s0 + $0xb0] sm:$0xff]
  %v40 = vld [vmem:[%s0 + $0xb8] sm:$0xff]
  %v41 = vld [vmem:[%s0 + $0xc0] sm:$0xff]
  %v42 = vld [vmem:[%s0 + $0xc8] sm:$0xff]
  %v43 = vld [vmem:[%s0 + $0xd0] sm:$0xff]
  %v44 = vld [vmem:[%s0 + $0xd8] sm:$0xff]
  %v45 = vld [vmem:[%s0 + $0xe0] sm:$0xff]
  %v46 = vld [vmem:[%s0 + $0xe8] sm:$0xff]
  %v47 = vld [vmem:[%s0 + $0xf0] sm:$0xff]
  %v48 = vld [vmem:[%s0 + $0xf8] sm:$0xff]
  %v49 = vld [vmem:[%s0 + $0x100] sm:$0xff]
  %v50 = vld [vmem:[%s0 + $0x108] sm:$0xff]
  %v51 = vld [vmem:[%s0 + $0x110] sm:$0xff]
  %v52 = vld [vmem:[%s0 + $0x118] sm:$0xff]
  %v53 = vld [vmem:[%s0 + $0x120] sm:$0xff]
  %v54 = vld [vmem:[%s0 + $0x128] sm:$0xff]
  %v55 = vld [vmem:[%s0 + $0x130] sm:$0xff]
  %v56 = vld [vmem:[%s0 + $0x138] sm:$0xff]
  %v57 = vld [vmem:[%s0 + $0x140] sm:$0xff]
  %v58 = vld [vmem:[%s0 + $0x148] sm:$0xff]
  %v59 = vld [vmem:[%s0 + $0x150] sm:$0xff]
  %v60 = vld [vmem:[%s0 + $0x158] sm:$0xff]
  %v61 = vld [vmem:[%s0 + $0x160] sm:$0xff]
  %v62 = vld [vmem:[%s0 + $0x168] sm:$0xff]
  %v63 = vld [vmem:[%s0 + $0x170] sm:$0xff]
  %v64 = vld [vmem:[%s0 + $0x178] sm:$0xff]
  %v65 = vld [vmem:[%s1] sm:$0xff]
  %v66 = vld [vmem:[%s1 + $0x8] sm:$0xff]
  %v67 = vld [vmem:[%s1 + $0x10] sm:$0xff]
  %v68 = vld [vmem:[%s1 + $0x18] sm:$0xff]
  %v69 = vld [vmem:[%s1 + $0x20] sm:$0xff]
  %v70 = vld [vmem:[%s1 + $0x28] sm:$0xff]
  %v71 = vld [vmem:[%s1 + $0x30] sm:$0xff]
  %v72 = vld [vmem:[%s1 + $0x38] sm:$0xff]
  %v73 = vld [vmem:[%s1 + $0x40] sm:$0xff]
  %v74 = vld [vmem:[%s1 + $0x48] sm:$0xff]
  %v75 = vld [vmem:[%s1 + $0x50] sm:$0xff]
  %v76 = vld [vmem:[%s1 + $0x58] sm:$0xff]
  %v77 = vld [vmem:[%s1 + $0x60] sm:$0xff]
  %v78 = vld [vmem:[%s1 + $0x68] sm:$0xff]
  %v79 = vld [vmem:[%s1 + $0x70] sm:$0xff]
  %v80 = vld [vmem:[%s1 + $0x78] sm:$0xff]
  %v81 = vld [vmem:[%s1 + $0x80] sm:$0xff]
  %v82 = vld [vmem:[%s1 + $0x88] sm:$0xff]
  %v83 = vld [vmem:[%s1 + $0x90] sm:$0xff]
  %v84 = vld [vmem:[%s1 + $0x98] sm:$0xff]
  %v85 = vld [vmem:[%s1 + $0xa0] sm:$0xff]
  %v86 = vld [vmem:[%s1 + $0xa8] sm:$0xff]
  %v87 = vld [vmem:[%s1 + $0xb0] sm:$0xff]
  %v88 = vld [vmem:[%s1 + $0xb8] sm:$0xff]
  %v89 = vld [vmem:[%s1 + $0xc0] sm:$0xff]
  %v90 = vld [vmem:[%s1 + $0xc8] sm:$0xff]
  %v91 = vld [vmem:[%s1 + $0xd0] sm:$0xff]
  %v92 = vld [vmem:[%s1 + $0xd8] sm:$0xff]
  %v93 = vld [vmem:[%s1 + $0xe0] sm:$0xff]
  %v94 = vld [vmem:[%s1 + $0xe8] sm:$0xff]
  %v95 = vld [vmem:[%s1 + $0xf0] sm:$0xff]
  %v96 = vld [vmem:[%s1 + $0xf8] sm:$0xff]
  %v97 = vld [vmem:[%s1 + $0x100] sm:$0xff]
  %v98 = vld [vmem:[%s1 + $0x108] sm:$0xff]
  %v99 = vld [vmem:[%s1 + $0x110] sm:$0xff]
  %v100 = vld [vmem:[%s1 + $0x118] sm:$0xff]
  %vm101 = vcmask 261120
  %v103 = vsel %vm101, %v19, 0
  %v106 = vsel %vm101, %v22, 0
  %v109 = vsel %vm101, %v25, 0
  %v112 = vsel %vm101, %v28, 0
  %v115 = vsel %vm101, %v31, 0
  %v118 = vsel %vm101, %v34, 0
  %v121 = vsel %vm101, %v37, 0
  %v124 = vsel %vm101, %v40, 0
  %v127 = vsel %vm101, %v43, 0
  %v130 = vsel %vm101, %v46, 0
  %v133 = vsel %vm101, %v49, 0
  %v136 = vsel %vm101, %v52, 0
  %v139 = vsel %vm101, %v55, 0
  %v142 = vsel %vm101, %v58, 0
  %v145 = vsel %vm101, %v61, 0
  %v148 = vsel %vm101, %v64, 0
  %150 = vmatpush.msra.mxu0 %v80
  %151 = vmatpush.msra.mxu0 %v79
  %152 = vmatpush.msra.mxu0 %v78
  %153 = vmatpush.msra.mxu0 %v77
  %154 = vmatpush.msra.mxu0 %v76
  %155 = vmatpush.msra.mxu0 %v75
  %156 = vmatpush.msra.mxu0 %v74
  %157 = vmatpush.msra.mxu0 %v73
  %158 = vmatpush.msra.mxu0 %v72
  %159 = vmatpush.msra.mxu0 %v71
  %160 = vmatpush.msra.mxu0 %v70
  %161 = vmatpush.msra.mxu0 %v69
  %162 = vmatpush.msra.mxu0 %v68
  %163 = vmatpush.msra.mxu0 %v67
  %164 = vmatpush.msra.mxu0 %v66
  %165 = vmatpush.msra.mxu0 %v65
  %166 = vmatmul.f32.gmra.mxu0 %v17
  %v167 = vpop.f32.mrf.mxu0
  %v168 = vadd.f32 0.0, %v167
  %169 = vmatmul.f32.gmra.mxu0 %v20
  %v170 = vpop.f32.mrf.mxu0
  %v171 = vadd.f32 0.0, %v170
  %172 = vmatmul.f32.gmra.mxu0 %v23
  %v173 = vpop.f32.mrf.mxu0
  %v174 = vadd.f32 0.0, %v173
  %175 = vmatmul.f32.gmra.mxu0 %v26
  %v176 = vpop.f32.mrf.mxu0
  %v177 = vadd.f32 0.0, %v176
  %178 = vmatmul.f32.gmra.mxu0 %v29
  %v179 = vpop.f32.mrf.mxu0
  %v180 = vadd.f32 0.0, %v179
  %181 = vmatmul.f32.gmra.mxu0 %v32
  %v182 = vpop.f32.mrf.mxu0
  %v183 = vadd.f32 0.0, %v182
  %184 = vmatmul.f32.gmra.mxu0 %v35
  %v185 = vpop.f32.mrf.mxu0
  %v186 = vadd.f32 0.0, %v185
  %187 = vmatmul.f32.gmra.mxu0 %v38
  %v188 = vpop.f32.mrf.mxu0
  %v189 = vadd.f32 0.0, %v188
  %190 = vmatmul.f32.gmra.mxu0 %v41
  %v191 = vpop.f32.mrf.mxu0
  %v192 = vadd.f32 0.0, %v191
  %193 = vmatmul.f32.gmra.mxu0 %v44
  %v194 = vpop.f32.mrf.mxu0
  %v195 = vadd.f32 0.0, %v194
  %196 = vmatmul.f32.gmra.mxu0 %v47
  %v197 = vpop.f32.mrf.mxu0
  %v198 = vadd.f32 0.0, %v197
  %199 = vmatmul.f32.gmra.mxu0 %v50
  %v200 = vpop.f32.mrf.mxu0
  %v201 = vadd.f32 0.0, %v200
  %202 = vmatmul.f32.gmra.mxu0 %v53
  %v203 = vpop.f32.mrf.mxu0
  %v204 = vadd.f32 0.0, %v203
  %205 = vmatmul.f32.gmra.mxu0 %v56
  %v206 = vpop.f32.mrf.mxu0
  %v207 = vadd.f32 0.0, %v206
  %208 = vmatmul.f32.gmra.mxu0 %v59
  %v209 = vpop.f32.mrf.mxu0
  %v210 = vadd.f32 0.0, %v209
  %211 = vmatmul.f32.gmra.mxu0 %v62
  %v212 = vpop.f32.mrf.mxu0
  %v213 = vadd.f32 0.0, %v212
  %214 = vdwg.mxu0
  %215 = vmatpush.msra.mxu0 %v96
  %216 = vmatpush.msra.mxu0 %v95
  %217 = vmatpush.msra.mxu0 %v94
  %218 = vmatpush.msra.mxu0 %v93
  %219 = vmatpush.msra.mxu0 %v92
  %220 = vmatpush.msra.mxu0 %v91
  %221 = vmatpush.msra.mxu0 %v90
  %222 = vmatpush.msra.mxu0 %v89
  %223 = vmatpush.msra.mxu0 %v88
  %224 = vmatpush.msra.mxu0 %v87
  %225 = vmatpush.msra.mxu0 %v86
  %226 = vmatpush.msra.mxu0 %v85
  %227 = vmatpush.msra.mxu0 %v84
  %228 = vmatpush.msra.mxu0 %v83
  %229 = vmatpush.msra.mxu0 %v82
  %230 = vmatpush.msra.mxu0 %v81
  %231 = vmatmul.f32.gmra.mxu0 %v18
  %v232 = vpop.f32.mrf.mxu0
  %v233 = vadd.f32 %v168, %v232
  %234 = vmatmul.f32.gmra.mxu0 %v21
  %v235 = vpop.f32.mrf.mxu0
  %v236 = vadd.f32 %v171, %v235
  %237 = vmatmul.f32.gmra.mxu0 %v24
  %v238 = vpop.f32.mrf.mxu0
  %v239 = vadd.f32 %v174, %v238
  %240 = vmatmul.f32.gmra.mxu0 %v27
  %v241 = vpop.f32.mrf.mxu0
  %v242 = vadd.f32 %v177, %v241
  %243 = vmatmul.f32.gmra.mxu0 %v30
  %v244 = vpop.f32.mrf.mxu0
  %v245 = vadd.f32 %v180, %v244
  %246 = vmatmul.f32.gmra.mxu0 %v33
  %v247 = vpop.f32.mrf.mxu0
  %v248 = vadd.f32 %v183, %v247
  %249 = vmatmul.f32.gmra.mxu0 %v36
  %v250 = vpop.f32.mrf.mxu0
  %v251 = vadd.f32 %v186, %v250
  %252 = vmatmul.f32.gmra.mxu0 %v39
  %v253 = vpop.f32.mrf.mxu0
  %v254 = vadd.f32 %v189, %v253
  %255 = vmatmul.f32.gmra.mxu0 %v42
  %v256 = vpop.f32.mrf.mxu0
  %v257 = vadd.f32 %v192, %v256
  %258 = vmatmul.f32.gmra.mxu0 %v45
  %v259 = vpop.f32.mrf.mxu0
  %v260 = vadd.f32 %v195, %v259
  %261 = vmatmul.f32.gmra.mxu0 %v48
  %v262 = vpop.f32.mrf.mxu0
  %v263 = vadd.f32 %v198, %v262
  %264 = vmatmul.f32.gmra.mxu0 %v51
  %v265 = vpop.f32.mrf.mxu0
  %v266 = vadd.f32 %v201, %v265
  %267 = vmatmul.f32.gmra.mxu0 %v54
  %v268 = vpop.f32.mrf.mxu0
  %v269 = vadd.f32 %v204, %v268
  %270 = vmatmul.f32.gmra.mxu0 %v57
  %v271 = vpop.f32.mrf.mxu0
  %v272 = vadd.f32 %v207, %v271
  %273 = vmatmul.f32.gmra.mxu0 %v60
  %v274 = vpop.f32.mrf.mxu0
  %v275 = vadd.f32 %v210, %v274
  %276 = vmatmul.f32.gmra.mxu0 %v63
  %v277 = vpop.f32.mrf.mxu0
  %v278 = vadd.f32 %v213, %v277
  %279 = vdwg.mxu0
  %280 = vmatpush.msra.mxu0 0.0
  %281 = vmatpush.msra.mxu0 0.0
  %282 = vmatpush.msra.mxu0 0.0
  %283 = vmatpush.msra.mxu0 0.0
  %284 = vmatpush.msra.mxu0 0.0
  %285 = vmatpush.msra.mxu0 0.0
  %286 = vmatpush.msra.mxu0 0.0
  %287 = vmatpush.msra.mxu0 0.0
  %288 = vmatpush.msra.mxu0 0.0
  %289 = vmatpush.msra.mxu0 0.0
  %290 = vmatpush.msra.mxu0 0.0
  %291 = vmatpush.msra.mxu0 0.0
  %292 = vmatpush.msra.mxu0 %v100
  %293 = vmatpush.msra.mxu0 %v99
  %294 = vmatpush.msra.mxu0 %v98
  %295 = vmatpush.msra.mxu0 %v97
  %296 = vmatmul.f32.gmra.mxu0 %v103
  %v297 = vpop.f32.mrf.mxu0
  %v298 = vadd.f32 %v233, %v297
  %299 = vmatmul.f32.gmra.mxu0 %v106
  %v300 = vpop.f32.mrf.mxu0
  %v301 = vadd.f32 %v236, %v300
  %302 = vmatmul.f32.gmra.mxu0 %v109
  %v303 = vpop.f32.mrf.mxu0
  %v304 = vadd.f32 %v239, %v303
  %305 = vmatmul.f32.gmra.mxu0 %v112
  %v306 = vpop.f32.mrf.mxu0
  %v307 = vadd.f32 %v242, %v306
  %308 = vmatmul.f32.gmra.mxu0 %v115
  %v309 = vpop.f32.mrf.mxu0
  %v310 = vadd.f32 %v245, %v309
  %311 = vmatmul.f32.gmra.mxu0 %v118
  %v312 = vpop.f32.mrf.mxu0
  %v313 = vadd.f32 %v248, %v312
  %314 = vmatmul.f32.gmra.mxu0 %v121
  %v315 = vpop.f32.mrf.mxu0
  %v316 = vadd.f32 %v251, %v315
  %317 = vmatmul.f32.gmra.mxu0 %v124
  %v318 = vpop.f32.mrf.mxu0
  %v319 = vadd.f32 %v254, %v318
  %320 = vmatmul.f32.gmra.mxu0 %v127
  %v321 = vpop.f32.mrf.mxu0
  %v322 = vadd.f32 %v257, %v321
  %323 = vmatmul.f32.gmra.mxu0 %v130
  %v324 = vpop.f32.mrf.mxu0
  %v325 = vadd.f32 %v260, %v324
  %326 = vmatmul.f32.gmra.mxu0 %v133
  %v327 = vpop.f32.mrf.mxu0
  %v328 = vadd.f32 %v263, %v327
  %329 = vmatmul.f32.gmra.mxu0 %v136
  %v330 = vpop.f32.mrf.mxu0
  %v331 = vadd.f32 %v266, %v330
  %332 = vmatmul.f32.gmra.mxu0 %v139
  %v333 = vpop.f32.mrf.mxu0
  %v334 = vadd.f32 %v269, %v333
  %335 = vmatmul.f32.gmra.mxu0 %v142
  %v336 = vpop.f32.mrf.mxu0
  %v337 = vadd.f32 %v272, %v336
  %338 = vmatmul.f32.gmra.mxu0 %v145
  %v339 = vpop.f32.mrf.mxu0
  %v340 = vadd.f32 %v275, %v339
  %341 = vmatmul.f32.gmra.mxu0 %v148
  %v342 = vpop.f32.mrf.mxu0
  %v343 = vadd.f32 %v278, %v342
  %344 = vdwg.mxu0
  %v345 = vld [vmem:[%s2] sm:$0x1]
  %v347 = vperm.slane %v345, 0
  %v349 = vmul.f32 %v298, %v347
  %v350 = vmul.f32 %v301, %v347
  %v351 = vmul.f32 %v304, %v347
  %v352 = vmul.f32 %v307, %v347
  %v353 = vmul.f32 %v310, %v347
  %v354 = vmul.f32 %v313, %v347
  %v355 = vmul.f32 %v316, %v347
  %v356 = vmul.f32 %v319, %v347
  %v357 = vmul.f32 %v322, %v347
  %v358 = vmul.f32 %v325, %v347
  %v359 = vmul.f32 %v328, %v347
  %v360 = vmul.f32 %v331, %v347
  %v361 = vmul.f32 %v334, %v347
  %v362 = vmul.f32 %v337, %v347
  %v363 = vmul.f32 %v340, %v347
  %v364 = vmul.f32 %v343, %v347
  %v365 = vld [vmem:[%s3] sm:$0x1]
  %v367 = vperm.slane %v365, 0
  %v369 = vadd.f32 %v349, %v367
  %v370 = vadd.f32 %v350, %v367
  %v371 = vadd.f32 %v351, %v367
  %v372 = vadd.f32 %v352, %v367
  %v373 = vadd.f32 %v353, %v367
  %v374 = vadd.f32 %v354, %v367
  %v375 = vadd.f32 %v355, %v367
  %v376 = vadd.f32 %v356, %v367
  %v377 = vadd.f32 %v357, %v367
  %v378 = vadd.f32 %v358, %v367
  %v379 = vadd.f32 %v359, %v367
  %v380 = vadd.f32 %v360, %v367
  %v381 = vadd.f32 %v361, %v367
  %v382 = vadd.f32 %v362, %v367
  %v383 = vadd.f32 %v363, %v367
  %v384 = vadd.f32 %v364, %v367
  %v385 = vmax.f32 %v369, 0.0
  %v386 = vmax.f32 %v370, 0.0
  %v387 = vmax.f32 %v371, 0.0
  %v388 = vmax.f32 %v372, 0.0
  %v389 = vmax.f32 %v373, 0.0
  %v390 = vmax.f32 %v374, 0.0
  %v391 = vmax.f32 %v375, 0.0
  %v392 = vmax.f32 %v376, 0.0
  %v393 = vmax.f32 %v377, 0.0
  %v394 = vmax.f32 %v378, 0.0
  %v395 = vmax.f32 %v379, 0.0
  %v396 = vmax.f32 %v380, 0.0
  %v397 = vmax.f32 %v381, 0.0
  %v398 = vmax.f32 %v382, 0.0
  %v399 = vmax.f32 %v383, 0.0
  %v400 = vmax.f32 %v384, 0.0
  %401 = vst.msk [vmem:[%s4] sm:$0xff] %vm101, %v385
  %402 = vst.msk [vmem:[%s4 + $0x8] sm:$0xff] %vm101, %v386
  %403 = vst.msk [vmem:[%s4 + $0x10] sm:$0xff] %vm101, %v387
  %404 = vst.msk [vmem:[%s4 + $0x18] sm:$0xff] %vm101, %v388
  %405 = vst.msk [vmem:[%s4 + $0x20] sm:$0xff] %vm101, %v389
  %406 = vst.msk [vmem:[%s4 + $0x28] sm:$0xff] %vm101, %v390
  %407 = vst.msk [vmem:[%s4 + $0x30] sm:$0xff] %vm101, %v391
  %408 = vst.msk [vmem:[%s4 + $0x38] sm:$0xff] %vm101, %v392
  %409 = vst.msk [vmem:[%s4 + $0x40] sm:$0xff] %vm101, %v393
  %410 = vst.msk [vmem:[%s4 + $0x48] sm:$0xff] %vm101, %v394
  %411 = vst.msk [vmem:[%s4 + $0x50] sm:$0xff] %vm101, %v395
  %412 = vst.msk [vmem:[%s4 + $0x58] sm:$0xff] %vm101, %v396
  %413 = vst.msk [vmem:[%s4 + $0x60] sm:$0xff] %vm101, %v397
  %414 = vst.msk [vmem:[%s4 + $0x68] sm:$0xff] %vm101, %v398
  %415 = vst.msk [vmem:[%s4 + $0x70] sm:$0xff] %vm101, %v399
  %416 = vst.msk [vmem:[%s4 + $0x78] sm:$0xff] %vm101, %v400
  // Predicated region
  $region18: #{macnet_forward.24} parent=0 // pred_check
    _
  $region19: #{macnet_forward.24} parent=0 // pred_check_branch
    %418 = sbr.rel (0) target = $region21
  $region20: #{macnet_forward.24} parent=0 // pred_region
    _
  $region21: #{macnet_forward.24} parent=0 // pred_fallthru
    _
  // Predicated region
  $region22: #{macnet_forward.24} parent=0 // pred_check
    _
  $region23: #{macnet_forward.24} parent=0 // pred_check_branch
    %420 = sbr.rel (0) target = $region25
  $region24: #{macnet_forward.24} parent=0 // pred_region
    _
  $region25: #{macnet_forward.24} parent=0 // pred_fallthru
    _

// kernel: macnet_forward.23
$region0: #{macnet_forward.23}
  #allocation0 [shape = 'u32[]', space=smem, size = 0x4, offset = 0x4, fixed_abs, tag = 'smem constant byte address 0x4 - core index']
  #allocation1 [shape = 'u32[72,128]{1,0:T(1,128)}', space=vmem, size = 0x9000, scoped, tag = 'internal scratch']
  %s0 = inlined_call_operand.vmem [shape: f32[128,288], index: 0, kind: input, shape index: {}]
  %s1 = inlined_call_operand.vmem [shape: f32[288,32], index: 1, kind: input, shape index: {}]
  %s2 = inlined_call_operand.vmem [shape: f32[1,32], index: 2, kind: input, shape index: {}]
  %s3 = inlined_call_operand.vmem [shape: f32[1,32], index: 3, kind: input, shape index: {}]
  %s4 = inlined_call_operand.vmem [shape: f32[128,32], index: 4, kind: input, shape index: {}]
  %s5 = inlined_call_operand.vmem [shape: f32[128,32], index: 5, kind: output, shape index: {}]
  %s6 = sld [smem:[#allocation0]]
  $region30: #{macnet_forward.23} parent=0
    _
  %s8 = ssub.s32 1, %s6
  %s9 = scalar_select 0, %s8, %s6
  // Predicated region
  $region2: #{macnet_forward.23} parent=0 // pred_check
    _
  $region3: #{macnet_forward.23} parent=0 // pred_check_branch
    %11 = sbr.rel (0) target = $region5
  $region4: #{macnet_forward.23} parent=0 // pred_region
    _
  $region5: #{macnet_forward.23} parent=0 // pred_fallthru
    _
  // Predicated region
  $region6: #{macnet_forward.23} parent=0 // pred_check
    _
  $region7: #{macnet_forward.23} parent=0 // pred_check_branch
    %13 = sbr.rel (0) target = $region9
  $region8: #{macnet_forward.23} parent=0 // pred_region
    _
  $region9: #{macnet_forward.23} parent=0 // pred_fallthru
    _
  // Predicated region
  $region10: #{macnet_forward.23} parent=0 // pred_check
    _
  $region11: #{macnet_forward.23} parent=0 // pred_check_branch
    %15 = sbr.rel (0) target = $region13
  $region12: #{macnet_forward.23} parent=0 // pred_region
    _
  $region13: #{macnet_forward.23} parent=0 // pred_fallthru
    _
  // Predicated region
  $region14: #{macnet_forward.23} parent=0 // pred_check
    _
  $region15: #{macnet_forward.23} parent=0 // pred_check_branch
    %17 = sbr.rel (0) target = $region17
  $region16: #{macnet_forward.23} parent=0 // pred_region
    _
  $region17: #{macnet_forward.23} parent=0 // pred_fallthru
    _
  // Predicated region
  $region18: #{macnet_forward.23} parent=0 // pred_check
    _
  $region19: #{macnet_forward.23} parent=0 // pred_check_branch
    %19 = sbr.rel (0) target = $region21
  $region20: #{macnet_forward.23} parent=0 // pred_region
    _
  $region21: #{macnet_forward.23} parent=0 // pred_fallthru
    _
  %v20 = vld [vmem:[%s0] sm:$0xff]
  %v21 = vld [vmem:[%s0 + $0x8] sm:$0xff]
  %v22 = vld [vmem:[%s0 + $0x10] sm:$0xff]
  %v23 = vld [vmem:[%s0 + $0x18] sm:$0xff]
  %v24 = vld [vmem:[%s0 + $0x20] sm:$0xff]
  %v25 = vld [vmem:[%s0 + $0x28] sm:$0xff]
  %v26 = vld [vmem:[%s0 + $0x30] sm:$0xff]
  %v27 = vld [vmem:[%s0 + $0x38] sm:$0xff]
  %v28 = vld [vmem:[%s0 + $0x40] sm:$0xff]
  %v29 = vld [vmem:[%s0 + $0x48] sm:$0xff]
  %v30 = vld [vmem:[%s0 + $0x50] sm:$0xff]
  %v31 = vld [vmem:[%s0 + $0x58] sm:$0xff]
  %v32 = vld [vmem:[%s0 + $0x60] sm:$0xff]
  %v33 = vld [vmem:[%s0 + $0x68] sm:$0xff]
  %v34 = vld [vmem:[%s0 + $0x70] sm:$0xff]
  %v35 = vld [vmem:[%s0 + $0x78] sm:$0xff]
  %v36 = vld [vmem:[%s0 + $0x80] sm:$0xff]
  %v37 = vld [vmem:[%s0 + $0x88] sm:$0xff]
  %v38 = vld [vmem:[%s0 + $0x90] sm:$0xff]
  %v39 = vld [vmem:[%s0 + $0x98] sm:$0xff]
  %v40 = vld [vmem:[%s0 + $0xa0] sm:$0xff]
  %v41 = vld [vmem:[%s0 + $0xa8] sm:$0xff]
  %v42 = vld [vmem:[%s0 + $0xb0] sm:$0xff]
  %v43 = vld [vmem:[%s0 + $0xb8] sm:$0xff]
  %v44 = vld [vmem:[%s0 + $0xc0] sm:$0xff]
  %v45 = vld [vmem:[%s0 + $0xc8] sm:$0xff]
  %v46 = vld [vmem:[%s0 + $0xd0] sm:$0xff]
  %v47 = vld [vmem:[%s0 + $0xd8] sm:$0xff]
  %v48 = vld [vmem:[%s0 + $0xe0] sm:$0xff]
  %v49 = vld [vmem:[%s0 + $0xe8] sm:$0xff]
  %v50 = vld [vmem:[%s0 + $0xf0] sm:$0xff]
  %v51 = vld [vmem:[%s0 + $0xf8] sm:$0xff]
  %v52 = vld [vmem:[%s0 + $0x100] sm:$0xff]
  %v53 = vld [vmem:[%s0 + $0x108] sm:$0xff]
  %v54 = vld [vmem:[%s0 + $0x110] sm:$0xff]
  %v55 = vld [vmem:[%s0 + $0x118] sm:$0xff]
  %v56 = vld [vmem:[%s0 + $0x120] sm:$0xff]
  %v57 = vld [vmem:[%s0 + $0x128] sm:$0xff]
  %v58 = vld [vmem:[%s0 + $0x130] sm:$0xff]
  %v59 = vld [vmem:[%s0 + $0x138] sm:$0xff]
  %v60 = vld [vmem:[%s0 + $0x140] sm:$0xff]
  %v61 = vld [vmem:[%s0 + $0x148] sm:$0xff]
  %v62 = vld [vmem:[%s0 + $0x150] sm:$0xff]
  %v63 = vld [vmem:[%s0 + $0x158] sm:$0xff]
  %v64 = vld [vmem:[%s0 + $0x160] sm:$0xff]
  %v65 = vld [vmem:[%s0 + $0x168] sm:$0xff]
  %v66 = vld [vmem:[%s0 + $0x170] sm:$0xff]
  %v67 = vld [vmem:[%s0 + $0x178] sm:$0xff]
  %v68 = vld [vmem:[%s1] sm:$0xff]
  %v69 = vld [vmem:[%s1 + $0x8] sm:$0xff]
  %v70 = vld [vmem:[%s1 + $0x10] sm:$0xff]
  %v71 = vld [vmem:[%s1 + $0x18] sm:$0xff]
  %v72 = vld [vmem:[%s1 + $0x20] sm:$0xff]
  %v73 = vld [vmem:[%s1 + $0x28] sm:$0xff]
  %v74 = vld [vmem:[%s1 + $0x30] sm:$0xff]
  %v75 = vld [vmem:[%s1 + $0x38] sm:$0xff]
  %v76 = vld [vmem:[%s1 + $0x40] sm:$0xff]
  %v77 = vld [vmem:[%s1 + $0x48] sm:$0xff]
  %v78 = vld [vmem:[%s1 + $0x50] sm:$0xff]
  %v79 = vld [vmem:[%s1 + $0x58] sm:$0xff]
  %v80 = vld [vmem:[%s1 + $0x60] sm:$0xff]
  %v81 = vld [vmem:[%s1 + $0x68] sm:$0xff]
  %v82 = vld [vmem:[%s1 + $0x70] sm:$0xff]
  %v83 = vld [vmem:[%s1 + $0x78] sm:$0xff]
  %v84 = vld [vmem:[%s1 + $0x80] sm:$0xff]
  %v85 = vld [vmem:[%s1 + $0x88] sm:$0xff]
  %v86 = vld [vmem:[%s1 + $0x90] sm:$0xff]
  %v87 = vld [vmem:[%s1 + $0x98] sm:$0xff]
  %v88 = vld [vmem:[%s1 + $0xa0] sm:$0xff]
  %v89 = vld [vmem:[%s1 + $0xa8] sm:$0xff]
  %v90 = vld [vmem:[%s1 + $0xb0] sm:$0xff]
  %v91 = vld [vmem:[%s1 + $0xb8] sm:$0xff]
  %v92 = vld [vmem:[%s1 + $0xc0] sm:$0xff]
  %v93 = vld [vmem:[%s1 + $0xc8] sm:$0xff]
  %v94 = vld [vmem:[%s1 + $0xd0] sm:$0xff]
  %v95 = vld [vmem:[%s1 + $0xd8] sm:$0xff]
  %v96 = vld [vmem:[%s1 + $0xe0] sm:$0xff]
  %v97 = vld [vmem:[%s1 + $0xe8] sm:$0xff]
  %v98 = vld [vmem:[%s1 + $0xf0] sm:$0xff]
  %v99 = vld [vmem:[%s1 + $0xf8] sm:$0xff]
  %v100 = vld [vmem:[%s1 + $0x100] sm:$0xff]
  %v101 = vld [vmem:[%s1 + $0x108] sm:$0xff]
  %v102 = vld [vmem:[%s1 + $0x110] sm:$0xff]
  %v103 = vld [vmem:[%s1 + $0x118] sm:$0xff]
  %vm104 = vcmask 261120
  %v106 = vsel %vm104, %v22, 0
  %v109 = vsel %vm104, %v25, 0
  %v112 = vsel %vm104, %v28, 0
  %v115 = vsel %vm104, %v31, 0
  %v118 = vsel %vm104, %v34, 0
  %v121 = vsel %vm104, %v37, 0
  %v124 = vsel %vm104, %v40, 0
  %v127 = vsel %vm104, %v43, 0
  %v130 = vsel %vm104, %v46, 0
  %v133 = vsel %vm104, %v49, 0
  %v136 = vsel %vm104, %v52, 0
  %v139 = vsel %vm104, %v55, 0
  %v142 = vsel %vm104, %v58, 0
  %v145 = vsel %vm104, %v61, 0
  %v148 = vsel %vm104, %v64, 0
  %v151 = vsel %vm104, %v67, 0
  %153 = vmatpush.msra.mxu0 %v83
  %154 = vmatpush.msra.mxu0 %v82
  %155 = vmatpush.msra.mxu0 %v81
  %156 = vmatpush.msra.mxu0 %v80
  %157 = vmatpush.msra.mxu0 %v79
  %158 = vmatpush.msra.mxu0 %v78
  %159 = vmatpush.msra.mxu0 %v77
  %160 = vmatpush.msra.mxu0 %v76
  %161 = vmatpush.msra.mxu0 %v75
  %162 = vmatpush.msra.mxu0 %v74
  %163 = vmatpush.msra.mxu0 %v73
  %164 = vmatpush.msra.mxu0 %v72
  %165 = vmatpush.msra.mxu0 %v71
  %166 = vmatpush.msra.mxu0 %v70
  %167 = vmatpush.msra.mxu0 %v69
  %168 = vmatpush.msra.mxu0 %v68
  %169 = vmatmul.f32.gmra.mxu0 %v20
  %v170 = vpop.f32.mrf.mxu0
  %v171 = vadd.f32 0.0, %v170
  %172 = vmatmul.f32.gmra.mxu0 %v23
  %v173 = vpop.f32.mrf.mxu0
  %v174 = vadd.f32 0.0, %v173
  %175 = vmatmul.f32.gmra.mxu0 %v26
  %v176 = vpop.f32.mrf.mxu0
  %v177 = vadd.f32 0.0, %v176
  %178 = vmatmul.f32.gmra.mxu0 %v29
  %v179 = vpop.f32.mrf.mxu0
  %v180 = vadd.f32 0.0, %v179
  %181 = vmatmul.f32.gmra.mxu0 %v32
  %v182 = vpop.f32.mrf.mxu0
  %v183 = vadd.f32 0.0, %v182
  %184 = vmatmul.f32.gmra.mxu0 %v35
  %v185 = vpop.f32.mrf.mxu0
  %v186 = vadd.f32 0.0, %v185
  %187 = vmatmul.f32.gmra.mxu0 %v38
  %v188 = vpop.f32.mrf.mxu0
  %v189 = vadd.f32 0.0, %v188
  %190 = vmatmul.f32.gmra.mxu0 %v41
  %v191 = vpop.f32.mrf.mxu0
  %v192 = vadd.f32 0.0, %v191
  %193 = vmatmul.f32.gmra.mxu0 %v44
  %v194 = vpop.f32.mrf.mxu0
  %v195 = vadd.f32 0.0, %v194
  %196 = vmatmul.f32.gmra.mxu0 %v47
  %v197 = vpop.f32.mrf.mxu0
  %v198 = vadd.f32 0.0, %v197
  %199 = vmatmul.f32.gmra.mxu0 %v50
  %v200 = vpop.f32.mrf.mxu0
  %v201 = vadd.f32 0.0, %v200
  %202 = vmatmul.f32.gmra.mxu0 %v53
  %v203 = vpop.f32.mrf.mxu0
  %v204 = vadd.f32 0.0, %v203
  %205 = vmatmul.f32.gmra.mxu0 %v56
  %v206 = vpop.f32.mrf.mxu0
  %v207 = vadd.f32 0.0, %v206
  %208 = vmatmul.f32.gmra.mxu0 %v59
  %v209 = vpop.f32.mrf.mxu0
  %v210 = vadd.f32 0.0, %v209
  %211 = vmatmul.f32.gmra.mxu0 %v62
  %v212 = vpop.f32.mrf.mxu0
  %v213 = vadd.f32 0.0, %v212
  %214 = vmatmul.f32.gmra.mxu0 %v65
  %v215 = vpop.f32.mrf.mxu0
  %v216 = vadd.f32 0.0, %v215
  %217 = vdwg.mxu0
  %218 = vmatpush.msra.mxu0 %v99
  %219 = vmatpush.msra.mxu0 %v98
  %220 = vmatpush.msra.mxu0 %v97
  %221 = vmatpush.msra.mxu0 %v96
  %222 = vmatpush.msra.mxu0 %v95
  %223 = vmatpush.msra.mxu0 %v94
  %224 = vmatpush.msra.mxu0 %v93
  %225 = vmatpush.msra.mxu0 %v92
  %226 = vmatpush.msra.mxu0 %v91
  %227 = vmatpush.msra.mxu0 %v90
  %228 = vmatpush.msra.mxu0 %v89
  %229 = vmatpush.msra.mxu0 %v88
  %230 = vmatpush.msra.mxu0 %v87
  %231 = vmatpush.msra.mxu0 %v86
  %232 = vmatpush.msra.mxu0 %v85
  %233 = vmatpush.msra.mxu0 %v84
  %234 = vmatmul.f32.gmra.mxu0 %v21
  %v235 = vpop.f32.mrf.mxu0
  %v236 = vadd.f32 %v171, %v235
  %237 = vmatmul.f32.gmra.mxu0 %v24
  %v238 = vpop.f32.mrf.mxu0
  %v239 = vadd.f32 %v174, %v238
  %240 = vmatmul.f32.gmra.mxu0 %v27
  %v241 = vpop.f32.mrf.mxu0
  %v242 = vadd.f32 %v177, %v241
  %243 = vmatmul.f32.gmra.mxu0 %v30
  %v244 = vpop.f32.mrf.mxu0
  %v245 = vadd.f32 %v180, %v244
  %246 = vmatmul.f32.gmra.mxu0 %v33
  %v247 = vpop.f32.mrf.mxu0
  %v248 = vadd.f32 %v183, %v247
  %249 = vmatmul.f32.gmra.mxu0 %v36
  %v250 = vpop.f32.mrf.mxu0
  %v251 = vadd.f32 %v186, %v250
  %252 = vmatmul.f32.gmra.mxu0 %v39
  %v253 = vpop.f32.mrf.mxu0
  %v254 = vadd.f32 %v189, %v253
  %255 = vmatmul.f32.gmra.mxu0 %v42
  %v256 = vpop.f32.mrf.mxu0
  %v257 = vadd.f32 %v192, %v256
  %258 = vmatmul.f32.gmra.mxu0 %v45
  %v259 = vpop.f32.mrf.mxu0
  %v260 = vadd.f32 %v195, %v259
  %261 = vmatmul.f32.gmra.mxu0 %v48
  %v262 = vpop.f32.mrf.mxu0
  %v263 = vadd.f32 %v198, %v262
  %264 = vmatmul.f32.gmra.mxu0 %v51
  %v265 = vpop.f32.mrf.mxu0
  %v266 = vadd.f32 %v201, %v265
  %267 = vmatmul.f32.gmra.mxu0 %v54
  %v268 = vpop.f32.mrf.mxu0
  %v269 = vadd.f32 %v204, %v268
  %270 = vmatmul.f32.gmra.mxu0 %v57
  %v271 = vpop.f32.mrf.mxu0
  %v272 = vadd.f32 %v207, %v271
  %273 = vmatmul.f32.gmra.mxu0 %v60
  %v274 = vpop.f32.mrf.mxu0
  %v275 = vadd.f32 %v210, %v274
  %276 = vmatmul.f32.gmra.mxu0 %v63
  %v277 = vpop.f32.mrf.mxu0
  %v278 = vadd.f32 %v213, %v277
  %279 = vmatmul.f32.gmra.mxu0 %v66
  %v280 = vpop.f32.mrf.mxu0
  %v281 = vadd.f32 %v216, %v280
  %282 = vdwg.mxu0
  %283 = vmatpush.msra.mxu0 0.0
  %284 = vmatpush.msra.mxu0 0.0
  %285 = vmatpush.msra.mxu0 0.0
  %286 = vmatpush.msra.mxu0 0.0
  %287 = vmatpush.msra.mxu0 0.0
  %288 = vmatpush.msra.mxu0 0.0
  %289 = vmatpush.msra.mxu0 0.0
  %290 = vmatpush.msra.mxu0 0.0
  %291 = vmatpush.msra.mxu0 0.0
  %292 = vmatpush.msra.mxu0 0.0
  %293 = vmatpush.msra.mxu0 0.0
  %294 = vmatpush.msra.mxu0 0.0
  %295 = vmatpush.msra.mxu0 %v103
  %296 = vmatpush.msra.mxu0 %v102
  %297 = vmatpush.msra.mxu0 %v101
  %298 = vmatpush.msra.mxu0 %v100
  %299 = vmatmul.f32.gmra.mxu0 %v106
  %v300 = vpop.f32.mrf.mxu0
  %v301 = vadd.f32 %v236, %v300
  %302 = vmatmul.f32.gmra.mxu0 %v109
  %v303 = vpop.f32.mrf.mxu0
  %v304 = vadd.f32 %v239, %v303
  %305 = vmatmul.f32.gmra.mxu0 %v112
  %v306 = vpop.f32.mrf.mxu0
  %v307 = vadd.f32 %v242, %v306
  %308 = vmatmul.f32.gmra.mxu0 %v115
  %v309 = vpop.f32.mrf.mxu0
  %v310 = vadd.f32 %v245, %v309
  %311 = vmatmul.f32.gmra.mxu0 %v118
  %v312 = vpop.f32.mrf.mxu0
  %v313 = vadd.f32 %v248, %v312
  %314 = vmatmul.f32.gmra.mxu0 %v121
  %v315 = vpop.f32.mrf.mxu0
  %v316 = vadd.f32 %v251, %v315
  %317 = vmatmul.f32.gmra.mxu0 %v124
  %v318 = vpop.f32.mrf.mxu0
  %v319 = vadd.f32 %v254, %v318
  %320 = vmatmul.f32.gmra.mxu0 %v127
  %v321 = vpop.f32.mrf.mxu0
  %v322 = vadd.f32 %v257, %v321
  %323 = vmatmul.f32.gmra.mxu0 %v130
  %v324 = vpop.f32.mrf.mxu0
  %v325 = vadd.f32 %v260, %v324
  %326 = vmatmul.f32.gmra.mxu0 %v133
  %v327 = vpop.f32.mrf.mxu0
  %v328 = vadd.f32 %v263, %v327
  %329 = vmatmul.f32.gmra.mxu0 %v136
  %v330 = vpop.f32.mrf.mxu0
  %v331 = vadd.f32 %v266, %v330
  %332 = vmatmul.f32.gmra.mxu0 %v139
  %v333 = vpop.f32.mrf.mxu0
  %v334 = vadd.f32 %v269, %v333
  %335 = vmatmul.f32.gmra.mxu0 %v142
  %v336 = vpop.f32.mrf.mxu0
  %v337 = vadd.f32 %v272, %v336
  %338 = vmatmul.f32.gmra.mxu0 %v145
  %v339 = vpop.f32.mrf.mxu0
  %v340 = vadd.f32 %v275, %v339
  %341 = vmatmul.f32.gmra.mxu0 %v148
  %v342 = vpop.f32.mrf.mxu0
  %v343 = vadd.f32 %v278, %v342
  %344 = vmatmul.f32.gmra.mxu0 %v151
  %v345 = vpop.f32.mrf.mxu0
  %v346 = vadd.f32 %v281, %v345
  %347 = vdwg.mxu0
  %v348 = vld [vmem:[%s2] sm:$0x1]
  %v350 = vperm.slane %v348, 0
  %v352 = vmul.f32 %v301, %v350
  %v353 = vmul.f32 %v304, %v350
  %v354 = vmul.f32 %v307, %v350
  %v355 = vmul.f32 %v310, %v350
  %v356 = vmul.f32 %v313, %v350
  %v357 = vmul.f32 %v316, %v350
  %v358 = vmul.f32 %v319, %v350
  %v359 = vmul.f32 %v322, %v350
  %v360 = vmul.f32 %v325, %v350
  %v361 = vmul.f32 %v328, %v350
  %v362 = vmul.f32 %v331, %v350
  %v363 = vmul.f32 %v334, %v350
  %v364 = vmul.f32 %v337, %v350
  %v365 = vmul.f32 %v340, %v350
  %v366 = vmul.f32 %v343, %v350
  %v367 = vmul.f32 %v346, %v350
  %v368 = vld [vmem:[%s3] sm:$0x1]
  %v370 = vperm.slane %v368, 0
  %v372 = vadd.f32 %v352, %v370
  %v373 = vadd.f32 %v353, %v370
  %v374 = vadd.f32 %v354, %v370
  %v375 = vadd.f32 %v355, %v370
  %v376 = vadd.f32 %v356, %v370
  %v377 = vadd.f32 %v357, %v370
  %v378 = vadd.f32 %v358, %v370
  %v379 = vadd.f32 %v359, %v370
  %v380 = vadd.f32 %v360, %v370
  %v381 = vadd.f32 %v361, %v370
  %v382 = vadd.f32 %v362, %v370
  %v383 = vadd.f32 %v363, %v370
  %v384 = vadd.f32 %v364, %v370
  %v385 = vadd.f32 %v365, %v370
  %v386 = vadd.f32 %v366, %v370
  %v387 = vadd.f32 %v367, %v370
  %v388 = vld [vmem:[%s4] sm:$0xff]
  %v389 = vld [vmem:[%s4 + $0x8] sm:$0xff]
  %v390 = vld [vmem:[%s4 + $0x10] sm:$0xff]
  %v391 = vld [vmem:[%s4 + $0x18] sm:$0xff]
  %v392 = vld [vmem:[%s4 + $0x20] sm:$0xff]
  %v393 = vld [vmem:[%s4 + $0x28] sm:$0xff]
  %v394 = vld [vmem:[%s4 + $0x30] sm:$0xff]
  %v395 = vld [vmem:[%s4 + $0x38] sm:$0xff]
  %v396 = vld [vmem:[%s4 + $0x40] sm:$0xff]
  %v397 = vld [vmem:[%s4 + $0x48] sm:$0xff]
  %v398 = vld [vmem:[%s4 + $0x50] sm:$0xff]
  %v399 = vld [vmem:[%s4 + $0x58] sm:$0xff]
  %v400 = vld [vmem:[%s4 + $0x60] sm:$0xff]
  %v401 = vld [vmem:[%s4 + $0x68] sm:$0xff]
  %v402 = vld [vmem:[%s4 + $0x70] sm:$0xff]
  %v403 = vld [vmem:[%s4 + $0x78] sm:$0xff]
  %v404 = vadd.f32 %v372, %v388
  %v405 = vadd.f32 %v373, %v389
  %v406 = vadd.f32 %v374, %v390
  %v407 = vadd.f32 %v375, %v391
  %v408 = vadd.f32 %v376, %v392
  %v409 = vadd.f32 %v377, %v393
  %v410 = vadd.f32 %v378, %v394
  %v411 = vadd.f32 %v379, %v395
  %v412 = vadd.f32 %v380, %v396
  %v413 = vadd.f32 %v381, %v397
  %v414 = vadd.f32 %v382, %v398
  %v415 = vadd.f32 %v383, %v399
  %v416 = vadd.f32 %v384, %v400
  %v417 = vadd.f32 %v385, %v401
  %v418 = vadd.f32 %v386, %v402
  %v419 = vadd.f32 %v387, %v403
  %v420 = vmax.f32 %v404, 0.0
  %v421 = vmax.f32 %v405, 0.0
  %v422 = vmax.f32 %v406, 0.0
  %v423 = vmax.f32 %v407, 0.0
  %v424 = vmax.f32 %v408, 0.0
  %v425 = vmax.f32 %v409, 0.0
  %v426 = vmax.f32 %v410, 0.0
  %v427 = vmax.f32 %v411, 0.0
  %v428 = vmax.f32 %v412, 0.0
  %v429 = vmax.f32 %v413, 0.0
  %v430 = vmax.f32 %v414, 0.0
  %v431 = vmax.f32 %v415, 0.0
  %v432 = vmax.f32 %v416, 0.0
  %v433 = vmax.f32 %v417, 0.0
  %v434 = vmax.f32 %v418, 0.0
  %v435 = vmax.f32 %v419, 0.0
  %436 = vst.msk [vmem:[%s5] sm:$0xff] %vm104, %v420
  %437 = vst.msk [vmem:[%s5 + $0x8] sm:$0xff] %vm104, %v421
  %438 = vst.msk [vmem:[%s5 + $0x10] sm:$0xff] %vm104, %v422
  %439 = vst.msk [vmem:[%s5 + $0x18] sm:$0xff] %vm104, %v423
  %440 = vst.msk [vmem:[%s5 + $0x20] sm:$0xff] %vm104, %v424
  %441 = vst.msk [vmem:[%s5 + $0x28] sm:$0xff] %vm104, %v425
  %442 = vst.msk [vmem:[%s5 + $0x30] sm:$0xff] %vm104, %v426
  %443 = vst.msk [vmem:[%s5 + $0x38] sm:$0xff] %vm104, %v427
  %444 = vst.msk [vmem:[%s5 + $0x40] sm:$0xff] %vm104, %v428
  %445 = vst.msk [vmem:[%s5 + $0x48] sm:$0xff] %vm104, %v429
  %446 = vst.msk [vmem:[%s5 + $0x50] sm:$0xff] %vm104, %v430
  %447 = vst.msk [vmem:[%s5 + $0x58] sm:$0xff] %vm104, %v431
  %448 = vst.msk [vmem:[%s5 + $0x60] sm:$0xff] %vm104, %v432
  %449 = vst.msk [vmem:[%s5 + $0x68] sm:$0xff] %vm104, %v433
  %450 = vst.msk [vmem:[%s5 + $0x70] sm:$0xff] %vm104, %v434
  %451 = vst.msk [vmem:[%s5 + $0x78] sm:$0xff] %vm104, %v435
  // Predicated region
  $region22: #{macnet_forward.23} parent=0 // pred_check
    _
  $region23: #{macnet_forward.23} parent=0 // pred_check_branch
    %453 = sbr.rel (0) target = $region25
  $region24: #{macnet_forward.23} parent=0 // pred_region
    _
  $region25: #{macnet_forward.23} parent=0 // pred_fallthru
    _
  // Predicated region
  $region26: #{macnet_forward.23} parent=0 // pred_check
    _
  $region27: #{macnet_forward.23} parent=0 // pred_check_branch
    %455 = sbr.rel (0) target = $region29
  $region28: #{macnet_forward.23} parent=0 // pred_region
    _
  $region29: #{macnet_forward.23} parent=0 // pred_fallthru
    _

// kernel: macnet_forward.27
$region0: #{macnet_forward.27}
  #allocation0 [shape = 'u32[]', space=smem, size = 0x4, offset = 0x4, fixed_abs, tag = 'smem constant byte address 0x4 - core index']
  #allocation1 [shape = 'u32[72,128]{1,0:T(1,128)}', space=vmem, size = 0x9000, scoped, tag = 'internal scratch']
  %s0 = inlined_call_operand.vmem [shape: f32[32,32], index: 0, kind: input, shape index: {}]
  %s1 = inlined_call_operand.vmem [shape: f32[32,64], index: 1, kind: input, shape index: {}]
  %s2 = inlined_call_operand.vmem [shape: f32[1,64], index: 2, kind: input, shape index: {}]
  %s3 = inlined_call_operand.vmem [shape: f32[1,64], index: 3, kind: input, shape index: {}]
  %s4 = inlined_call_operand.vmem [shape: f32[32,64], index: 4, kind: output, shape index: {}]
  %s5 = sld [smem:[#allocation0]]
  $region26: #{macnet_forward.27} parent=0
    _
  %s7 = ssub.s32 1, %s5
  %s8 = scalar_select 0, %s7, %s5
  // Predicated region
  $region2: #{macnet_forward.27} parent=0 // pred_check
    _
  $region3: #{macnet_forward.27} parent=0 // pred_check_branch
    %10 = sbr.rel (0) target = $region5
  $region4: #{macnet_forward.27} parent=0 // pred_region
    _
  $region5: #{macnet_forward.27} parent=0 // pred_fallthru
    _
  // Predicated region
  $region6: #{macnet_forward.27} parent=0 // pred_check
    _
  $region7: #{macnet_forward.27} parent=0 // pred_check_branch
    %12 = sbr.rel (0) target = $region9
  $region8: #{macnet_forward.27} parent=0 // pred_region
    _
  $region9: #{macnet_forward.27} parent=0 // pred_fallthru
    _
  // Predicated region
  $region10: #{macnet_forward.27} parent=0 // pred_check
    _
  $region11: #{macnet_forward.27} parent=0 // pred_check_branch
    %14 = sbr.rel (0) target = $region13
  $region12: #{macnet_forward.27} parent=0 // pred_region
    _
  $region13: #{macnet_forward.27} parent=0 // pred_fallthru
    _
  // Predicated region
  $region14: #{macnet_forward.27} parent=0 // pred_check
    _
  $region15: #{macnet_forward.27} parent=0 // pred_check_branch
    %16 = sbr.rel (0) target = $region17
  $region16: #{macnet_forward.27} parent=0 // pred_region
    _
  $region17: #{macnet_forward.27} parent=0 // pred_fallthru
    _
  %v17 = vld [vmem:[%s0] sm:$0xff]
  %v18 = vld [vmem:[%s0 + $0x8] sm:$0xff]
  %v19 = vld [vmem:[%s0 + $0x10] sm:$0xff]
  %v20 = vld [vmem:[%s0 + $0x18] sm:$0xff]
  %v21 = vld [vmem:[%s1] sm:$0xff]
  %v22 = vld [vmem:[%s1 + $0x8] sm:$0xff]
  %v23 = vld [vmem:[%s1 + $0x10] sm:$0xff]
  %v24 = vld [vmem:[%s1 + $0x18] sm:$0xff]
  %vm25 = vcmask 261120
  %v27 = vsel %vm25, %v17, 0
  %v30 = vsel %vm25, %v18, 0
  %v33 = vsel %vm25, %v19, 0
  %v36 = vsel %vm25, %v20, 0
  %38 = vmatpush.msra.mxu0 0.0
  %39 = vmatpush.msra.mxu0 0.0
  %40 = vmatpush.msra.mxu0 0.0
  %41 = vmatpush.msra.mxu0 0.0
  %42 = vmatpush.msra.mxu0 0.0
  %43 = vmatpush.msra.mxu0 0.0
  %44 = vmatpush.msra.mxu0 0.0
  %45 = vmatpush.msra.mxu0 0.0
  %46 = vmatpush.msra.mxu0 0.0
  %47 = vmatpush.msra.mxu0 0.0
  %48 = vmatpush.msra.mxu0 0.0
  %49 = vmatpush.msra.mxu0 0.0
  %50 = vmatpush.msra.mxu0 %v24
  %51 = vmatpush.msra.mxu0 %v23
  %52 = vmatpush.msra.mxu0 %v22
  %53 = vmatpush.msra.mxu0 %v21
  %54 = vmatmul.f32.gmra.mxu0 %v27
  %v55 = vpop.f32.mrf.mxu0
  %v56 = vadd.f32 0.0, %v55
  %57 = vmatmul.f32.gmra.mxu0 %v30
  %v58 = vpop.f32.mrf.mxu0
  %v59 = vadd.f32 0.0, %v58
  %60 = vmatmul.f32.gmra.mxu0 %v33
  %v61 = vpop.f32.mrf.mxu0
  %v62 = vadd.f32 0.0, %v61
  %63 = vmatmul.f32.gmra.mxu0 %v36
  %v64 = vpop.f32.mrf.mxu0
  %v65 = vadd.f32 0.0, %v64
  %66 = vdwg.mxu0
  %v67 = vld [vmem:[%s2] sm:$0x1]
  %v69 = vperm.slane %v67, 0
  %v71 = vmul.f32 %v56, %v69
  %v72 = vmul.f32 %v59, %v69
  %v73 = vmul.f32 %v62, %v69
  %v74 = vmul.f32 %v65, %v69
  %v75 = vld [vmem:[%s3] sm:$0x1]
  %v77 = vperm.slane %v75, 0
  %v79 = vadd.f32 %v71, %v77
  %v80 = vadd.f32 %v72, %v77
  %v81 = vadd.f32 %v73, %v77
  %v82 = vadd.f32 %v74, %v77
  %vm83 = vcmask 523264
  %84 = vst.msk [vmem:[%s4] sm:$0xff] %vm83, %v79
  %85 = vst.msk [vmem:[%s4 + $0x8] sm:$0xff] %vm83, %v80
  %86 = vst.msk [vmem:[%s4 + $0x10] sm:$0xff] %vm83, %v81
  %87 = vst.msk [vmem:[%s4 + $0x18] sm:$0xff] %vm83, %v82
  // Predicated region
  $region18: #{macnet_forward.27} parent=0 // pred_check
    _
  $region19: #{macnet_forward.27} parent=0 // pred_check_branch
    %89 = sbr.rel (0) target = $region21
  $region20: #{macnet_forward.27} parent=0 // pred_region
    _
  $region21: #{macnet_forward.27} parent=0 // pred_fallthru
    _
  // Predicated region
  $region22: #{macnet_forward.27} parent=0 // pred_check
    _
  $region23: #{macnet_forward.27} parent=0 // pred_check_branch
    %91 = sbr.rel (0) target = $region25
  $region24: #{macnet_forward.27} parent=0 // pred_region
    _
  $region25: #{macnet_forward.27} parent=0 // pred_fallthru
    _

// kernel: macnet_forward.26
$region0: #{macnet_forward.26}
  #allocation0 [shape = 'u32[]', space=smem, size = 0x4, offset = 0x4, fixed_abs, tag = 'smem constant byte address 0x4 - core index']
  #allocation1 [shape = 'u32[72,128]{1,0:T(1,128)}', space=vmem, size = 0x9000, scoped, tag = 'internal scratch']
  %s0 = inlined_call_operand.vmem [shape: f32[32,288], index: 0, kind: input, shape index: {}]
  %s1 = inlined_call_operand.vmem [shape: f32[288,64], index: 1, kind: input, shape index: {}]
  %s2 = inlined_call_operand.vmem [shape: f32[1,64], index: 2, kind: input, shape index: {}]
  %s3 = inlined_call_operand.vmem [shape: f32[1,64], index: 3, kind: input, shape index: {}]
  %s4 = inlined_call_operand.vmem [shape: f32[32,64], index: 4, kind: output, shape index: {}]
  %s5 = sld [smem:[#allocation0]]
  $region26: #{macnet_forward.26} parent=0
    _
  %s7 = ssub.s32 1, %s5
  %s8 = scalar_select 0, %s7, %s5
  // Predicated region
  $region2: #{macnet_forward.26} parent=0 // pred_check
    _
  $region3: #{macnet_forward.26} parent=0 // pred_check_branch
    %10 = sbr.rel (0) target = $region5
  $region4: #{macnet_forward.26} parent=0 // pred_region
    _
  $region5: #{macnet_forward.26} parent=0 // pred_fallthru
    _
  // Predicated region
  $region6: #{macnet_forward.26} parent=0 // pred_check
    _
  $region7: #{macnet_forward.26} parent=0 // pred_check_branch
    %12 = sbr.rel (0) target = $region9
  $region8: #{macnet_forward.26} parent=0 // pred_region
    _
  $region9: #{macnet_forward.26} parent=0 // pred_fallthru
    _
  // Predicated region
  $region10: #{macnet_forward.26} parent=0 // pred_check
    _
  $region11: #{macnet_forward.26} parent=0 // pred_check_branch
    %14 = sbr.rel (0) target = $region13
  $region12: #{macnet_forward.26} parent=0 // pred_region
    _
  $region13: #{macnet_forward.26} parent=0 // pred_fallthru
    _
  // Predicated region
  $region14: #{macnet_forward.26} parent=0 // pred_check
    _
  $region15: #{macnet_forward.26} parent=0 // pred_check_branch
    %16 = sbr.rel (0) target = $region17
  $region16: #{macnet_forward.26} parent=0 // pred_region
    _
  $region17: #{macnet_forward.26} parent=0 // pred_fallthru
    _
  %v17 = vld [vmem:[%s0] sm:$0xff]
  %v18 = vld [vmem:[%s0 + $0x8] sm:$0xff]
  %v19 = vld [vmem:[%s0 + $0x10] sm:$0xff]
  %v20 = vld [vmem:[%s0 + $0x18] sm:$0xff]
  %v21 = vld [vmem:[%s0 + $0x20] sm:$0xff]
  %v22 = vld [vmem:[%s0 + $0x28] sm:$0xff]
  %v23 = vld [vmem:[%s0 + $0x30] sm:$0xff]
  %v24 = vld [vmem:[%s0 + $0x38] sm:$0xff]
  %v25 = vld [vmem:[%s0 + $0x40] sm:$0xff]
  %v26 = vld [vmem:[%s0 + $0x48] sm:$0xff]
  %v27 = vld [vmem:[%s0 + $0x50] sm:$0xff]
  %v28 = vld [vmem:[%s0 + $0x58] sm:$0xff]
  %v29 = vld [vmem:[%s1] sm:$0xff]
  %v30 = vld [vmem:[%s1 + $0x8] sm:$0xff]
  %v31 = vld [vmem:[%s1 + $0x10] sm:$0xff]
  %v32 = vld [vmem:[%s1 + $0x18] sm:$0xff]
  %v33 = vld [vmem:[%s1 + $0x20] sm:$0xff]
  %v34 = vld [vmem:[%s1 + $0x28] sm:$0xff]
  %v35 = vld [vmem:[%s1 + $0x30] sm:$0xff]
  %v36 = vld [vmem:[%s1 + $0x38] sm:$0xff]
  %v37 = vld [vmem:[%s1 + $0x40] sm:$0xff]
  %v38 = vld [vmem:[%s1 + $0x48] sm:$0xff]
  %v39 = vld [vmem:[%s1 + $0x50] sm:$0xff]
  %v40 = vld [vmem:[%s1 + $0x58] sm:$0xff]
  %v41 = vld [vmem:[%s1 + $0x60] sm:$0xff]
  %v42 = vld [vmem:[%s1 + $0x68] sm:$0xff]
  %v43 = vld [vmem:[%s1 + $0x70] sm:$0xff]
  %v44 = vld [vmem:[%s1 + $0x78] sm:$0xff]
  %v45 = vld [vmem:[%s1 + $0x80] sm:$0xff]
  %v46 = vld [vmem:[%s1 + $0x88] sm:$0xff]
  %v47 = vld [vmem:[%s1 + $0x90] sm:$0xff]
  %v48 = vld [vmem:[%s1 + $0x98] sm:$0xff]
  %v49 = vld [vmem:[%s1 + $0xa0] sm:$0xff]
  %v50 = vld [vmem:[%s1 + $0xa8] sm:$0xff]
  %v51 = vld [vmem:[%s1 + $0xb0] sm:$0xff]
  %v52 = vld [vmem:[%s1 + $0xb8] sm:$0xff]
  %v53 = vld [vmem:[%s1 + $0xc0] sm:$0xff]
  %v54 = vld [vmem:[%s1 + $0xc8] sm:$0xff]
  %v55 = vld [vmem:[%s1 + $0xd0] sm:$0xff]
  %v56 = vld [vmem:[%s1 + $0xd8] sm:$0xff]
  %v57 = vld [vmem:[%s1 + $0xe0] sm:$0xff]
  %v58 = vld [vmem:[%s1 + $0xe8] sm:$0xff]
  %v59 = vld [vmem:[%s1 + $0xf0] sm:$0xff]
  %v60 = vld [vmem:[%s1 + $0xf8] sm:$0xff]
  %v61 = vld [vmem:[%s1 + $0x100] sm:$0xff]
  %v62 = vld [vmem:[%s1 + $0x108] sm:$0xff]
  %v63 = vld [vmem:[%s1 + $0x110] sm:$0xff]
  %v64 = vld [vmem:[%s1 + $0x118] sm:$0xff]
  %vm65 = vcmask 261120
  %v67 = vsel %vm65, %v19, 0
  %v70 = vsel %vm65, %v22, 0
  %v73 = vsel %vm65, %v25, 0
  %v76 = vsel %vm65, %v28, 0
  %78 = vmatpush.msra.mxu0 %v44
  %79 = vmatpush.msra.mxu0 %v43
  %80 = vmatpush.msra.mxu0 %v42
  %81 = vmatpush.msra.mxu0 %v41
  %82 = vmatpush.msra.mxu0 %v40
  %83 = vmatpush.msra.mxu0 %v39
  %84 = vmatpush.msra.mxu0 %v38
  %85 = vmatpush.msra.mxu0 %v37
  %86 = vmatpush.msra.mxu0 %v36
  %87 = vmatpush.msra.mxu0 %v35
  %88 = vmatpush.msra.mxu0 %v34
  %89 = vmatpush.msra.mxu0 %v33
  %90 = vmatpush.msra.mxu0 %v32
  %91 = vmatpush.msra.mxu0 %v31
  %92 = vmatpush.msra.mxu0 %v30
  %93 = vmatpush.msra.mxu0 %v29
  %94 = vmatmul.f32.gmra.mxu0 %v17
  %v95 = vpop.f32.mrf.mxu0
  %v96 = vadd.f32 0.0, %v95
  %97 = vmatmul.f32.gmra.mxu0 %v20
  %v98 = vpop.f32.mrf.mxu0
  %v99 = vadd.f32 0.0, %v98
  %100 = vmatmul.f32.gmra.mxu0 %v23
  %v101 = vpop.f32.mrf.mxu0
  %v102 = vadd.f32 0.0, %v101
  %103 = vmatmul.f32.gmra.mxu0 %v26
  %v104 = vpop.f32.mrf.mxu0
  %v105 = vadd.f32 0.0, %v104
  %106 = vdwg.mxu0
  %107 = vmatpush.msra.mxu0 %v60
  %108 = vmatpush.msra.mxu0 %v59
  %109 = vmatpush.msra.mxu0 %v58
  %110 = vmatpush.msra.mxu0 %v57
  %111 = vmatpush.msra.mxu0 %v56
  %112 = vmatpush.msra.mxu0 %v55
  %113 = vmatpush.msra.mxu0 %v54
  %114 = vmatpush.msra.mxu0 %v53
  %115 = vmatpush.msra.mxu0 %v52
  %116 = vmatpush.msra.mxu0 %v51
  %117 = vmatpush.msra.mxu0 %v50
  %118 = vmatpush.msra.mxu0 %v49
  %119 = vmatpush.msra.mxu0 %v48
  %120 = vmatpush.msra.mxu0 %v47
  %121 = vmatpush.msra.mxu0 %v46
  %122 = vmatpush.msra.mxu0 %v45
  %123 = vmatmul.f32.gmra.mxu0 %v18
  %v124 = vpop.f32.mrf.mxu0
  %v125 = vadd.f32 %v96, %v124
  %126 = vmatmul.f32.gmra.mxu0 %v21
  %v127 = vpop.f32.mrf.mxu0
  %v128 = vadd.f32 %v99, %v127
  %129 = vmatmul.f32.gmra.mxu0 %v24
  %v130 = vpop.f32.mrf.mxu0
  %v131 = vadd.f32 %v102, %v130
  %132 = vmatmul.f32.gmra.mxu0 %v27
  %v133 = vpop.f32.mrf.mxu0
  %v134 = vadd.f32 %v105, %v133
  %135 = vdwg.mxu0
  %136 = vmatpush.msra.mxu0 0.0
  %137 = vmatpush.msra.mxu0 0.0
  %138 = vmatpush.msra.mxu0 0.0
  %139 = vmatpush.msra.mxu0 0.0
  %140 = vmatpush.msra.mxu0 0.0
  %141 = vmatpush.msra.mxu0 0.0
  %142 = vmatpush.msra.mxu0 0.0
  %143 = vmatpush.msra.mxu0 0.0
  %144 = vmatpush.msra.mxu0 0.0
  %145 = vmatpush.msra.mxu0 0.0
  %146 = vmatpush.msra.mxu0 0.0
  %147 = vmatpush.msra.mxu0 0.0
  %148 = vmatpush.msra.mxu0 %v64
  %149 = vmatpush.msra.mxu0 %v63
  %150 = vmatpush.msra.mxu0 %v62
  %151 = vmatpush.msra.mxu0 %v61
  %152 = vmatmul.f32.gmra.mxu0 %v67
  %v153 = vpop.f32.mrf.mxu0
  %v154 = vadd.f32 %v125, %v153
  %155 = vmatmul.f32.gmra.mxu0 %v70
  %v156 = vpop.f32.mrf.mxu0
  %v157 = vadd.f32 %v128, %v156
  %158 = vmatmul.f32.gmra.mxu0 %v73
  %v159 = vpop.f32.mrf.mxu0
  %v160 = vadd.f32 %v131, %v159
  %161 = vmatmul.f32.gmra.mxu0 %v76
  %v162 = vpop.f32.mrf.mxu0
  %v163 = vadd.f32 %v134, %v162
  %164 = vdwg.mxu0
  %v165 = vld [vmem:[%s2] sm:$0x1]
  %v167 = vperm.slane %v165, 0
  %v169 = vmul.f32 %v154, %v167
  %v170 = vmul.f32 %v157, %v167
  %v171 = vmul.f32 %v160, %v167
  %v172 = vmul.f32 %v163, %v167
  %v173 = vld [vmem:[%s3] sm:$0x1]
  %v175 = vperm.slane %v173, 0
  %v177 = vadd.f32 %v169, %v175
  %v178 = vadd.f32 %v170, %v175
  %v179 = vadd.f32 %v171, %v175
  %v180 = vadd.f32 %v172, %v175
  %v181 = vmax.f32 %v177, 0.0
  %v182 = vmax.f32 %v178, 0.0
  %v183 = vmax.f32 %v179, 0.0
  %v184 = vmax.f32 %v180, 0.0
  %vm185 = vcmask 523264
  %186 = vst.msk [vmem:[%s4] sm:$0xff] %vm185, %v181
  %187 = vst.msk [vmem:[%s4 + $0x8] sm:$0xff] %vm185, %v182
  %188 = vst.msk [vmem:[%s4 + $0x10] sm:$0xff] %vm185, %v183
  %189 = vst.msk [vmem:[%s4 + $0x18] sm:$0xff] %vm185, %v184
  // Predicated region
  $region18: #{macnet_forward.26} parent=0 // pred_check
    _
  $region19: #{macnet_forward.26} parent=0 // pred_check_branch
    %191 = sbr.rel (0) target = $region21
  $region20: #{macnet_forward.26} parent=0 // pred_region
    _
  $region21: #{macnet_forward.26} parent=0 // pred_fallthru
    _
  // Predicated region
  $region22: #{macnet_forward.26} parent=0 // pred_check
    _
  $region23: #{macnet_forward.26} parent=0 // pred_check_branch
    %193 = sbr.rel (0) target = $region25
  $region24: #{macnet_forward.26} parent=0 // pred_region
    _
  $region25: #{macnet_forward.26} parent=0 // pred_fallthru
    _

// kernel: macnet_forward.32
$region0: #{macnet_forward.32}
  #allocation0 [shape = 'u32[]', space=smem, size = 0x4, offset = 0x4, fixed_abs, tag = 'smem constant byte address 0x4 - core index']
  #allocation1 [shape = 'u32[72,128]{1,0:T(1,128)}', space=vmem, size = 0x9000, scoped, tag = 'internal scratch']
  %s0 = inlined_call_operand.vmem [shape: f32[32,64], index: 0, kind: input, shape index: {}]
  %s1 = inlined_call_operand.vmem [shape: f32[64,128], index: 1, kind: input, shape index: {}]
  %s2 = inlined_call_operand.vmem [shape: f32[1,128], index: 2, kind: input, shape index: {}]
  %s3 = inlined_call_operand.vmem [shape: f32[1,128], index: 3, kind: input, shape index: {}]
  %s4 = inlined_call_operand.vmem [shape: f32[32,128], index: 4, kind: output, shape index: {}]
  %s5 = sld [smem:[#allocation0]]
  $region26: #{macnet_forward.32} parent=0
    _
  %s7 = ssub.s32 1, %s5
  %s8 = scalar_select 0, %s7, %s5
  // Predicated region
  $region2: #{macnet_forward.32} parent=0 // pred_check
    _
  $region3: #{macnet_forward.32} parent=0 // pred_check_branch
    %10 = sbr.rel (0) target = $region5
  $region4: #{macnet_forward.32} parent=0 // pred_region
    _
  $region5: #{macnet_forward.32} parent=0 // pred_fallthru
    _
  // Predicated region
  $region6: #{macnet_forward.32} parent=0 // pred_check
    _
  $region7: #{macnet_forward.32} parent=0 // pred_check_branch
    %12 = sbr.rel (0) target = $region9
  $region8: #{macnet_forward.32} parent=0 // pred_region
    _
  $region9: #{macnet_forward.32} parent=0 // pred_fallthru
    _
  // Predicated region
  $region10: #{macnet_forward.32} parent=0 // pred_check
    _
  $region11: #{macnet_forward.32} parent=0 // pred_check_branch
    %14 = sbr.rel (0) target = $region13
  $region12: #{macnet_forward.32} parent=0 // pred_region
    _
  $region13: #{macnet_forward.32} parent=0 // pred_fallthru
    _
  // Predicated region
  $region14: #{macnet_forward.32} parent=0 // pred_check
    _
  $region15: #{macnet_forward.32} parent=0 // pred_check_branch
    %16 = sbr.rel (0) target = $region17
  $region16: #{macnet_forward.32} parent=0 // pred_region
    _
  $region17: #{macnet_forward.32} parent=0 // pred_fallthru
    _
  %v17 = vld [vmem:[%s0] sm:$0xff]
  %v18 = vld [vmem:[%s0 + $0x8] sm:$0xff]
  %v19 = vld [vmem:[%s0 + $0x10] sm:$0xff]
  %v20 = vld [vmem:[%s0 + $0x18] sm:$0xff]
  %v21 = vld [vmem:[%s1] sm:$0xff]
  %v22 = vld [vmem:[%s1 + $0x8] sm:$0xff]
  %v23 = vld [vmem:[%s1 + $0x10] sm:$0xff]
  %v24 = vld [vmem:[%s1 + $0x18] sm:$0xff]
  %v25 = vld [vmem:[%s1 + $0x20] sm:$0xff]
  %v26 = vld [vmem:[%s1 + $0x28] sm:$0xff]
  %v27 = vld [vmem:[%s1 + $0x30] sm:$0xff]
  %v28 = vld [vmem:[%s1 + $0x38] sm:$0xff]
  %vm29 = vcmask 523264
  %v31 = vsel %vm29, %v17, 0
  %v34 = vsel %vm29, %v18, 0
  %v37 = vsel %vm29, %v19, 0
  %v40 = vsel %vm29, %v20, 0
  %42 = vmatpush.msra.mxu0 0.0
  %43 = vmatpush.msra.mxu0 0.0
  %44 = vmatpush.msra.mxu0 0.0
  %45 = vmatpush.msra.mxu0 0.0
  %46 = vmatpush.msra.mxu0 0.0
  %47 = vmatpush.msra.mxu0 0.0
  %48 = vmatpush.msra.mxu0 0.0
  %49 = vmatpush.msra.mxu0 0.0
  %50 = vmatpush.msra.mxu0 %v28
  %51 = vmatpush.msra.mxu0 %v27
  %52 = vmatpush.msra.mxu0 %v26
  %53 = vmatpush.msra.mxu0 %v25
  %54 = vmatpush.msra.mxu0 %v24
  %55 = vmatpush.msra.mxu0 %v23
  %56 = vmatpush.msra.mxu0 %v22
  %57 = vmatpush.msra.mxu0 %v21
  %58 = vmatmul.f32.gmra.mxu0 %v31
  %v59 = vpop.f32.mrf.mxu0
  %v60 = vadd.f32 0.0, %v59
  %61 = vmatmul.f32.gmra.mxu0 %v34
  %v62 = vpop.f32.mrf.mxu0
  %v63 = vadd.f32 0.0, %v62
  %64 = vmatmul.f32.gmra.mxu0 %v37
  %v65 = vpop.f32.mrf.mxu0
  %v66 = vadd.f32 0.0, %v65
  %67 = vmatmul.f32.gmra.mxu0 %v40
  %v68 = vpop.f32.mrf.mxu0
  %v69 = vadd.f32 0.0, %v68
  %70 = vdwg.mxu0
  %v71 = vld [vmem:[%s2] sm:$0x1]
  %v73 = vperm.slane %v71, 0
  %v75 = vmul.f32 %v60, %v73
  %v76 = vmul.f32 %v63, %v73
  %v77 = vmul.f32 %v66, %v73
  %v78 = vmul.f32 %v69, %v73
  %v79 = vld [vmem:[%s3] sm:$0x1]
  %v81 = vperm.slane %v79, 0
  %v83 = vadd.f32 %v75, %v81
  %v84 = vadd.f32 %v76, %v81
  %v85 = vadd.f32 %v77, %v81
  %v86 = vadd.f32 %v78, %v81
  %87 = vst [vmem:[%s4] sm:$0xff] %v83
  %88 = vst [vmem:[%s4 + $0x8] sm:$0xff] %v84
  %89 = vst [vmem:[%s4 + $0x10] sm:$0xff] %v85
  %90 = vst [vmem:[%s4 + $0x18] sm:$0xff] %v86
  // Predicated region
  $region18: #{macnet_forward.32} parent=0 // pred_check
    _
  $region19: #{macnet_forward.32} parent=0 // pred_check_branch
    %92 = sbr.rel (0) target = $region21
  $region20: #{macnet_forward.32} parent=0 // pred_region
    _
  $region21: #{macnet_forward.32} parent=0 // pred_fallthru
    _
  // Predicated region
  $region22: #{macnet_forward.32} parent=0 // pred_check
    _
  $region23: #{macnet_forward.32} parent=0 // pred_check_branch
    %94 = sbr.rel (0) target = $region25
  $region24: #{macnet_forward.32} parent=0 // pred_region
    _
  $region25: #{macnet_forward.32} parent=0 // pred_fallthru
    _

// kernel: macnet_forward.28
$region0: #{macnet_forward.28}
  #allocation0 [shape = 'u32[]', space=smem, size = 0x4, offset = 0x4, fixed_abs, tag = 'smem constant byte address 0x4 - core index']
  #allocation1 [shape = 'u32[72,128]{1,0:T(1,128)}', space=vmem, size = 0x9000, scoped, tag = 'internal scratch']
  %s0 = inlined_call_operand.vmem [shape: f32[32,576], index: 0, kind: input, shape index: {}]
  %s1 = inlined_call_operand.vmem [shape: f32[576,64], index: 1, kind: input, shape index: {}]
  %s2 = inlined_call_operand.vmem [shape: f32[1,64], index: 2, kind: input, shape index: {}]
  %s3 = inlined_call_operand.vmem [shape: f32[1,64], index: 3, kind: input, shape index: {}]
  %s4 = inlined_call_operand.vmem [shape: f32[32,64], index: 4, kind: input, shape index: {}]
  %s5 = inlined_call_operand.vmem [shape: f32[32,64], index: 5, kind: output, shape index: {}]
  %s6 = sld [smem:[#allocation0]]
  $region30: #{macnet_forward.28} parent=0
    _
  %s8 = ssub.s32 1, %s6
  %s9 = scalar_select 0, %s8, %s6
  // Predicated region
  $region2: #{macnet_forward.28} parent=0 // pred_check
    _
  $region3: #{macnet_forward.28} parent=0 // pred_check_branch
    %11 = sbr.rel (0) target = $region5
  $region4: #{macnet_forward.28} parent=0 // pred_region
    _
  $region5: #{macnet_forward.28} parent=0 // pred_fallthru
    _
  // Predicated region
  $region6: #{macnet_forward.28} parent=0 // pred_check
    _
  $region7: #{macnet_forward.28} parent=0 // pred_check_branch
    %13 = sbr.rel (0) target = $region9
  $region8: #{macnet_forward.28} parent=0 // pred_region
    _
  $region9: #{macnet_forward.28} parent=0 // pred_fallthru
    _
  // Predicated region
  $region10: #{macnet_forward.28} parent=0 // pred_check
    _
  $region11: #{macnet_forward.28} parent=0 // pred_check_branch
    %15 = sbr.rel (0) target = $region13
  $region12: #{macnet_forward.28} parent=0 // pred_region
    _
  $region13: #{macnet_forward.28} parent=0 // pred_fallthru
    _
  // Predicated region
  $region14: #{macnet_forward.28} parent=0 // pred_check
    _
  $region15: #{macnet_forward.28} parent=0 // pred_check_branch
    %17 = sbr.rel (0) target = $region17
  $region16: #{macnet_forward.28} parent=0 // pred_region
    _
  $region17: #{macnet_forward.28} parent=0 // pred_fallthru
    _
  // Predicated region
  $region18: #{macnet_forward.28} parent=0 // pred_check
    _
  $region19: #{macnet_forward.28} parent=0 // pred_check_branch
    %19 = sbr.rel (0) target = $region21
  $region20: #{macnet_forward.28} parent=0 // pred_region
    _
  $region21: #{macnet_forward.28} parent=0 // pred_fallthru
    _
  %v20 = vld [vmem:[%s0] sm:$0xff]
  %v21 = vld [vmem:[%s0 + $0x8] sm:$0xff]
  %v22 = vld [vmem:[%s0 + $0x10] sm:$0xff]
  %v23 = vld [vmem:[%s0 + $0x18] sm:$0xff]
  %v24 = vld [vmem:[%s0 + $0x20] sm:$0xff]
  %v25 = vld [vmem:[%s0 + $0x28] sm:$0xff]
  %v26 = vld [vmem:[%s0 + $0x30] sm:$0xff]
  %v27 = vld [vmem:[%s0 + $0x38] sm:$0xff]
  %v28 = vld [vmem:[%s0 + $0x40] sm:$0xff]
  %v29 = vld [vmem:[%s0 + $0x48] sm:$0xff]
  %v30 = vld [vmem:[%s0 + $0x50] sm:$0xff]
  %v31 = vld [vmem:[%s0 + $0x58] sm:$0xff]
  %v32 = vld [vmem:[%s0 + $0x60] sm:$0xff]
  %v33 = vld [vmem:[%s0 + $0x68] sm:$0xff]
  %v34 = vld [vmem:[%s0 + $0x70] sm:$0xff]
  %v35 = vld [vmem:[%s0 + $0x78] sm:$0xff]
  %v36 = vld [vmem:[%s0 + $0x80] sm:$0xff]
  %v37 = vld [vmem:[%s0 + $0x88] sm:$0xff]
  %v38 = vld [vmem:[%s0 + $0x90] sm:$0xff]
  %v39 = vld [vmem:[%s0 + $0x98] sm:$0xff]
  %v40 = vld [vmem:[%s1] sm:$0xff]
  %v41 = vld [vmem:[%s1 + $0x8] sm:$0xff]
  %v42 = vld [vmem:[%s1 + $0x10] sm:$0xff]
  %v43 = vld [vmem:[%s1 + $0x18] sm:$0xff]
  %v44 = vld [vmem:[%s1 + $0x20] sm:$0xff]
  %v45 = vld [vmem:[%s1 + $0x28] sm:$0xff]
  %v46 = vld [vmem:[%s1 + $0x30] sm:$0xff]
  %v47 = vld [vmem:[%s1 + $0x38] sm:$0xff]
  %v48 = vld [vmem:[%s1 + $0x40] sm:$0xff]
  %v49 = vld [vmem:[%s1 + $0x48] sm:$0xff]
  %v50 = vld [vmem:[%s1 + $0x50] sm:$0xff]
  %v51 = vld [vmem:[%s1 + $0x58] sm:$0xff]
  %v52 = vld [vmem:[%s1 + $0x60] sm:$0xff]
  %v53 = vld [vmem:[%s1 + $0x68] sm:$0xff]
  %v54 = vld [vmem:[%s1 + $0x70] sm:$0xff]
  %v55 = vld [vmem:[%s1 + $0x78] sm:$0xff]
  %v56 = vld [vmem:[%s1 + $0x80] sm:$0xff]
  %v57 = vld [vmem:[%s1 + $0x88] sm:$0xff]
  %v58 = vld [vmem:[%s1 + $0x90] sm:$0xff]
  %v59 = vld [vmem:[%s1 + $0x98] sm:$0xff]
  %v60 = vld [vmem:[%s1 + $0xa0] sm:$0xff]
  %v61 = vld [vmem:[%s1 + $0xa8] sm:$0xff]
  %v62 = vld [vmem:[%s1 + $0xb0] sm:$0xff]
  %v63 = vld [vmem:[%s1 + $0xb8] sm:$0xff]
  %v64 = vld [vmem:[%s1 + $0xc0] sm:$0xff]
  %v65 = vld [vmem:[%s1 + $0xc8] sm:$0xff]
  %v66 = vld [vmem:[%s1 + $0xd0] sm:$0xff]
  %v67 = vld [vmem:[%s1 + $0xd8] sm:$0xff]
  %v68 = vld [vmem:[%s1 + $0xe0] sm:$0xff]
  %v69 = vld [vmem:[%s1 + $0xe8] sm:$0xff]
  %v70 = vld [vmem:[%s1 + $0xf0] sm:$0xff]
  %v71 = vld [vmem:[%s1 + $0xf8] sm:$0xff]
  %v72 = vld [vmem:[%s1 + $0x100] sm:$0xff]
  %v73 = vld [vmem:[%s1 + $0x108] sm:$0xff]
  %v74 = vld [vmem:[%s1 + $0x110] sm:$0xff]
  %v75 = vld [vmem:[%s1 + $0x118] sm:$0xff]
  %v76 = vld [vmem:[%s1 + $0x120] sm:$0xff]
  %v77 = vld [vmem:[%s1 + $0x128] sm:$0xff]
  %v78 = vld [vmem:[%s1 + $0x130] sm:$0xff]
  %v79 = vld [vmem:[%s1 + $0x138] sm:$0xff]
  %v80 = vld [vmem:[%s1 + $0x140] sm:$0xff]
  %v81 = vld [vmem:[%s1 + $0x148] sm:$0xff]
  %v82 = vld [vmem:[%s1 + $0x150] sm:$0xff]
  %v83 = vld [vmem:[%s1 + $0x158] sm:$0xff]
  %v84 = vld [vmem:[%s1 + $0x160] sm:$0xff]
  %v85 = vld [vmem:[%s1 + $0x168] sm:$0xff]
  %v86 = vld [vmem:[%s1 + $0x170] sm:$0xff]
  %v87 = vld [vmem:[%s1 + $0x178] sm:$0xff]
  %v88 = vld [vmem:[%s1 + $0x180] sm:$0xff]
  %v89 = vld [vmem:[%s1 + $0x188] sm:$0xff]
  %v90 = vld [vmem:[%s1 + $0x190] sm:$0xff]
  %v91 = vld [vmem:[%s1 + $0x198] sm:$0xff]
  %v92 = vld [vmem:[%s1 + $0x1a0] sm:$0xff]
  %v93 = vld [vmem:[%s1 + $0x1a8] sm:$0xff]
  %v94 = vld [vmem:[%s1 + $0x1b0] sm:$0xff]
  %v95 = vld [vmem:[%s1 + $0x1b8] sm:$0xff]
  %v96 = vld [vmem:[%s1 + $0x1c0] sm:$0xff]
  %v97 = vld [vmem:[%s1 + $0x1c8] sm:$0xff]
  %v98 = vld [vmem:[%s1 + $0x1d0] sm:$0xff]
  %v99 = vld [vmem:[%s1 + $0x1d8] sm:$0xff]
  %v100 = vld [vmem:[%s1 + $0x1e0] sm:$0xff]
  %v101 = vld [vmem:[%s1 + $0x1e8] sm:$0xff]
  %v102 = vld [vmem:[%s1 + $0x1f0] sm:$0xff]
  %v103 = vld [vmem:[%s1 + $0x1f8] sm:$0xff]
  %v104 = vld [vmem:[%s1 + $0x200] sm:$0xff]
  %v105 = vld [vmem:[%s1 + $0x208] sm:$0xff]
  %v106 = vld [vmem:[%s1 + $0x210] sm:$0xff]
  %v107 = vld [vmem:[%s1 + $0x218] sm:$0xff]
  %v108 = vld [vmem:[%s1 + $0x220] sm:$0xff]
  %v109 = vld [vmem:[%s1 + $0x228] sm:$0xff]
  %v110 = vld [vmem:[%s1 + $0x230] sm:$0xff]
  %v111 = vld [vmem:[%s1 + $0x238] sm:$0xff]
  %vm112 = vcmask 523264
  %v114 = vsel %vm112, %v24, 0
  %v117 = vsel %vm112, %v29, 0
  %v120 = vsel %vm112, %v34, 0
  %v123 = vsel %vm112, %v39, 0
  %125 = vmatpush.msra.mxu0 %v55
  %126 = vmatpush.msra.mxu0 %v54
  %127 = vmatpush.msra.mxu0 %v53
  %128 = vmatpush.msra.mxu0 %v52
  %129 = vmatpush.msra.mxu0 %v51
  %130 = vmatpush.msra.mxu0 %v50
  %131 = vmatpush.msra.mxu0 %v49
  %132 = vmatpush.msra.mxu0 %v48
  %133 = vmatpush.msra.mxu0 %v47
  %134 = vmatpush.msra.mxu0 %v46
  %135 = vmatpush.msra.mxu0 %v45
  %136 = vmatpush.msra.mxu0 %v44
  %137 = vmatpush.msra.mxu0 %v43
  %138 = vmatpush.msra.mxu0 %v42
  %139 = vmatpush.msra.mxu0 %v41
  %140 = vmatpush.msra.mxu0 %v40
  %141 = vmatmul.f32.gmra.mxu0 %v20
  %v142 = vpop.f32.mrf.mxu0
  %v143 = vadd.f32 0.0, %v142
  %144 = vmatmul.f32.gmra.mxu0 %v25
  %v145 = vpop.f32.mrf.mxu0
  %v146 = vadd.f32 0.0, %v145
  %147 = vmatmul.f32.gmra.mxu0 %v30
  %v148 = vpop.f32.mrf.mxu0
  %v149 = vadd.f32 0.0, %v148
  %150 = vmatmul.f32.gmra.mxu0 %v35
  %v151 = vpop.f32.mrf.mxu0
  %v152 = vadd.f32 0.0, %v151
  %153 = vdwg.mxu0
  %154 = vmatpush.msra.mxu0 %v71
  %155 = vmatpush.msra.mxu0 %v70
  %156 = vmatpush.msra.mxu0 %v69
  %157 = vmatpush.msra.mxu0 %v68
  %158 = vmatpush.msra.mxu0 %v67
  %159 = vmatpush.msra.mxu0 %v66
  %160 = vmatpush.msra.mxu0 %v65
  %161 = vmatpush.msra.mxu0 %v64
  %162 = vmatpush.msra.mxu0 %v63
  %163 = vmatpush.msra.mxu0 %v62
  %164 = vmatpush.msra.mxu0 %v61
  %165 = vmatpush.msra.mxu0 %v60
  %166 = vmatpush.msra.mxu0 %v59
  %167 = vmatpush.msra.mxu0 %v58
  %168 = vmatpush.msra.mxu0 %v57
  %169 = vmatpush.msra.mxu0 %v56
  %170 = vmatmul.f32.gmra.mxu0 %v21
  %v171 = vpop.f32.mrf.mxu0
  %v172 = vadd.f32 %v143, %v171
  %173 = vmatmul.f32.gmra.mxu0 %v26
  %v174 = vpop.f32.mrf.mxu0
  %v175 = vadd.f32 %v146, %v174
  %176 = vmatmul.f32.gmra.mxu0 %v31
  %v177 = vpop.f32.mrf.mxu0
  %v178 = vadd.f32 %v149, %v177
  %179 = vmatmul.f32.gmra.mxu0 %v36
  %v180 = vpop.f32.mrf.mxu0
  %v181 = vadd.f32 %v152, %v180
  %182 = vdwg.mxu0
  %183 = vmatpush.msra.mxu0 %v87
  %184 = vmatpush.msra.mxu0 %v86
  %185 = vmatpush.msra.mxu0 %v85
  %186 = vmatpush.msra.mxu0 %v84
  %187 = vmatpush.msra.mxu0 %v83
  %188 = vmatpush.msra.mxu0 %v82
  %189 = vmatpush.msra.mxu0 %v81
  %190 = vmatpush.msra.mxu0 %v80
  %191 = vmatpush.msra.mxu0 %v79
  %192 = vmatpush.msra.mxu0 %v78
  %193 = vmatpush.msra.mxu0 %v77
  %194 = vmatpush.msra.mxu0 %v76
  %195 = vmatpush.msra.mxu0 %v75
  %196 = vmatpush.msra.mxu0 %v74
  %197 = vmatpush.msra.mxu0 %v73
  %198 = vmatpush.msra.mxu0 %v72
  %199 = vmatmul.f32.gmra.mxu0 %v22
  %v200 = vpop.f32.mrf.mxu0
  %v201 = vadd.f32 %v172, %v200
  %202 = vmatmul.f32.gmra.mxu0 %v27
  %v203 = vpop.f32.mrf.mxu0
  %v204 = vadd.f32 %v175, %v203
  %205 = vmatmul.f32.gmra.mxu0 %v32
  %v206 = vpop.f32.mrf.mxu0
  %v207 = vadd.f32 %v178, %v206
  %208 = vmatmul.f32.gmra.mxu0 %v37
  %v209 = vpop.f32.mrf.mxu0
  %v210 = vadd.f32 %v181, %v209
  %211 = vdwg.mxu0
  %212 = vmatpush.msra.mxu0 %v103
  %213 = vmatpush.msra.mxu0 %v102
  %214 = vmatpush.msra.mxu0 %v101
  %215 = vmatpush.msra.mxu0 %v100
  %216 = vmatpush.msra.mxu0 %v99
  %217 = vmatpush.msra.mxu0 %v98
  %218 = vmatpush.msra.mxu0 %v97
  %219 = vmatpush.msra.mxu0 %v96
  %220 = vmatpush.msra.mxu0 %v95
  %221 = vmatpush.msra.mxu0 %v94
  %222 = vmatpush.msra.mxu0 %v93
  %223 = vmatpush.msra.mxu0 %v92
  %224 = vmatpush.msra.mxu0 %v91
  %225 = vmatpush.msra.mxu0 %v90
  %226 = vmatpush.msra.mxu0 %v89
  %227 = vmatpush.msra.mxu0 %v88
  %228 = vmatmul.f32.gmra.mxu0 %v23
  %v229 = vpop.f32.mrf.mxu0
  %v230 = vadd.f32 %v201, %v229
  %231 = vmatmul.f32.gmra.mxu0 %v28
  %v232 = vpop.f32.mrf.mxu0
  %v233 = vadd.f32 %v204, %v232
  %234 = vmatmul.f32.gmra.mxu0 %v33
  %v235 = vpop.f32.mrf.mxu0
  %v236 = vadd.f32 %v207, %v235
  %237 = vmatmul.f32.gmra.mxu0 %v38
  %v238 = vpop.f32.mrf.mxu0
  %v239 = vadd.f32 %v210, %v238
  %240 = vdwg.mxu0
  %241 = vmatpush.msra.mxu0 0.0
  %242 = vmatpush.msra.mxu0 0.0
  %243 = vmatpush.msra.mxu0 0.0
  %244 = vmatpush.msra.mxu0 0.0
  %245 = vmatpush.msra.mxu0 0.0
  %246 = vmatpush.msra.mxu0 0.0
  %247 = vmatpush.msra.mxu0 0.0
  %248 = vmatpush.msra.mxu0 0.0
  %249 = vmatpush.msra.mxu0 %v111
  %250 = vmatpush.msra.mxu0 %v110
  %251 = vmatpush.msra.mxu0 %v109
  %252 = vmatpush.msra.mxu0 %v108
  %253 = vmatpush.msra.mxu0 %v107
  %254 = vmatpush.msra.mxu0 %v106
  %255 = vmatpush.msra.mxu0 %v105
  %256 = vmatpush.msra.mxu0 %v104
  %257 = vmatmul.f32.gmra.mxu0 %v114
  %v258 = vpop.f32.mrf.mxu0
  %v259 = vadd.f32 %v230, %v258
  %260 = vmatmul.f32.gmra.mxu0 %v117
  %v261 = vpop.f32.mrf.mxu0
  %v262 = vadd.f32 %v233, %v261
  %263 = vmatmul.f32.gmra.mxu0 %v120
  %v264 = vpop.f32.mrf.mxu0
  %v265 = vadd.f32 %v236, %v264
  %266 = vmatmul.f32.gmra.mxu0 %v123
  %v267 = vpop.f32.mrf.mxu0
  %v268 = vadd.f32 %v239, %v267
  %269 = vdwg.mxu0
  %v270 = vld [vmem:[%s2] sm:$0x1]
  %v272 = vperm.slane %v270, 0
  %v274 = vmul.f32 %v259, %v272
  %v275 = vmul.f32 %v262, %v272
  %v276 = vmul.f32 %v265, %v272
  %v277 = vmul.f32 %v268, %v272
  %v278 = vld [vmem:[%s3] sm:$0x1]
  %v280 = vperm.slane %v278, 0
  %v282 = vadd.f32 %v274, %v280
  %v283 = vadd.f32 %v275, %v280
  %v284 = vadd.f32 %v276, %v280
  %v285 = vadd.f32 %v277, %v280
  %v286 = vld [vmem:[%s4] sm:$0xff]
  %v287 = vld [vmem:[%s4 + $0x8] sm:$0xff]
  %v288 = vld [vmem:[%s4 + $0x10] sm:$0xff]
  %v289 = vld [vmem:[%s4 + $0x18] sm:$0xff]
  %v290 = vadd.f32 %v282, %v286
  %v291 = vadd.f32 %v283, %v287
  %v292 = vadd.f32 %v284, %v288
  %v293 = vadd.f32 %v285, %v289
  %v294 = vmax.f32 %v290, 0.0
  %v295 = vmax.f32 %v291, 0.0
  %v296 = vmax.f32 %v292, 0.0
  %v297 = vmax.f32 %v293, 0.0
  %298 = vst.msk [vmem:[%s5] sm:$0xff] %vm112, %v294
  %299 = vst.msk [vmem:[%s5 + $0x8] sm:$0xff] %vm112, %v295
  %300 = vst.msk [vmem:[%s5 + $0x10] sm:$0xff] %vm112, %v296
  %301 = vst.msk [vmem:[%s5 + $0x18] sm:$0xff] %vm112, %v297
  // Predicated region
  $region22: #{macnet_forward.28} parent=0 // pred_check
    _
  $region23: #{macnet_forward.28} parent=0 // pred_check_branch
    %303 = sbr.rel (0) target = $region25
  $region24: #{macnet_forward.28} parent=0 // pred_region
    _
  $region25: #{macnet_forward.28} parent=0 // pred_fallthru
    _
  // Predicated region
  $region26: #{macnet_forward.28} parent=0 // pred_check
    _
  $region27: #{macnet_forward.28} parent=0 // pred_check_branch
    %305 = sbr.rel (0) target = $region29
  $region28: #{macnet_forward.28} parent=0 // pred_region
    _
  $region29: #{macnet_forward.28} parent=0 // pred_fallthru
    _

// kernel: macnet_forward.29
$region0: #{macnet_forward.29}
  #allocation0 [shape = 'u32[]', space=smem, size = 0x4, offset = 0x4, fixed_abs, tag = 'smem constant byte address 0x4 - core index']
  #allocation1 [shape = 'u32[72,128]{1,0:T(1,128)}', space=vmem, size = 0x9000, scoped, tag = 'internal scratch']
  %s0 = inlined_call_operand.vmem [shape: f32[32,576], index: 0, kind: input, shape index: {}]
  %s1 = inlined_call_operand.vmem [shape: f32[576,64], index: 1, kind: input, shape index: {}]
  %s2 = inlined_call_operand.vmem [shape: f32[1,64], index: 2, kind: input, shape index: {}]
  %s3 = inlined_call_operand.vmem [shape: f32[1,64], index: 3, kind: input, shape index: {}]
  %s4 = inlined_call_operand.vmem [shape: f32[32,64], index: 4, kind: output, shape index: {}]
  %s5 = sld [smem:[#allocation0]]
  $region26: #{macnet_forward.29} parent=0
    _
  %s7 = ssub.s32 1, %s5
  %s8 = scalar_select 0, %s7, %s5
  // Predicated region
  $region2: #{macnet_forward.29} parent=0 // pred_check
    _
  $region3: #{macnet_forward.29} parent=0 // pred_check_branch
    %10 = sbr.rel (0) target = $region5
  $region4: #{macnet_forward.29} parent=0 // pred_region
    _
  $region5: #{macnet_forward.29} parent=0 // pred_fallthru
    _
  // Predicated region
  $region6: #{macnet_forward.29} parent=0 // pred_check
    _
  $region7: #{macnet_forward.29} parent=0 // pred_check_branch
    %12 = sbr.rel (0) target = $region9
  $region8: #{macnet_forward.29} parent=0 // pred_region
    _
  $region9: #{macnet_forward.29} parent=0 // pred_fallthru
    _
  // Predicated region
  $region10: #{macnet_forward.29} parent=0 // pred_check
    _
  $region11: #{macnet_forward.29} parent=0 // pred_check_branch
    %14 = sbr.rel (0) target = $region13
  $region12: #{macnet_forward.29} parent=0 // pred_region
    _
  $region13: #{macnet_forward.29} parent=0 // pred_fallthru
    _
  // Predicated region
  $region14: #{macnet_forward.29} parent=0 // pred_check
    _
  $region15: #{macnet_forward.29} parent=0 // pred_check_branch
    %16 = sbr.rel (0) target = $region17
  $region16: #{macnet_forward.29} parent=0 // pred_region
    _
  $region17: #{macnet_forward.29} parent=0 // pred_fallthru
    _
  %v17 = vld [vmem:[%s0] sm:$0xff]
  %v18 = vld [vmem:[%s0 + $0x8] sm:$0xff]
  %v19 = vld [vmem:[%s0 + $0x10] sm:$0xff]
  %v20 = vld [vmem:[%s0 + $0x18] sm:$0xff]
  %v21 = vld [vmem:[%s0 + $0x20] sm:$0xff]
  %v22 = vld [vmem:[%s0 + $0x28] sm:$0xff]
  %v23 = vld [vmem:[%s0 + $0x30] sm:$0xff]
  %v24 = vld [vmem:[%s0 + $0x38] sm:$0xff]
  %v25 = vld [vmem:[%s0 + $0x40] sm:$0xff]
  %v26 = vld [vmem:[%s0 + $0x48] sm:$0xff]
  %v27 = vld [vmem:[%s0 + $0x50] sm:$0xff]
  %v28 = vld [vmem:[%s0 + $0x58] sm:$0xff]
  %v29 = vld [vmem:[%s0 + $0x60] sm:$0xff]
  %v30 = vld [vmem:[%s0 + $0x68] sm:$0xff]
  %v31 = vld [vmem:[%s0 + $0x70] sm:$0xff]
  %v32 = vld [vmem:[%s0 + $0x78] sm:$0xff]
  %v33 = vld [vmem:[%s0 + $0x80] sm:$0xff]
  %v34 = vld [vmem:[%s0 + $0x88] sm:$0xff]
  %v35 = vld [vmem:[%s0 + $0x90] sm:$0xff]
  %v36 = vld [vmem:[%s0 + $0x98] sm:$0xff]
  %v37 = vld [vmem:[%s1] sm:$0xff]
  %v38 = vld [vmem:[%s1 + $0x8] sm:$0xff]
  %v39 = vld [vmem:[%s1 + $0x10] sm:$0xff]
  %v40 = vld [vmem:[%s1 + $0x18] sm:$0xff]
  %v41 = vld [vmem:[%s1 + $0x20] sm:$0xff]
  %v42 = vld [vmem:[%s1 + $0x28] sm:$0xff]
  %v43 = vld [vmem:[%s1 + $0x30] sm:$0xff]
  %v44 = vld [vmem:[%s1 + $0x38] sm:$0xff]
  %v45 = vld [vmem:[%s1 + $0x40] sm:$0xff]
  %v46 = vld [vmem:[%s1 + $0x48] sm:$0xff]
  %v47 = vld [vmem:[%s1 + $0x50] sm:$0xff]
  %v48 = vld [vmem:[%s1 + $0x58] sm:$0xff]
  %v49 = vld [vmem:[%s1 + $0x60] sm:$0xff]
  %v50 = vld [vmem:[%s1 + $0x68] sm:$0xff]
  %v51 = vld [vmem:[%s1 + $0x70] sm:$0xff]
  %v52 = vld [vmem:[%s1 + $0x78] sm:$0xff]
  %v53 = vld [vmem:[%s1 + $0x80] sm:$0xff]
  %v54 = vld [vmem:[%s1 + $0x88] sm:$0xff]
  %v55 = vld [vmem:[%s1 + $0x90] sm:$0xff]
  %v56 = vld [vmem:[%s1 + $0x98] sm:$0xff]
  %v57 = vld [vmem:[%s1 + $0xa0] sm:$0xff]
  %v58 = vld [vmem:[%s1 + $0xa8] sm:$0xff]
  %v59 = vld [vmem:[%s1 + $0xb0] sm:$0xff]
  %v60 = vld [vmem:[%s1 + $0xb8] sm:$0xff]
  %v61 = vld [vmem:[%s1 + $0xc0] sm:$0xff]
  %v62 = vld [vmem:[%s1 + $0xc8] sm:$0xff]
  %v63 = vld [vmem:[%s1 + $0xd0] sm:$0xff]
  %v64 = vld [vmem:[%s1 + $0xd8] sm:$0xff]
  %v65 = vld [vmem:[%s1 + $0xe0] sm:$0xff]
  %v66 = vld [vmem:[%s1 + $0xe8] sm:$0xff]
  %v67 = vld [vmem:[%s1 + $0xf0] sm:$0xff]
  %v68 = vld [vmem:[%s1 + $0xf8] sm:$0xff]
  %v69 = vld [vmem:[%s1 + $0x100] sm:$0xff]
  %v70 = vld [vmem:[%s1 + $0x108] sm:$0xff]
  %v71 = vld [vmem:[%s1 + $0x110] sm:$0xff]
  %v72 = vld [vmem:[%s1 + $0x118] sm:$0xff]
  %v73 = vld [vmem:[%s1 + $0x120] sm:$0xff]
  %v74 = vld [vmem:[%s1 + $0x128] sm:$0xff]
  %v75 = vld [vmem:[%s1 + $0x130] sm:$0xff]
  %v76 = vld [vmem:[%s1 + $0x138] sm:$0xff]
  %v77 = vld [vmem:[%s1 + $0x140] sm:$0xff]
  %v78 = vld [vmem:[%s1 + $0x148] sm:$0xff]
  %v79 = vld [vmem:[%s1 + $0x150] sm:$0xff]
  %v80 = vld [vmem:[%s1 + $0x158] sm:$0xff]
  %v81 = vld [vmem:[%s1 + $0x160] sm:$0xff]
  %v82 = vld [vmem:[%s1 + $0x168] sm:$0xff]
  %v83 = vld [vmem:[%s1 + $0x170] sm:$0xff]
  %v84 = vld [vmem:[%s1 + $0x178] sm:$0xff]
  %v85 = vld [vmem:[%s1 + $0x180] sm:$0xff]
  %v86 = vld [vmem:[%s1 + $0x188] sm:$0xff]
  %v87 = vld [vmem:[%s1 + $0x190] sm:$0xff]
  %v88 = vld [vmem:[%s1 + $0x198] sm:$0xff]
  %v89 = vld [vmem:[%s1 + $0x1a0] sm:$0xff]
  %v90 = vld [vmem:[%s1 + $0x1a8] sm:$0xff]
  %v91 = vld [vmem:[%s1 + $0x1b0] sm:$0xff]
  %v92 = vld [vmem:[%s1 + $0x1b8] sm:$0xff]
  %v93 = vld [vmem:[%s1 + $0x1c0] sm:$0xff]
  %v94 = vld [vmem:[%s1 + $0x1c8] sm:$0xff]
  %v95 = vld [vmem:[%s1 + $0x1d0] sm:$0xff]
  %v96 = vld [vmem:[%s1 + $0x1d8] sm:$0xff]
  %v97 = vld [vmem:[%s1 + $0x1e0] sm:$0xff]
  %v98 = vld [vmem:[%s1 + $0x1e8] sm:$0xff]
  %v99 = vld [vmem:[%s1 + $0x1f0] sm:$0xff]
  %v100 = vld [vmem:[%s1 + $0x1f8] sm:$0xff]
  %v101 = vld [vmem:[%s1 + $0x200] sm:$0xff]
  %v102 = vld [vmem:[%s1 + $0x208] sm:$0xff]
  %v103 = vld [vmem:[%s1 + $0x210] sm:$0xff]
  %v104 = vld [vmem:[%s1 + $0x218] sm:$0xff]
  %v105 = vld [vmem:[%s1 + $0x220] sm:$0xff]
  %v106 = vld [vmem:[%s1 + $0x228] sm:$0xff]
  %v107 = vld [vmem:[%s1 + $0x230] sm:$0xff]
  %v108 = vld [vmem:[%s1 + $0x238] sm:$0xff]
  %vm109 = vcmask 523264
  %v111 = vsel %vm109, %v21, 0
  %v114 = vsel %vm109, %v26, 0
  %v117 = vsel %vm109, %v31, 0
  %v120 = vsel %vm109, %v36, 0
  %122 = vmatpush.msra.mxu0 %v52
  %123 = vmatpush.msra.mxu0 %v51
  %124 = vmatpush.msra.mxu0 %v50
  %125 = vmatpush.msra.mxu0 %v49
  %126 = vmatpush.msra.mxu0 %v48
  %127 = vmatpush.msra.mxu0 %v47
  %128 = vmatpush.msra.mxu0 %v46
  %129 = vmatpush.msra.mxu0 %v45
  %130 = vmatpush.msra.mxu0 %v44
  %131 = vmatpush.msra.mxu0 %v43
  %132 = vmatpush.msra.mxu0 %v42
  %133 = vmatpush.msra.mxu0 %v41
  %134 = vmatpush.msra.mxu0 %v40
  %135 = vmatpush.msra.mxu0 %v39
  %136 = vmatpush.msra.mxu0 %v38
  %137 = vmatpush.msra.mxu0 %v37
  %138 = vmatmul.f32.gmra.mxu0 %v17
  %v139 = vpop.f32.mrf.mxu0
  %v140 = vadd.f32 0.0, %v139
  %141 = vmatmul.f32.gmra.mxu0 %v22
  %v142 = vpop.f32.mrf.mxu0
  %v143 = vadd.f32 0.0, %v142
  %144 = vmatmul.f32.gmra.mxu0 %v27
  %v145 = vpop.f32.mrf.mxu0
  %v146 = vadd.f32 0.0, %v145
  %147 = vmatmul.f32.gmra.mxu0 %v32
  %v148 = vpop.f32.mrf.mxu0
  %v149 = vadd.f32 0.0, %v148
  %150 = vdwg.mxu0
  %151 = vmatpush.msra.mxu0 %v68
  %152 = vmatpush.msra.mxu0 %v67
  %153 = vmatpush.msra.mxu0 %v66
  %154 = vmatpush.msra.mxu0 %v65
  %155 = vmatpush.msra.mxu0 %v64
  %156 = vmatpush.msra.mxu0 %v63
  %157 = vmatpush.msra.mxu0 %v62
  %158 = vmatpush.msra.mxu0 %v61
  %159 = vmatpush.msra.mxu0 %v60
  %160 = vmatpush.msra.mxu0 %v59
  %161 = vmatpush.msra.mxu0 %v58
  %162 = vmatpush.msra.mxu0 %v57
  %163 = vmatpush.msra.mxu0 %v56
  %164 = vmatpush.msra.mxu0 %v55
  %165 = vmatpush.msra.mxu0 %v54
  %166 = vmatpush.msra.mxu0 %v53
  %167 = vmatmul.f32.gmra.mxu0 %v18
  %v168 = vpop.f32.mrf.mxu0
  %v169 = vadd.f32 %v140, %v168
  %170 = vmatmul.f32.gmra.mxu0 %v23
  %v171 = vpop.f32.mrf.mxu0
  %v172 = vadd.f32 %v143, %v171
  %173 = vmatmul.f32.gmra.mxu0 %v28
  %v174 = vpop.f32.mrf.mxu0
  %v175 = vadd.f32 %v146, %v174
  %176 = vmatmul.f32.gmra.mxu0 %v33
  %v177 = vpop.f32.mrf.mxu0
  %v178 = vadd.f32 %v149, %v177
  %179 = vdwg.mxu0
  %180 = vmatpush.msra.mxu0 %v84
  %181 = vmatpush.msra.mxu0 %v83
  %182 = vmatpush.msra.mxu0 %v82
  %183 = vmatpush.msra.mxu0 %v81
  %184 = vmatpush.msra.mxu0 %v80
  %185 = vmatpush.msra.mxu0 %v79
  %186 = vmatpush.msra.mxu0 %v78
  %187 = vmatpush.msra.mxu0 %v77
  %188 = vmatpush.msra.mxu0 %v76
  %189 = vmatpush.msra.mxu0 %v75
  %190 = vmatpush.msra.mxu0 %v74
  %191 = vmatpush.msra.mxu0 %v73
  %192 = vmatpush.msra.mxu0 %v72
  %193 = vmatpush.msra.mxu0 %v71
  %194 = vmatpush.msra.mxu0 %v70
  %195 = vmatpush.msra.mxu0 %v69
  %196 = vmatmul.f32.gmra.mxu0 %v19
  %v197 = vpop.f32.mrf.mxu0
  %v198 = vadd.f32 %v169, %v197
  %199 = vmatmul.f32.gmra.mxu0 %v24
  %v200 = vpop.f32.mrf.mxu0
  %v201 = vadd.f32 %v172, %v200
  %202 = vmatmul.f32.gmra.mxu0 %v29
  %v203 = vpop.f32.mrf.mxu0
  %v204 = vadd.f32 %v175, %v203
  %205 = vmatmul.f32.gmra.mxu0 %v34
  %v206 = vpop.f32.mrf.mxu0
  %v207 = vadd.f32 %v178, %v206
  %208 = vdwg.mxu0
  %209 = vmatpush.msra.mxu0 %v100
  %210 = vmatpush.msra.mxu0 %v99
  %211 = vmatpush.msra.mxu0 %v98
  %212 = vmatpush.msra.mxu0 %v97
  %213 = vmatpush.msra.mxu0 %v96
  %214 = vmatpush.msra.mxu0 %v95
  %215 = vmatpush.msra.mxu0 %v94
  %216 = vmatpush.msra.mxu0 %v93
  %217 = vmatpush.msra.mxu0 %v92
  %218 = vmatpush.msra.mxu0 %v91
  %219 = vmatpush.msra.mxu0 %v90
  %220 = vmatpush.msra.mxu0 %v89
  %221 = vmatpush.msra.mxu0 %v88
  %222 = vmatpush.msra.mxu0 %v87
  %223 = vmatpush.msra.mxu0 %v86
  %224 = vmatpush.msra.mxu0 %v85
  %225 = vmatmul.f32.gmra.mxu0 %v20
  %v226 = vpop.f32.mrf.mxu0
  %v227 = vadd.f32 %v198, %v226
  %228 = vmatmul.f32.gmra.mxu0 %v25
  %v229 = vpop.f32.mrf.mxu0
  %v230 = vadd.f32 %v201, %v229
  %231 = vmatmul.f32.gmra.mxu0 %v30
  %v232 = vpop.f32.mrf.mxu0
  %v233 = vadd.f32 %v204, %v232
  %234 = vmatmul.f32.gmra.mxu0 %v35
  %v235 = vpop.f32.mrf.mxu0
  %v236 = vadd.f32 %v207, %v235
  %237 = vdwg.mxu0
  %238 = vmatpush.msra.mxu0 0.0
  %239 = vmatpush.msra.mxu0 0.0
  %240 = vmatpush.msra.mxu0 0.0
  %241 = vmatpush.msra.mxu0 0.0
  %242 = vmatpush.msra.mxu0 0.0
  %243 = vmatpush.msra.mxu0 0.0
  %244 = vmatpush.msra.mxu0 0.0
  %245 = vmatpush.msra.mxu0 0.0
  %246 = vmatpush.msra.mxu0 %v108
  %247 = vmatpush.msra.mxu0 %v107
  %248 = vmatpush.msra.mxu0 %v106
  %249 = vmatpush.msra.mxu0 %v105
  %250 = vmatpush.msra.mxu0 %v104
  %251 = vmatpush.msra.mxu0 %v103
  %252 = vmatpush.msra.mxu0 %v102
  %253 = vmatpush.msra.mxu0 %v101
  %254 = vmatmul.f32.gmra.mxu0 %v111
  %v255 = vpop.f32.mrf.mxu0
  %v256 = vadd.f32 %v227, %v255
  %257 = vmatmul.f32.gmra.mxu0 %v114
  %v258 = vpop.f32.mrf.mxu0
  %v259 = vadd.f32 %v230, %v258
  %260 = vmatmul.f32.gmra.mxu0 %v117
  %v261 = vpop.f32.mrf.mxu0
  %v262 = vadd.f32 %v233, %v261
  %263 = vmatmul.f32.gmra.mxu0 %v120
  %v264 = vpop.f32.mrf.mxu0
  %v265 = vadd.f32 %v236, %v264
  %266 = vdwg.mxu0
  %v267 = vld [vmem:[%s2] sm:$0x1]
  %v269 = vperm.slane %v267, 0
  %v271 = vmul.f32 %v256, %v269
  %v272 = vmul.f32 %v259, %v269
  %v273 = vmul.f32 %v262, %v269
  %v274 = vmul.f32 %v265, %v269
  %v275 = vld [vmem:[%s3] sm:$0x1]
  %v277 = vperm.slane %v275, 0
  %v279 = vadd.f32 %v271, %v277
  %v280 = vadd.f32 %v272, %v277
  %v281 = vadd.f32 %v273, %v277
  %v282 = vadd.f32 %v274, %v277
  %v283 = vmax.f32 %v279, 0.0
  %v284 = vmax.f32 %v280, 0.0
  %v285 = vmax.f32 %v281, 0.0
  %v286 = vmax.f32 %v282, 0.0
  %287 = vst.msk [vmem:[%s4] sm:$0xff] %vm109, %v283
  %288 = vst.msk [vmem:[%s4 + $0x8] sm:$0xff] %vm109, %v284
  %289 = vst.msk [vmem:[%s4 + $0x10] sm:$0xff] %vm109, %v285
  %290 = vst.msk [vmem:[%s4 + $0x18] sm:$0xff] %vm109, %v286
  // Predicated region
  $region18: #{macnet_forward.29} parent=0 // pred_check
    _
  $region19: #{macnet_forward.29} parent=0 // pred_check_branch
    %292 = sbr.rel (0) target = $region21
  $region20: #{macnet_forward.29} parent=0 // pred_region
    _
  $region21: #{macnet_forward.29} parent=0 // pred_fallthru
    _
  // Predicated region
  $region22: #{macnet_forward.29} parent=0 // pred_check
    _
  $region23: #{macnet_forward.29} parent=0 // pred_check_branch
    %294 = sbr.rel (0) target = $region25
  $region24: #{macnet_forward.29} parent=0 // pred_region
    _
  $region25: #{macnet_forward.29} parent=0 // pred_fallthru
    _

// kernel: macnet_forward.31
$region0: #{macnet_forward.31}
  #allocation0 [shape = 'u32[]', space=smem, size = 0x4, offset = 0x4, fixed_abs, tag = 'smem constant byte address 0x4 - core index']
  #allocation1 [shape = 'u32[72,128]{1,0:T(1,128)}', space=vmem, size = 0x9000, scoped, tag = 'internal scratch']
  %s0 = inlined_call_operand.vmem [shape: f32[32,576], index: 0, kind: input, shape index: {}]
  %s1 = inlined_call_operand.vmem [shape: f32[576,128], index: 1, kind: input, shape index: {}]
  %s2 = inlined_call_operand.vmem [shape: f32[1,128], index: 2, kind: input, shape index: {}]
  %s3 = inlined_call_operand.vmem [shape: f32[1,128], index: 3, kind: input, shape index: {}]
  %s4 = inlined_call_operand.vmem [shape: f32[32,128], index: 4, kind: output, shape index: {}]
  %s5 = sld [smem:[#allocation0]]
  $region26: #{macnet_forward.31} parent=0
    _
  %s7 = ssub.s32 1, %s5
  %s8 = scalar_select 0, %s7, %s5
  // Predicated region
  $region2: #{macnet_forward.31} parent=0 // pred_check
    _
  $region3: #{macnet_forward.31} parent=0 // pred_check_branch
    %10 = sbr.rel (0) target = $region5
  $region4: #{macnet_forward.31} parent=0 // pred_region
    _
  $region5: #{macnet_forward.31} parent=0 // pred_fallthru
    _
  // Predicated region
  $region6: #{macnet_forward.31} parent=0 // pred_check
    _
  $region7: #{macnet_forward.31} parent=0 // pred_check_branch
    %12 = sbr.rel (0) target = $region9
  $region8: #{macnet_forward.31} parent=0 // pred_region
    _
  $region9: #{macnet_forward.31} parent=0 // pred_fallthru
    _
  // Predicated region
  $region10: #{macnet_forward.31} parent=0 // pred_check
    _
  $region11: #{macnet_forward.31} parent=0 // pred_check_branch
    %14 = sbr.rel (0) target = $region13
  $region12: #{macnet_forward.31} parent=0 // pred_region
    _
  $region13: #{macnet_forward.31} parent=0 // pred_fallthru
    _
  // Predicated region
  $region14: #{macnet_forward.31} parent=0 // pred_check
    _
  $region15: #{macnet_forward.31} parent=0 // pred_check_branch
    %16 = sbr.rel (0) target = $region17
  $region16: #{macnet_forward.31} parent=0 // pred_region
    _
  $region17: #{macnet_forward.31} parent=0 // pred_fallthru
    _
  %v17 = vld [vmem:[%s0] sm:$0xff]
  %v18 = vld [vmem:[%s0 + $0x8] sm:$0xff]
  %v19 = vld [vmem:[%s0 + $0x10] sm:$0xff]
  %v20 = vld [vmem:[%s0 + $0x18] sm:$0xff]
  %v21 = vld [vmem:[%s0 + $0x20] sm:$0xff]
  %v22 = vld [vmem:[%s0 + $0x28] sm:$0xff]
  %v23 = vld [vmem:[%s0 + $0x30] sm:$0xff]
  %v24 = vld [vmem:[%s0 + $0x38] sm:$0xff]
  %v25 = vld [vmem:[%s0 + $0x40] sm:$0xff]
  %v26 = vld [vmem:[%s0 + $0x48] sm:$0xff]
  %v27 = vld [vmem:[%s0 + $0x50] sm:$0xff]
  %v28 = vld [vmem:[%s0 + $0x58] sm:$0xff]
  %v29 = vld [vmem:[%s0 + $0x60] sm:$0xff]
  %v30 = vld [vmem:[%s0 + $0x68] sm:$0xff]
  %v31 = vld [vmem:[%s0 + $0x70] sm:$0xff]
  %v32 = vld [vmem:[%s0 + $0x78] sm:$0xff]
  %v33 = vld [vmem:[%s0 + $0x80] sm:$0xff]
  %v34 = vld [vmem:[%s0 + $0x88] sm:$0xff]
  %v35 = vld [vmem:[%s0 + $0x90] sm:$0xff]
  %v36 = vld [vmem:[%s0 + $0x98] sm:$0xff]
  %v37 = vld [vmem:[%s1] sm:$0xff]
  %v38 = vld [vmem:[%s1 + $0x8] sm:$0xff]
  %v39 = vld [vmem:[%s1 + $0x10] sm:$0xff]
  %v40 = vld [vmem:[%s1 + $0x18] sm:$0xff]
  %v41 = vld [vmem:[%s1 + $0x20] sm:$0xff]
  %v42 = vld [vmem:[%s1 + $0x28] sm:$0xff]
  %v43 = vld [vmem:[%s1 + $0x30] sm:$0xff]
  %v44 = vld [vmem:[%s1 + $0x38] sm:$0xff]
  %v45 = vld [vmem:[%s1 + $0x40] sm:$0xff]
  %v46 = vld [vmem:[%s1 + $0x48] sm:$0xff]
  %v47 = vld [vmem:[%s1 + $0x50] sm:$0xff]
  %v48 = vld [vmem:[%s1 + $0x58] sm:$0xff]
  %v49 = vld [vmem:[%s1 + $0x60] sm:$0xff]
  %v50 = vld [vmem:[%s1 + $0x68] sm:$0xff]
  %v51 = vld [vmem:[%s1 + $0x70] sm:$0xff]
  %v52 = vld [vmem:[%s1 + $0x78] sm:$0xff]
  %v53 = vld [vmem:[%s1 + $0x80] sm:$0xff]
  %v54 = vld [vmem:[%s1 + $0x88] sm:$0xff]
  %v55 = vld [vmem:[%s1 + $0x90] sm:$0xff]
  %v56 = vld [vmem:[%s1 + $0x98] sm:$0xff]
  %v57 = vld [vmem:[%s1 + $0xa0] sm:$0xff]
  %v58 = vld [vmem:[%s1 + $0xa8] sm:$0xff]
  %v59 = vld [vmem:[%s1 + $0xb0] sm:$0xff]
  %v60 = vld [vmem:[%s1 + $0xb8] sm:$0xff]
  %v61 = vld [vmem:[%s1 + $0xc0] sm:$0xff]
  %v62 = vld [vmem:[%s1 + $0xc8] sm:$0xff]
  %v63 = vld [vmem:[%s1 + $0xd0] sm:$0xff]
  %v64 = vld [vmem:[%s1 + $0xd8] sm:$0xff]
  %v65 = vld [vmem:[%s1 + $0xe0] sm:$0xff]
  %v66 = vld [vmem:[%s1 + $0xe8] sm:$0xff]
  %v67 = vld [vmem:[%s1 + $0xf0] sm:$0xff]
  %v68 = vld [vmem:[%s1 + $0xf8] sm:$0xff]
  %v69 = vld [vmem:[%s1 + $0x100] sm:$0xff]
  %v70 = vld [vmem:[%s1 + $0x108] sm:$0xff]
  %v71 = vld [vmem:[%s1 + $0x110] sm:$0xff]
  %v72 = vld [vmem:[%s1 + $0x118] sm:$0xff]
  %v73 = vld [vmem:[%s1 + $0x120] sm:$0xff]
  %v74 = vld [vmem:[%s1 + $0x128] sm:$0xff]
  %v75 = vld [vmem:[%s1 + $0x130] sm:$0xff]
  %v76 = vld [vmem:[%s1 + $0x138] sm:$0xff]
  %v77 = vld [vmem:[%s1 + $0x140] sm:$0xff]
  %v78 = vld [vmem:[%s1 + $0x148] sm:$0xff]
  %v79 = vld [vmem:[%s1 + $0x150] sm:$0xff]
  %v80 = vld [vmem:[%s1 + $0x158] sm:$0xff]
  %v81 = vld [vmem:[%s1 + $0x160] sm:$0xff]
  %v82 = vld [vmem:[%s1 + $0x168] sm:$0xff]
  %v83 = vld [vmem:[%s1 + $0x170] sm:$0xff]
  %v84 = vld [vmem:[%s1 + $0x178] sm:$0xff]
  %v85 = vld [vmem:[%s1 + $0x180] sm:$0xff]
  %v86 = vld [vmem:[%s1 + $0x188] sm:$0xff]
  %v87 = vld [vmem:[%s1 + $0x190] sm:$0xff]
  %v88 = vld [vmem:[%s1 + $0x198] sm:$0xff]
  %v89 = vld [vmem:[%s1 + $0x1a0] sm:$0xff]
  %v90 = vld [vmem:[%s1 + $0x1a8] sm:$0xff]
  %v91 = vld [vmem:[%s1 + $0x1b0] sm:$0xff]
  %v92 = vld [vmem:[%s1 + $0x1b8] sm:$0xff]
  %v93 = vld [vmem:[%s1 + $0x1c0] sm:$0xff]
  %v94 = vld [vmem:[%s1 + $0x1c8] sm:$0xff]
  %v95 = vld [vmem:[%s1 + $0x1d0] sm:$0xff]
  %v96 = vld [vmem:[%s1 + $0x1d8] sm:$0xff]
  %v97 = vld [vmem:[%s1 + $0x1e0] sm:$0xff]
  %v98 = vld [vmem:[%s1 + $0x1e8] sm:$0xff]
  %v99 = vld [vmem:[%s1 + $0x1f0] sm:$0xff]
  %v100 = vld [vmem:[%s1 + $0x1f8] sm:$0xff]
  %v101 = vld [vmem:[%s1 + $0x200] sm:$0xff]
  %v102 = vld [vmem:[%s1 + $0x208] sm:$0xff]
  %v103 = vld [vmem:[%s1 + $0x210] sm:$0xff]
  %v104 = vld [vmem:[%s1 + $0x218] sm:$0xff]
  %v105 = vld [vmem:[%s1 + $0x220] sm:$0xff]
  %v106 = vld [vmem:[%s1 + $0x228] sm:$0xff]
  %v107 = vld [vmem:[%s1 + $0x230] sm:$0xff]
  %v108 = vld [vmem:[%s1 + $0x238] sm:$0xff]
  %vm109 = vcmask 523264
  %v111 = vsel %vm109, %v21, 0
  %v114 = vsel %vm109, %v26, 0
  %v117 = vsel %vm109, %v31, 0
  %v120 = vsel %vm109, %v36, 0
  %122 = vmatpush.msra.mxu0 %v52
  %123 = vmatpush.msra.mxu0 %v51
  %124 = vmatpush.msra.mxu0 %v50
  %125 = vmatpush.msra.mxu0 %v49
  %126 = vmatpush.msra.mxu0 %v48
  %127 = vmatpush.msra.mxu0 %v47
  %128 = vmatpush.msra.mxu0 %v46
  %129 = vmatpush.msra.mxu0 %v45
  %130 = vmatpush.msra.mxu0 %v44
  %131 = vmatpush.msra.mxu0 %v43
  %132 = vmatpush.msra.mxu0 %v42
  %133 = vmatpush.msra.mxu0 %v41
  %134 = vmatpush.msra.mxu0 %v40
  %135 = vmatpush.msra.mxu0 %v39
  %136 = vmatpush.msra.mxu0 %v38
  %137 = vmatpush.msra.mxu0 %v37
  %138 = vmatmul.f32.gmra.mxu0 %v17
  %v139 = vpop.f32.mrf.mxu0
  %v140 = vadd.f32 0.0, %v139
  %141 = vmatmul.f32.gmra.mxu0 %v22
  %v142 = vpop.f32.mrf.mxu0
  %v143 = vadd.f32 0.0, %v142
  %144 = vmatmul.f32.gmra.mxu0 %v27
  %v145 = vpop.f32.mrf.mxu0
  %v146 = vadd.f32 0.0, %v145
  %147 = vmatmul.f32.gmra.mxu0 %v32
  %v148 = vpop.f32.mrf.mxu0
  %v149 = vadd.f32 0.0, %v148
  %150 = vdwg.mxu0
  %151 = vmatpush.msra.mxu0 %v68
  %152 = vmatpush.msra.mxu0 %v67
  %153 = vmatpush.msra.mxu0 %v66
  %154 = vmatpush.msra.mxu0 %v65
  %155 = vmatpush.msra.mxu0 %v64
  %156 = vmatpush.msra.mxu0 %v63
  %157 = vmatpush.msra.mxu0 %v62
  %158 = vmatpush.msra.mxu0 %v61
  %159 = vmatpush.msra.mxu0 %v60
  %160 = vmatpush.msra.mxu0 %v59
  %161 = vmatpush.msra.mxu0 %v58
  %162 = vmatpush.msra.mxu0 %v57
  %163 = vmatpush.msra.mxu0 %v56
  %164 = vmatpush.msra.mxu0 %v55
  %165 = vmatpush.msra.mxu0 %v54
  %166 = vmatpush.msra.mxu0 %v53
  %167 = vmatmul.f32.gmra.mxu0 %v18
  %v168 = vpop.f32.mrf.mxu0
  %v169 = vadd.f32 %v140, %v168
  %170 = vmatmul.f32.gmra.mxu0 %v23
  %v171 = vpop.f32.mrf.mxu0
  %v172 = vadd.f32 %v143, %v171
  %173 = vmatmul.f32.gmra.mxu0 %v28
  %v174 = vpop.f32.mrf.mxu0
  %v175 = vadd.f32 %v146, %v174
  %176 = vmatmul.f32.gmra.mxu0 %v33
  %v177 = vpop.f32.mrf.mxu0
  %v178 = vadd.f32 %v149, %v177
  %179 = vdwg.mxu0
  %180 = vmatpush.msra.mxu0 %v84
  %181 = vmatpush.msra.mxu0 %v83
  %182 = vmatpush.msra.mxu0 %v82
  %183 = vmatpush.msra.mxu0 %v81
  %184 = vmatpush.msra.mxu0 %v80
  %185 = vmatpush.msra.mxu0 %v79
  %186 = vmatpush.msra.mxu0 %v78
  %187 = vmatpush.msra.mxu0 %v77
  %188 = vmatpush.msra.mxu0 %v76
  %189 = vmatpush.msra.mxu0 %v75
  %190 = vmatpush.msra.mxu0 %v74
  %191 = vmatpush.msra.mxu0 %v73
  %192 = vmatpush.msra.mxu0 %v72
  %193 = vmatpush.msra.mxu0 %v71
  %194 = vmatpush.msra.mxu0 %v70
  %195 = vmatpush.msra.mxu0 %v69
  %196 = vmatmul.f32.gmra.mxu0 %v19
  %v197 = vpop.f32.mrf.mxu0
  %v198 = vadd.f32 %v169, %v197
  %199 = vmatmul.f32.gmra.mxu0 %v24
  %v200 = vpop.f32.mrf.mxu0
  %v201 = vadd.f32 %v172, %v200
  %202 = vmatmul.f32.gmra.mxu0 %v29
  %v203 = vpop.f32.mrf.mxu0
  %v204 = vadd.f32 %v175, %v203
  %205 = vmatmul.f32.gmra.mxu0 %v34
  %v206 = vpop.f32.mrf.mxu0
  %v207 = vadd.f32 %v178, %v206
  %208 = vdwg.mxu0
  %209 = vmatpush.msra.mxu0 %v100
  %210 = vmatpush.msra.mxu0 %v99
  %211 = vmatpush.msra.mxu0 %v98
  %212 = vmatpush.msra.mxu0 %v97
  %213 = vmatpush.msra.mxu0 %v96
  %214 = vmatpush.msra.mxu0 %v95
  %215 = vmatpush.msra.mxu0 %v94
  %216 = vmatpush.msra.mxu0 %v93
  %217 = vmatpush.msra.mxu0 %v92
  %218 = vmatpush.msra.mxu0 %v91
  %219 = vmatpush.msra.mxu0 %v90
  %220 = vmatpush.msra.mxu0 %v89
  %221 = vmatpush.msra.mxu0 %v88
  %222 = vmatpush.msra.mxu0 %v87
  %223 = vmatpush.msra.mxu0 %v86
  %224 = vmatpush.msra.mxu0 %v85
  %225 = vmatmul.f32.gmra.mxu0 %v20
  %v226 = vpop.f32.mrf.mxu0
  %v227 = vadd.f32 %v198, %v226
  %228 = vmatmul.f32.gmra.mxu0 %v25
  %v229 = vpop.f32.mrf.mxu0
  %v230 = vadd.f32 %v201, %v229
  %231 = vmatmul.f32.gmra.mxu0 %v30
  %v232 = vpop.f32.mrf.mxu0
  %v233 = vadd.f32 %v204, %v232
  %234 = vmatmul.f32.gmra.mxu0 %v35
  %v235 = vpop.f32.mrf.mxu0
  %v236 = vadd.f32 %v207, %v235
  %237 = vdwg.mxu0
  %238 = vmatpush.msra.mxu0 0.0
  %239 = vmatpush.msra.mxu0 0.0
  %240 = vmatpush.msra.mxu0 0.0
  %241 = vmatpush.msra.mxu0 0.0
  %242 = vmatpush.msra.mxu0 0.0
  %243 = vmatpush.msra.mxu0 0.0
  %244 = vmatpush.msra.mxu0 0.0
  %245 = vmatpush.msra.mxu0 0.0
  %246 = vmatpush.msra.mxu0 %v108
  %247 = vmatpush.msra.mxu0 %v107
  %248 = vmatpush.msra.mxu0 %v106
  %249 = vmatpush.msra.mxu0 %v105
  %250 = vmatpush.msra.mxu0 %v104
  %251 = vmatpush.msra.mxu0 %v103
  %252 = vmatpush.msra.mxu0 %v102
  %253 = vmatpush.msra.mxu0 %v101
  %254 = vmatmul.f32.gmra.mxu0 %v111
  %v255 = vpop.f32.mrf.mxu0
  %v256 = vadd.f32 %v227, %v255
  %257 = vmatmul.f32.gmra.mxu0 %v114
  %v258 = vpop.f32.mrf.mxu0
  %v259 = vadd.f32 %v230, %v258
  %260 = vmatmul.f32.gmra.mxu0 %v117
  %v261 = vpop.f32.mrf.mxu0
  %v262 = vadd.f32 %v233, %v261
  %263 = vmatmul.f32.gmra.mxu0 %v120
  %v264 = vpop.f32.mrf.mxu0
  %v265 = vadd.f32 %v236, %v264
  %266 = vdwg.mxu0
  %v267 = vld [vmem:[%s2] sm:$0x1]
  %v269 = vperm.slane %v267, 0
  %v271 = vmul.f32 %v256, %v269
  %v272 = vmul.f32 %v259, %v269
  %v273 = vmul.f32 %v262, %v269
  %v274 = vmul.f32 %v265, %v269
  %v275 = vld [vmem:[%s3] sm:$0x1]
  %v277 = vperm.slane %v275, 0
  %v279 = vadd.f32 %v271, %v277
  %v280 = vadd.f32 %v272, %v277
  %v281 = vadd.f32 %v273, %v277
  %v282 = vadd.f32 %v274, %v277
  %v283 = vmax.f32 %v279, 0.0
  %v284 = vmax.f32 %v280, 0.0
  %v285 = vmax.f32 %v281, 0.0
  %v286 = vmax.f32 %v282, 0.0
  %287 = vst [vmem:[%s4] sm:$0xff] %v283
  %288 = vst [vmem:[%s4 + $0x8] sm:$0xff] %v284
  %289 = vst [vmem:[%s4 + $0x10] sm:$0xff] %v285
  %290 = vst [vmem:[%s4 + $0x18] sm:$0xff] %v286
  // Predicated region
  $region18: #{macnet_forward.31} parent=0 // pred_check
    _
  $region19: #{macnet_forward.31} parent=0 // pred_check_branch
    %292 = sbr.rel (0) target = $region21
  $region20: #{macnet_forward.31} parent=0 // pred_region
    _
  $region21: #{macnet_forward.31} parent=0 // pred_fallthru
    _
  // Predicated region
  $region22: #{macnet_forward.31} parent=0 // pred_check
    _
  $region23: #{macnet_forward.31} parent=0 // pred_check_branch
    %294 = sbr.rel (0) target = $region25
  $region24: #{macnet_forward.31} parent=0 // pred_region
    _
  $region25: #{macnet_forward.31} parent=0 // pred_fallthru
    _

// kernel: macnet_forward.34
$region0: #{macnet_forward.34}
  #allocation0 [shape = 'u32[]', space=smem, size = 0x4, offset = 0x4, fixed_abs, tag = 'smem constant byte address 0x4 - core index']
  #allocation1 [shape = 'u32[72,128]{1,0:T(1,128)}', space=vmem, size = 0x9000, scoped, tag = 'internal scratch']
  %s0 = inlined_call_operand.vmem [shape: f32[32,1152], index: 0, kind: input, shape index: {}]
  %s1 = inlined_call_operand.vmem [shape: f32[1152,128], index: 1, kind: input, shape index: {}]
  %s2 = inlined_call_operand.vmem [shape: f32[1,128], index: 2, kind: input, shape index: {}]
  %s3 = inlined_call_operand.vmem [shape: f32[1,128], index: 3, kind: input, shape index: {}]
  %s4 = inlined_call_operand.vmem [shape: f32[32,128], index: 4, kind: output, shape index: {}]
  %s5 = sld [smem:[#allocation0]]
  $region26: #{macnet_forward.34} parent=0
    _
  %s7 = ssub.s32 1, %s5
  %s8 = scalar_select 0, %s7, %s5
  // Predicated region
  $region2: #{macnet_forward.34} parent=0 // pred_check
    _
  $region3: #{macnet_forward.34} parent=0 // pred_check_branch
    %10 = sbr.rel (0) target = $region5
  $region4: #{macnet_forward.34} parent=0 // pred_region
    _
  $region5: #{macnet_forward.34} parent=0 // pred_fallthru
    _
  // Predicated region
  $region6: #{macnet_forward.34} parent=0 // pred_check
    _
  $region7: #{macnet_forward.34} parent=0 // pred_check_branch
    %12 = sbr.rel (0) target = $region9
  $region8: #{macnet_forward.34} parent=0 // pred_region
    _
  $region9: #{macnet_forward.34} parent=0 // pred_fallthru
    _
  // Predicated region
  $region10: #{macnet_forward.34} parent=0 // pred_check
    _
  $region11: #{macnet_forward.34} parent=0 // pred_check_branch
    %14 = sbr.rel (0) target = $region13
  $region12: #{macnet_forward.34} parent=0 // pred_region
    _
  $region13: #{macnet_forward.34} parent=0 // pred_fallthru
    _
  // Predicated region
  $region14: #{macnet_forward.34} parent=0 // pred_check
    _
  $region15: #{macnet_forward.34} parent=0 // pred_check_branch
    %16 = sbr.rel (0) target = $region17
  $region16: #{macnet_forward.34} parent=0 // pred_region
    _
  $region17: #{macnet_forward.34} parent=0 // pred_fallthru
    _
  %v17 = vld [vmem:[%s0] sm:$0xff]
  %v18 = vld [vmem:[%s0 + $0x8] sm:$0xff]
  %v19 = vld [vmem:[%s0 + $0x10] sm:$0xff]
  %v20 = vld [vmem:[%s0 + $0x18] sm:$0xff]
  %v21 = vld [vmem:[%s0 + $0x20] sm:$0xff]
  %v22 = vld [vmem:[%s0 + $0x28] sm:$0xff]
  %v23 = vld [vmem:[%s0 + $0x30] sm:$0xff]
  %v24 = vld [vmem:[%s0 + $0x38] sm:$0xff]
  %v25 = vld [vmem:[%s0 + $0x40] sm:$0xff]
  %v26 = vld [vmem:[%s0 + $0x48] sm:$0xff]
  %v27 = vld [vmem:[%s0 + $0x50] sm:$0xff]
  %v28 = vld [vmem:[%s0 + $0x58] sm:$0xff]
  %v29 = vld [vmem:[%s0 + $0x60] sm:$0xff]
  %v30 = vld [vmem:[%s0 + $0x68] sm:$0xff]
  %v31 = vld [vmem:[%s0 + $0x70] sm:$0xff]
  %v32 = vld [vmem:[%s0 + $0x78] sm:$0xff]
  %v33 = vld [vmem:[%s0 + $0x80] sm:$0xff]
  %v34 = vld [vmem:[%s0 + $0x88] sm:$0xff]
  %v35 = vld [vmem:[%s0 + $0x90] sm:$0xff]
  %v36 = vld [vmem:[%s0 + $0x98] sm:$0xff]
  %v37 = vld [vmem:[%s0 + $0xa0] sm:$0xff]
  %v38 = vld [vmem:[%s0 + $0xa8] sm:$0xff]
  %v39 = vld [vmem:[%s0 + $0xb0] sm:$0xff]
  %v40 = vld [vmem:[%s0 + $0xb8] sm:$0xff]
  %v41 = vld [vmem:[%s0 + $0xc0] sm:$0xff]
  %v42 = vld [vmem:[%s0 + $0xc8] sm:$0xff]
  %v43 = vld [vmem:[%s0 + $0xd0] sm:$0xff]
  %v44 = vld [vmem:[%s0 + $0xd8] sm:$0xff]
  %v45 = vld [vmem:[%s0 + $0xe0] sm:$0xff]
  %v46 = vld [vmem:[%s0 + $0xe8] sm:$0xff]
  %v47 = vld [vmem:[%s0 + $0xf0] sm:$0xff]
  %v48 = vld [vmem:[%s0 + $0xf8] sm:$0xff]
  %v49 = vld [vmem:[%s0 + $0x100] sm:$0xff]
  %v50 = vld [vmem:[%s0 + $0x108] sm:$0xff]
  %v51 = vld [vmem:[%s0 + $0x110] sm:$0xff]
  %v52 = vld [vmem:[%s0 + $0x118] sm:$0xff]
  %v53 = vld [vmem:[%s1] sm:$0xff]
  %v54 = vld [vmem:[%s1 + $0x8] sm:$0xff]
  %v55 = vld [vmem:[%s1 + $0x10] sm:$0xff]
  %v56 = vld [vmem:[%s1 + $0x18] sm:$0xff]
  %v57 = vld [vmem:[%s1 + $0x20] sm:$0xff]
  %v58 = vld [vmem:[%s1 + $0x28] sm:$0xff]
  %v59 = vld [vmem:[%s1 + $0x30] sm:$0xff]
  %v60 = vld [vmem:[%s1 + $0x38] sm:$0xff]
  %v61 = vld [vmem:[%s1 + $0x40] sm:$0xff]
  %v62 = vld [vmem:[%s1 + $0x48] sm:$0xff]
  %v63 = vld [vmem:[%s1 + $0x50] sm:$0xff]
  %v64 = vld [vmem:[%s1 + $0x58] sm:$0xff]
  %v65 = vld [vmem:[%s1 + $0x60] sm:$0xff]
  %v66 = vld [vmem:[%s1 + $0x68] sm:$0xff]
  %v67 = vld [vmem:[%s1 + $0x70] sm:$0xff]
  %v68 = vld [vmem:[%s1 + $0x78] sm:$0xff]
  %v69 = vld [vmem:[%s1 + $0x80] sm:$0xff]
  %v70 = vld [vmem:[%s1 + $0x88] sm:$0xff]
  %v71 = vld [vmem:[%s1 + $0x90] sm:$0xff]
  %v72 = vld [vmem:[%s1 + $0x98] sm:$0xff]
  %v73 = vld [vmem:[%s1 + $0xa0] sm:$0xff]
  %v74 = vld [vmem:[%s1 + $0xa8] sm:$0xff]
  %v75 = vld [vmem:[%s1 + $0xb0] sm:$0xff]
  %v76 = vld [vmem:[%s1 + $0xb8] sm:$0xff]
  %v77 = vld [vmem:[%s1 + $0xc0] sm:$0xff]
  %v78 = vld [vmem:[%s1 + $0xc8] sm:$0xff]
  %v79 = vld [vmem:[%s1 + $0xd0] sm:$0xff]
  %v80 = vld [vmem:[%s1 + $0xd8] sm:$0xff]
  %v81 = vld [vmem:[%s1 + $0xe0] sm:$0xff]
  %v82 = vld [vmem:[%s1 + $0xe8] sm:$0xff]
  %v83 = vld [vmem:[%s1 + $0xf0] sm:$0xff]
  %v84 = vld [vmem:[%s1 + $0xf8] sm:$0xff]
  %v85 = vld [vmem:[%s1 + $0x100] sm:$0xff]
  %v86 = vld [vmem:[%s1 + $0x108] sm:$0xff]
  %v87 = vld [vmem:[%s1 + $0x110] sm:$0xff]
  %v88 = vld [vmem:[%s1 + $0x118] sm:$0xff]
  %v89 = vld [vmem:[%s1 + $0x120] sm:$0xff]
  %v90 = vld [vmem:[%s1 + $0x128] sm:$0xff]
  %v91 = vld [vmem:[%s1 + $0x130] sm:$0xff]
  %v92 = vld [vmem:[%s1 + $0x138] sm:$0xff]
  %v93 = vld [vmem:[%s1 + $0x140] sm:$0xff]
  %v94 = vld [vmem:[%s1 + $0x148] sm:$0xff]
  %v95 = vld [vmem:[%s1 + $0x150] sm:$0xff]
  %v96 = vld [vmem:[%s1 + $0x158] sm:$0xff]
  %v97 = vld [vmem:[%s1 + $0x160] sm:$0xff]
  %v98 = vld [vmem:[%s1 + $0x168] sm:$0xff]
  %v99 = vld [vmem:[%s1 + $0x170] sm:$0xff]
  %v100 = vld [vmem:[%s1 + $0x178] sm:$0xff]
  %v101 = vld [vmem:[%s1 + $0x180] sm:$0xff]
  %v102 = vld [vmem:[%s1 + $0x188] sm:$0xff]
  %v103 = vld [vmem:[%s1 + $0x190] sm:$0xff]
  %v104 = vld [vmem:[%s1 + $0x198] sm:$0xff]
  %v105 = vld [vmem:[%s1 + $0x1a0] sm:$0xff]
  %v106 = vld [vmem:[%s1 + $0x1a8] sm:$0xff]
  %v107 = vld [vmem:[%s1 + $0x1b0] sm:$0xff]
  %v108 = vld [vmem:[%s1 + $0x1b8] sm:$0xff]
  %v109 = vld [vmem:[%s1 + $0x1c0] sm:$0xff]
  %v110 = vld [vmem:[%s1 + $0x1c8] sm:$0xff]
  %v111 = vld [vmem:[%s1 + $0x1d0] sm:$0xff]
  %v112 = vld [vmem:[%s1 + $0x1d8] sm:$0xff]
  %v113 = vld [vmem:[%s1 + $0x1e0] sm:$0xff]
  %v114 = vld [vmem:[%s1 + $0x1e8] sm:$0xff]
  %v115 = vld [vmem:[%s1 + $0x1f0] sm:$0xff]
  %v116 = vld [vmem:[%s1 + $0x1f8] sm:$0xff]
  %v117 = vld [vmem:[%s1 + $0x200] sm:$0xff]
  %v118 = vld [vmem:[%s1 + $0x208] sm:$0xff]
  %v119 = vld [vmem:[%s1 + $0x210] sm:$0xff]
  %v120 = vld [vmem:[%s1 + $0x218] sm:$0xff]
  %v121 = vld [vmem:[%s1 + $0x220] sm:$0xff]
  %v122 = vld [vmem:[%s1 + $0x228] sm:$0xff]
  %v123 = vld [vmem:[%s1 + $0x230] sm:$0xff]
  %v124 = vld [vmem:[%s1 + $0x238] sm:$0xff]
  %v125 = vld [vmem:[%s1 + $0x240] sm:$0xff]
  %v126 = vld [vmem:[%s1 + $0x248] sm:$0xff]
  %v127 = vld [vmem:[%s1 + $0x250] sm:$0xff]
  %v128 = vld [vmem:[%s1 + $0x258] sm:$0xff]
  %v129 = vld [vmem:[%s1 + $0x260] sm:$0xff]
  %v130 = vld [vmem:[%s1 + $0x268] sm:$0xff]
  %v131 = vld [vmem:[%s1 + $0x270] sm:$0xff]
  %v132 = vld [vmem:[%s1 + $0x278] sm:$0xff]
  %v133 = vld [vmem:[%s1 + $0x280] sm:$0xff]
  %v134 = vld [vmem:[%s1 + $0x288] sm:$0xff]
  %v135 = vld [vmem:[%s1 + $0x290] sm:$0xff]
  %v136 = vld [vmem:[%s1 + $0x298] sm:$0xff]
  %v137 = vld [vmem:[%s1 + $0x2a0] sm:$0xff]
  %v138 = vld [vmem:[%s1 + $0x2a8] sm:$0xff]
  %v139 = vld [vmem:[%s1 + $0x2b0] sm:$0xff]
  %v140 = vld [vmem:[%s1 + $0x2b8] sm:$0xff]
  %v141 = vld [vmem:[%s1 + $0x2c0] sm:$0xff]
  %v142 = vld [vmem:[%s1 + $0x2c8] sm:$0xff]
  %v143 = vld [vmem:[%s1 + $0x2d0] sm:$0xff]
  %v144 = vld [vmem:[%s1 + $0x2d8] sm:$0xff]
  %v145 = vld [vmem:[%s1 + $0x2e0] sm:$0xff]
  %v146 = vld [vmem:[%s1 + $0x2e8] sm:$0xff]
  %v147 = vld [vmem:[%s1 + $0x2f0] sm:$0xff]
  %v148 = vld [vmem:[%s1 + $0x2f8] sm:$0xff]
  %v149 = vld [vmem:[%s1 + $0x300] sm:$0xff]
  %v150 = vld [vmem:[%s1 + $0x308] sm:$0xff]
  %v151 = vld [vmem:[%s1 + $0x310] sm:$0xff]
  %v152 = vld [vmem:[%s1 + $0x318] sm:$0xff]
  %v153 = vld [vmem:[%s1 + $0x320] sm:$0xff]
  %v154 = vld [vmem:[%s1 + $0x328] sm:$0xff]
  %v155 = vld [vmem:[%s1 + $0x330] sm:$0xff]
  %v156 = vld [vmem:[%s1 + $0x338] sm:$0xff]
  %v157 = vld [vmem:[%s1 + $0x340] sm:$0xff]
  %v158 = vld [vmem:[%s1 + $0x348] sm:$0xff]
  %v159 = vld [vmem:[%s1 + $0x350] sm:$0xff]
  %v160 = vld [vmem:[%s1 + $0x358] sm:$0xff]
  %v161 = vld [vmem:[%s1 + $0x360] sm:$0xff]
  %v162 = vld [vmem:[%s1 + $0x368] sm:$0xff]
  %v163 = vld [vmem:[%s1 + $0x370] sm:$0xff]
  %v164 = vld [vmem:[%s1 + $0x378] sm:$0xff]
  %v165 = vld [vmem:[%s1 + $0x380] sm:$0xff]
  %v166 = vld [vmem:[%s1 + $0x388] sm:$0xff]
  %v167 = vld [vmem:[%s1 + $0x390] sm:$0xff]
  %v168 = vld [vmem:[%s1 + $0x398] sm:$0xff]
  %v169 = vld [vmem:[%s1 + $0x3a0] sm:$0xff]
  %v170 = vld [vmem:[%s1 + $0x3a8] sm:$0xff]
  %v171 = vld [vmem:[%s1 + $0x3b0] sm:$0xff]
  %v172 = vld [vmem:[%s1 + $0x3b8] sm:$0xff]
  %v173 = vld [vmem:[%s1 + $0x3c0] sm:$0xff]
  %v174 = vld [vmem:[%s1 + $0x3c8] sm:$0xff]
  %v175 = vld [vmem:[%s1 + $0x3d0] sm:$0xff]
  %v176 = vld [vmem:[%s1 + $0x3d8] sm:$0xff]
  %v177 = vld [vmem:[%s1 + $0x3e0] sm:$0xff]
  %v178 = vld [vmem:[%s1 + $0x3e8] sm:$0xff]
  %v179 = vld [vmem:[%s1 + $0x3f0] sm:$0xff]
  %v180 = vld [vmem:[%s1 + $0x3f8] sm:$0xff]
  %v181 = vld [vmem:[%s1 + $0x400] sm:$0xff]
  %v182 = vld [vmem:[%s1 + $0x408] sm:$0xff]
  %v183 = vld [vmem:[%s1 + $0x410] sm:$0xff]
  %v184 = vld [vmem:[%s1 + $0x418] sm:$0xff]
  %v185 = vld [vmem:[%s1 + $0x420] sm:$0xff]
  %v186 = vld [vmem:[%s1 + $0x428] sm:$0xff]
  %v187 = vld [vmem:[%s1 + $0x430] sm:$0xff]
  %v188 = vld [vmem:[%s1 + $0x438] sm:$0xff]
  %v189 = vld [vmem:[%s1 + $0x440] sm:$0xff]
  %v190 = vld [vmem:[%s1 + $0x448] sm:$0xff]
  %v191 = vld [vmem:[%s1 + $0x450] sm:$0xff]
  %v192 = vld [vmem:[%s1 + $0x458] sm:$0xff]
  %v193 = vld [vmem:[%s1 + $0x460] sm:$0xff]
  %v194 = vld [vmem:[%s1 + $0x468] sm:$0xff]
  %v195 = vld [vmem:[%s1 + $0x470] sm:$0xff]
  %v196 = vld [vmem:[%s1 + $0x478] sm:$0xff]
  %197 = vmatpush.msra.mxu0 %v68
  %198 = vmatpush.msra.mxu0 %v67
  %199 = vmatpush.msra.mxu0 %v66
  %200 = vmatpush.msra.mxu0 %v65
  %201 = vmatpush.msra.mxu0 %v64
  %202 = vmatpush.msra.mxu0 %v63
  %203 = vmatpush.msra.mxu0 %v62
  %204 = vmatpush.msra.mxu0 %v61
  %205 = vmatpush.msra.mxu0 %v60
  %206 = vmatpush.msra.mxu0 %v59
  %207 = vmatpush.msra.mxu0 %v58
  %208 = vmatpush.msra.mxu0 %v57
  %209 = vmatpush.msra.mxu0 %v56
  %210 = vmatpush.msra.mxu0 %v55
  %211 = vmatpush.msra.mxu0 %v54
  %212 = vmatpush.msra.mxu0 %v53
  %213 = vmatmul.f32.gmra.mxu0 %v17
  %v214 = vpop.f32.mrf.mxu0
  %v215 = vadd.f32 0.0, %v214
  %216 = vmatmul.f32.gmra.mxu0 %v26
  %v217 = vpop.f32.mrf.mxu0
  %v218 = vadd.f32 0.0, %v217
  %219 = vmatmul.f32.gmra.mxu0 %v35
  %v220 = vpop.f32.mrf.mxu0
  %v221 = vadd.f32 0.0, %v220
  %222 = vmatmul.f32.gmra.mxu0 %v44
  %v223 = vpop.f32.mrf.mxu0
  %v224 = vadd.f32 0.0, %v223
  %225 = vdwg.mxu0
  %226 = vmatpush.msra.mxu0 %v84
  %227 = vmatpush.msra.mxu0 %v83
  %228 = vmatpush.msra.mxu0 %v82
  %229 = vmatpush.msra.mxu0 %v81
  %230 = vmatpush.msra.mxu0 %v80
  %231 = vmatpush.msra.mxu0 %v79
  %232 = vmatpush.msra.mxu0 %v78
  %233 = vmatpush.msra.mxu0 %v77
  %234 = vmatpush.msra.mxu0 %v76
  %235 = vmatpush.msra.mxu0 %v75
  %236 = vmatpush.msra.mxu0 %v74
  %237 = vmatpush.msra.mxu0 %v73
  %238 = vmatpush.msra.mxu0 %v72
  %239 = vmatpush.msra.mxu0 %v71
  %240 = vmatpush.msra.mxu0 %v70
  %241 = vmatpush.msra.mxu0 %v69
  %242 = vmatmul.f32.gmra.mxu0 %v18
  %v243 = vpop.f32.mrf.mxu0
  %v244 = vadd.f32 %v215, %v243
  %245 = vmatmul.f32.gmra.mxu0 %v27
  %v246 = vpop.f32.mrf.mxu0
  %v247 = vadd.f32 %v218, %v246
  %248 = vmatmul.f32.gmra.mxu0 %v36
  %v249 = vpop.f32.mrf.mxu0
  %v250 = vadd.f32 %v221, %v249
  %251 = vmatmul.f32.gmra.mxu0 %v45
  %v252 = vpop.f32.mrf.mxu0
  %v253 = vadd.f32 %v224, %v252
  %254 = vdwg.mxu0
  %255 = vmatpush.msra.mxu0 %v100
  %256 = vmatpush.msra.mxu0 %v99
  %257 = vmatpush.msra.mxu0 %v98
  %258 = vmatpush.msra.mxu0 %v97
  %259 = vmatpush.msra.mxu0 %v96
  %260 = vmatpush.msra.mxu0 %v95
  %261 = vmatpush.msra.mxu0 %v94
  %262 = vmatpush.msra.mxu0 %v93
  %263 = vmatpush.msra.mxu0 %v92
  %264 = vmatpush.msra.mxu0 %v91
  %265 = vmatpush.msra.mxu0 %v90
  %266 = vmatpush.msra.mxu0 %v89
  %267 = vmatpush.msra.mxu0 %v88
  %268 = vmatpush.msra.mxu0 %v87
  %269 = vmatpush.msra.mxu0 %v86
  %270 = vmatpush.msra.mxu0 %v85
  %271 = vmatmul.f32.gmra.mxu0 %v19
  %v272 = vpop.f32.mrf.mxu0
  %v273 = vadd.f32 %v244, %v272
  %274 = vmatmul.f32.gmra.mxu0 %v28
  %v275 = vpop.f32.mrf.mxu0
  %v276 = vadd.f32 %v247, %v275
  %277 = vmatmul.f32.gmra.mxu0 %v37
  %v278 = vpop.f32.mrf.mxu0
  %v279 = vadd.f32 %v250, %v278
  %280 = vmatmul.f32.gmra.mxu0 %v46
  %v281 = vpop.f32.mrf.mxu0
  %v282 = vadd.f32 %v253, %v281
  %283 = vdwg.mxu0
  %284 = vmatpush.msra.mxu0 %v116
  %285 = vmatpush.msra.mxu0 %v115
  %286 = vmatpush.msra.mxu0 %v114
  %287 = vmatpush.msra.mxu0 %v113
  %288 = vmatpush.msra.mxu0 %v112
  %289 = vmatpush.msra.mxu0 %v111
  %290 = vmatpush.msra.mxu0 %v110
  %291 = vmatpush.msra.mxu0 %v109
  %292 = vmatpush.msra.mxu0 %v108
  %293 = vmatpush.msra.mxu0 %v107
  %294 = vmatpush.msra.mxu0 %v106
  %295 = vmatpush.msra.mxu0 %v105
  %296 = vmatpush.msra.mxu0 %v104
  %297 = vmatpush.msra.mxu0 %v103
  %298 = vmatpush.msra.mxu0 %v102
  %299 = vmatpush.msra.mxu0 %v101
  %300 = vmatmul.f32.gmra.mxu0 %v20
  %v301 = vpop.f32.mrf.mxu0
  %v302 = vadd.f32 %v273, %v301
  %303 = vmatmul.f32.gmra.mxu0 %v29
  %v304 = vpop.f32.mrf.mxu0
  %v305 = vadd.f32 %v276, %v304
  %306 = vmatmul.f32.gmra.mxu0 %v38
  %v307 = vpop.f32.mrf.mxu0
  %v308 = vadd.f32 %v279, %v307
  %309 = vmatmul.f32.gmra.mxu0 %v47
  %v310 = vpop.f32.mrf.mxu0
  %v311 = vadd.f32 %v282, %v310
  %312 = vdwg.mxu0
  %313 = vmatpush.msra.mxu0 %v132
  %314 = vmatpush.msra.mxu0 %v131
  %315 = vmatpush.msra.mxu0 %v130
  %316 = vmatpush.msra.mxu0 %v129
  %317 = vmatpush.msra.mxu0 %v128
  %318 = vmatpush.msra.mxu0 %v127
  %319 = vmatpush.msra.mxu0 %v126
  %320 = vmatpush.msra.mxu0 %v125
  %321 = vmatpush.msra.mxu0 %v124
  %322 = vmatpush.msra.mxu0 %v123
  %323 = vmatpush.msra.mxu0 %v122
  %324 = vmatpush.msra.mxu0 %v121
  %325 = vmatpush.msra.mxu0 %v120
  %326 = vmatpush.msra.mxu0 %v119
  %327 = vmatpush.msra.mxu0 %v118
  %328 = vmatpush.msra.mxu0 %v117
  %329 = vmatmul.f32.gmra.mxu0 %v21
  %v330 = vpop.f32.mrf.mxu0
  %v331 = vadd.f32 %v302, %v330
  %332 = vmatmul.f32.gmra.mxu0 %v30
  %v333 = vpop.f32.mrf.mxu0
  %v334 = vadd.f32 %v305, %v333
  %335 = vmatmul.f32.gmra.mxu0 %v39
  %v336 = vpop.f32.mrf.mxu0
  %v337 = vadd.f32 %v308, %v336
  %338 = vmatmul.f32.gmra.mxu0 %v48
  %v339 = vpop.f32.mrf.mxu0
  %v340 = vadd.f32 %v311, %v339
  %341 = vdwg.mxu0
  %342 = vmatpush.msra.mxu0 %v148
  %343 = vmatpush.msra.mxu0 %v147
  %344 = vmatpush.msra.mxu0 %v146
  %345 = vmatpush.msra.mxu0 %v145
  %346 = vmatpush.msra.mxu0 %v144
  %347 = vmatpush.msra.mxu0 %v143
  %348 = vmatpush.msra.mxu0 %v142
  %349 = vmatpush.msra.mxu0 %v141
  %350 = vmatpush.msra.mxu0 %v140
  %351 = vmatpush.msra.mxu0 %v139
  %352 = vmatpush.msra.mxu0 %v138
  %353 = vmatpush.msra.mxu0 %v137
  %354 = vmatpush.msra.mxu0 %v136
  %355 = vmatpush.msra.mxu0 %v135
  %356 = vmatpush.msra.mxu0 %v134
  %357 = vmatpush.msra.mxu0 %v133
  %358 = vmatmul.f32.gmra.mxu0 %v22
  %v359 = vpop.f32.mrf.mxu0
  %v360 = vadd.f32 %v331, %v359
  %361 = vmatmul.f32.gmra.mxu0 %v31
  %v362 = vpop.f32.mrf.mxu0
  %v363 = vadd.f32 %v334, %v362
  %364 = vmatmul.f32.gmra.mxu0 %v40
  %v365 = vpop.f32.mrf.mxu0
  %v366 = vadd.f32 %v337, %v365
  %367 = vmatmul.f32.gmra.mxu0 %v49
  %v368 = vpop.f32.mrf.mxu0
  %v369 = vadd.f32 %v340, %v368
  %370 = vdwg.mxu0
  %371 = vmatpush.msra.mxu0 %v164
  %372 = vmatpush.msra.mxu0 %v163
  %373 = vmatpush.msra.mxu0 %v162
  %374 = vmatpush.msra.mxu0 %v161
  %375 = vmatpush.msra.mxu0 %v160
  %376 = vmatpush.msra.mxu0 %v159
  %377 = vmatpush.msra.mxu0 %v158
  %378 = vmatpush.msra.mxu0 %v157
  %379 = vmatpush.msra.mxu0 %v156
  %380 = vmatpush.msra.mxu0 %v155
  %381 = vmatpush.msra.mxu0 %v154
  %382 = vmatpush.msra.mxu0 %v153
  %383 = vmatpush.msra.mxu0 %v152
  %384 = vmatpush.msra.mxu0 %v151
  %385 = vmatpush.msra.mxu0 %v150
  %386 = vmatpush.msra.mxu0 %v149
  %387 = vmatmul.f32.gmra.mxu0 %v23
  %v388 = vpop.f32.mrf.mxu0
  %v389 = vadd.f32 %v360, %v388
  %390 = vmatmul.f32.gmra.mxu0 %v32
  %v391 = vpop.f32.mrf.mxu0
  %v392 = vadd.f32 %v363, %v391
  %393 = vmatmul.f32.gmra.mxu0 %v41
  %v394 = vpop.f32.mrf.mxu0
  %v395 = vadd.f32 %v366, %v394
  %396 = vmatmul.f32.gmra.mxu0 %v50
  %v397 = vpop.f32.mrf.mxu0
  %v398 = vadd.f32 %v369, %v397
  %399 = vdwg.mxu0
  %400 = vmatpush.msra.mxu0 %v180
  %401 = vmatpush.msra.mxu0 %v179
  %402 = vmatpush.msra.mxu0 %v178
  %403 = vmatpush.msra.mxu0 %v177
  %404 = vmatpush.msra.mxu0 %v176
  %405 = vmatpush.msra.mxu0 %v175
  %406 = vmatpush.msra.mxu0 %v174
  %407 = vmatpush.msra.mxu0 %v173
  %408 = vmatpush.msra.mxu0 %v172
  %409 = vmatpush.msra.mxu0 %v171
  %410 = vmatpush.msra.mxu0 %v170
  %411 = vmatpush.msra.mxu0 %v169
  %412 = vmatpush.msra.mxu0 %v168
  %413 = vmatpush.msra.mxu0 %v167
  %414 = vmatpush.msra.mxu0 %v166
  %415 = vmatpush.msra.mxu0 %v165
  %416 = vmatmul.f32.gmra.mxu0 %v24
  %v417 = vpop.f32.mrf.mxu0
  %v418 = vadd.f32 %v389, %v417
  %419 = vmatmul.f32.gmra.mxu0 %v33
  %v420 = vpop.f32.mrf.mxu0
  %v421 = vadd.f32 %v392, %v420
  %422 = vmatmul.f32.gmra.mxu0 %v42
  %v423 = vpop.f32.mrf.mxu0
  %v424 = vadd.f32 %v395, %v423
  %425 = vmatmul.f32.gmra.mxu0 %v51
  %v426 = vpop.f32.mrf.mxu0
  %v427 = vadd.f32 %v398, %v426
  %428 = vdwg.mxu0
  %429 = vmatpush.msra.mxu0 %v196
  %430 = vmatpush.msra.mxu0 %v195
  %431 = vmatpush.msra.mxu0 %v194
  %432 = vmatpush.msra.mxu0 %v193
  %433 = vmatpush.msra.mxu0 %v192
  %434 = vmatpush.msra.mxu0 %v191
  %435 = vmatpush.msra.mxu0 %v190
  %436 = vmatpush.msra.mxu0 %v189
  %437 = vmatpush.msra.mxu0 %v188
  %438 = vmatpush.msra.mxu0 %v187
  %439 = vmatpush.msra.mxu0 %v186
  %440 = vmatpush.msra.mxu0 %v185
  %441 = vmatpush.msra.mxu0 %v184
  %442 = vmatpush.msra.mxu0 %v183
  %443 = vmatpush.msra.mxu0 %v182
  %444 = vmatpush.msra.mxu0 %v181
  %445 = vmatmul.f32.gmra.mxu0 %v25
  %v446 = vpop.f32.mrf.mxu0
  %v447 = vadd.f32 %v418, %v446
  %448 = vmatmul.f32.gmra.mxu0 %v34
  %v449 = vpop.f32.mrf.mxu0
  %v450 = vadd.f32 %v421, %v449
  %451 = vmatmul.f32.gmra.mxu0 %v43
  %v452 = vpop.f32.mrf.mxu0
  %v453 = vadd.f32 %v424, %v452
  %454 = vmatmul.f32.gmra.mxu0 %v52
  %v455 = vpop.f32.mrf.mxu0
  %v456 = vadd.f32 %v427, %v455
  %457 = vdwg.mxu0
  %v458 = vld [vmem:[%s2] sm:$0x1]
  %v460 = vperm.slane %v458, 0
  %v462 = vmul.f32 %v447, %v460
  %v463 = vmul.f32 %v450, %v460
  %v464 = vmul.f32 %v453, %v460
  %v465 = vmul.f32 %v456, %v460
  %v466 = vld [vmem:[%s3] sm:$0x1]
  %v468 = vperm.slane %v466, 0
  %v470 = vadd.f32 %v462, %v468
  %v471 = vadd.f32 %v463, %v468
  %v472 = vadd.f32 %v464, %v468
  %v473 = vadd.f32 %v465, %v468
  %v474 = vmax.f32 %v470, 0.0
  %v475 = vmax.f32 %v471, 0.0
  %v476 = vmax.f32 %v472, 0.0
  %v477 = vmax.f32 %v473, 0.0
  %478 = vst [vmem:[%s4] sm:$0xff] %v474
  %479 = vst [vmem:[%s4 + $0x8] sm:$0xff] %v475
  %480 = vst [vmem:[%s4 + $0x10] sm:$0xff] %v476
  %481 = vst [vmem:[%s4 + $0x18] sm:$0xff] %v477
  // Predicated region
  $region18: #{macnet_forward.34} parent=0 // pred_check
    _
  $region19: #{macnet_forward.34} parent=0 // pred_check_branch
    %483 = sbr.rel (0) target = $region21
  $region20: #{macnet_forward.34} parent=0 // pred_region
    _
  $region21: #{macnet_forward.34} parent=0 // pred_fallthru
    _
  // Predicated region
  $region22: #{macnet_forward.34} parent=0 // pred_check
    _
  $region23: #{macnet_forward.34} parent=0 // pred_check_branch
    %485 = sbr.rel (0) target = $region25
  $region24: #{macnet_forward.34} parent=0 // pred_region
    _
  $region25: #{macnet_forward.34} parent=0 // pred_fallthru
    _

// kernel: macnet_forward.37
$region0: #{macnet_forward.37}
  #allocation0 [shape = 'u32[]', space=smem, size = 0x4, offset = 0x4, fixed_abs, tag = 'smem constant byte address 0x4 - core index']
  #allocation1 [shape = 'u32[72,128]{1,0:T(1,128)}', space=vmem, size = 0x9000, scoped, tag = 'internal scratch']
  %s0 = inlined_call_operand.vmem [shape: f32[32,128], index: 0, kind: input, shape index: {}]
  %s1 = inlined_call_operand.vmem [shape: f32[128,256], index: 1, kind: input, shape index: {}]
  %s2 = inlined_call_operand.vmem [shape: f32[1,256], index: 2, kind: input, shape index: {}]
  %s3 = inlined_call_operand.vmem [shape: f32[1,256], index: 3, kind: input, shape index: {}]
  %s4 = inlined_call_operand.vmem [shape: f32[32,256], index: 4, kind: output, shape index: {}]
  %s5 = sld [smem:[#allocation0]]
  $region26: #{macnet_forward.37} parent=0
    _
  %s7 = ssub.s32 1, %s5
  %s8 = scalar_select 0, %s7, %s5
  // Predicated region
  $region2: #{macnet_forward.37} parent=0 // pred_check
    _
  $region3: #{macnet_forward.37} parent=0 // pred_check_branch
    %10 = sbr.rel (0) target = $region5
  $region4: #{macnet_forward.37} parent=0 // pred_region
    _
  $region5: #{macnet_forward.37} parent=0 // pred_fallthru
    _
  // Predicated region
  $region6: #{macnet_forward.37} parent=0 // pred_check
    _
  $region7: #{macnet_forward.37} parent=0 // pred_check_branch
    %12 = sbr.rel (0) target = $region9
  $region8: #{macnet_forward.37} parent=0 // pred_region
    _
  $region9: #{macnet_forward.37} parent=0 // pred_fallthru
    _
  // Predicated region
  $region10: #{macnet_forward.37} parent=0 // pred_check
    _
  $region11: #{macnet_forward.37} parent=0 // pred_check_branch
    %14 = sbr.rel (0) target = $region13
  $region12: #{macnet_forward.37} parent=0 // pred_region
    _
  $region13: #{macnet_forward.37} parent=0 // pred_fallthru
    _
  // Predicated region
  $region14: #{macnet_forward.37} parent=0 // pred_check
    _
  $region15: #{macnet_forward.37} parent=0 // pred_check_branch
    %16 = sbr.rel (0) target = $region17
  $region16: #{macnet_forward.37} parent=0 // pred_region
    _
  $region17: #{macnet_forward.37} parent=0 // pred_fallthru
    _
  %v17 = vld [vmem:[%s0] sm:$0xff]
  %v18 = vld [vmem:[%s0 + $0x8] sm:$0xff]
  %v19 = vld [vmem:[%s0 + $0x10] sm:$0xff]
  %v20 = vld [vmem:[%s0 + $0x18] sm:$0xff]
  %v21 = vld [vmem:[%s1] sm:$0xff]
  %v22 = vld [vmem:[%s1 + $0x8] sm:$0xff]
  %v23 = vld [vmem:[%s1 + $0x10] sm:$0xff]
  %v24 = vld [vmem:[%s1 + $0x18] sm:$0xff]
  %v25 = vld [vmem:[%s1 + $0x20] sm:$0xff]
  %v26 = vld [vmem:[%s1 + $0x28] sm:$0xff]
  %v27 = vld [vmem:[%s1 + $0x30] sm:$0xff]
  %v28 = vld [vmem:[%s1 + $0x38] sm:$0xff]
  %v29 = vld [vmem:[%s1 + $0x40] sm:$0xff]
  %v30 = vld [vmem:[%s1 + $0x48] sm:$0xff]
  %v31 = vld [vmem:[%s1 + $0x50] sm:$0xff]
  %v32 = vld [vmem:[%s1 + $0x58] sm:$0xff]
  %v33 = vld [vmem:[%s1 + $0x60] sm:$0xff]
  %v34 = vld [vmem:[%s1 + $0x68] sm:$0xff]
  %v35 = vld [vmem:[%s1 + $0x70] sm:$0xff]
  %v36 = vld [vmem:[%s1 + $0x78] sm:$0xff]
  %v37 = vld [vmem:[%s1 + $0x80] sm:$0xff]
  %v38 = vld [vmem:[%s1 + $0x88] sm:$0xff]
  %v39 = vld [vmem:[%s1 + $0x90] sm:$0xff]
  %v40 = vld [vmem:[%s1 + $0x98] sm:$0xff]
  %v41 = vld [vmem:[%s1 + $0xa0] sm:$0xff]
  %v42 = vld [vmem:[%s1 + $0xa8] sm:$0xff]
  %v43 = vld [vmem:[%s1 + $0xb0] sm:$0xff]
  %v44 = vld [vmem:[%s1 + $0xb8] sm:$0xff]
  %v45 = vld [vmem:[%s1 + $0xc0] sm:$0xff]
  %v46 = vld [vmem:[%s1 + $0xc8] sm:$0xff]
  %v47 = vld [vmem:[%s1 + $0xd0] sm:$0xff]
  %v48 = vld [vmem:[%s1 + $0xd8] sm:$0xff]
  %v49 = vld [vmem:[%s1 + $0xe0] sm:$0xff]
  %v50 = vld [vmem:[%s1 + $0xe8] sm:$0xff]
  %v51 = vld [vmem:[%s1 + $0xf0] sm:$0xff]
  %v52 = vld [vmem:[%s1 + $0xf8] sm:$0xff]
  %53 = vmatpush.msra.mxu0 %v51
  %54 = vmatpush.msra.mxu0 %v49
  %55 = vmatpush.msra.mxu0 %v47
  %56 = vmatpush.msra.mxu0 %v45
  %57 = vmatpush.msra.mxu0 %v43
  %58 = vmatpush.msra.mxu0 %v41
  %59 = vmatpush.msra.mxu0 %v39
  %60 = vmatpush.msra.mxu0 %v37
  %61 = vmatpush.msra.mxu0 %v35
  %62 = vmatpush.msra.mxu0 %v33
  %63 = vmatpush.msra.mxu0 %v31
  %64 = vmatpush.msra.mxu0 %v29
  %65 = vmatpush.msra.mxu0 %v27
  %66 = vmatpush.msra.mxu0 %v25
  %67 = vmatpush.msra.mxu0 %v23
  %68 = vmatpush.msra.mxu0 %v21
  %69 = vmatmul.f32.gmra.mxu0 %v17
  %v70 = vpop.f32.mrf.mxu0
  %v71 = vadd.f32 0.0, %v70
  %72 = vmatmul.f32.gmra.mxu0 %v18
  %v73 = vpop.f32.mrf.mxu0
  %v74 = vadd.f32 0.0, %v73
  %75 = vmatmul.f32.gmra.mxu0 %v19
  %v76 = vpop.f32.mrf.mxu0
  %v77 = vadd.f32 0.0, %v76
  %78 = vmatmul.f32.gmra.mxu0 %v20
  %v79 = vpop.f32.mrf.mxu0
  %v80 = vadd.f32 0.0, %v79
  %81 = vdwg.mxu0
  %82 = vmatpush.msra.mxu0 %v52
  %83 = vmatpush.msra.mxu0 %v50
  %84 = vmatpush.msra.mxu0 %v48
  %85 = vmatpush.msra.mxu0 %v46
  %86 = vmatpush.msra.mxu0 %v44
  %87 = vmatpush.msra.mxu0 %v42
  %88 = vmatpush.msra.mxu0 %v40
  %89 = vmatpush.msra.mxu0 %v38
  %90 = vmatpush.msra.mxu0 %v36
  %91 = vmatpush.msra.mxu0 %v34
  %92 = vmatpush.msra.mxu0 %v32
  %93 = vmatpush.msra.mxu0 %v30
  %94 = vmatpush.msra.mxu0 %v28
  %95 = vmatpush.msra.mxu0 %v26
  %96 = vmatpush.msra.mxu0 %v24
  %97 = vmatpush.msra.mxu0 %v22
  %98 = vmatmul.f32.gmra.mxu0 %v17
  %v99 = vpop.f32.mrf.mxu0
  %v100 = vadd.f32 0.0, %v99
  %101 = vmatmul.f32.gmra.mxu0 %v18
  %v102 = vpop.f32.mrf.mxu0
  %v103 = vadd.f32 0.0, %v102
  %104 = vmatmul.f32.gmra.mxu0 %v19
  %v105 = vpop.f32.mrf.mxu0
  %v106 = vadd.f32 0.0, %v105
  %107 = vmatmul.f32.gmra.mxu0 %v20
  %v108 = vpop.f32.mrf.mxu0
  %v109 = vadd.f32 0.0, %v108
  %110 = vdwg.mxu0
  %v111 = vld [vmem:[%s2] sm:$0x3]
  %v113 = vperm.slane %v111, 0
  %v114 = vperm.slane %v111, 1
  %v117 = vmul.f32 %v71, %v113
  %v118 = vmul.f32 %v100, %v114
  %v119 = vmul.f32 %v74, %v113
  %v120 = vmul.f32 %v103, %v114
  %v121 = vmul.f32 %v77, %v113
  %v122 = vmul.f32 %v106, %v114
  %v123 = vmul.f32 %v80, %v113
  %v124 = vmul.f32 %v109, %v114
  %v125 = vld [vmem:[%s3] sm:$0x3]
  %v127 = vperm.slane %v125, 0
  %v128 = vperm.slane %v125, 1
  %v131 = vadd.f32 %v117, %v127
  %v132 = vadd.f32 %v118, %v128
  %v133 = vadd.f32 %v119, %v127
  %v134 = vadd.f32 %v120, %v128
  %v135 = vadd.f32 %v121, %v127
  %v136 = vadd.f32 %v122, %v128
  %v137 = vadd.f32 %v123, %v127
  %v138 = vadd.f32 %v124, %v128
  %139 = vst [vmem:[%s4] sm:$0xff] %v131
  %140 = vst [vmem:[%s4 + $0x8] sm:$0xff] %v132
  %141 = vst [vmem:[%s4 + $0x10] sm:$0xff] %v133
  %142 = vst [vmem:[%s4 + $0x18] sm:$0xff] %v134
  %143 = vst [vmem:[%s4 + $0x20] sm:$0xff] %v135
  %144 = vst [vmem:[%s4 + $0x28] sm:$0xff] %v136
  %145 = vst [vmem:[%s4 + $0x30] sm:$0xff] %v137
  %146 = vst [vmem:[%s4 + $0x38] sm:$0xff] %v138
  // Predicated region
  $region18: #{macnet_forward.37} parent=0 // pred_check
    _
  $region19: #{macnet_forward.37} parent=0 // pred_check_branch
    %148 = sbr.rel (0) target = $region21
  $region20: #{macnet_forward.37} parent=0 // pred_region
    _
  $region21: #{macnet_forward.37} parent=0 // pred_fallthru
    _
  // Predicated region
  $region22: #{macnet_forward.37} parent=0 // pred_check
    _
  $region23: #{macnet_forward.37} parent=0 // pred_check_branch
    %150 = sbr.rel (0) target = $region25
  $region24: #{macnet_forward.37} parent=0 // pred_region
    _
  $region25: #{macnet_forward.37} parent=0 // pred_fallthru
    _

// kernel: macnet_forward.33
$region0: #{macnet_forward.33}
  #allocation0 [shape = 'u32[]', space=smem, size = 0x4, offset = 0x4, fixed_abs, tag = 'smem constant byte address 0x4 - core index']
  #allocation1 [shape = 'u32[72,128]{1,0:T(1,128)}', space=vmem, size = 0x9000, scoped, tag = 'internal scratch']
  %s0 = inlined_call_operand.vmem [shape: f32[32,1152], index: 0, kind: input, shape index: {}]
  %s1 = inlined_call_operand.vmem [shape: f32[1152,128], index: 1, kind: input, shape index: {}]
  %s2 = inlined_call_operand.vmem [shape: f32[1,128], index: 2, kind: input, shape index: {}]
  %s3 = inlined_call_operand.vmem [shape: f32[1,128], index: 3, kind: input, shape index: {}]
  %s4 = inlined_call_operand.vmem [shape: f32[32,128], index: 4, kind: input, shape index: {}]
  %s5 = inlined_call_operand.vmem [shape: f32[32,128], index: 5, kind: output, shape index: {}]
  %s6 = sld [smem:[#allocation0]]
  $region30: #{macnet_forward.33} parent=0
    _
  %s8 = ssub.s32 1, %s6
  %s9 = scalar_select 0, %s8, %s6
  // Predicated region
  $region2: #{macnet_forward.33} parent=0 // pred_check
    _
  $region3: #{macnet_forward.33} parent=0 // pred_check_branch
    %11 = sbr.rel (0) target = $region5
  $region4: #{macnet_forward.33} parent=0 // pred_region
    _
  $region5: #{macnet_forward.33} parent=0 // pred_fallthru
    _
  // Predicated region
  $region6: #{macnet_forward.33} parent=0 // pred_check
    _
  $region7: #{macnet_forward.33} parent=0 // pred_check_branch
    %13 = sbr.rel (0) target = $region9
  $region8: #{macnet_forward.33} parent=0 // pred_region
    _
  $region9: #{macnet_forward.33} parent=0 // pred_fallthru
    _
  // Predicated region
  $region10: #{macnet_forward.33} parent=0 // pred_check
    _
  $region11: #{macnet_forward.33} parent=0 // pred_check_branch
    %15 = sbr.rel (0) target = $region13
  $region12: #{macnet_forward.33} parent=0 // pred_region
    _
  $region13: #{macnet_forward.33} parent=0 // pred_fallthru
    _
  // Predicated region
  $region14: #{macnet_forward.33} parent=0 // pred_check
    _
  $region15: #{macnet_forward.33} parent=0 // pred_check_branch
    %17 = sbr.rel (0) target = $region17
  $region16: #{macnet_forward.33} parent=0 // pred_region
    _
  $region17: #{macnet_forward.33} parent=0 // pred_fallthru
    _
  // Predicated region
  $region18: #{macnet_forward.33} parent=0 // pred_check
    _
  $region19: #{macnet_forward.33} parent=0 // pred_check_branch
    %19 = sbr.rel (0) target = $region21
  $region20: #{macnet_forward.33} parent=0 // pred_region
    _
  $region21: #{macnet_forward.33} parent=0 // pred_fallthru
    _
  %v20 = vld [vmem:[%s0] sm:$0xff]
  %v21 = vld [vmem:[%s0 + $0x8] sm:$0xff]
  %v22 = vld [vmem:[%s0 + $0x10] sm:$0xff]
  %v23 = vld [vmem:[%s0 + $0x18] sm:$0xff]
  %v24 = vld [vmem:[%s0 + $0x20] sm:$0xff]
  %v25 = vld [vmem:[%s0 + $0x28] sm:$0xff]
  %v26 = vld [vmem:[%s0 + $0x30] sm:$0xff]
  %v27 = vld [vmem:[%s0 + $0x38] sm:$0xff]
  %v28 = vld [vmem:[%s0 + $0x40] sm:$0xff]
  %v29 = vld [vmem:[%s0 + $0x48] sm:$0xff]
  %v30 = vld [vmem:[%s0 + $0x50] sm:$0xff]
  %v31 = vld [vmem:[%s0 + $0x58] sm:$0xff]
  %v32 = vld [vmem:[%s0 + $0x60] sm:$0xff]
  %v33 = vld [vmem:[%s0 + $0x68] sm:$0xff]
  %v34 = vld [vmem:[%s0 + $0x70] sm:$0xff]
  %v35 = vld [vmem:[%s0 + $0x78] sm:$0xff]
  %v36 = vld [vmem:[%s0 + $0x80] sm:$0xff]
  %v37 = vld [vmem:[%s0 + $0x88] sm:$0xff]
  %v38 = vld [vmem:[%s0 + $0x90] sm:$0xff]
  %v39 = vld [vmem:[%s0 + $0x98] sm:$0xff]
  %v40 = vld [vmem:[%s0 + $0xa0] sm:$0xff]
  %v41 = vld [vmem:[%s0 + $0xa8] sm:$0xff]
  %v42 = vld [vmem:[%s0 + $0xb0] sm:$0xff]
  %v43 = vld [vmem:[%s0 + $0xb8] sm:$0xff]
  %v44 = vld [vmem:[%s0 + $0xc0] sm:$0xff]
  %v45 = vld [vmem:[%s0 + $0xc8] sm:$0xff]
  %v46 = vld [vmem:[%s0 + $0xd0] sm:$0xff]
  %v47 = vld [vmem:[%s0 + $0xd8] sm:$0xff]
  %v48 = vld [vmem:[%s0 + $0xe0] sm:$0xff]
  %v49 = vld [vmem:[%s0 + $0xe8] sm:$0xff]
  %v50 = vld [vmem:[%s0 + $0xf0] sm:$0xff]
  %v51 = vld [vmem:[%s0 + $0xf8] sm:$0xff]
  %v52 = vld [vmem:[%s0 + $0x100] sm:$0xff]
  %v53 = vld [vmem:[%s0 + $0x108] sm:$0xff]
  %v54 = vld [vmem:[%s0 + $0x110] sm:$0xff]
  %v55 = vld [vmem:[%s0 + $0x118] sm:$0xff]
  %v56 = vld [vmem:[%s1] sm:$0xff]
  %v57 = vld [vmem:[%s1 + $0x8] sm:$0xff]
  %v58 = vld [vmem:[%s1 + $0x10] sm:$0xff]
  %v59 = vld [vmem:[%s1 + $0x18] sm:$0xff]
  %v60 = vld [vmem:[%s1 + $0x20] sm:$0xff]
  %v61 = vld [vmem:[%s1 + $0x28] sm:$0xff]
  %v62 = vld [vmem:[%s1 + $0x30] sm:$0xff]
  %v63 = vld [vmem:[%s1 + $0x38] sm:$0xff]
  %v64 = vld [vmem:[%s1 + $0x40] sm:$0xff]
  %v65 = vld [vmem:[%s1 + $0x48] sm:$0xff]
  %v66 = vld [vmem:[%s1 + $0x50] sm:$0xff]
  %v67 = vld [vmem:[%s1 + $0x58] sm:$0xff]
  %v68 = vld [vmem:[%s1 + $0x60] sm:$0xff]
  %v69 = vld [vmem:[%s1 + $0x68] sm:$0xff]
  %v70 = vld [vmem:[%s1 + $0x70] sm:$0xff]
  %v71 = vld [vmem:[%s1 + $0x78] sm:$0xff]
  %v72 = vld [vmem:[%s1 + $0x80] sm:$0xff]
  %v73 = vld [vmem:[%s1 + $0x88] sm:$0xff]
  %v74 = vld [vmem:[%s1 + $0x90] sm:$0xff]
  %v75 = vld [vmem:[%s1 + $0x98] sm:$0xff]
  %v76 = vld [vmem:[%s1 + $0xa0] sm:$0xff]
  %v77 = vld [vmem:[%s1 + $0xa8] sm:$0xff]
  %v78 = vld [vmem:[%s1 + $0xb0] sm:$0xff]
  %v79 = vld [vmem:[%s1 + $0xb8] sm:$0xff]
  %v80 = vld [vmem:[%s1 + $0xc0] sm:$0xff]
  %v81 = vld [vmem:[%s1 + $0xc8] sm:$0xff]
  %v82 = vld [vmem:[%s1 + $0xd0] sm:$0xff]
  %v83 = vld [vmem:[%s1 + $0xd8] sm:$0xff]
  %v84 = vld [vmem:[%s1 + $0xe0] sm:$0xff]
  %v85 = vld [vmem:[%s1 + $0xe8] sm:$0xff]
  %v86 = vld [vmem:[%s1 + $0xf0] sm:$0xff]
  %v87 = vld [vmem:[%s1 + $0xf8] sm:$0xff]
  %v88 = vld [vmem:[%s1 + $0x100] sm:$0xff]
  %v89 = vld [vmem:[%s1 + $0x108] sm:$0xff]
  %v90 = vld [vmem:[%s1 + $0x110] sm:$0xff]
  %v91 = vld [vmem:[%s1 + $0x118] sm:$0xff]
  %v92 = vld [vmem:[%s1 + $0x120] sm:$0xff]
  %v93 = vld [vmem:[%s1 + $0x128] sm:$0xff]
  %v94 = vld [vmem:[%s1 + $0x130] sm:$0xff]
  %v95 = vld [vmem:[%s1 + $0x138] sm:$0xff]
  %v96 = vld [vmem:[%s1 + $0x140] sm:$0xff]
  %v97 = vld [vmem:[%s1 + $0x148] sm:$0xff]
  %v98 = vld [vmem:[%s1 + $0x150] sm:$0xff]
  %v99 = vld [vmem:[%s1 + $0x158] sm:$0xff]
  %v100 = vld [vmem:[%s1 + $0x160] sm:$0xff]
  %v101 = vld [vmem:[%s1 + $0x168] sm:$0xff]
  %v102 = vld [vmem:[%s1 + $0x170] sm:$0xff]
  %v103 = vld [vmem:[%s1 + $0x178] sm:$0xff]
  %v104 = vld [vmem:[%s1 + $0x180] sm:$0xff]
  %v105 = vld [vmem:[%s1 + $0x188] sm:$0xff]
  %v106 = vld [vmem:[%s1 + $0x190] sm:$0xff]
  %v107 = vld [vmem:[%s1 + $0x198] sm:$0xff]
  %v108 = vld [vmem:[%s1 + $0x1a0] sm:$0xff]
  %v109 = vld [vmem:[%s1 + $0x1a8] sm:$0xff]
  %v110 = vld [vmem:[%s1 + $0x1b0] sm:$0xff]
  %v111 = vld [vmem:[%s1 + $0x1b8] sm:$0xff]
  %v112 = vld [vmem:[%s1 + $0x1c0] sm:$0xff]
  %v113 = vld [vmem:[%s1 + $0x1c8] sm:$0xff]
  %v114 = vld [vmem:[%s1 + $0x1d0] sm:$0xff]
  %v115 = vld [vmem:[%s1 + $0x1d8] sm:$0xff]
  %v116 = vld [vmem:[%s1 + $0x1e0] sm:$0xff]
  %v117 = vld [vmem:[%s1 + $0x1e8] sm:$0xff]
  %v118 = vld [vmem:[%s1 + $0x1f0] sm:$0xff]
  %v119 = vld [vmem:[%s1 + $0x1f8] sm:$0xff]
  %v120 = vld [vmem:[%s1 + $0x200] sm:$0xff]
  %v121 = vld [vmem:[%s1 + $0x208] sm:$0xff]
  %v122 = vld [vmem:[%s1 + $0x210] sm:$0xff]
  %v123 = vld [vmem:[%s1 + $0x218] sm:$0xff]
  %v124 = vld [vmem:[%s1 + $0x220] sm:$0xff]
  %v125 = vld [vmem:[%s1 + $0x228] sm:$0xff]
  %v126 = vld [vmem:[%s1 + $0x230] sm:$0xff]
  %v127 = vld [vmem:[%s1 + $0x238] sm:$0xff]
  %v128 = vld [vmem:[%s1 + $0x240] sm:$0xff]
  %v129 = vld [vmem:[%s1 + $0x248] sm:$0xff]
  %v130 = vld [vmem:[%s1 + $0x250] sm:$0xff]
  %v131 = vld [vmem:[%s1 + $0x258] sm:$0xff]
  %v132 = vld [vmem:[%s1 + $0x260] sm:$0xff]
  %v133 = vld [vmem:[%s1 + $0x268] sm:$0xff]
  %v134 = vld [vmem:[%s1 + $0x270] sm:$0xff]
  %v135 = vld [vmem:[%s1 + $0x278] sm:$0xff]
  %v136 = vld [vmem:[%s1 + $0x280] sm:$0xff]
  %v137 = vld [vmem:[%s1 + $0x288] sm:$0xff]
  %v138 = vld [vmem:[%s1 + $0x290] sm:$0xff]
  %v139 = vld [vmem:[%s1 + $0x298] sm:$0xff]
  %v140 = vld [vmem:[%s1 + $0x2a0] sm:$0xff]
  %v141 = vld [vmem:[%s1 + $0x2a8] sm:$0xff]
  %v142 = vld [vmem:[%s1 + $0x2b0] sm:$0xff]
  %v143 = vld [vmem:[%s1 + $0x2b8] sm:$0xff]
  %v144 = vld [vmem:[%s1 + $0x2c0] sm:$0xff]
  %v145 = vld [vmem:[%s1 + $0x2c8] sm:$0xff]
  %v146 = vld [vmem:[%s1 + $0x2d0] sm:$0xff]
  %v147 = vld [vmem:[%s1 + $0x2d8] sm:$0xff]
  %v148 = vld [vmem:[%s1 + $0x2e0] sm:$0xff]
  %v149 = vld [vmem:[%s1 + $0x2e8] sm:$0xff]
  %v150 = vld [vmem:[%s1 + $0x2f0] sm:$0xff]
  %v151 = vld [vmem:[%s1 + $0x2f8] sm:$0xff]
  %v152 = vld [vmem:[%s1 + $0x300] sm:$0xff]
  %v153 = vld [vmem:[%s1 + $0x308] sm:$0xff]
  %v154 = vld [vmem:[%s1 + $0x310] sm:$0xff]
  %v155 = vld [vmem:[%s1 + $0x318] sm:$0xff]
  %v156 = vld [vmem:[%s1 + $0x320] sm:$0xff]
  %v157 = vld [vmem:[%s1 + $0x328] sm:$0xff]
  %v158 = vld [vmem:[%s1 + $0x330] sm:$0xff]
  %v159 = vld [vmem:[%s1 + $0x338] sm:$0xff]
  %v160 = vld [vmem:[%s1 + $0x340] sm:$0xff]
  %v161 = vld [vmem:[%s1 + $0x348] sm:$0xff]
  %v162 = vld [vmem:[%s1 + $0x350] sm:$0xff]
  %v163 = vld [vmem:[%s1 + $0x358] sm:$0xff]
  %v164 = vld [vmem:[%s1 + $0x360] sm:$0xff]
  %v165 = vld [vmem:[%s1 + $0x368] sm:$0xff]
  %v166 = vld [vmem:[%s1 + $0x370] sm:$0xff]
  %v167 = vld [vmem:[%s1 + $0x378] sm:$0xff]
  %v168 = vld [vmem:[%s1 + $0x380] sm:$0xff]
  %v169 = vld [vmem:[%s1 + $0x388] sm:$0xff]
  %v170 = vld [vmem:[%s1 + $0x390] sm:$0xff]
  %v171 = vld [vmem:[%s1 + $0x398] sm:$0xff]
  %v172 = vld [vmem:[%s1 + $0x3a0] sm:$0xff]
  %v173 = vld [vmem:[%s1 + $0x3a8] sm:$0xff]
  %v174 = vld [vmem:[%s1 + $0x3b0] sm:$0xff]
  %v175 = vld [vmem:[%s1 + $0x3b8] sm:$0xff]
  %v176 = vld [vmem:[%s1 + $0x3c0] sm:$0xff]
  %v177 = vld [vmem:[%s1 + $0x3c8] sm:$0xff]
  %v178 = vld [vmem:[%s1 + $0x3d0] sm:$0xff]
  %v179 = vld [vmem:[%s1 + $0x3d8] sm:$0xff]
  %v180 = vld [vmem:[%s1 + $0x3e0] sm:$0xff]
  %v181 = vld [vmem:[%s1 + $0x3e8] sm:$0xff]
  %v182 = vld [vmem:[%s1 + $0x3f0] sm:$0xff]
  %v183 = vld [vmem:[%s1 + $0x3f8] sm:$0xff]
  %v184 = vld [vmem:[%s1 + $0x400] sm:$0xff]
  %v185 = vld [vmem:[%s1 + $0x408] sm:$0xff]
  %v186 = vld [vmem:[%s1 + $0x410] sm:$0xff]
  %v187 = vld [vmem:[%s1 + $0x418] sm:$0xff]
  %v188 = vld [vmem:[%s1 + $0x420] sm:$0xff]
  %v189 = vld [vmem:[%s1 + $0x428] sm:$0xff]
  %v190 = vld [vmem:[%s1 + $0x430] sm:$0xff]
  %v191 = vld [vmem:[%s1 + $0x438] sm:$0xff]
  %v192 = vld [vmem:[%s1 + $0x440] sm:$0xff]
  %v193 = vld [vmem:[%s1 + $0x448] sm:$0xff]
  %v194 = vld [vmem:[%s1 + $0x450] sm:$0xff]
  %v195 = vld [vmem:[%s1 + $0x458] sm:$0xff]
  %v196 = vld [vmem:[%s1 + $0x460] sm:$0xff]
  %v197 = vld [vmem:[%s1 + $0x468] sm:$0xff]
  %v198 = vld [vmem:[%s1 + $0x470] sm:$0xff]
  %v199 = vld [vmem:[%s1 + $0x478] sm:$0xff]
  %200 = vmatpush.msra.mxu0 %v71
  %201 = vmatpush.msra.mxu0 %v70
  %202 = vmatpush.msra.mxu0 %v69
  %203 = vmatpush.msra.mxu0 %v68
  %204 = vmatpush.msra.mxu0 %v67
  %205 = vmatpush.msra.mxu0 %v66
  %206 = vmatpush.msra.mxu0 %v65
  %207 = vmatpush.msra.mxu0 %v64
  %208 = vmatpush.msra.mxu0 %v63
  %209 = vmatpush.msra.mxu0 %v62
  %210 = vmatpush.msra.mxu0 %v61
  %211 = vmatpush.msra.mxu0 %v60
  %212 = vmatpush.msra.mxu0 %v59
  %213 = vmatpush.msra.mxu0 %v58
  %214 = vmatpush.msra.mxu0 %v57
  %215 = vmatpush.msra.mxu0 %v56
  %216 = vmatmul.f32.gmra.mxu0 %v20
  %v217 = vpop.f32.mrf.mxu0
  %v218 = vadd.f32 0.0, %v217
  %219 = vmatmul.f32.gmra.mxu0 %v29
  %v220 = vpop.f32.mrf.mxu0
  %v221 = vadd.f32 0.0, %v220
  %222 = vmatmul.f32.gmra.mxu0 %v38
  %v223 = vpop.f32.mrf.mxu0
  %v224 = vadd.f32 0.0, %v223
  %225 = vmatmul.f32.gmra.mxu0 %v47
  %v226 = vpop.f32.mrf.mxu0
  %v227 = vadd.f32 0.0, %v226
  %228 = vdwg.mxu0
  %229 = vmatpush.msra.mxu0 %v87
  %230 = vmatpush.msra.mxu0 %v86
  %231 = vmatpush.msra.mxu0 %v85
  %232 = vmatpush.msra.mxu0 %v84
  %233 = vmatpush.msra.mxu0 %v83
  %234 = vmatpush.msra.mxu0 %v82
  %235 = vmatpush.msra.mxu0 %v81
  %236 = vmatpush.msra.mxu0 %v80
  %237 = vmatpush.msra.mxu0 %v79
  %238 = vmatpush.msra.mxu0 %v78
  %239 = vmatpush.msra.mxu0 %v77
  %240 = vmatpush.msra.mxu0 %v76
  %241 = vmatpush.msra.mxu0 %v75
  %242 = vmatpush.msra.mxu0 %v74
  %243 = vmatpush.msra.mxu0 %v73
  %244 = vmatpush.msra.mxu0 %v72
  %245 = vmatmul.f32.gmra.mxu0 %v21
  %v246 = vpop.f32.mrf.mxu0
  %v247 = vadd.f32 %v218, %v246
  %248 = vmatmul.f32.gmra.mxu0 %v30
  %v249 = vpop.f32.mrf.mxu0
  %v250 = vadd.f32 %v221, %v249
  %251 = vmatmul.f32.gmra.mxu0 %v39
  %v252 = vpop.f32.mrf.mxu0
  %v253 = vadd.f32 %v224, %v252
  %254 = vmatmul.f32.gmra.mxu0 %v48
  %v255 = vpop.f32.mrf.mxu0
  %v256 = vadd.f32 %v227, %v255
  %257 = vdwg.mxu0
  %258 = vmatpush.msra.mxu0 %v103
  %259 = vmatpush.msra.mxu0 %v102
  %260 = vmatpush.msra.mxu0 %v101
  %261 = vmatpush.msra.mxu0 %v100
  %262 = vmatpush.msra.mxu0 %v99
  %263 = vmatpush.msra.mxu0 %v98
  %264 = vmatpush.msra.mxu0 %v97
  %265 = vmatpush.msra.mxu0 %v96
  %266 = vmatpush.msra.mxu0 %v95
  %267 = vmatpush.msra.mxu0 %v94
  %268 = vmatpush.msra.mxu0 %v93
  %269 = vmatpush.msra.mxu0 %v92
  %270 = vmatpush.msra.mxu0 %v91
  %271 = vmatpush.msra.mxu0 %v90
  %272 = vmatpush.msra.mxu0 %v89
  %273 = vmatpush.msra.mxu0 %v88
  %274 = vmatmul.f32.gmra.mxu0 %v22
  %v275 = vpop.f32.mrf.mxu0
  %v276 = vadd.f32 %v247, %v275
  %277 = vmatmul.f32.gmra.mxu0 %v31
  %v278 = vpop.f32.mrf.mxu0
  %v279 = vadd.f32 %v250, %v278
  %280 = vmatmul.f32.gmra.mxu0 %v40
  %v281 = vpop.f32.mrf.mxu0
  %v282 = vadd.f32 %v253, %v281
  %283 = vmatmul.f32.gmra.mxu0 %v49
  %v284 = vpop.f32.mrf.mxu0
  %v285 = vadd.f32 %v256, %v284
  %286 = vdwg.mxu0
  %287 = vmatpush.msra.mxu0 %v119
  %288 = vmatpush.msra.mxu0 %v118
  %289 = vmatpush.msra.mxu0 %v117
  %290 = vmatpush.msra.mxu0 %v116
  %291 = vmatpush.msra.mxu0 %v115
  %292 = vmatpush.msra.mxu0 %v114
  %293 = vmatpush.msra.mxu0 %v113
  %294 = vmatpush.msra.mxu0 %v112
  %295 = vmatpush.msra.mxu0 %v111
  %296 = vmatpush.msra.mxu0 %v110
  %297 = vmatpush.msra.mxu0 %v109
  %298 = vmatpush.msra.mxu0 %v108
  %299 = vmatpush.msra.mxu0 %v107
  %300 = vmatpush.msra.mxu0 %v106
  %301 = vmatpush.msra.mxu0 %v105
  %302 = vmatpush.msra.mxu0 %v104
  %303 = vmatmul.f32.gmra.mxu0 %v23
  %v304 = vpop.f32.mrf.mxu0
  %v305 = vadd.f32 %v276, %v304
  %306 = vmatmul.f32.gmra.mxu0 %v32
  %v307 = vpop.f32.mrf.mxu0
  %v308 = vadd.f32 %v279, %v307
  %309 = vmatmul.f32.gmra.mxu0 %v41
  %v310 = vpop.f32.mrf.mxu0
  %v311 = vadd.f32 %v282, %v310
  %312 = vmatmul.f32.gmra.mxu0 %v50
  %v313 = vpop.f32.mrf.mxu0
  %v314 = vadd.f32 %v285, %v313
  %315 = vdwg.mxu0
  %316 = vmatpush.msra.mxu0 %v135
  %317 = vmatpush.msra.mxu0 %v134
  %318 = vmatpush.msra.mxu0 %v133
  %319 = vmatpush.msra.mxu0 %v132
  %320 = vmatpush.msra.mxu0 %v131
  %321 = vmatpush.msra.mxu0 %v130
  %322 = vmatpush.msra.mxu0 %v129
  %323 = vmatpush.msra.mxu0 %v128
  %324 = vmatpush.msra.mxu0 %v127
  %325 = vmatpush.msra.mxu0 %v126
  %326 = vmatpush.msra.mxu0 %v125
  %327 = vmatpush.msra.mxu0 %v124
  %328 = vmatpush.msra.mxu0 %v123
  %329 = vmatpush.msra.mxu0 %v122
  %330 = vmatpush.msra.mxu0 %v121
  %331 = vmatpush.msra.mxu0 %v120
  %332 = vmatmul.f32.gmra.mxu0 %v24
  %v333 = vpop.f32.mrf.mxu0
  %v334 = vadd.f32 %v305, %v333
  %335 = vmatmul.f32.gmra.mxu0 %v33
  %v336 = vpop.f32.mrf.mxu0
  %v337 = vadd.f32 %v308, %v336
  %338 = vmatmul.f32.gmra.mxu0 %v42
  %v339 = vpop.f32.mrf.mxu0
  %v340 = vadd.f32 %v311, %v339
  %341 = vmatmul.f32.gmra.mxu0 %v51
  %v342 = vpop.f32.mrf.mxu0
  %v343 = vadd.f32 %v314, %v342
  %344 = vdwg.mxu0
  %345 = vmatpush.msra.mxu0 %v151
  %346 = vmatpush.msra.mxu0 %v150
  %347 = vmatpush.msra.mxu0 %v149
  %348 = vmatpush.msra.mxu0 %v148
  %349 = vmatpush.msra.mxu0 %v147
  %350 = vmatpush.msra.mxu0 %v146
  %351 = vmatpush.msra.mxu0 %v145
  %352 = vmatpush.msra.mxu0 %v144
  %353 = vmatpush.msra.mxu0 %v143
  %354 = vmatpush.msra.mxu0 %v142
  %355 = vmatpush.msra.mxu0 %v141
  %356 = vmatpush.msra.mxu0 %v140
  %357 = vmatpush.msra.mxu0 %v139
  %358 = vmatpush.msra.mxu0 %v138
  %359 = vmatpush.msra.mxu0 %v137
  %360 = vmatpush.msra.mxu0 %v136
  %361 = vmatmul.f32.gmra.mxu0 %v25
  %v362 = vpop.f32.mrf.mxu0
  %v363 = vadd.f32 %v334, %v362
  %364 = vmatmul.f32.gmra.mxu0 %v34
  %v365 = vpop.f32.mrf.mxu0
  %v366 = vadd.f32 %v337, %v365
  %367 = vmatmul.f32.gmra.mxu0 %v43
  %v368 = vpop.f32.mrf.mxu0
  %v369 = vadd.f32 %v340, %v368
  %370 = vmatmul.f32.gmra.mxu0 %v52
  %v371 = vpop.f32.mrf.mxu0
  %v372 = vadd.f32 %v343, %v371
  %373 = vdwg.mxu0
  %374 = vmatpush.msra.mxu0 %v167
  %375 = vmatpush.msra.mxu0 %v166
  %376 = vmatpush.msra.mxu0 %v165
  %377 = vmatpush.msra.mxu0 %v164
  %378 = vmatpush.msra.mxu0 %v163
  %379 = vmatpush.msra.mxu0 %v162
  %380 = vmatpush.msra.mxu0 %v161
  %381 = vmatpush.msra.mxu0 %v160
  %382 = vmatpush.msra.mxu0 %v159
  %383 = vmatpush.msra.mxu0 %v158
  %384 = vmatpush.msra.mxu0 %v157
  %385 = vmatpush.msra.mxu0 %v156
  %386 = vmatpush.msra.mxu0 %v155
  %387 = vmatpush.msra.mxu0 %v154
  %388 = vmatpush.msra.mxu0 %v153
  %389 = vmatpush.msra.mxu0 %v152
  %390 = vmatmul.f32.gmra.mxu0 %v26
  %v391 = vpop.f32.mrf.mxu0
  %v392 = vadd.f32 %v363, %v391
  %393 = vmatmul.f32.gmra.mxu0 %v35
  %v394 = vpop.f32.mrf.mxu0
  %v395 = vadd.f32 %v366, %v394
  %396 = vmatmul.f32.gmra.mxu0 %v44
  %v397 = vpop.f32.mrf.mxu0
  %v398 = vadd.f32 %v369, %v397
  %399 = vmatmul.f32.gmra.mxu0 %v53
  %v400 = vpop.f32.mrf.mxu0
  %v401 = vadd.f32 %v372, %v400
  %402 = vdwg.mxu0
  %403 = vmatpush.msra.mxu0 %v183
  %404 = vmatpush.msra.mxu0 %v182
  %405 = vmatpush.msra.mxu0 %v181
  %406 = vmatpush.msra.mxu0 %v180
  %407 = vmatpush.msra.mxu0 %v179
  %408 = vmatpush.msra.mxu0 %v178
  %409 = vmatpush.msra.mxu0 %v177
  %410 = vmatpush.msra.mxu0 %v176
  %411 = vmatpush.msra.mxu0 %v175
  %412 = vmatpush.msra.mxu0 %v174
  %413 = vmatpush.msra.mxu0 %v173
  %414 = vmatpush.msra.mxu0 %v172
  %415 = vmatpush.msra.mxu0 %v171
  %416 = vmatpush.msra.mxu0 %v170
  %417 = vmatpush.msra.mxu0 %v169
  %418 = vmatpush.msra.mxu0 %v168
  %419 = vmatmul.f32.gmra.mxu0 %v27
  %v420 = vpop.f32.mrf.mxu0
  %v421 = vadd.f32 %v392, %v420
  %422 = vmatmul.f32.gmra.mxu0 %v36
  %v423 = vpop.f32.mrf.mxu0
  %v424 = vadd.f32 %v395, %v423
  %425 = vmatmul.f32.gmra.mxu0 %v45
  %v426 = vpop.f32.mrf.mxu0
  %v427 = vadd.f32 %v398, %v426
  %428 = vmatmul.f32.gmra.mxu0 %v54
  %v429 = vpop.f32.mrf.mxu0
  %v430 = vadd.f32 %v401, %v429
  %431 = vdwg.mxu0
  %432 = vmatpush.msra.mxu0 %v199
  %433 = vmatpush.msra.mxu0 %v198
  %434 = vmatpush.msra.mxu0 %v197
  %435 = vmatpush.msra.mxu0 %v196
  %436 = vmatpush.msra.mxu0 %v195
  %437 = vmatpush.msra.mxu0 %v194
  %438 = vmatpush.msra.mxu0 %v193
  %439 = vmatpush.msra.mxu0 %v192
  %440 = vmatpush.msra.mxu0 %v191
  %441 = vmatpush.msra.mxu0 %v190
  %442 = vmatpush.msra.mxu0 %v189
  %443 = vmatpush.msra.mxu0 %v188
  %444 = vmatpush.msra.mxu0 %v187
  %445 = vmatpush.msra.mxu0 %v186
  %446 = vmatpush.msra.mxu0 %v185
  %447 = vmatpush.msra.mxu0 %v184
  %448 = vmatmul.f32.gmra.mxu0 %v28
  %v449 = vpop.f32.mrf.mxu0
  %v450 = vadd.f32 %v421, %v449
  %451 = vmatmul.f32.gmra.mxu0 %v37
  %v452 = vpop.f32.mrf.mxu0
  %v453 = vadd.f32 %v424, %v452
  %454 = vmatmul.f32.gmra.mxu0 %v46
  %v455 = vpop.f32.mrf.mxu0
  %v456 = vadd.f32 %v427, %v455
  %457 = vmatmul.f32.gmra.mxu0 %v55
  %v458 = vpop.f32.mrf.mxu0
  %v459 = vadd.f32 %v430, %v458
  %460 = vdwg.mxu0
  %v461 = vld [vmem:[%s2] sm:$0x1]
  %v463 = vperm.slane %v461, 0
  %v465 = vmul.f32 %v450, %v463
  %v466 = vmul.f32 %v453, %v463
  %v467 = vmul.f32 %v456, %v463
  %v468 = vmul.f32 %v459, %v463
  %v469 = vld [vmem:[%s3] sm:$0x1]
  %v471 = vperm.slane %v469, 0
  %v473 = vadd.f32 %v465, %v471
  %v474 = vadd.f32 %v466, %v471
  %v475 = vadd.f32 %v467, %v471
  %v476 = vadd.f32 %v468, %v471
  %v477 = vld [vmem:[%s4] sm:$0xff]
  %v478 = vld [vmem:[%s4 + $0x8] sm:$0xff]
  %v479 = vld [vmem:[%s4 + $0x10] sm:$0xff]
  %v480 = vld [vmem:[%s4 + $0x18] sm:$0xff]
  %v481 = vadd.f32 %v473, %v477
  %v482 = vadd.f32 %v474, %v478
  %v483 = vadd.f32 %v475, %v479
  %v484 = vadd.f32 %v476, %v480
  %v485 = vmax.f32 %v481, 0.0
  %v486 = vmax.f32 %v482, 0.0
  %v487 = vmax.f32 %v483, 0.0
  %v488 = vmax.f32 %v484, 0.0
  %489 = vst [vmem:[%s5] sm:$0xff] %v485
  %490 = vst [vmem:[%s5 + $0x8] sm:$0xff] %v486
  %491 = vst [vmem:[%s5 + $0x10] sm:$0xff] %v487
  %492 = vst [vmem:[%s5 + $0x18] sm:$0xff] %v488
  // Predicated region
  $region22: #{macnet_forward.33} parent=0 // pred_check
    _
  $region23: #{macnet_forward.33} parent=0 // pred_check_branch
    %494 = sbr.rel (0) target = $region25
  $region24: #{macnet_forward.33} parent=0 // pred_region
    _
  $region25: #{macnet_forward.33} parent=0 // pred_fallthru
    _
  // Predicated region
  $region26: #{macnet_forward.33} parent=0 // pred_check
    _
  $region27: #{macnet_forward.33} parent=0 // pred_check_branch
    %496 = sbr.rel (0) target = $region29
  $region28: #{macnet_forward.33} parent=0 // pred_region
    _
  $region29: #{macnet_forward.33} parent=0 // pred_fallthru
    _

// kernel: macnet_forward.36
$region0: #{macnet_forward.36}
  #allocation0 [shape = 'u32[]', space=smem, size = 0x4, offset = 0x4, fixed_abs, tag = 'smem constant byte address 0x4 - core index']
  #allocation1 [shape = 'u32[72,128]{1,0:T(1,128)}', space=vmem, size = 0x9000, scoped, tag = 'internal scratch']
  %s0 = inlined_call_operand.vmem [shape: f32[32,1152], index: 0, kind: input, shape index: {}]
  %s1 = inlined_call_operand.vmem [shape: f32[1152,256], index: 1, kind: input, shape index: {}]
  %s2 = inlined_call_operand.vmem [shape: f32[1,256], index: 2, kind: input, shape index: {}]
  %s3 = inlined_call_operand.vmem [shape: f32[1,256], index: 3, kind: input, shape index: {}]
  %s4 = inlined_call_operand.vmem [shape: f32[32,256], index: 4, kind: output, shape index: {}]
  %s5 = sld [smem:[#allocation0]]
  $region26: #{macnet_forward.36} parent=0
    _
  %s7 = ssub.s32 1, %s5
  %s8 = scalar_select 0, %s7, %s5
  // Predicated region
  $region2: #{macnet_forward.36} parent=0 // pred_check
    _
  $region3: #{macnet_forward.36} parent=0 // pred_check_branch
    %10 = sbr.rel (0) target = $region5
  $region4: #{macnet_forward.36} parent=0 // pred_region
    _
  $region5: #{macnet_forward.36} parent=0 // pred_fallthru
    _
  // Predicated region
  $region6: #{macnet_forward.36} parent=0 // pred_check
    _
  $region7: #{macnet_forward.36} parent=0 // pred_check_branch
    %12 = sbr.rel (0) target = $region9
  $region8: #{macnet_forward.36} parent=0 // pred_region
    _
  $region9: #{macnet_forward.36} parent=0 // pred_fallthru
    _
  // Predicated region
  $region10: #{macnet_forward.36} parent=0 // pred_check
    _
  $region11: #{macnet_forward.36} parent=0 // pred_check_branch
    %14 = sbr.rel (0) target = $region13
  $region12: #{macnet_forward.36} parent=0 // pred_region
    _
  $region13: #{macnet_forward.36} parent=0 // pred_fallthru
    _
  // Predicated region
  $region14: #{macnet_forward.36} parent=0 // pred_check
    _
  $region15: #{macnet_forward.36} parent=0 // pred_check_branch
    %16 = sbr.rel (0) target = $region17
  $region16: #{macnet_forward.36} parent=0 // pred_region
    _
  $region17: #{macnet_forward.36} parent=0 // pred_fallthru
    _
  %v17 = vld [vmem:[%s0] sm:$0xff]
  %v18 = vld [vmem:[%s0 + $0x8] sm:$0xff]
  %v19 = vld [vmem:[%s0 + $0x10] sm:$0xff]
  %v20 = vld [vmem:[%s0 + $0x18] sm:$0xff]
  %v21 = vld [vmem:[%s0 + $0x20] sm:$0xff]
  %v22 = vld [vmem:[%s0 + $0x28] sm:$0xff]
  %v23 = vld [vmem:[%s0 + $0x30] sm:$0xff]
  %v24 = vld [vmem:[%s0 + $0x38] sm:$0xff]
  %v25 = vld [vmem:[%s0 + $0x40] sm:$0xff]
  %v26 = vld [vmem:[%s0 + $0x48] sm:$0xff]
  %v27 = vld [vmem:[%s0 + $0x50] sm:$0xff]
  %v28 = vld [vmem:[%s0 + $0x58] sm:$0xff]
  %v29 = vld [vmem:[%s0 + $0x60] sm:$0xff]
  %v30 = vld [vmem:[%s0 + $0x68] sm:$0xff]
  %v31 = vld [vmem:[%s0 + $0x70] sm:$0xff]
  %v32 = vld [vmem:[%s0 + $0x78] sm:$0xff]
  %v33 = vld [vmem:[%s0 + $0x80] sm:$0xff]
  %v34 = vld [vmem:[%s0 + $0x88] sm:$0xff]
  %v35 = vld [vmem:[%s0 + $0x90] sm:$0xff]
  %v36 = vld [vmem:[%s0 + $0x98] sm:$0xff]
  %v37 = vld [vmem:[%s0 + $0xa0] sm:$0xff]
  %v38 = vld [vmem:[%s0 + $0xa8] sm:$0xff]
  %v39 = vld [vmem:[%s0 + $0xb0] sm:$0xff]
  %v40 = vld [vmem:[%s0 + $0xb8] sm:$0xff]
  %v41 = vld [vmem:[%s0 + $0xc0] sm:$0xff]
  %v42 = vld [vmem:[%s0 + $0xc8] sm:$0xff]
  %v43 = vld [vmem:[%s0 + $0xd0] sm:$0xff]
  %v44 = vld [vmem:[%s0 + $0xd8] sm:$0xff]
  %v45 = vld [vmem:[%s0 + $0xe0] sm:$0xff]
  %v46 = vld [vmem:[%s0 + $0xe8] sm:$0xff]
  %v47 = vld [vmem:[%s0 + $0xf0] sm:$0xff]
  %v48 = vld [vmem:[%s0 + $0xf8] sm:$0xff]
  %v49 = vld [vmem:[%s0 + $0x100] sm:$0xff]
  %v50 = vld [vmem:[%s0 + $0x108] sm:$0xff]
  %v51 = vld [vmem:[%s0 + $0x110] sm:$0xff]
  %v52 = vld [vmem:[%s0 + $0x118] sm:$0xff]
  %v53 = vld [vmem:[%s1] sm:$0xff]
  %v54 = vld [vmem:[%s1 + $0x8] sm:$0xff]
  %v55 = vld [vmem:[%s1 + $0x10] sm:$0xff]
  %v56 = vld [vmem:[%s1 + $0x18] sm:$0xff]
  %v57 = vld [vmem:[%s1 + $0x20] sm:$0xff]
  %v58 = vld [vmem:[%s1 + $0x28] sm:$0xff]
  %v59 = vld [vmem:[%s1 + $0x30] sm:$0xff]
  %v60 = vld [vmem:[%s1 + $0x38] sm:$0xff]
  %v61 = vld [vmem:[%s1 + $0x40] sm:$0xff]
  %v62 = vld [vmem:[%s1 + $0x48] sm:$0xff]
  %v63 = vld [vmem:[%s1 + $0x50] sm:$0xff]
  %v64 = vld [vmem:[%s1 + $0x58] sm:$0xff]
  %v65 = vld [vmem:[%s1 + $0x60] sm:$0xff]
  %v66 = vld [vmem:[%s1 + $0x68] sm:$0xff]
  %v67 = vld [vmem:[%s1 + $0x70] sm:$0xff]
  %v68 = vld [vmem:[%s1 + $0x78] sm:$0xff]
  %v69 = vld [vmem:[%s1 + $0x80] sm:$0xff]
  %v70 = vld [vmem:[%s1 + $0x88] sm:$0xff]
  %v71 = vld [vmem:[%s1 + $0x90] sm:$0xff]
  %v72 = vld [vmem:[%s1 + $0x98] sm:$0xff]
  %v73 = vld [vmem:[%s1 + $0xa0] sm:$0xff]
  %v74 = vld [vmem:[%s1 + $0xa8] sm:$0xff]
  %v75 = vld [vmem:[%s1 + $0xb0] sm:$0xff]
  %v76 = vld [vmem:[%s1 + $0xb8] sm:$0xff]
  %v77 = vld [vmem:[%s1 + $0xc0] sm:$0xff]
  %v78 = vld [vmem:[%s1 + $0xc8] sm:$0xff]
  %v79 = vld [vmem:[%s1 + $0xd0] sm:$0xff]
  %v80 = vld [vmem:[%s1 + $0xd8] sm:$0xff]
  %v81 = vld [vmem:[%s1 + $0xe0] sm:$0xff]
  %v82 = vld [vmem:[%s1 + $0xe8] sm:$0xff]
  %v83 = vld [vmem:[%s1 + $0xf0] sm:$0xff]
  %v84 = vld [vmem:[%s1 + $0xf8] sm:$0xff]
  %v85 = vld [vmem:[%s1 + $0x100] sm:$0xff]
  %v86 = vld [vmem:[%s1 + $0x108] sm:$0xff]
  %v87 = vld [vmem:[%s1 + $0x110] sm:$0xff]
  %v88 = vld [vmem:[%s1 + $0x118] sm:$0xff]
  %v89 = vld [vmem:[%s1 + $0x120] sm:$0xff]
  %v90 = vld [vmem:[%s1 + $0x128] sm:$0xff]
  %v91 = vld [vmem:[%s1 + $0x130] sm:$0xff]
  %v92 = vld [vmem:[%s1 + $0x138] sm:$0xff]
  %v93 = vld [vmem:[%s1 + $0x140] sm:$0xff]
  %v94 = vld [vmem:[%s1 + $0x148] sm:$0xff]
  %v95 = vld [vmem:[%s1 + $0x150] sm:$0xff]
  %v96 = vld [vmem:[%s1 + $0x158] sm:$0xff]
  %v97 = vld [vmem:[%s1 + $0x160] sm:$0xff]
  %v98 = vld [vmem:[%s1 + $0x168] sm:$0xff]
  %v99 = vld [vmem:[%s1 + $0x170] sm:$0xff]
  %v100 = vld [vmem:[%s1 + $0x178] sm:$0xff]
  %v101 = vld [vmem:[%s1 + $0x180] sm:$0xff]
  %v102 = vld [vmem:[%s1 + $0x188] sm:$0xff]
  %v103 = vld [vmem:[%s1 + $0x190] sm:$0xff]
  %v104 = vld [vmem:[%s1 + $0x198] sm:$0xff]
  %v105 = vld [vmem:[%s1 + $0x1a0] sm:$0xff]
  %v106 = vld [vmem:[%s1 + $0x1a8] sm:$0xff]
  %v107 = vld [vmem:[%s1 + $0x1b0] sm:$0xff]
  %v108 = vld [vmem:[%s1 + $0x1b8] sm:$0xff]
  %v109 = vld [vmem:[%s1 + $0x1c0] sm:$0xff]
  %v110 = vld [vmem:[%s1 + $0x1c8] sm:$0xff]
  %v111 = vld [vmem:[%s1 + $0x1d0] sm:$0xff]
  %v112 = vld [vmem:[%s1 + $0x1d8] sm:$0xff]
  %v113 = vld [vmem:[%s1 + $0x1e0] sm:$0xff]
  %v114 = vld [vmem:[%s1 + $0x1e8] sm:$0xff]
  %v115 = vld [vmem:[%s1 + $0x1f0] sm:$0xff]
  %v116 = vld [vmem:[%s1 + $0x1f8] sm:$0xff]
  %v117 = vld [vmem:[%s1 + $0x200] sm:$0xff]
  %v118 = vld [vmem:[%s1 + $0x208] sm:$0xff]
  %v119 = vld [vmem:[%s1 + $0x210] sm:$0xff]
  %v120 = vld [vmem:[%s1 + $0x218] sm:$0xff]
  %v121 = vld [vmem:[%s1 + $0x220] sm:$0xff]
  %v122 = vld [vmem:[%s1 + $0x228] sm:$0xff]
  %v123 = vld [vmem:[%s1 + $0x230] sm:$0xff]
  %v124 = vld [vmem:[%s1 + $0x238] sm:$0xff]
  %v125 = vld [vmem:[%s1 + $0x240] sm:$0xff]
  %v126 = vld [vmem:[%s1 + $0x248] sm:$0xff]
  %v127 = vld [vmem:[%s1 + $0x250] sm:$0xff]
  %v128 = vld [vmem:[%s1 + $0x258] sm:$0xff]
  %v129 = vld [vmem:[%s1 + $0x260] sm:$0xff]
  %v130 = vld [vmem:[%s1 + $0x268] sm:$0xff]
  %v131 = vld [vmem:[%s1 + $0x270] sm:$0xff]
  %v132 = vld [vmem:[%s1 + $0x278] sm:$0xff]
  %v133 = vld [vmem:[%s1 + $0x280] sm:$0xff]
  %v134 = vld [vmem:[%s1 + $0x288] sm:$0xff]
  %v135 = vld [vmem:[%s1 + $0x290] sm:$0xff]
  %v136 = vld [vmem:[%s1 + $0x298] sm:$0xff]
  %v137 = vld [vmem:[%s1 + $0x2a0] sm:$0xff]
  %v138 = vld [vmem:[%s1 + $0x2a8] sm:$0xff]
  %v139 = vld [vmem:[%s1 + $0x2b0] sm:$0xff]
  %v140 = vld [vmem:[%s1 + $0x2b8] sm:$0xff]
  %v141 = vld [vmem:[%s1 + $0x2c0] sm:$0xff]
  %v142 = vld [vmem:[%s1 + $0x2c8] sm:$0xff]
  %v143 = vld [vmem:[%s1 + $0x2d0] sm:$0xff]
  %v144 = vld [vmem:[%s1 + $0x2d8] sm:$0xff]
  %v145 = vld [vmem:[%s1 + $0x2e0] sm:$0xff]
  %v146 = vld [vmem:[%s1 + $0x2e8] sm:$0xff]
  %v147 = vld [vmem:[%s1 + $0x2f0] sm:$0xff]
  %v148 = vld [vmem:[%s1 + $0x2f8] sm:$0xff]
  %v149 = vld [vmem:[%s1 + $0x300] sm:$0xff]
  %v150 = vld [vmem:[%s1 + $0x308] sm:$0xff]
  %v151 = vld [vmem:[%s1 + $0x310] sm:$0xff]
  %v152 = vld [vmem:[%s1 + $0x318] sm:$0xff]
  %v153 = vld [vmem:[%s1 + $0x320] sm:$0xff]
  %v154 = vld [vmem:[%s1 + $0x328] sm:$0xff]
  %v155 = vld [vmem:[%s1 + $0x330] sm:$0xff]
  %v156 = vld [vmem:[%s1 + $0x338] sm:$0xff]
  %v157 = vld [vmem:[%s1 + $0x340] sm:$0xff]
  %v158 = vld [vmem:[%s1 + $0x348] sm:$0xff]
  %v159 = vld [vmem:[%s1 + $0x350] sm:$0xff]
  %v160 = vld [vmem:[%s1 + $0x358] sm:$0xff]
  %v161 = vld [vmem:[%s1 + $0x360] sm:$0xff]
  %v162 = vld [vmem:[%s1 + $0x368] sm:$0xff]
  %v163 = vld [vmem:[%s1 + $0x370] sm:$0xff]
  %v164 = vld [vmem:[%s1 + $0x378] sm:$0xff]
  %v165 = vld [vmem:[%s1 + $0x380] sm:$0xff]
  %v166 = vld [vmem:[%s1 + $0x388] sm:$0xff]
  %v167 = vld [vmem:[%s1 + $0x390] sm:$0xff]
  %v168 = vld [vmem:[%s1 + $0x398] sm:$0xff]
  %v169 = vld [vmem:[%s1 + $0x3a0] sm:$0xff]
  %v170 = vld [vmem:[%s1 + $0x3a8] sm:$0xff]
  %v171 = vld [vmem:[%s1 + $0x3b0] sm:$0xff]
  %v172 = vld [vmem:[%s1 + $0x3b8] sm:$0xff]
  %v173 = vld [vmem:[%s1 + $0x3c0] sm:$0xff]
  %v174 = vld [vmem:[%s1 + $0x3c8] sm:$0xff]
  %v175 = vld [vmem:[%s1 + $0x3d0] sm:$0xff]
  %v176 = vld [vmem:[%s1 + $0x3d8] sm:$0xff]
  %v177 = vld [vmem:[%s1 + $0x3e0] sm:$0xff]
  %v178 = vld [vmem:[%s1 + $0x3e8] sm:$0xff]
  %v179 = vld [vmem:[%s1 + $0x3f0] sm:$0xff]
  %v180 = vld [vmem:[%s1 + $0x3f8] sm:$0xff]
  %v181 = vld [vmem:[%s1 + $0x400] sm:$0xff]
  %v182 = vld [vmem:[%s1 + $0x408] sm:$0xff]
  %v183 = vld [vmem:[%s1 + $0x410] sm:$0xff]
  %v184 = vld [vmem:[%s1 + $0x418] sm:$0xff]
  %v185 = vld [vmem:[%s1 + $0x420] sm:$0xff]
  %v186 = vld [vmem:[%s1 + $0x428] sm:$0xff]
  %v187 = vld [vmem:[%s1 + $0x430] sm:$0xff]
  %v188 = vld [vmem:[%s1 + $0x438] sm:$0xff]
  %v189 = vld [vmem:[%s1 + $0x440] sm:$0xff]
  %v190 = vld [vmem:[%s1 + $0x448] sm:$0xff]
  %v191 = vld [vmem:[%s1 + $0x450] sm:$0xff]
  %v192 = vld [vmem:[%s1 + $0x458] sm:$0xff]
  %v193 = vld [vmem:[%s1 + $0x460] sm:$0xff]
  %v194 = vld [vmem:[%s1 + $0x468] sm:$0xff]
  %v195 = vld [vmem:[%s1 + $0x470] sm:$0xff]
  %v196 = vld [vmem:[%s1 + $0x478] sm:$0xff]
  %v197 = vld [vmem:[%s1 + $0x480] sm:$0xff]
  %v198 = vld [vmem:[%s1 + $0x488] sm:$0xff]
  %v199 = vld [vmem:[%s1 + $0x490] sm:$0xff]
  %v200 = vld [vmem:[%s1 + $0x498] sm:$0xff]
  %v201 = vld [vmem:[%s1 + $0x4a0] sm:$0xff]
  %v202 = vld [vmem:[%s1 + $0x4a8] sm:$0xff]
  %v203 = vld [vmem:[%s1 + $0x4b0] sm:$0xff]
  %v204 = vld [vmem:[%s1 + $0x4b8] sm:$0xff]
  %v205 = vld [vmem:[%s1 + $0x4c0] sm:$0xff]
  %v206 = vld [vmem:[%s1 + $0x4c8] sm:$0xff]
  %v207 = vld [vmem:[%s1 + $0x4d0] sm:$0xff]
  %v208 = vld [vmem:[%s1 + $0x4d8] sm:$0xff]
  %v209 = vld [vmem:[%s1 + $0x4e0] sm:$0xff]
  %v210 = vld [vmem:[%s1 + $0x4e8] sm:$0xff]
  %v211 = vld [vmem:[%s1 + $0x4f0] sm:$0xff]
  %v212 = vld [vmem:[%s1 + $0x4f8] sm:$0xff]
  %v213 = vld [vmem:[%s1 + $0x500] sm:$0xff]
  %v214 = vld [vmem:[%s1 + $0x508] sm:$0xff]
  %v215 = vld [vmem:[%s1 + $0x510] sm:$0xff]
  %v216 = vld [vmem:[%s1 + $0x518] sm:$0xff]
  %v217 = vld [vmem:[%s1 + $0x520] sm:$0xff]
  %v218 = vld [vmem:[%s1 + $0x528] sm:$0xff]
  %v219 = vld [vmem:[%s1 + $0x530] sm:$0xff]
  %v220 = vld [vmem:[%s1 + $0x538] sm:$0xff]
  %v221 = vld [vmem:[%s1 + $0x540] sm:$0xff]
  %v222 = vld [vmem:[%s1 + $0x548] sm:$0xff]
  %v223 = vld [vmem:[%s1 + $0x550] sm:$0xff]
  %v224 = vld [vmem:[%s1 + $0x558] sm:$0xff]
  %v225 = vld [vmem:[%s1 + $0x560] sm:$0xff]
  %v226 = vld [vmem:[%s1 + $0x568] sm:$0xff]
  %v227 = vld [vmem:[%s1 + $0x570] sm:$0xff]
  %v228 = vld [vmem:[%s1 + $0x578] sm:$0xff]
  %v229 = vld [vmem:[%s1 + $0x580] sm:$0xff]
  %v230 = vld [vmem:[%s1 + $0x588] sm:$0xff]
  %v231 = vld [vmem:[%s1 + $0x590] sm:$0xff]
  %v232 = vld [vmem:[%s1 + $0x598] sm:$0xff]
  %v233 = vld [vmem:[%s1 + $0x5a0] sm:$0xff]
  %v234 = vld [vmem:[%s1 + $0x5a8] sm:$0xff]
  %v235 = vld [vmem:[%s1 + $0x5b0] sm:$0xff]
  %v236 = vld [vmem:[%s1 + $0x5b8] sm:$0xff]
  %v237 = vld [vmem:[%s1 + $0x5c0] sm:$0xff]
  %v238 = vld [vmem:[%s1 + $0x5c8] sm:$0xff]
  %v239 = vld [vmem:[%s1 + $0x5d0] sm:$0xff]
  %v240 = vld [vmem:[%s1 + $0x5d8] sm:$0xff]
  %v241 = vld [vmem:[%s1 + $0x5e0] sm:$0xff]
  %v242 = vld [vmem:[%s1 + $0x5e8] sm:$0xff]
  %v243 = vld [vmem:[%s1 + $0x5f0] sm:$0xff]
  %v244 = vld [vmem:[%s1 + $0x5f8] sm:$0xff]
  %v245 = vld [vmem:[%s1 + $0x600] sm:$0xff]
  %v246 = vld [vmem:[%s1 + $0x608] sm:$0xff]
  %v247 = vld [vmem:[%s1 + $0x610] sm:$0xff]
  %v248 = vld [vmem:[%s1 + $0x618] sm:$0xff]
  %v249 = vld [vmem:[%s1 + $0x620] sm:$0xff]
  %v250 = vld [vmem:[%s1 + $0x628] sm:$0xff]
  %v251 = vld [vmem:[%s1 + $0x630] sm:$0xff]
  %v252 = vld [vmem:[%s1 + $0x638] sm:$0xff]
  %v253 = vld [vmem:[%s1 + $0x640] sm:$0xff]
  %v254 = vld [vmem:[%s1 + $0x648] sm:$0xff]
  %v255 = vld [vmem:[%s1 + $0x650] sm:$0xff]
  %v256 = vld [vmem:[%s1 + $0x658] sm:$0xff]
  %v257 = vld [vmem:[%s1 + $0x660] sm:$0xff]
  %v258 = vld [vmem:[%s1 + $0x668] sm:$0xff]
  %v259 = vld [vmem:[%s1 + $0x670] sm:$0xff]
  %v260 = vld [vmem:[%s1 + $0x678] sm:$0xff]
  %v261 = vld [vmem:[%s1 + $0x680] sm:$0xff]
  %v262 = vld [vmem:[%s1 + $0x688] sm:$0xff]
  %v263 = vld [vmem:[%s1 + $0x690] sm:$0xff]
  %v264 = vld [vmem:[%s1 + $0x698] sm:$0xff]
  %v265 = vld [vmem:[%s1 + $0x6a0] sm:$0xff]
  %v266 = vld [vmem:[%s1 + $0x6a8] sm:$0xff]
  %v267 = vld [vmem:[%s1 + $0x6b0] sm:$0xff]
  %v268 = vld [vmem:[%s1 + $0x6b8] sm:$0xff]
  %v269 = vld [vmem:[%s1 + $0x6c0] sm:$0xff]
  %v270 = vld [vmem:[%s1 + $0x6c8] sm:$0xff]
  %v271 = vld [vmem:[%s1 + $0x6d0] sm:$0xff]
  %v272 = vld [vmem:[%s1 + $0x6d8] sm:$0xff]
  %v273 = vld [vmem:[%s1 + $0x6e0] sm:$0xff]
  %v274 = vld [vmem:[%s1 + $0x6e8] sm:$0xff]
  %v275 = vld [vmem:[%s1 + $0x6f0] sm:$0xff]
  %v276 = vld [vmem:[%s1 + $0x6f8] sm:$0xff]
  %v277 = vld [vmem:[%s1 + $0x700] sm:$0xff]
  %v278 = vld [vmem:[%s1 + $0x708] sm:$0xff]
  %v279 = vld [vmem:[%s1 + $0x710] sm:$0xff]
  %v280 = vld [vmem:[%s1 + $0x718] sm:$0xff]
  %v281 = vld [vmem:[%s1 + $0x720] sm:$0xff]
  %v282 = vld [vmem:[%s1 + $0x728] sm:$0xff]
  %v283 = vld [vmem:[%s1 + $0x730] sm:$0xff]
  %v284 = vld [vmem:[%s1 + $0x738] sm:$0xff]
  %v285 = vld [vmem:[%s1 + $0x740] sm:$0xff]
  %v286 = vld [vmem:[%s1 + $0x748] sm:$0xff]
  %v287 = vld [vmem:[%s1 + $0x750] sm:$0xff]
  %v288 = vld [vmem:[%s1 + $0x758] sm:$0xff]
  %v289 = vld [vmem:[%s1 + $0x760] sm:$0xff]
  %v290 = vld [vmem:[%s1 + $0x768] sm:$0xff]
  %v291 = vld [vmem:[%s1 + $0x770] sm:$0xff]
  %v292 = vld [vmem:[%s1 + $0x778] sm:$0xff]
  %v293 = vld [vmem:[%s1 + $0x780] sm:$0xff]
  %v294 = vld [vmem:[%s1 + $0x788] sm:$0xff]
  %v295 = vld [vmem:[%s1 + $0x790] sm:$0xff]
  %v296 = vld [vmem:[%s1 + $0x798] sm:$0xff]
  %v297 = vld [vmem:[%s1 + $0x7a0] sm:$0xff]
  %v298 = vld [vmem:[%s1 + $0x7a8] sm:$0xff]
  %v299 = vld [vmem:[%s1 + $0x7b0] sm:$0xff]
  %v300 = vld [vmem:[%s1 + $0x7b8] sm:$0xff]
  %v301 = vld [vmem:[%s1 + $0x7c0] sm:$0xff]
  %v302 = vld [vmem:[%s1 + $0x7c8] sm:$0xff]
  %v303 = vld [vmem:[%s1 + $0x7d0] sm:$0xff]
  %v304 = vld [vmem:[%s1 + $0x7d8] sm:$0xff]
  %v305 = vld [vmem:[%s1 + $0x7e0] sm:$0xff]
  %v306 = vld [vmem:[%s1 + $0x7e8] sm:$0xff]
  %v307 = vld [vmem:[%s1 + $0x7f0] sm:$0xff]
  %v308 = vld [vmem:[%s1 + $0x7f8] sm:$0xff]
  %v309 = vld [vmem:[%s1 + $0x800] sm:$0xff]
  %v310 = vld [vmem:[%s1 + $0x808] sm:$0xff]
  %v311 = vld [vmem:[%s1 + $0x810] sm:$0xff]
  %v312 = vld [vmem:[%s1 + $0x818] sm:$0xff]
  %v313 = vld [vmem:[%s1 + $0x820] sm:$0xff]
  %v314 = vld [vmem:[%s1 + $0x828] sm:$0xff]
  %v315 = vld [vmem:[%s1 + $0x830] sm:$0xff]
  %v316 = vld [vmem:[%s1 + $0x838] sm:$0xff]
  %v317 = vld [vmem:[%s1 + $0x840] sm:$0xff]
  %v318 = vld [vmem:[%s1 + $0x848] sm:$0xff]
  %v319 = vld [vmem:[%s1 + $0x850] sm:$0xff]
  %v320 = vld [vmem:[%s1 + $0x858] sm:$0xff]
  %v321 = vld [vmem:[%s1 + $0x860] sm:$0xff]
  %v322 = vld [vmem:[%s1 + $0x868] sm:$0xff]
  %v323 = vld [vmem:[%s1 + $0x870] sm:$0xff]
  %v324 = vld [vmem:[%s1 + $0x878] sm:$0xff]
  %v325 = vld [vmem:[%s1 + $0x880] sm:$0xff]
  %v326 = vld [vmem:[%s1 + $0x888] sm:$0xff]
  %v327 = vld [vmem:[%s1 + $0x890] sm:$0xff]
  %v328 = vld [vmem:[%s1 + $0x898] sm:$0xff]
  %v329 = vld [vmem:[%s1 + $0x8a0] sm:$0xff]
  %v330 = vld [vmem:[%s1 + $0x8a8] sm:$0xff]
  %v331 = vld [vmem:[%s1 + $0x8b0] sm:$0xff]
  %v332 = vld [vmem:[%s1 + $0x8b8] sm:$0xff]
  %v333 = vld [vmem:[%s1 + $0x8c0] sm:$0xff]
  %v334 = vld [vmem:[%s1 + $0x8c8] sm:$0xff]
  %v335 = vld [vmem:[%s1 + $0x8d0] sm:$0xff]
  %v336 = vld [vmem:[%s1 + $0x8d8] sm:$0xff]
  %v337 = vld [vmem:[%s1 + $0x8e0] sm:$0xff]
  %v338 = vld [vmem:[%s1 + $0x8e8] sm:$0xff]
  %v339 = vld [vmem:[%s1 + $0x8f0] sm:$0xff]
  %v340 = vld [vmem:[%s1 + $0x8f8] sm:$0xff]
  %341 = vmatpush.msra.mxu0 %v83
  %342 = vmatpush.msra.mxu0 %v81
  %343 = vmatpush.msra.mxu0 %v79
  %344 = vmatpush.msra.mxu0 %v77
  %345 = vmatpush.msra.mxu0 %v75
  %346 = vmatpush.msra.mxu0 %v73
  %347 = vmatpush.msra.mxu0 %v71
  %348 = vmatpush.msra.mxu0 %v69
  %349 = vmatpush.msra.mxu0 %v67
  %350 = vmatpush.msra.mxu0 %v65
  %351 = vmatpush.msra.mxu0 %v63
  %352 = vmatpush.msra.mxu0 %v61
  %353 = vmatpush.msra.mxu0 %v59
  %354 = vmatpush.msra.mxu0 %v57
  %355 = vmatpush.msra.mxu0 %v55
  %356 = vmatpush.msra.mxu0 %v53
  %357 = vmatmul.f32.gmra.mxu0 %v17
  %v358 = vpop.f32.mrf.mxu0
  %v359 = vadd.f32 0.0, %v358
  %360 = vmatmul.f32.gmra.mxu0 %v26
  %v361 = vpop.f32.mrf.mxu0
  %v362 = vadd.f32 0.0, %v361
  %363 = vmatmul.f32.gmra.mxu0 %v35
  %v364 = vpop.f32.mrf.mxu0
  %v365 = vadd.f32 0.0, %v364
  %366 = vmatmul.f32.gmra.mxu0 %v44
  %v367 = vpop.f32.mrf.mxu0
  %v368 = vadd.f32 0.0, %v367
  %369 = vdwg.mxu0
  %370 = vmatpush.msra.mxu0 %v115
  %371 = vmatpush.msra.mxu0 %v113
  %372 = vmatpush.msra.mxu0 %v111
  %373 = vmatpush.msra.mxu0 %v109
  %374 = vmatpush.msra.mxu0 %v107
  %375 = vmatpush.msra.mxu0 %v105
  %376 = vmatpush.msra.mxu0 %v103
  %377 = vmatpush.msra.mxu0 %v101
  %378 = vmatpush.msra.mxu0 %v99
  %379 = vmatpush.msra.mxu0 %v97
  %380 = vmatpush.msra.mxu0 %v95
  %381 = vmatpush.msra.mxu0 %v93
  %382 = vmatpush.msra.mxu0 %v91
  %383 = vmatpush.msra.mxu0 %v89
  %384 = vmatpush.msra.mxu0 %v87
  %385 = vmatpush.msra.mxu0 %v85
  %386 = vmatmul.f32.gmra.mxu0 %v18
  %v387 = vpop.f32.mrf.mxu0
  %v388 = vadd.f32 %v359, %v387
  %389 = vmatmul.f32.gmra.mxu0 %v27
  %v390 = vpop.f32.mrf.mxu0
  %v391 = vadd.f32 %v362, %v390
  %392 = vmatmul.f32.gmra.mxu0 %v36
  %v393 = vpop.f32.mrf.mxu0
  %v394 = vadd.f32 %v365, %v393
  %395 = vmatmul.f32.gmra.mxu0 %v45
  %v396 = vpop.f32.mrf.mxu0
  %v397 = vadd.f32 %v368, %v396
  %398 = vdwg.mxu0
  %399 = vmatpush.msra.mxu0 %v147
  %400 = vmatpush.msra.mxu0 %v145
  %401 = vmatpush.msra.mxu0 %v143
  %402 = vmatpush.msra.mxu0 %v141
  %403 = vmatpush.msra.mxu0 %v139
  %404 = vmatpush.msra.mxu0 %v137
  %405 = vmatpush.msra.mxu0 %v135
  %406 = vmatpush.msra.mxu0 %v133
  %407 = vmatpush.msra.mxu0 %v131
  %408 = vmatpush.msra.mxu0 %v129
  %409 = vmatpush.msra.mxu0 %v127
  %410 = vmatpush.msra.mxu0 %v125
  %411 = vmatpush.msra.mxu0 %v123
  %412 = vmatpush.msra.mxu0 %v121
  %413 = vmatpush.msra.mxu0 %v119
  %414 = vmatpush.msra.mxu0 %v117
  %415 = vmatmul.f32.gmra.mxu0 %v19
  %v416 = vpop.f32.mrf.mxu0
  %v417 = vadd.f32 %v388, %v416
  %418 = vmatmul.f32.gmra.mxu0 %v28
  %v419 = vpop.f32.mrf.mxu0
  %v420 = vadd.f32 %v391, %v419
  %421 = vmatmul.f32.gmra.mxu0 %v37
  %v422 = vpop.f32.mrf.mxu0
  %v423 = vadd.f32 %v394, %v422
  %424 = vmatmul.f32.gmra.mxu0 %v46
  %v425 = vpop.f32.mrf.mxu0
  %v426 = vadd.f32 %v397, %v425
  %427 = vdwg.mxu0
  %428 = vmatpush.msra.mxu0 %v179
  %429 = vmatpush.msra.mxu0 %v177
  %430 = vmatpush.msra.mxu0 %v175
  %431 = vmatpush.msra.mxu0 %v173
  %432 = vmatpush.msra.mxu0 %v171
  %433 = vmatpush.msra.mxu0 %v169
  %434 = vmatpush.msra.mxu0 %v167
  %435 = vmatpush.msra.mxu0 %v165
  %436 = vmatpush.msra.mxu0 %v163
  %437 = vmatpush.msra.mxu0 %v161
  %438 = vmatpush.msra.mxu0 %v159
  %439 = vmatpush.msra.mxu0 %v157
  %440 = vmatpush.msra.mxu0 %v155
  %441 = vmatpush.msra.mxu0 %v153
  %442 = vmatpush.msra.mxu0 %v151
  %443 = vmatpush.msra.mxu0 %v149
  %444 = vmatmul.f32.gmra.mxu0 %v20
  %v445 = vpop.f32.mrf.mxu0
  %v446 = vadd.f32 %v417, %v445
  %447 = vmatmul.f32.gmra.mxu0 %v29
  %v448 = vpop.f32.mrf.mxu0
  %v449 = vadd.f32 %v420, %v448
  %450 = vmatmul.f32.gmra.mxu0 %v38
  %v451 = vpop.f32.mrf.mxu0
  %v452 = vadd.f32 %v423, %v451
  %453 = vmatmul.f32.gmra.mxu0 %v47
  %v454 = vpop.f32.mrf.mxu0
  %v455 = vadd.f32 %v426, %v454
  %456 = vdwg.mxu0
  %457 = vmatpush.msra.mxu0 %v211
  %458 = vmatpush.msra.mxu0 %v209
  %459 = vmatpush.msra.mxu0 %v207
  %460 = vmatpush.msra.mxu0 %v205
  %461 = vmatpush.msra.mxu0 %v203
  %462 = vmatpush.msra.mxu0 %v201
  %463 = vmatpush.msra.mxu0 %v199
  %464 = vmatpush.msra.mxu0 %v197
  %465 = vmatpush.msra.mxu0 %v195
  %466 = vmatpush.msra.mxu0 %v193
  %467 = vmatpush.msra.mxu0 %v191
  %468 = vmatpush.msra.mxu0 %v189
  %469 = vmatpush.msra.mxu0 %v187
  %470 = vmatpush.msra.mxu0 %v185
  %471 = vmatpush.msra.mxu0 %v183
  %472 = vmatpush.msra.mxu0 %v181
  %473 = vmatmul.f32.gmra.mxu0 %v21
  %v474 = vpop.f32.mrf.mxu0
  %v475 = vadd.f32 %v446, %v474
  %476 = vmatmul.f32.gmra.mxu0 %v30
  %v477 = vpop.f32.mrf.mxu0
  %v478 = vadd.f32 %v449, %v477
  %479 = vmatmul.f32.gmra.mxu0 %v39
  %v480 = vpop.f32.mrf.mxu0
  %v481 = vadd.f32 %v452, %v480
  %482 = vmatmul.f32.gmra.mxu0 %v48
  %v483 = vpop.f32.mrf.mxu0
  %v484 = vadd.f32 %v455, %v483
  %485 = vdwg.mxu0
  %486 = vmatpush.msra.mxu0 %v243
  %487 = vmatpush.msra.mxu0 %v241
  %488 = vmatpush.msra.mxu0 %v239
  %489 = vmatpush.msra.mxu0 %v237
  %490 = vmatpush.msra.mxu0 %v235
  %491 = vmatpush.msra.mxu0 %v233
  %492 = vmatpush.msra.mxu0 %v231
  %493 = vmatpush.msra.mxu0 %v229
  %494 = vmatpush.msra.mxu0 %v227
  %495 = vmatpush.msra.mxu0 %v225
  %496 = vmatpush.msra.mxu0 %v223
  %497 = vmatpush.msra.mxu0 %v221
  %498 = vmatpush.msra.mxu0 %v219
  %499 = vmatpush.msra.mxu0 %v217
  %500 = vmatpush.msra.mxu0 %v215
  %501 = vmatpush.msra.mxu0 %v213
  %502 = vmatmul.f32.gmra.mxu0 %v22
  %v503 = vpop.f32.mrf.mxu0
  %v504 = vadd.f32 %v475, %v503
  %505 = vmatmul.f32.gmra.mxu0 %v31
  %v506 = vpop.f32.mrf.mxu0
  %v507 = vadd.f32 %v478, %v506
  %508 = vmatmul.f32.gmra.mxu0 %v40
  %v509 = vpop.f32.mrf.mxu0
  %v510 = vadd.f32 %v481, %v509
  %511 = vmatmul.f32.gmra.mxu0 %v49
  %v512 = vpop.f32.mrf.mxu0
  %v513 = vadd.f32 %v484, %v512
  %514 = vdwg.mxu0
  %515 = vmatpush.msra.mxu0 %v275
  %516 = vmatpush.msra.mxu0 %v273
  %517 = vmatpush.msra.mxu0 %v271
  %518 = vmatpush.msra.mxu0 %v269
  %519 = vmatpush.msra.mxu0 %v267
  %520 = vmatpush.msra.mxu0 %v265
  %521 = vmatpush.msra.mxu0 %v263
  %522 = vmatpush.msra.mxu0 %v261
  %523 = vmatpush.msra.mxu0 %v259
  %524 = vmatpush.msra.mxu0 %v257
  %525 = vmatpush.msra.mxu0 %v255
  %526 = vmatpush.msra.mxu0 %v253
  %527 = vmatpush.msra.mxu0 %v251
  %528 = vmatpush.msra.mxu0 %v249
  %529 = vmatpush.msra.mxu0 %v247
  %530 = vmatpush.msra.mxu0 %v245
  %531 = vmatmul.f32.gmra.mxu0 %v23
  %v532 = vpop.f32.mrf.mxu0
  %v533 = vadd.f32 %v504, %v532
  %534 = vmatmul.f32.gmra.mxu0 %v32
  %v535 = vpop.f32.mrf.mxu0
  %v536 = vadd.f32 %v507, %v535
  %537 = vmatmul.f32.gmra.mxu0 %v41
  %v538 = vpop.f32.mrf.mxu0
  %v539 = vadd.f32 %v510, %v538
  %540 = vmatmul.f32.gmra.mxu0 %v50
  %v541 = vpop.f32.mrf.mxu0
  %v542 = vadd.f32 %v513, %v541
  %543 = vdwg.mxu0
  %544 = vmatpush.msra.mxu0 %v307
  %545 = vmatpush.msra.mxu0 %v305
  %546 = vmatpush.msra.mxu0 %v303
  %547 = vmatpush.msra.mxu0 %v301
  %548 = vmatpush.msra.mxu0 %v299
  %549 = vmatpush.msra.mxu0 %v297
  %550 = vmatpush.msra.mxu0 %v295
  %551 = vmatpush.msra.mxu0 %v293
  %552 = vmatpush.msra.mxu0 %v291
  %553 = vmatpush.msra.mxu0 %v289
  %554 = vmatpush.msra.mxu0 %v287
  %555 = vmatpush.msra.mxu0 %v285
  %556 = vmatpush.msra.mxu0 %v283
  %557 = vmatpush.msra.mxu0 %v281
  %558 = vmatpush.msra.mxu0 %v279
  %559 = vmatpush.msra.mxu0 %v277
  %560 = vmatmul.f32.gmra.mxu0 %v24
  %v561 = vpop.f32.mrf.mxu0
  %v562 = vadd.f32 %v533, %v561
  %563 = vmatmul.f32.gmra.mxu0 %v33
  %v564 = vpop.f32.mrf.mxu0
  %v565 = vadd.f32 %v536, %v564
  %566 = vmatmul.f32.gmra.mxu0 %v42
  %v567 = vpop.f32.mrf.mxu0
  %v568 = vadd.f32 %v539, %v567
  %569 = vmatmul.f32.gmra.mxu0 %v51
  %v570 = vpop.f32.mrf.mxu0
  %v571 = vadd.f32 %v542, %v570
  %572 = vdwg.mxu0
  %573 = vmatpush.msra.mxu0 %v339
  %574 = vmatpush.msra.mxu0 %v337
  %575 = vmatpush.msra.mxu0 %v335
  %576 = vmatpush.msra.mxu0 %v333
  %577 = vmatpush.msra.mxu0 %v331
  %578 = vmatpush.msra.mxu0 %v329
  %579 = vmatpush.msra.mxu0 %v327
  %580 = vmatpush.msra.mxu0 %v325
  %581 = vmatpush.msra.mxu0 %v323
  %582 = vmatpush.msra.mxu0 %v321
  %583 = vmatpush.msra.mxu0 %v319
  %584 = vmatpush.msra.mxu0 %v317
  %585 = vmatpush.msra.mxu0 %v315
  %586 = vmatpush.msra.mxu0 %v313
  %587 = vmatpush.msra.mxu0 %v311
  %588 = vmatpush.msra.mxu0 %v309
  %589 = vmatmul.f32.gmra.mxu0 %v25
  %v590 = vpop.f32.mrf.mxu0
  %v591 = vadd.f32 %v562, %v590
  %592 = vmatmul.f32.gmra.mxu0 %v34
  %v593 = vpop.f32.mrf.mxu0
  %v594 = vadd.f32 %v565, %v593
  %595 = vmatmul.f32.gmra.mxu0 %v43
  %v596 = vpop.f32.mrf.mxu0
  %v597 = vadd.f32 %v568, %v596
  %598 = vmatmul.f32.gmra.mxu0 %v52
  %v599 = vpop.f32.mrf.mxu0
  %v600 = vadd.f32 %v571, %v599
  %601 = vdwg.mxu0
  %602 = vmatpush.msra.mxu0 %v84
  %603 = vmatpush.msra.mxu0 %v82
  %604 = vmatpush.msra.mxu0 %v80
  %605 = vmatpush.msra.mxu0 %v78
  %606 = vmatpush.msra.mxu0 %v76
  %607 = vmatpush.msra.mxu0 %v74
  %608 = vmatpush.msra.mxu0 %v72
  %609 = vmatpush.msra.mxu0 %v70
  %610 = vmatpush.msra.mxu0 %v68
  %611 = vmatpush.msra.mxu0 %v66
  %612 = vmatpush.msra.mxu0 %v64
  %613 = vmatpush.msra.mxu0 %v62
  %614 = vmatpush.msra.mxu0 %v60
  %615 = vmatpush.msra.mxu0 %v58
  %616 = vmatpush.msra.mxu0 %v56
  %617 = vmatpush.msra.mxu0 %v54
  %618 = vmatmul.f32.gmra.mxu0 %v17
  %v619 = vpop.f32.mrf.mxu0
  %v620 = vadd.f32 0.0, %v619
  %621 = vmatmul.f32.gmra.mxu0 %v26
  %v622 = vpop.f32.mrf.mxu0
  %v623 = vadd.f32 0.0, %v622
  %624 = vmatmul.f32.gmra.mxu0 %v35
  %v625 = vpop.f32.mrf.mxu0
  %v626 = vadd.f32 0.0, %v625
  %627 = vmatmul.f32.gmra.mxu0 %v44
  %v628 = vpop.f32.mrf.mxu0
  %v629 = vadd.f32 0.0, %v628
  %630 = vdwg.mxu0
  %631 = vmatpush.msra.mxu0 %v116
  %632 = vmatpush.msra.mxu0 %v114
  %633 = vmatpush.msra.mxu0 %v112
  %634 = vmatpush.msra.mxu0 %v110
  %635 = vmatpush.msra.mxu0 %v108
  %636 = vmatpush.msra.mxu0 %v106
  %637 = vmatpush.msra.mxu0 %v104
  %638 = vmatpush.msra.mxu0 %v102
  %639 = vmatpush.msra.mxu0 %v100
  %640 = vmatpush.msra.mxu0 %v98
  %641 = vmatpush.msra.mxu0 %v96
  %642 = vmatpush.msra.mxu0 %v94
  %643 = vmatpush.msra.mxu0 %v92
  %644 = vmatpush.msra.mxu0 %v90
  %645 = vmatpush.msra.mxu0 %v88
  %646 = vmatpush.msra.mxu0 %v86
  %647 = vmatmul.f32.gmra.mxu0 %v18
  %v648 = vpop.f32.mrf.mxu0
  %v649 = vadd.f32 %v620, %v648
  %650 = vmatmul.f32.gmra.mxu0 %v27
  %v651 = vpop.f32.mrf.mxu0
  %v652 = vadd.f32 %v623, %v651
  %653 = vmatmul.f32.gmra.mxu0 %v36
  %v654 = vpop.f32.mrf.mxu0
  %v655 = vadd.f32 %v626, %v654
  %656 = vmatmul.f32.gmra.mxu0 %v45
  %v657 = vpop.f32.mrf.mxu0
  %v658 = vadd.f32 %v629, %v657
  %659 = vdwg.mxu0
  %660 = vmatpush.msra.mxu0 %v148
  %661 = vmatpush.msra.mxu0 %v146
  %662 = vmatpush.msra.mxu0 %v144
  %663 = vmatpush.msra.mxu0 %v142
  %664 = vmatpush.msra.mxu0 %v140
  %665 = vmatpush.msra.mxu0 %v138
  %666 = vmatpush.msra.mxu0 %v136
  %667 = vmatpush.msra.mxu0 %v134
  %668 = vmatpush.msra.mxu0 %v132
  %669 = vmatpush.msra.mxu0 %v130
  %670 = vmatpush.msra.mxu0 %v128
  %671 = vmatpush.msra.mxu0 %v126
  %672 = vmatpush.msra.mxu0 %v124
  %673 = vmatpush.msra.mxu0 %v122
  %674 = vmatpush.msra.mxu0 %v120
  %675 = vmatpush.msra.mxu0 %v118
  %676 = vmatmul.f32.gmra.mxu0 %v19
  %v677 = vpop.f32.mrf.mxu0
  %v678 = vadd.f32 %v649, %v677
  %679 = vmatmul.f32.gmra.mxu0 %v28
  %v680 = vpop.f32.mrf.mxu0
  %v681 = vadd.f32 %v652, %v680
  %682 = vmatmul.f32.gmra.mxu0 %v37
  %v683 = vpop.f32.mrf.mxu0
  %v684 = vadd.f32 %v655, %v683
  %685 = vmatmul.f32.gmra.mxu0 %v46
  %v686 = vpop.f32.mrf.mxu0
  %v687 = vadd.f32 %v658, %v686
  %688 = vdwg.mxu0
  %689 = vmatpush.msra.mxu0 %v180
  %690 = vmatpush.msra.mxu0 %v178
  %691 = vmatpush.msra.mxu0 %v176
  %692 = vmatpush.msra.mxu0 %v174
  %693 = vmatpush.msra.mxu0 %v172
  %694 = vmatpush.msra.mxu0 %v170
  %695 = vmatpush.msra.mxu0 %v168
  %696 = vmatpush.msra.mxu0 %v166
  %697 = vmatpush.msra.mxu0 %v164
  %698 = vmatpush.msra.mxu0 %v162
  %699 = vmatpush.msra.mxu0 %v160
  %700 = vmatpush.msra.mxu0 %v158
  %701 = vmatpush.msra.mxu0 %v156
  %702 = vmatpush.msra.mxu0 %v154
  %703 = vmatpush.msra.mxu0 %v152
  %704 = vmatpush.msra.mxu0 %v150
  %705 = vmatmul.f32.gmra.mxu0 %v20
  %v706 = vpop.f32.mrf.mxu0
  %v707 = vadd.f32 %v678, %v706
  %708 = vmatmul.f32.gmra.mxu0 %v29
  %v709 = vpop.f32.mrf.mxu0
  %v710 = vadd.f32 %v681, %v709
  %711 = vmatmul.f32.gmra.mxu0 %v38
  %v712 = vpop.f32.mrf.mxu0
  %v713 = vadd.f32 %v684, %v712
  %714 = vmatmul.f32.gmra.mxu0 %v47
  %v715 = vpop.f32.mrf.mxu0
  %v716 = vadd.f32 %v687, %v715
  %717 = vdwg.mxu0
  %718 = vmatpush.msra.mxu0 %v212
  %719 = vmatpush.msra.mxu0 %v210
  %720 = vmatpush.msra.mxu0 %v208
  %721 = vmatpush.msra.mxu0 %v206
  %722 = vmatpush.msra.mxu0 %v204
  %723 = vmatpush.msra.mxu0 %v202
  %724 = vmatpush.msra.mxu0 %v200
  %725 = vmatpush.msra.mxu0 %v198
  %726 = vmatpush.msra.mxu0 %v196
  %727 = vmatpush.msra.mxu0 %v194
  %728 = vmatpush.msra.mxu0 %v192
  %729 = vmatpush.msra.mxu0 %v190
  %730 = vmatpush.msra.mxu0 %v188
  %731 = vmatpush.msra.mxu0 %v186
  %732 = vmatpush.msra.mxu0 %v184
  %733 = vmatpush.msra.mxu0 %v182
  %734 = vmatmul.f32.gmra.mxu0 %v21
  %v735 = vpop.f32.mrf.mxu0
  %v736 = vadd.f32 %v707, %v735
  %737 = vmatmul.f32.gmra.mxu0 %v30
  %v738 = vpop.f32.mrf.mxu0
  %v739 = vadd.f32 %v710, %v738
  %740 = vmatmul.f32.gmra.mxu0 %v39
  %v741 = vpop.f32.mrf.mxu0
  %v742 = vadd.f32 %v713, %v741
  %743 = vmatmul.f32.gmra.mxu0 %v48
  %v744 = vpop.f32.mrf.mxu0
  %v745 = vadd.f32 %v716, %v744
  %746 = vdwg.mxu0
  %747 = vmatpush.msra.mxu0 %v244
  %748 = vmatpush.msra.mxu0 %v242
  %749 = vmatpush.msra.mxu0 %v240
  %750 = vmatpush.msra.mxu0 %v238
  %751 = vmatpush.msra.mxu0 %v236
  %752 = vmatpush.msra.mxu0 %v234
  %753 = vmatpush.msra.mxu0 %v232
  %754 = vmatpush.msra.mxu0 %v230
  %755 = vmatpush.msra.mxu0 %v228
  %756 = vmatpush.msra.mxu0 %v226
  %757 = vmatpush.msra.mxu0 %v224
  %758 = vmatpush.msra.mxu0 %v222
  %759 = vmatpush.msra.mxu0 %v220
  %760 = vmatpush.msra.mxu0 %v218
  %761 = vmatpush.msra.mxu0 %v216
  %762 = vmatpush.msra.mxu0 %v214
  %763 = vmatmul.f32.gmra.mxu0 %v22
  %v764 = vpop.f32.mrf.mxu0
  %v765 = vadd.f32 %v736, %v764
  %766 = vmatmul.f32.gmra.mxu0 %v31
  %v767 = vpop.f32.mrf.mxu0
  %v768 = vadd.f32 %v739, %v767
  %769 = vmatmul.f32.gmra.mxu0 %v40
  %v770 = vpop.f32.mrf.mxu0
  %v771 = vadd.f32 %v742, %v770
  %772 = vmatmul.f32.gmra.mxu0 %v49
  %v773 = vpop.f32.mrf.mxu0
  %v774 = vadd.f32 %v745, %v773
  %775 = vdwg.mxu0
  %776 = vmatpush.msra.mxu0 %v276
  %777 = vmatpush.msra.mxu0 %v274
  %778 = vmatpush.msra.mxu0 %v272
  %779 = vmatpush.msra.mxu0 %v270
  %780 = vmatpush.msra.mxu0 %v268
  %781 = vmatpush.msra.mxu0 %v266
  %782 = vmatpush.msra.mxu0 %v264
  %783 = vmatpush.msra.mxu0 %v262
  %784 = vmatpush.msra.mxu0 %v260
  %785 = vmatpush.msra.mxu0 %v258
  %786 = vmatpush.msra.mxu0 %v256
  %787 = vmatpush.msra.mxu0 %v254
  %788 = vmatpush.msra.mxu0 %v252
  %789 = vmatpush.msra.mxu0 %v250
  %790 = vmatpush.msra.mxu0 %v248
  %791 = vmatpush.msra.mxu0 %v246
  %792 = vmatmul.f32.gmra.mxu0 %v23
  %v793 = vpop.f32.mrf.mxu0
  %v794 = vadd.f32 %v765, %v793
  %795 = vmatmul.f32.gmra.mxu0 %v32
  %v796 = vpop.f32.mrf.mxu0
  %v797 = vadd.f32 %v768, %v796
  %798 = vmatmul.f32.gmra.mxu0 %v41
  %v799 = vpop.f32.mrf.mxu0
  %v800 = vadd.f32 %v771, %v799
  %801 = vmatmul.f32.gmra.mxu0 %v50
  %v802 = vpop.f32.mrf.mxu0
  %v803 = vadd.f32 %v774, %v802
  %804 = vdwg.mxu0
  %805 = vmatpush.msra.mxu0 %v308
  %806 = vmatpush.msra.mxu0 %v306
  %807 = vmatpush.msra.mxu0 %v304
  %808 = vmatpush.msra.mxu0 %v302
  %809 = vmatpush.msra.mxu0 %v300
  %810 = vmatpush.msra.mxu0 %v298
  %811 = vmatpush.msra.mxu0 %v296
  %812 = vmatpush.msra.mxu0 %v294
  %813 = vmatpush.msra.mxu0 %v292
  %814 = vmatpush.msra.mxu0 %v290
  %815 = vmatpush.msra.mxu0 %v288
  %816 = vmatpush.msra.mxu0 %v286
  %817 = vmatpush.msra.mxu0 %v284
  %818 = vmatpush.msra.mxu0 %v282
  %819 = vmatpush.msra.mxu0 %v280
  %820 = vmatpush.msra.mxu0 %v278
  %821 = vmatmul.f32.gmra.mxu0 %v24
  %v822 = vpop.f32.mrf.mxu0
  %v823 = vadd.f32 %v794, %v822
  %824 = vmatmul.f32.gmra.mxu0 %v33
  %v825 = vpop.f32.mrf.mxu0
  %v826 = vadd.f32 %v797, %v825
  %827 = vmatmul.f32.gmra.mxu0 %v42
  %v828 = vpop.f32.mrf.mxu0
  %v829 = vadd.f32 %v800, %v828
  %830 = vmatmul.f32.gmra.mxu0 %v51
  %v831 = vpop.f32.mrf.mxu0
  %v832 = vadd.f32 %v803, %v831
  %833 = vdwg.mxu0
  %834 = vmatpush.msra.mxu0 %v340
  %835 = vmatpush.msra.mxu0 %v338
  %836 = vmatpush.msra.mxu0 %v336
  %837 = vmatpush.msra.mxu0 %v334
  %838 = vmatpush.msra.mxu0 %v332
  %839 = vmatpush.msra.mxu0 %v330
  %840 = vmatpush.msra.mxu0 %v328
  %841 = vmatpush.msra.mxu0 %v326
  %842 = vmatpush.msra.mxu0 %v324
  %843 = vmatpush.msra.mxu0 %v322
  %844 = vmatpush.msra.mxu0 %v320
  %845 = vmatpush.msra.mxu0 %v318
  %846 = vmatpush.msra.mxu0 %v316
  %847 = vmatpush.msra.mxu0 %v314
  %848 = vmatpush.msra.mxu0 %v312
  %849 = vmatpush.msra.mxu0 %v310
  %850 = vmatmul.f32.gmra.mxu0 %v25
  %v851 = vpop.f32.mrf.mxu0
  %v852 = vadd.f32 %v823, %v851
  %853 = vmatmul.f32.gmra.mxu0 %v34
  %v854 = vpop.f32.mrf.mxu0
  %v855 = vadd.f32 %v826, %v854
  %856 = vmatmul.f32.gmra.mxu0 %v43
  %v857 = vpop.f32.mrf.mxu0
  %v858 = vadd.f32 %v829, %v857
  %859 = vmatmul.f32.gmra.mxu0 %v52
  %v860 = vpop.f32.mrf.mxu0
  %v861 = vadd.f32 %v832, %v860
  %862 = vdwg.mxu0
  %v863 = vld [vmem:[%s2] sm:$0x3]
  %v865 = vperm.slane %v863, 0
  %v866 = vperm.slane %v863, 1
  %v869 = vmul.f32 %v591, %v865
  %v870 = vmul.f32 %v852, %v866
  %v871 = vmul.f32 %v594, %v865
  %v872 = vmul.f32 %v855, %v866
  %v873 = vmul.f32 %v597, %v865
  %v874 = vmul.f32 %v858, %v866
  %v875 = vmul.f32 %v600, %v865
  %v876 = vmul.f32 %v861, %v866
  %v877 = vld [vmem:[%s3] sm:$0x3]
  %v879 = vperm.slane %v877, 0
  %v880 = vperm.slane %v877, 1
  %v883 = vadd.f32 %v869, %v879
  %v884 = vadd.f32 %v870, %v880
  %v885 = vadd.f32 %v871, %v879
  %v886 = vadd.f32 %v872, %v880
  %v887 = vadd.f32 %v873, %v879
  %v888 = vadd.f32 %v874, %v880
  %v889 = vadd.f32 %v875, %v879
  %v890 = vadd.f32 %v876, %v880
  %v891 = vmax.f32 %v883, 0.0
  %v892 = vmax.f32 %v884, 0.0
  %v893 = vmax.f32 %v885, 0.0
  %v894 = vmax.f32 %v886, 0.0
  %v895 = vmax.f32 %v887, 0.0
  %v896 = vmax.f32 %v888, 0.0
  %v897 = vmax.f32 %v889, 0.0
  %v898 = vmax.f32 %v890, 0.0
  %899 = vst [vmem:[%s4] sm:$0xff] %v891
  %900 = vst [vmem:[%s4 + $0x8] sm:$0xff] %v892
  %901 = vst [vmem:[%s4 + $0x10] sm:$0xff] %v893
  %902 = vst [vmem:[%s4 + $0x18] sm:$0xff] %v894
  %903 = vst [vmem:[%s4 + $0x20] sm:$0xff] %v895
  %904 = vst [vmem:[%s4 + $0x28] sm:$0xff] %v896
  %905 = vst [vmem:[%s4 + $0x30] sm:$0xff] %v897
  %906 = vst [vmem:[%s4 + $0x38] sm:$0xff] %v898
  // Predicated region
  $region18: #{macnet_forward.36} parent=0 // pred_check
    _
  $region19: #{macnet_forward.36} parent=0 // pred_check_branch
    %908 = sbr.rel (0) target = $region21
  $region20: #{macnet_forward.36} parent=0 // pred_region
    _
  $region21: #{macnet_forward.36} parent=0 // pred_fallthru
    _
  // Predicated region
  $region22: #{macnet_forward.36} parent=0 // pred_check
    _
  $region23: #{macnet_forward.36} parent=0 // pred_check_branch
    %910 = sbr.rel (0) target = $region25
  $region24: #{macnet_forward.36} parent=0 // pred_region
    _
  $region25: #{macnet_forward.36} parent=0 // pred_fallthru
    _

// kernel: macnet_forward.41
$region0: #{macnet_forward.41}
  #allocation0 [shape = 'u32[]', space=smem, size = 0x4, offset = 0x4, fixed_abs, tag = 'smem constant byte address 0x4 - core index']
  #allocation1 [shape = 'u32[72,128]{1,0:T(1,128)}', space=vmem, size = 0x9000, scoped, tag = 'internal scratch']
  #allocation2 [shape = 'f32[1,1]{1,0:T(1,128)S(1)}', space=vmem, size = 0x200, scoped, tag = 'scoped memory for macnet_forward.41']
  %s0 = inlined_call_operand.vmem [shape: f32[2,16,256], index: 0, kind: input, shape index: {}]
  %s1 = inlined_call_operand.vmem [shape: f32[2,1], index: 1, kind: input, shape index: {}]
  %s2 = inlined_call_operand.vmem [shape: f32[256,128], index: 2, kind: input, shape index: {}]
  %s3 = inlined_call_operand.vmem [shape: f32[1,128], index: 3, kind: input, shape index: {}]
  %s4 = inlined_call_operand.vmem [shape: f32[1,128], index: 4, kind: input, shape index: {}]
  %s5 = inlined_call_operand.vmem [shape: f32[1,128], index: 5, kind: input, shape index: {}]
  %s6 = inlined_call_operand.<no memory space> [shape: f32[1,1], index: 6, kind: input, shape index: {}]
  %s7 = inlined_call_operand.vmem [shape: f32[2,1], index: 7, kind: output, shape index: {}]
  %s8 = sld [smem:[#allocation0]]
  $region38: #{macnet_forward.41} parent=0
    _
  %s10 = ssub.s32 1, %s8
  %s11 = scalar_select 0, %s10, %s8
  %v12 = vstv %s6
  %13 = vst [vmem:[#allocation2] sm:$0x1] %v12
  // Predicated region
  $region2: #{macnet_forward.41} parent=0 // pred_check
    _
  $region3: #{macnet_forward.41} parent=0 // pred_check_branch
    %15 = sbr.rel (0) target = $region5
  $region4: #{macnet_forward.41} parent=0 // pred_region
    _
  $region5: #{macnet_forward.41} parent=0 // pred_fallthru
    _
  // Predicated region
  $region6: #{macnet_forward.41} parent=0 // pred_check
    _
  $region7: #{macnet_forward.41} parent=0 // pred_check_branch
    %17 = sbr.rel (0) target = $region9
  $region8: #{macnet_forward.41} parent=0 // pred_region
    _
  $region9: #{macnet_forward.41} parent=0 // pred_fallthru
    _
  // Predicated region
  $region10: #{macnet_forward.41} parent=0 // pred_check
    _
  $region11: #{macnet_forward.41} parent=0 // pred_check_branch
    %19 = sbr.rel (0) target = $region13
  $region12: #{macnet_forward.41} parent=0 // pred_region
    _
  $region13: #{macnet_forward.41} parent=0 // pred_fallthru
    _
  // Predicated region
  $region14: #{macnet_forward.41} parent=0 // pred_check
    _
  $region15: #{macnet_forward.41} parent=0 // pred_check_branch
    %21 = sbr.rel (0) target = $region17
  $region16: #{macnet_forward.41} parent=0 // pred_region
    _
  $region17: #{macnet_forward.41} parent=0 // pred_fallthru
    _
  // Predicated region
  $region18: #{macnet_forward.41} parent=0 // pred_check
    _
  $region19: #{macnet_forward.41} parent=0 // pred_check_branch
    %23 = sbr.rel (0) target = $region21
  $region20: #{macnet_forward.41} parent=0 // pred_region
    _
  $region21: #{macnet_forward.41} parent=0 // pred_fallthru
    _
  // Predicated region
  $region22: #{macnet_forward.41} parent=0 // pred_check
    _
  $region23: #{macnet_forward.41} parent=0 // pred_check_branch
    %25 = sbr.rel (0) target = $region25
  $region24: #{macnet_forward.41} parent=0 // pred_region
    _
  $region25: #{macnet_forward.41} parent=0 // pred_fallthru
    _
  // Predicated region
  $region26: #{macnet_forward.41} parent=0 // pred_check
    _
  $region27: #{macnet_forward.41} parent=0 // pred_check_branch
    %27 = sbr.rel (0) target = $region29
  $region28: #{macnet_forward.41} parent=0 // pred_region
    _
  $region29: #{macnet_forward.41} parent=0 // pred_fallthru
    _
  %v28 = vld [vmem:[%s0] sm:$0xff]
  %v29 = vld [vmem:[%s0 + $0x8] sm:$0xff]
  %v30 = vld [vmem:[%s0 + $0x10] sm:$0xff]
  %v31 = vld [vmem:[%s0 + $0x18] sm:$0xff]
  %v32 = vld [vmem:[%s0 + $0x20] sm:$0xff]
  %v33 = vld [vmem:[%s0 + $0x28] sm:$0xff]
  %v34 = vld [vmem:[%s0 + $0x30] sm:$0xff]
  %v35 = vld [vmem:[%s0 + $0x38] sm:$0xff]
  %v36 = vadd.f32 %v28, %v30
  %v37 = vrot.slane %v36, 4
  %v38 = vadd.f32 %v36, %v37
  %v39 = vrot.slane %v38, 2
  %v40 = vadd.f32 %v38, %v39
  %v41 = vrot.slane %v40, 1
  %v42 = vadd.f32 %v40, %v41
  %v43 = vadd.f32 %v29, %v31
  %v44 = vrot.slane %v43, 4
  %v45 = vadd.f32 %v43, %v44
  %v46 = vrot.slane %v45, 2
  %v47 = vadd.f32 %v45, %v46
  %v48 = vrot.slane %v47, 1
  %v49 = vadd.f32 %v47, %v48
  %v50 = vadd.f32 %v32, %v34
  %v51 = vrot.slane %v50, 4
  %v52 = vadd.f32 %v50, %v51
  %v53 = vrot.slane %v52, 2
  %v54 = vadd.f32 %v52, %v53
  %v55 = vrot.slane %v54, 1
  %v56 = vadd.f32 %v54, %v55
  %v57 = vadd.f32 %v33, %v35
  %v58 = vrot.slane %v57, 4
  %v59 = vadd.f32 %v57, %v58
  %v60 = vrot.slane %v59, 2
  %v61 = vadd.f32 %v59, %v60
  %v62 = vrot.slane %v61, 1
  %v63 = vadd.f32 %v61, %v62
  %v64 = vmul.f32 %v42, 0.0625
  %v65 = vmul.f32 %v49, 0.0625
  %v66 = vmul.f32 %v56, 0.0625
  %v67 = vmul.f32 %v63, 0.0625
  %v68 = vld [vmem:[%s2] sm:$0xff]
  %v69 = vld [vmem:[%s2 + $0x8] sm:$0xff]
  %v70 = vld [vmem:[%s2 + $0x10] sm:$0xff]
  %v71 = vld [vmem:[%s2 + $0x18] sm:$0xff]
  %v72 = vld [vmem:[%s2 + $0x20] sm:$0xff]
  %v73 = vld [vmem:[%s2 + $0x28] sm:$0xff]
  %v74 = vld [vmem:[%s2 + $0x30] sm:$0xff]
  %v75 = vld [vmem:[%s2 + $0x38] sm:$0xff]
  %v76 = vld [vmem:[%s2 + $0x40] sm:$0xff]
  %v77 = vld [vmem:[%s2 + $0x48] sm:$0xff]
  %v78 = vld [vmem:[%s2 + $0x50] sm:$0xff]
  %v79 = vld [vmem:[%s2 + $0x58] sm:$0xff]
  %v80 = vld [vmem:[%s2 + $0x60] sm:$0xff]
  %v81 = vld [vmem:[%s2 + $0x68] sm:$0xff]
  %v82 = vld [vmem:[%s2 + $0x70] sm:$0xff]
  %v83 = vld [vmem:[%s2 + $0x78] sm:$0xff]
  %v84 = vld [vmem:[%s2 + $0x80] sm:$0xff]
  %v85 = vld [vmem:[%s2 + $0x88] sm:$0xff]
  %v86 = vld [vmem:[%s2 + $0x90] sm:$0xff]
  %v87 = vld [vmem:[%s2 + $0x98] sm:$0xff]
  %v88 = vld [vmem:[%s2 + $0xa0] sm:$0xff]
  %v89 = vld [vmem:[%s2 + $0xa8] sm:$0xff]
  %v90 = vld [vmem:[%s2 + $0xb0] sm:$0xff]
  %v91 = vld [vmem:[%s2 + $0xb8] sm:$0xff]
  %v92 = vld [vmem:[%s2 + $0xc0] sm:$0xff]
  %v93 = vld [vmem:[%s2 + $0xc8] sm:$0xff]
  %v94 = vld [vmem:[%s2 + $0xd0] sm:$0xff]
  %v95 = vld [vmem:[%s2 + $0xd8] sm:$0xff]
  %v96 = vld [vmem:[%s2 + $0xe0] sm:$0xff]
  %v97 = vld [vmem:[%s2 + $0xe8] sm:$0xff]
  %v98 = vld [vmem:[%s2 + $0xf0] sm:$0xff]
  %v99 = vld [vmem:[%s2 + $0xf8] sm:$0xff]
  %v100 = vld [vmem:[%s1] sm:$0x3]
  %v101 = vld [vmem:[%s3] sm:$0x1]
  %103 = vset.pattern.permute.xlu0 0
  %104 = vperm.xlu0 %103, %v100
  %v105 = vpop.permute.xlu0 %104
  %v108 = vperm.slane %v101, 0
  %v110 = vmul.f32 %v105, %v108
  %vm115 = vcmask 1041409
  %v116 = vsel %vm115, %v66, %v64
  %v117 = vsel %vm115, %v67, %v65
  %120 = vmatpush.msra.mxu0 %v83
  %121 = vmatpush.msra.mxu0 %v82
  %122 = vmatpush.msra.mxu0 %v81
  %123 = vmatpush.msra.mxu0 %v80
  %124 = vmatpush.msra.mxu0 %v79
  %125 = vmatpush.msra.mxu0 %v78
  %126 = vmatpush.msra.mxu0 %v77
  %127 = vmatpush.msra.mxu0 %v76
  %128 = vmatpush.msra.mxu0 %v75
  %129 = vmatpush.msra.mxu0 %v74
  %130 = vmatpush.msra.mxu0 %v73
  %131 = vmatpush.msra.mxu0 %v72
  %132 = vmatpush.msra.mxu0 %v71
  %133 = vmatpush.msra.mxu0 %v70
  %134 = vmatpush.msra.mxu0 %v69
  %135 = vmatpush.msra.mxu0 %v68
  %136 = vmatmul.f32.gmra.mxu0 %v116
  %v137 = vpop.f32.mrf.mxu0
  %v138 = vadd.f32 %v110, %v137
  %139 = vdwg.mxu0
  %140 = vmatpush.msra.mxu0 %v99
  %141 = vmatpush.msra.mxu0 %v98
  %142 = vmatpush.msra.mxu0 %v97
  %143 = vmatpush.msra.mxu0 %v96
  %144 = vmatpush.msra.mxu0 %v95
  %145 = vmatpush.msra.mxu0 %v94
  %146 = vmatpush.msra.mxu0 %v93
  %147 = vmatpush.msra.mxu0 %v92
  %148 = vmatpush.msra.mxu0 %v91
  %149 = vmatpush.msra.mxu0 %v90
  %150 = vmatpush.msra.mxu0 %v89
  %151 = vmatpush.msra.mxu0 %v88
  %152 = vmatpush.msra.mxu0 %v87
  %153 = vmatpush.msra.mxu0 %v86
  %154 = vmatpush.msra.mxu0 %v85
  %155 = vmatpush.msra.mxu0 %v84
  %156 = vmatmul.f32.gmra.mxu0 %v117
  %v157 = vpop.f32.mrf.mxu0
  %v158 = vadd.f32 %v138, %v157
  %159 = vdwg.mxu0
  %v160 = vld [vmem:[%s4] sm:$0x1]
  %v162 = vperm.slane %v160, 0
  %v164 = vadd.f32 %v158, %v162
  %v165 = vld [vmem:[%s5] sm:$0x1]
  %v167 = vperm.slane %v165, 0
  %v169 = vmul.f32 %v164, %v167
  %vm170 = vcmask 1041408
  %v171 = vsel %vm170, %v169, 0.0
  %172 = vadd.xlane.f32.xlu0 %v171
  %v173 = vpop.xlane.xlu0 %172
  %v174 = vld [vmem:[#allocation2] sm:$0x1]
  %v176 = vperm.slane %v174, 0
  %v178 = vadd.f32 %v173, %v176
  %vm179 = vcmask 1024
  %180 = vst.msk [vmem:[%s7] sm:$0x3] %vm179, %v178
  // Predicated region
  $region30: #{macnet_forward.41} parent=0 // pred_check
    _
  $region31: #{macnet_forward.41} parent=0 // pred_check_branch
    %182 = sbr.rel (0) target = $region33
  $region32: #{macnet_forward.41} parent=0 // pred_region
    _
  $region33: #{macnet_forward.41} parent=0 // pred_fallthru
    _
  // Predicated region
  $region34: #{macnet_forward.41} parent=0 // pred_check
    _
  $region35: #{macnet_forward.41} parent=0 // pred_check_branch
    %184 = sbr.rel (0) target = $region37
  $region36: #{macnet_forward.41} parent=0 // pred_region
    _
  $region37: #{macnet_forward.41} parent=0 // pred_fallthru
    _

// kernel: macnet_forward.39
$region0: #{macnet_forward.39}
  #allocation0 [shape = 'u32[]', space=smem, size = 0x4, offset = 0x4, fixed_abs, tag = 'smem constant byte address 0x4 - core index']
  #allocation1 [shape = 'u32[72,128]{1,0:T(1,128)}', space=vmem, size = 0x9000, scoped, tag = 'internal scratch']
  %s0 = inlined_call_operand.vmem [shape: f32[32,2304], index: 0, kind: input, shape index: {}]
  %s1 = inlined_call_operand.vmem [shape: f32[2304,256], index: 1, kind: input, shape index: {}]
  %s2 = inlined_call_operand.vmem [shape: f32[1,256], index: 2, kind: input, shape index: {}]
  %s3 = inlined_call_operand.vmem [shape: f32[1,256], index: 3, kind: input, shape index: {}]
  %s4 = inlined_call_operand.vmem [shape: f32[32,256], index: 4, kind: output, shape index: {}]
  %s5 = sld [smem:[#allocation0]]
  $region26: #{macnet_forward.39} parent=0
    _
  %s7 = ssub.s32 1, %s5
  %s8 = scalar_select 0, %s7, %s5
  // Predicated region
  $region2: #{macnet_forward.39} parent=0 // pred_check
    _
  $region3: #{macnet_forward.39} parent=0 // pred_check_branch
    %10 = sbr.rel (0) target = $region5
  $region4: #{macnet_forward.39} parent=0 // pred_region
    _
  $region5: #{macnet_forward.39} parent=0 // pred_fallthru
    _
  // Predicated region
  $region6: #{macnet_forward.39} parent=0 // pred_check
    _
  $region7: #{macnet_forward.39} parent=0 // pred_check_branch
    %12 = sbr.rel (0) target = $region9
  $region8: #{macnet_forward.39} parent=0 // pred_region
    _
  $region9: #{macnet_forward.39} parent=0 // pred_fallthru
    _
  // Predicated region
  $region10: #{macnet_forward.39} parent=0 // pred_check
    _
  $region11: #{macnet_forward.39} parent=0 // pred_check_branch
    %14 = sbr.rel (0) target = $region13
  $region12: #{macnet_forward.39} parent=0 // pred_region
    _
  $region13: #{macnet_forward.39} parent=0 // pred_fallthru
    _
  // Predicated region
  $region14: #{macnet_forward.39} parent=0 // pred_check
    _
  $region15: #{macnet_forward.39} parent=0 // pred_check_branch
    %16 = sbr.rel (0) target = $region17
  $region16: #{macnet_forward.39} parent=0 // pred_region
    _
  $region17: #{macnet_forward.39} parent=0 // pred_fallthru
    _
  %v17 = vld [vmem:[%s0] sm:$0xff]
  %v18 = vld [vmem:[%s0 + $0x8] sm:$0xff]
  %v19 = vld [vmem:[%s0 + $0x10] sm:$0xff]
  %v20 = vld [vmem:[%s0 + $0x18] sm:$0xff]
  %v21 = vld [vmem:[%s0 + $0x20] sm:$0xff]
  %v22 = vld [vmem:[%s0 + $0x28] sm:$0xff]
  %v23 = vld [vmem:[%s0 + $0x30] sm:$0xff]
  %v24 = vld [vmem:[%s0 + $0x38] sm:$0xff]
  %v25 = vld [vmem:[%s0 + $0x40] sm:$0xff]
  %v26 = vld [vmem:[%s0 + $0x48] sm:$0xff]
  %v27 = vld [vmem:[%s0 + $0x50] sm:$0xff]
  %v28 = vld [vmem:[%s0 + $0x58] sm:$0xff]
  %v29 = vld [vmem:[%s0 + $0x60] sm:$0xff]
  %v30 = vld [vmem:[%s0 + $0x68] sm:$0xff]
  %v31 = vld [vmem:[%s0 + $0x70] sm:$0xff]
  %v32 = vld [vmem:[%s0 + $0x78] sm:$0xff]
  %v33 = vld [vmem:[%s0 + $0x80] sm:$0xff]
  %v34 = vld [vmem:[%s0 + $0x88] sm:$0xff]
  %v35 = vld [vmem:[%s0 + $0x90] sm:$0xff]
  %v36 = vld [vmem:[%s0 + $0x98] sm:$0xff]
  %v37 = vld [vmem:[%s0 + $0xa0] sm:$0xff]
  %v38 = vld [vmem:[%s0 + $0xa8] sm:$0xff]
  %v39 = vld [vmem:[%s0 + $0xb0] sm:$0xff]
  %v40 = vld [vmem:[%s0 + $0xb8] sm:$0xff]
  %v41 = vld [vmem:[%s0 + $0xc0] sm:$0xff]
  %v42 = vld [vmem:[%s0 + $0xc8] sm:$0xff]
  %v43 = vld [vmem:[%s0 + $0xd0] sm:$0xff]
  %v44 = vld [vmem:[%s0 + $0xd8] sm:$0xff]
  %v45 = vld [vmem:[%s0 + $0xe0] sm:$0xff]
  %v46 = vld [vmem:[%s0 + $0xe8] sm:$0xff]
  %v47 = vld [vmem:[%s0 + $0xf0] sm:$0xff]
  %v48 = vld [vmem:[%s0 + $0xf8] sm:$0xff]
  %v49 = vld [vmem:[%s0 + $0x100] sm:$0xff]
  %v50 = vld [vmem:[%s0 + $0x108] sm:$0xff]
  %v51 = vld [vmem:[%s0 + $0x110] sm:$0xff]
  %v52 = vld [vmem:[%s0 + $0x118] sm:$0xff]
  %v53 = vld [vmem:[%s0 + $0x120] sm:$0xff]
  %v54 = vld [vmem:[%s0 + $0x128] sm:$0xff]
  %v55 = vld [vmem:[%s0 + $0x130] sm:$0xff]
  %v56 = vld [vmem:[%s0 + $0x138] sm:$0xff]
  %v57 = vld [vmem:[%s0 + $0x140] sm:$0xff]
  %v58 = vld [vmem:[%s0 + $0x148] sm:$0xff]
  %v59 = vld [vmem:[%s0 + $0x150] sm:$0xff]
  %v60 = vld [vmem:[%s0 + $0x158] sm:$0xff]
  %v61 = vld [vmem:[%s0 + $0x160] sm:$0xff]
  %v62 = vld [vmem:[%s0 + $0x168] sm:$0xff]
  %v63 = vld [vmem:[%s0 + $0x170] sm:$0xff]
  %v64 = vld [vmem:[%s0 + $0x178] sm:$0xff]
  %v65 = vld [vmem:[%s0 + $0x180] sm:$0xff]
  %v66 = vld [vmem:[%s0 + $0x188] sm:$0xff]
  %v67 = vld [vmem:[%s0 + $0x190] sm:$0xff]
  %v68 = vld [vmem:[%s0 + $0x198] sm:$0xff]
  %v69 = vld [vmem:[%s0 + $0x1a0] sm:$0xff]
  %v70 = vld [vmem:[%s0 + $0x1a8] sm:$0xff]
  %v71 = vld [vmem:[%s0 + $0x1b0] sm:$0xff]
  %v72 = vld [vmem:[%s0 + $0x1b8] sm:$0xff]
  %v73 = vld [vmem:[%s0 + $0x1c0] sm:$0xff]
  %v74 = vld [vmem:[%s0 + $0x1c8] sm:$0xff]
  %v75 = vld [vmem:[%s0 + $0x1d0] sm:$0xff]
  %v76 = vld [vmem:[%s0 + $0x1d8] sm:$0xff]
  %v77 = vld [vmem:[%s0 + $0x1e0] sm:$0xff]
  %v78 = vld [vmem:[%s0 + $0x1e8] sm:$0xff]
  %v79 = vld [vmem:[%s0 + $0x1f0] sm:$0xff]
  %v80 = vld [vmem:[%s0 + $0x1f8] sm:$0xff]
  %v81 = vld [vmem:[%s0 + $0x200] sm:$0xff]
  %v82 = vld [vmem:[%s0 + $0x208] sm:$0xff]
  %v83 = vld [vmem:[%s0 + $0x210] sm:$0xff]
  %v84 = vld [vmem:[%s0 + $0x218] sm:$0xff]
  %v85 = vld [vmem:[%s0 + $0x220] sm:$0xff]
  %v86 = vld [vmem:[%s0 + $0x228] sm:$0xff]
  %v87 = vld [vmem:[%s0 + $0x230] sm:$0xff]
  %v88 = vld [vmem:[%s0 + $0x238] sm:$0xff]
  %v89 = vld [vmem:[%s1] sm:$0xff]
  %v90 = vld [vmem:[%s1 + $0x8] sm:$0xff]
  %v91 = vld [vmem:[%s1 + $0x10] sm:$0xff]
  %v92 = vld [vmem:[%s1 + $0x18] sm:$0xff]
  %v93 = vld [vmem:[%s1 + $0x20] sm:$0xff]
  %v94 = vld [vmem:[%s1 + $0x28] sm:$0xff]
  %v95 = vld [vmem:[%s1 + $0x30] sm:$0xff]
  %v96 = vld [vmem:[%s1 + $0x38] sm:$0xff]
  %v97 = vld [vmem:[%s1 + $0x40] sm:$0xff]
  %v98 = vld [vmem:[%s1 + $0x48] sm:$0xff]
  %v99 = vld [vmem:[%s1 + $0x50] sm:$0xff]
  %v100 = vld [vmem:[%s1 + $0x58] sm:$0xff]
  %v101 = vld [vmem:[%s1 + $0x60] sm:$0xff]
  %v102 = vld [vmem:[%s1 + $0x68] sm:$0xff]
  %v103 = vld [vmem:[%s1 + $0x70] sm:$0xff]
  %v104 = vld [vmem:[%s1 + $0x78] sm:$0xff]
  %v105 = vld [vmem:[%s1 + $0x80] sm:$0xff]
  %v106 = vld [vmem:[%s1 + $0x88] sm:$0xff]
  %v107 = vld [vmem:[%s1 + $0x90] sm:$0xff]
  %v108 = vld [vmem:[%s1 + $0x98] sm:$0xff]
  %v109 = vld [vmem:[%s1 + $0xa0] sm:$0xff]
  %v110 = vld [vmem:[%s1 + $0xa8] sm:$0xff]
  %v111 = vld [vmem:[%s1 + $0xb0] sm:$0xff]
  %v112 = vld [vmem:[%s1 + $0xb8] sm:$0xff]
  %v113 = vld [vmem:[%s1 + $0xc0] sm:$0xff]
  %v114 = vld [vmem:[%s1 + $0xc8] sm:$0xff]
  %v115 = vld [vmem:[%s1 + $0xd0] sm:$0xff]
  %v116 = vld [vmem:[%s1 + $0xd8] sm:$0xff]
  %v117 = vld [vmem:[%s1 + $0xe0] sm:$0xff]
  %v118 = vld [vmem:[%s1 + $0xe8] sm:$0xff]
  %v119 = vld [vmem:[%s1 + $0xf0] sm:$0xff]
  %v120 = vld [vmem:[%s1 + $0xf8] sm:$0xff]
  %v121 = vld [vmem:[%s1 + $0x100] sm:$0xff]
  %v122 = vld [vmem:[%s1 + $0x108] sm:$0xff]
  %v123 = vld [vmem:[%s1 + $0x110] sm:$0xff]
  %v124 = vld [vmem:[%s1 + $0x118] sm:$0xff]
  %v125 = vld [vmem:[%s1 + $0x120] sm:$0xff]
  %v126 = vld [vmem:[%s1 + $0x128] sm:$0xff]
  %v127 = vld [vmem:[%s1 + $0x130] sm:$0xff]
  %v128 = vld [vmem:[%s1 + $0x138] sm:$0xff]
  %v129 = vld [vmem:[%s1 + $0x140] sm:$0xff]
  %v130 = vld [vmem:[%s1 + $0x148] sm:$0xff]
  %v131 = vld [vmem:[%s1 + $0x150] sm:$0xff]
  %v132 = vld [vmem:[%s1 + $0x158] sm:$0xff]
  %v133 = vld [vmem:[%s1 + $0x160] sm:$0xff]
  %v134 = vld [vmem:[%s1 + $0x168] sm:$0xff]
  %v135 = vld [vmem:[%s1 + $0x170] sm:$0xff]
  %v136 = vld [vmem:[%s1 + $0x178] sm:$0xff]
  %v137 = vld [vmem:[%s1 + $0x180] sm:$0xff]
  %v138 = vld [vmem:[%s1 + $0x188] sm:$0xff]
  %v139 = vld [vmem:[%s1 + $0x190] sm:$0xff]
  %v140 = vld [vmem:[%s1 + $0x198] sm:$0xff]
  %v141 = vld [vmem:[%s1 + $0x1a0] sm:$0xff]
  %v142 = vld [vmem:[%s1 + $0x1a8] sm:$0xff]
  %v143 = vld [vmem:[%s1 + $0x1b0] sm:$0xff]
  %v144 = vld [vmem:[%s1 + $0x1b8] sm:$0xff]
  %v145 = vld [vmem:[%s1 + $0x1c0] sm:$0xff]
  %v146 = vld [vmem:[%s1 + $0x1c8] sm:$0xff]
  %v147 = vld [vmem:[%s1 + $0x1d0] sm:$0xff]
  %v148 = vld [vmem:[%s1 + $0x1d8] sm:$0xff]
  %v149 = vld [vmem:[%s1 + $0x1e0] sm:$0xff]
  %v150 = vld [vmem:[%s1 + $0x1e8] sm:$0xff]
  %v151 = vld [vmem:[%s1 + $0x1f0] sm:$0xff]
  %v152 = vld [vmem:[%s1 + $0x1f8] sm:$0xff]
  %v153 = vld [vmem:[%s1 + $0x200] sm:$0xff]
  %v154 = vld [vmem:[%s1 + $0x208] sm:$0xff]
  %v155 = vld [vmem:[%s1 + $0x210] sm:$0xff]
  %v156 = vld [vmem:[%s1 + $0x218] sm:$0xff]
  %v157 = vld [vmem:[%s1 + $0x220] sm:$0xff]
  %v158 = vld [vmem:[%s1 + $0x228] sm:$0xff]
  %v159 = vld [vmem:[%s1 + $0x230] sm:$0xff]
  %v160 = vld [vmem:[%s1 + $0x238] sm:$0xff]
  %v161 = vld [vmem:[%s1 + $0x240] sm:$0xff]
  %v162 = vld [vmem:[%s1 + $0x248] sm:$0xff]
  %v163 = vld [vmem:[%s1 + $0x250] sm:$0xff]
  %v164 = vld [vmem:[%s1 + $0x258] sm:$0xff]
  %v165 = vld [vmem:[%s1 + $0x260] sm:$0xff]
  %v166 = vld [vmem:[%s1 + $0x268] sm:$0xff]
  %v167 = vld [vmem:[%s1 + $0x270] sm:$0xff]
  %v168 = vld [vmem:[%s1 + $0x278] sm:$0xff]
  %v169 = vld [vmem:[%s1 + $0x280] sm:$0xff]
  %v170 = vld [vmem:[%s1 + $0x288] sm:$0xff]
  %v171 = vld [vmem:[%s1 + $0x290] sm:$0xff]
  %v172 = vld [vmem:[%s1 + $0x298] sm:$0xff]
  %v173 = vld [vmem:[%s1 + $0x2a0] sm:$0xff]
  %v174 = vld [vmem:[%s1 + $0x2a8] sm:$0xff]
  %v175 = vld [vmem:[%s1 + $0x2b0] sm:$0xff]
  %v176 = vld [vmem:[%s1 + $0x2b8] sm:$0xff]
  %v177 = vld [vmem:[%s1 + $0x2c0] sm:$0xff]
  %v178 = vld [vmem:[%s1 + $0x2c8] sm:$0xff]
  %v179 = vld [vmem:[%s1 + $0x2d0] sm:$0xff]
  %v180 = vld [vmem:[%s1 + $0x2d8] sm:$0xff]
  %v181 = vld [vmem:[%s1 + $0x2e0] sm:$0xff]
  %v182 = vld [vmem:[%s1 + $0x2e8] sm:$0xff]
  %v183 = vld [vmem:[%s1 + $0x2f0] sm:$0xff]
  %v184 = vld [vmem:[%s1 + $0x2f8] sm:$0xff]
  %v185 = vld [vmem:[%s1 + $0x300] sm:$0xff]
  %v186 = vld [vmem:[%s1 + $0x308] sm:$0xff]
  %v187 = vld [vmem:[%s1 + $0x310] sm:$0xff]
  %v188 = vld [vmem:[%s1 + $0x318] sm:$0xff]
  %v189 = vld [vmem:[%s1 + $0x320] sm:$0xff]
  %v190 = vld [vmem:[%s1 + $0x328] sm:$0xff]
  %v191 = vld [vmem:[%s1 + $0x330] sm:$0xff]
  %v192 = vld [vmem:[%s1 + $0x338] sm:$0xff]
  %v193 = vld [vmem:[%s1 + $0x340] sm:$0xff]
  %v194 = vld [vmem:[%s1 + $0x348] sm:$0xff]
  %v195 = vld [vmem:[%s1 + $0x350] sm:$0xff]
  %v196 = vld [vmem:[%s1 + $0x358] sm:$0xff]
  %v197 = vld [vmem:[%s1 + $0x360] sm:$0xff]
  %v198 = vld [vmem:[%s1 + $0x368] sm:$0xff]
  %v199 = vld [vmem:[%s1 + $0x370] sm:$0xff]
  %v200 = vld [vmem:[%s1 + $0x378] sm:$0xff]
  %v201 = vld [vmem:[%s1 + $0x380] sm:$0xff]
  %v202 = vld [vmem:[%s1 + $0x388] sm:$0xff]
  %v203 = vld [vmem:[%s1 + $0x390] sm:$0xff]
  %v204 = vld [vmem:[%s1 + $0x398] sm:$0xff]
  %v205 = vld [vmem:[%s1 + $0x3a0] sm:$0xff]
  %v206 = vld [vmem:[%s1 + $0x3a8] sm:$0xff]
  %v207 = vld [vmem:[%s1 + $0x3b0] sm:$0xff]
  %v208 = vld [vmem:[%s1 + $0x3b8] sm:$0xff]
  %v209 = vld [vmem:[%s1 + $0x3c0] sm:$0xff]
  %v210 = vld [vmem:[%s1 + $0x3c8] sm:$0xff]
  %v211 = vld [vmem:[%s1 + $0x3d0] sm:$0xff]
  %v212 = vld [vmem:[%s1 + $0x3d8] sm:$0xff]
  %v213 = vld [vmem:[%s1 + $0x3e0] sm:$0xff]
  %v214 = vld [vmem:[%s1 + $0x3e8] sm:$0xff]
  %v215 = vld [vmem:[%s1 + $0x3f0] sm:$0xff]
  %v216 = vld [vmem:[%s1 + $0x3f8] sm:$0xff]
  %v217 = vld [vmem:[%s1 + $0x400] sm:$0xff]
  %v218 = vld [vmem:[%s1 + $0x408] sm:$0xff]
  %v219 = vld [vmem:[%s1 + $0x410] sm:$0xff]
  %v220 = vld [vmem:[%s1 + $0x418] sm:$0xff]
  %v221 = vld [vmem:[%s1 + $0x420] sm:$0xff]
  %v222 = vld [vmem:[%s1 + $0x428] sm:$0xff]
  %v223 = vld [vmem:[%s1 + $0x430] sm:$0xff]
  %v224 = vld [vmem:[%s1 + $0x438] sm:$0xff]
  %v225 = vld [vmem:[%s1 + $0x440] sm:$0xff]
  %v226 = vld [vmem:[%s1 + $0x448] sm:$0xff]
  %v227 = vld [vmem:[%s1 + $0x450] sm:$0xff]
  %v228 = vld [vmem:[%s1 + $0x458] sm:$0xff]
  %v229 = vld [vmem:[%s1 + $0x460] sm:$0xff]
  %v230 = vld [vmem:[%s1 + $0x468] sm:$0xff]
  %v231 = vld [vmem:[%s1 + $0x470] sm:$0xff]
  %v232 = vld [vmem:[%s1 + $0x478] sm:$0xff]
  %v233 = vld [vmem:[%s1 + $0x480] sm:$0xff]
  %v234 = vld [vmem:[%s1 + $0x488] sm:$0xff]
  %v235 = vld [vmem:[%s1 + $0x490] sm:$0xff]
  %v236 = vld [vmem:[%s1 + $0x498] sm:$0xff]
  %v237 = vld [vmem:[%s1 + $0x4a0] sm:$0xff]
  %v238 = vld [vmem:[%s1 + $0x4a8] sm:$0xff]
  %v239 = vld [vmem:[%s1 + $0x4b0] sm:$0xff]
  %v240 = vld [vmem:[%s1 + $0x4b8] sm:$0xff]
  %v241 = vld [vmem:[%s1 + $0x4c0] sm:$0xff]
  %v242 = vld [vmem:[%s1 + $0x4c8] sm:$0xff]
  %v243 = vld [vmem:[%s1 + $0x4d0] sm:$0xff]
  %v244 = vld [vmem:[%s1 + $0x4d8] sm:$0xff]
  %v245 = vld [vmem:[%s1 + $0x4e0] sm:$0xff]
  %v246 = vld [vmem:[%s1 + $0x4e8] sm:$0xff]
  %v247 = vld [vmem:[%s1 + $0x4f0] sm:$0xff]
  %v248 = vld [vmem:[%s1 + $0x4f8] sm:$0xff]
  %v249 = vld [vmem:[%s1 + $0x500] sm:$0xff]
  %v250 = vld [vmem:[%s1 + $0x508] sm:$0xff]
  %v251 = vld [vmem:[%s1 + $0x510] sm:$0xff]
  %v252 = vld [vmem:[%s1 + $0x518] sm:$0xff]
  %v253 = vld [vmem:[%s1 + $0x520] sm:$0xff]
  %v254 = vld [vmem:[%s1 + $0x528] sm:$0xff]
  %v255 = vld [vmem:[%s1 + $0x530] sm:$0xff]
  %v256 = vld [vmem:[%s1 + $0x538] sm:$0xff]
  %v257 = vld [vmem:[%s1 + $0x540] sm:$0xff]
  %v258 = vld [vmem:[%s1 + $0x548] sm:$0xff]
  %v259 = vld [vmem:[%s1 + $0x550] sm:$0xff]
  %v260 = vld [vmem:[%s1 + $0x558] sm:$0xff]
  %v261 = vld [vmem:[%s1 + $0x560] sm:$0xff]
  %v262 = vld [vmem:[%s1 + $0x568] sm:$0xff]
  %v263 = vld [vmem:[%s1 + $0x570] sm:$0xff]
  %v264 = vld [vmem:[%s1 + $0x578] sm:$0xff]
  %v265 = vld [vmem:[%s1 + $0x580] sm:$0xff]
  %v266 = vld [vmem:[%s1 + $0x588] sm:$0xff]
  %v267 = vld [vmem:[%s1 + $0x590] sm:$0xff]
  %v268 = vld [vmem:[%s1 + $0x598] sm:$0xff]
  %v269 = vld [vmem:[%s1 + $0x5a0] sm:$0xff]
  %v270 = vld [vmem:[%s1 + $0x5a8] sm:$0xff]
  %v271 = vld [vmem:[%s1 + $0x5b0] sm:$0xff]
  %v272 = vld [vmem:[%s1 + $0x5b8] sm:$0xff]
  %v273 = vld [vmem:[%s1 + $0x5c0] sm:$0xff]
  %v274 = vld [vmem:[%s1 + $0x5c8] sm:$0xff]
  %v275 = vld [vmem:[%s1 + $0x5d0] sm:$0xff]
  %v276 = vld [vmem:[%s1 + $0x5d8] sm:$0xff]
  %v277 = vld [vmem:[%s1 + $0x5e0] sm:$0xff]
  %v278 = vld [vmem:[%s1 + $0x5e8] sm:$0xff]
  %v279 = vld [vmem:[%s1 + $0x5f0] sm:$0xff]
  %v280 = vld [vmem:[%s1 + $0x5f8] sm:$0xff]
  %v281 = vld [vmem:[%s1 + $0x600] sm:$0xff]
  %v282 = vld [vmem:[%s1 + $0x608] sm:$0xff]
  %v283 = vld [vmem:[%s1 + $0x610] sm:$0xff]
  %v284 = vld [vmem:[%s1 + $0x618] sm:$0xff]
  %v285 = vld [vmem:[%s1 + $0x620] sm:$0xff]
  %v286 = vld [vmem:[%s1 + $0x628] sm:$0xff]
  %v287 = vld [vmem:[%s1 + $0x630] sm:$0xff]
  %v288 = vld [vmem:[%s1 + $0x638] sm:$0xff]
  %v289 = vld [vmem:[%s1 + $0x640] sm:$0xff]
  %v290 = vld [vmem:[%s1 + $0x648] sm:$0xff]
  %v291 = vld [vmem:[%s1 + $0x650] sm:$0xff]
  %v292 = vld [vmem:[%s1 + $0x658] sm:$0xff]
  %v293 = vld [vmem:[%s1 + $0x660] sm:$0xff]
  %v294 = vld [vmem:[%s1 + $0x668] sm:$0xff]
  %v295 = vld [vmem:[%s1 + $0x670] sm:$0xff]
  %v296 = vld [vmem:[%s1 + $0x678] sm:$0xff]
  %v297 = vld [vmem:[%s1 + $0x680] sm:$0xff]
  %v298 = vld [vmem:[%s1 + $0x688] sm:$0xff]
  %v299 = vld [vmem:[%s1 + $0x690] sm:$0xff]
  %v300 = vld [vmem:[%s1 + $0x698] sm:$0xff]
  %v301 = vld [vmem:[%s1 + $0x6a0] sm:$0xff]
  %v302 = vld [vmem:[%s1 + $0x6a8] sm:$0xff]
  %v303 = vld [vmem:[%s1 + $0x6b0] sm:$0xff]
  %v304 = vld [vmem:[%s1 + $0x6b8] sm:$0xff]
  %v305 = vld [vmem:[%s1 + $0x6c0] sm:$0xff]
  %v306 = vld [vmem:[%s1 + $0x6c8] sm:$0xff]
  %v307 = vld [vmem:[%s1 + $0x6d0] sm:$0xff]
  %v308 = vld [vmem:[%s1 + $0x6d8] sm:$0xff]
  %v309 = vld [vmem:[%s1 + $0x6e0] sm:$0xff]
  %v310 = vld [vmem:[%s1 + $0x6e8] sm:$0xff]
  %v311 = vld [vmem:[%s1 + $0x6f0] sm:$0xff]
  %v312 = vld [vmem:[%s1 + $0x6f8] sm:$0xff]
  %v313 = vld [vmem:[%s1 + $0x700] sm:$0xff]
  %v314 = vld [vmem:[%s1 + $0x708] sm:$0xff]
  %v315 = vld [vmem:[%s1 + $0x710] sm:$0xff]
  %v316 = vld [vmem:[%s1 + $0x718] sm:$0xff]
  %v317 = vld [vmem:[%s1 + $0x720] sm:$0xff]
  %v318 = vld [vmem:[%s1 + $0x728] sm:$0xff]
  %v319 = vld [vmem:[%s1 + $0x730] sm:$0xff]
  %v320 = vld [vmem:[%s1 + $0x738] sm:$0xff]
  %v321 = vld [vmem:[%s1 + $0x740] sm:$0xff]
  %v322 = vld [vmem:[%s1 + $0x748] sm:$0xff]
  %v323 = vld [vmem:[%s1 + $0x750] sm:$0xff]
  %v324 = vld [vmem:[%s1 + $0x758] sm:$0xff]
  %v325 = vld [vmem:[%s1 + $0x760] sm:$0xff]
  %v326 = vld [vmem:[%s1 + $0x768] sm:$0xff]
  %v327 = vld [vmem:[%s1 + $0x770] sm:$0xff]
  %v328 = vld [vmem:[%s1 + $0x778] sm:$0xff]
  %v329 = vld [vmem:[%s1 + $0x780] sm:$0xff]
  %v330 = vld [vmem:[%s1 + $0x788] sm:$0xff]
  %v331 = vld [vmem:[%s1 + $0x790] sm:$0xff]
  %v332 = vld [vmem:[%s1 + $0x798] sm:$0xff]
  %v333 = vld [vmem:[%s1 + $0x7a0] sm:$0xff]
  %v334 = vld [vmem:[%s1 + $0x7a8] sm:$0xff]
  %v335 = vld [vmem:[%s1 + $0x7b0] sm:$0xff]
  %v336 = vld [vmem:[%s1 + $0x7b8] sm:$0xff]
  %v337 = vld [vmem:[%s1 + $0x7c0] sm:$0xff]
  %v338 = vld [vmem:[%s1 + $0x7c8] sm:$0xff]
  %v339 = vld [vmem:[%s1 + $0x7d0] sm:$0xff]
  %v340 = vld [vmem:[%s1 + $0x7d8] sm:$0xff]
  %v341 = vld [vmem:[%s1 + $0x7e0] sm:$0xff]
  %v342 = vld [vmem:[%s1 + $0x7e8] sm:$0xff]
  %v343 = vld [vmem:[%s1 + $0x7f0] sm:$0xff]
  %v344 = vld [vmem:[%s1 + $0x7f8] sm:$0xff]
  %v345 = vld [vmem:[%s1 + $0x800] sm:$0xff]
  %v346 = vld [vmem:[%s1 + $0x808] sm:$0xff]
  %v347 = vld [vmem:[%s1 + $0x810] sm:$0xff]
  %v348 = vld [vmem:[%s1 + $0x818] sm:$0xff]
  %v349 = vld [vmem:[%s1 + $0x820] sm:$0xff]
  %v350 = vld [vmem:[%s1 + $0x828] sm:$0xff]
  %v351 = vld [vmem:[%s1 + $0x830] sm:$0xff]
  %v352 = vld [vmem:[%s1 + $0x838] sm:$0xff]
  %v353 = vld [vmem:[%s1 + $0x840] sm:$0xff]
  %v354 = vld [vmem:[%s1 + $0x848] sm:$0xff]
  %v355 = vld [vmem:[%s1 + $0x850] sm:$0xff]
  %v356 = vld [vmem:[%s1 + $0x858] sm:$0xff]
  %v357 = vld [vmem:[%s1 + $0x860] sm:$0xff]
  %v358 = vld [vmem:[%s1 + $0x868] sm:$0xff]
  %v359 = vld [vmem:[%s1 + $0x870] sm:$0xff]
  %v360 = vld [vmem:[%s1 + $0x878] sm:$0xff]
  %v361 = vld [vmem:[%s1 + $0x880] sm:$0xff]
  %v362 = vld [vmem:[%s1 + $0x888] sm:$0xff]
  %v363 = vld [vmem:[%s1 + $0x890] sm:$0xff]
  %v364 = vld [vmem:[%s1 + $0x898] sm:$0xff]
  %v365 = vld [vmem:[%s1 + $0x8a0] sm:$0xff]
  %v366 = vld [vmem:[%s1 + $0x8a8] sm:$0xff]
  %v367 = vld [vmem:[%s1 + $0x8b0] sm:$0xff]
  %v368 = vld [vmem:[%s1 + $0x8b8] sm:$0xff]
  %v369 = vld [vmem:[%s1 + $0x8c0] sm:$0xff]
  %v370 = vld [vmem:[%s1 + $0x8c8] sm:$0xff]
  %v371 = vld [vmem:[%s1 + $0x8d0] sm:$0xff]
  %v372 = vld [vmem:[%s1 + $0x8d8] sm:$0xff]
  %v373 = vld [vmem:[%s1 + $0x8e0] sm:$0xff]
  %v374 = vld [vmem:[%s1 + $0x8e8] sm:$0xff]
  %v375 = vld [vmem:[%s1 + $0x8f0] sm:$0xff]
  %v376 = vld [vmem:[%s1 + $0x8f8] sm:$0xff]
  %v377 = vld [vmem:[%s1 + $0x900] sm:$0xff]
  %v378 = vld [vmem:[%s1 + $0x908] sm:$0xff]
  %v379 = vld [vmem:[%s1 + $0x910] sm:$0xff]
  %v380 = vld [vmem:[%s1 + $0x918] sm:$0xff]
  %v381 = vld [vmem:[%s1 + $0x920] sm:$0xff]
  %v382 = vld [vmem:[%s1 + $0x928] sm:$0xff]
  %v383 = vld [vmem:[%s1 + $0x930] sm:$0xff]
  %v384 = vld [vmem:[%s1 + $0x938] sm:$0xff]
  %v385 = vld [vmem:[%s1 + $0x940] sm:$0xff]
  %v386 = vld [vmem:[%s1 + $0x948] sm:$0xff]
  %v387 = vld [vmem:[%s1 + $0x950] sm:$0xff]
  %v388 = vld [vmem:[%s1 + $0x958] sm:$0xff]
  %v389 = vld [vmem:[%s1 + $0x960] sm:$0xff]
  %v390 = vld [vmem:[%s1 + $0x968] sm:$0xff]
  %v391 = vld [vmem:[%s1 + $0x970] sm:$0xff]
  %v392 = vld [vmem:[%s1 + $0x978] sm:$0xff]
  %v393 = vld [vmem:[%s1 + $0x980] sm:$0xff]
  %v394 = vld [vmem:[%s1 + $0x988] sm:$0xff]
  %v395 = vld [vmem:[%s1 + $0x990] sm:$0xff]
  %v396 = vld [vmem:[%s1 + $0x998] sm:$0xff]
  %v397 = vld [vmem:[%s1 + $0x9a0] sm:$0xff]
  %v398 = vld [vmem:[%s1 + $0x9a8] sm:$0xff]
  %v399 = vld [vmem:[%s1 + $0x9b0] sm:$0xff]
  %v400 = vld [vmem:[%s1 + $0x9b8] sm:$0xff]
  %v401 = vld [vmem:[%s1 + $0x9c0] sm:$0xff]
  %v402 = vld [vmem:[%s1 + $0x9c8] sm:$0xff]
  %v403 = vld [vmem:[%s1 + $0x9d0] sm:$0xff]
  %v404 = vld [vmem:[%s1 + $0x9d8] sm:$0xff]
  %v405 = vld [vmem:[%s1 + $0x9e0] sm:$0xff]
  %v406 = vld [vmem:[%s1 + $0x9e8] sm:$0xff]
  %v407 = vld [vmem:[%s1 + $0x9f0] sm:$0xff]
  %v408 = vld [vmem:[%s1 + $0x9f8] sm:$0xff]
  %v409 = vld [vmem:[%s1 + $0xa00] sm:$0xff]
  %v410 = vld [vmem:[%s1 + $0xa08] sm:$0xff]
  %v411 = vld [vmem:[%s1 + $0xa10] sm:$0xff]
  %v412 = vld [vmem:[%s1 + $0xa18] sm:$0xff]
  %v413 = vld [vmem:[%s1 + $0xa20] sm:$0xff]
  %v414 = vld [vmem:[%s1 + $0xa28] sm:$0xff]
  %v415 = vld [vmem:[%s1 + $0xa30] sm:$0xff]
  %v416 = vld [vmem:[%s1 + $0xa38] sm:$0xff]
  %v417 = vld [vmem:[%s1 + $0xa40] sm:$0xff]
  %v418 = vld [vmem:[%s1 + $0xa48] sm:$0xff]
  %v419 = vld [vmem:[%s1 + $0xa50] sm:$0xff]
  %v420 = vld [vmem:[%s1 + $0xa58] sm:$0xff]
  %v421 = vld [vmem:[%s1 + $0xa60] sm:$0xff]
  %v422 = vld [vmem:[%s1 + $0xa68] sm:$0xff]
  %v423 = vld [vmem:[%s1 + $0xa70] sm:$0xff]
  %v424 = vld [vmem:[%s1 + $0xa78] sm:$0xff]
  %v425 = vld [vmem:[%s1 + $0xa80] sm:$0xff]
  %v426 = vld [vmem:[%s1 + $0xa88] sm:$0xff]
  %v427 = vld [vmem:[%s1 + $0xa90] sm:$0xff]
  %v428 = vld [vmem:[%s1 + $0xa98] sm:$0xff]
  %v429 = vld [vmem:[%s1 + $0xaa0] sm:$0xff]
  %v430 = vld [vmem:[%s1 + $0xaa8] sm:$0xff]
  %v431 = vld [vmem:[%s1 + $0xab0] sm:$0xff]
  %v432 = vld [vmem:[%s1 + $0xab8] sm:$0xff]
  %v433 = vld [vmem:[%s1 + $0xac0] sm:$0xff]
  %v434 = vld [vmem:[%s1 + $0xac8] sm:$0xff]
  %v435 = vld [vmem:[%s1 + $0xad0] sm:$0xff]
  %v436 = vld [vmem:[%s1 + $0xad8] sm:$0xff]
  %v437 = vld [vmem:[%s1 + $0xae0] sm:$0xff]
  %v438 = vld [vmem:[%s1 + $0xae8] sm:$0xff]
  %v439 = vld [vmem:[%s1 + $0xaf0] sm:$0xff]
  %v440 = vld [vmem:[%s1 + $0xaf8] sm:$0xff]
  %v441 = vld [vmem:[%s1 + $0xb00] sm:$0xff]
  %v442 = vld [vmem:[%s1 + $0xb08] sm:$0xff]
  %v443 = vld [vmem:[%s1 + $0xb10] sm:$0xff]
  %v444 = vld [vmem:[%s1 + $0xb18] sm:$0xff]
  %v445 = vld [vmem:[%s1 + $0xb20] sm:$0xff]
  %v446 = vld [vmem:[%s1 + $0xb28] sm:$0xff]
  %v447 = vld [vmem:[%s1 + $0xb30] sm:$0xff]
  %v448 = vld [vmem:[%s1 + $0xb38] sm:$0xff]
  %v449 = vld [vmem:[%s1 + $0xb40] sm:$0xff]
  %v450 = vld [vmem:[%s1 + $0xb48] sm:$0xff]
  %v451 = vld [vmem:[%s1 + $0xb50] sm:$0xff]
  %v452 = vld [vmem:[%s1 + $0xb58] sm:$0xff]
  %v453 = vld [vmem:[%s1 + $0xb60] sm:$0xff]
  %v454 = vld [vmem:[%s1 + $0xb68] sm:$0xff]
  %v455 = vld [vmem:[%s1 + $0xb70] sm:$0xff]
  %v456 = vld [vmem:[%s1 + $0xb78] sm:$0xff]
  %v457 = vld [vmem:[%s1 + $0xb80] sm:$0xff]
  %v458 = vld [vmem:[%s1 + $0xb88] sm:$0xff]
  %v459 = vld [vmem:[%s1 + $0xb90] sm:$0xff]
  %v460 = vld [vmem:[%s1 + $0xb98] sm:$0xff]
  %v461 = vld [vmem:[%s1 + $0xba0] sm:$0xff]
  %v462 = vld [vmem:[%s1 + $0xba8] sm:$0xff]
  %v463 = vld [vmem:[%s1 + $0xbb0] sm:$0xff]
  %v464 = vld [vmem:[%s1 + $0xbb8] sm:$0xff]
  %v465 = vld [vmem:[%s1 + $0xbc0] sm:$0xff]
  %v466 = vld [vmem:[%s1 + $0xbc8] sm:$0xff]
  %v467 = vld [vmem:[%s1 + $0xbd0] sm:$0xff]
  %v468 = vld [vmem:[%s1 + $0xbd8] sm:$0xff]
  %v469 = vld [vmem:[%s1 + $0xbe0] sm:$0xff]
  %v470 = vld [vmem:[%s1 + $0xbe8] sm:$0xff]
  %v471 = vld [vmem:[%s1 + $0xbf0] sm:$0xff]
  %v472 = vld [vmem:[%s1 + $0xbf8] sm:$0xff]
  %v473 = vld [vmem:[%s1 + $0xc00] sm:$0xff]
  %v474 = vld [vmem:[%s1 + $0xc08] sm:$0xff]
  %v475 = vld [vmem:[%s1 + $0xc10] sm:$0xff]
  %v476 = vld [vmem:[%s1 + $0xc18] sm:$0xff]
  %v477 = vld [vmem:[%s1 + $0xc20] sm:$0xff]
  %v478 = vld [vmem:[%s1 + $0xc28] sm:$0xff]
  %v479 = vld [vmem:[%s1 + $0xc30] sm:$0xff]
  %v480 = vld [vmem:[%s1 + $0xc38] sm:$0xff]
  %v481 = vld [vmem:[%s1 + $0xc40] sm:$0xff]
  %v482 = vld [vmem:[%s1 + $0xc48] sm:$0xff]
  %v483 = vld [vmem:[%s1 + $0xc50] sm:$0xff]
  %v484 = vld [vmem:[%s1 + $0xc58] sm:$0xff]
  %v485 = vld [vmem:[%s1 + $0xc60] sm:$0xff]
  %v486 = vld [vmem:[%s1 + $0xc68] sm:$0xff]
  %v487 = vld [vmem:[%s1 + $0xc70] sm:$0xff]
  %v488 = vld [vmem:[%s1 + $0xc78] sm:$0xff]
  %v489 = vld [vmem:[%s1 + $0xc80] sm:$0xff]
  %v490 = vld [vmem:[%s1 + $0xc88] sm:$0xff]
  %v491 = vld [vmem:[%s1 + $0xc90] sm:$0xff]
  %v492 = vld [vmem:[%s1 + $0xc98] sm:$0xff]
  %v493 = vld [vmem:[%s1 + $0xca0] sm:$0xff]
  %v494 = vld [vmem:[%s1 + $0xca8] sm:$0xff]
  %v495 = vld [vmem:[%s1 + $0xcb0] sm:$0xff]
  %v496 = vld [vmem:[%s1 + $0xcb8] sm:$0xff]
  %v497 = vld [vmem:[%s1 + $0xcc0] sm:$0xff]
  %v498 = vld [vmem:[%s1 + $0xcc8] sm:$0xff]
  %v499 = vld [vmem:[%s1 + $0xcd0] sm:$0xff]
  %v500 = vld [vmem:[%s1 + $0xcd8] sm:$0xff]
  %v501 = vld [vmem:[%s1 + $0xce0] sm:$0xff]
  %v502 = vld [vmem:[%s1 + $0xce8] sm:$0xff]
  %v503 = vld [vmem:[%s1 + $0xcf0] sm:$0xff]
  %v504 = vld [vmem:[%s1 + $0xcf8] sm:$0xff]
  %v505 = vld [vmem:[%s1 + $0xd00] sm:$0xff]
  %v506 = vld [vmem:[%s1 + $0xd08] sm:$0xff]
  %v507 = vld [vmem:[%s1 + $0xd10] sm:$0xff]
  %v508 = vld [vmem:[%s1 + $0xd18] sm:$0xff]
  %v509 = vld [vmem:[%s1 + $0xd20] sm:$0xff]
  %v510 = vld [vmem:[%s1 + $0xd28] sm:$0xff]
  %v511 = vld [vmem:[%s1 + $0xd30] sm:$0xff]
  %v512 = vld [vmem:[%s1 + $0xd38] sm:$0xff]
  %v513 = vld [vmem:[%s1 + $0xd40] sm:$0xff]
  %v514 = vld [vmem:[%s1 + $0xd48] sm:$0xff]
  %v515 = vld [vmem:[%s1 + $0xd50] sm:$0xff]
  %v516 = vld [vmem:[%s1 + $0xd58] sm:$0xff]
  %v517 = vld [vmem:[%s1 + $0xd60] sm:$0xff]
  %v518 = vld [vmem:[%s1 + $0xd68] sm:$0xff]
  %v519 = vld [vmem:[%s1 + $0xd70] sm:$0xff]
  %v520 = vld [vmem:[%s1 + $0xd78] sm:$0xff]
  %v521 = vld [vmem:[%s1 + $0xd80] sm:$0xff]
  %v522 = vld [vmem:[%s1 + $0xd88] sm:$0xff]
  %v523 = vld [vmem:[%s1 + $0xd90] sm:$0xff]
  %v524 = vld [vmem:[%s1 + $0xd98] sm:$0xff]
  %v525 = vld [vmem:[%s1 + $0xda0] sm:$0xff]
  %v526 = vld [vmem:[%s1 + $0xda8] sm:$0xff]
  %v527 = vld [vmem:[%s1 + $0xdb0] sm:$0xff]
  %v528 = vld [vmem:[%s1 + $0xdb8] sm:$0xff]
  %v529 = vld [vmem:[%s1 + $0xdc0] sm:$0xff]
  %v530 = vld [vmem:[%s1 + $0xdc8] sm:$0xff]
  %v531 = vld [vmem:[%s1 + $0xdd0] sm:$0xff]
  %v532 = vld [vmem:[%s1 + $0xdd8] sm:$0xff]
  %v533 = vld [vmem:[%s1 + $0xde0] sm:$0xff]
  %v534 = vld [vmem:[%s1 + $0xde8] sm:$0xff]
  %v535 = vld [vmem:[%s1 + $0xdf0] sm:$0xff]
  %v536 = vld [vmem:[%s1 + $0xdf8] sm:$0xff]
  %v537 = vld [vmem:[%s1 + $0xe00] sm:$0xff]
  %v538 = vld [vmem:[%s1 + $0xe08] sm:$0xff]
  %v539 = vld [vmem:[%s1 + $0xe10] sm:$0xff]
  %v540 = vld [vmem:[%s1 + $0xe18] sm:$0xff]
  %v541 = vld [vmem:[%s1 + $0xe20] sm:$0xff]
  %v542 = vld [vmem:[%s1 + $0xe28] sm:$0xff]
  %v543 = vld [vmem:[%s1 + $0xe30] sm:$0xff]
  %v544 = vld [vmem:[%s1 + $0xe38] sm:$0xff]
  %v545 = vld [vmem:[%s1 + $0xe40] sm:$0xff]
  %v546 = vld [vmem:[%s1 + $0xe48] sm:$0xff]
  %v547 = vld [vmem:[%s1 + $0xe50] sm:$0xff]
  %v548 = vld [vmem:[%s1 + $0xe58] sm:$0xff]
  %v549 = vld [vmem:[%s1 + $0xe60] sm:$0xff]
  %v550 = vld [vmem:[%s1 + $0xe68] sm:$0xff]
  %v551 = vld [vmem:[%s1 + $0xe70] sm:$0xff]
  %v552 = vld [vmem:[%s1 + $0xe78] sm:$0xff]
  %v553 = vld [vmem:[%s1 + $0xe80] sm:$0xff]
  %v554 = vld [vmem:[%s1 + $0xe88] sm:$0xff]
  %v555 = vld [vmem:[%s1 + $0xe90] sm:$0xff]
  %v556 = vld [vmem:[%s1 + $0xe98] sm:$0xff]
  %v557 = vld [vmem:[%s1 + $0xea0] sm:$0xff]
  %v558 = vld [vmem:[%s1 + $0xea8] sm:$0xff]
  %v559 = vld [vmem:[%s1 + $0xeb0] sm:$0xff]
  %v560 = vld [vmem:[%s1 + $0xeb8] sm:$0xff]
  %v561 = vld [vmem:[%s1 + $0xec0] sm:$0xff]
  %v562 = vld [vmem:[%s1 + $0xec8] sm:$0xff]
  %v563 = vld [vmem:[%s1 + $0xed0] sm:$0xff]
  %v564 = vld [vmem:[%s1 + $0xed8] sm:$0xff]
  %v565 = vld [vmem:[%s1 + $0xee0] sm:$0xff]
  %v566 = vld [vmem:[%s1 + $0xee8] sm:$0xff]
  %v567 = vld [vmem:[%s1 + $0xef0] sm:$0xff]
  %v568 = vld [vmem:[%s1 + $0xef8] sm:$0xff]
  %v569 = vld [vmem:[%s1 + $0xf00] sm:$0xff]
  %v570 = vld [vmem:[%s1 + $0xf08] sm:$0xff]
  %v571 = vld [vmem:[%s1 + $0xf10] sm:$0xff]
  %v572 = vld [vmem:[%s1 + $0xf18] sm:$0xff]
  %v573 = vld [vmem:[%s1 + $0xf20] sm:$0xff]
  %v574 = vld [vmem:[%s1 + $0xf28] sm:$0xff]
  %v575 = vld [vmem:[%s1 + $0xf30] sm:$0xff]
  %v576 = vld [vmem:[%s1 + $0xf38] sm:$0xff]
  %v577 = vld [vmem:[%s1 + $0xf40] sm:$0xff]
  %v578 = vld [vmem:[%s1 + $0xf48] sm:$0xff]
  %v579 = vld [vmem:[%s1 + $0xf50] sm:$0xff]
  %v580 = vld [vmem:[%s1 + $0xf58] sm:$0xff]
  %v581 = vld [vmem:[%s1 + $0xf60] sm:$0xff]
  %v582 = vld [vmem:[%s1 + $0xf68] sm:$0xff]
  %v583 = vld [vmem:[%s1 + $0xf70] sm:$0xff]
  %v584 = vld [vmem:[%s1 + $0xf78] sm:$0xff]
  %v585 = vld [vmem:[%s1 + $0xf80] sm:$0xff]
  %v586 = vld [vmem:[%s1 + $0xf88] sm:$0xff]
  %v587 = vld [vmem:[%s1 + $0xf90] sm:$0xff]
  %v588 = vld [vmem:[%s1 + $0xf98] sm:$0xff]
  %v589 = vld [vmem:[%s1 + $0xfa0] sm:$0xff]
  %v590 = vld [vmem:[%s1 + $0xfa8] sm:$0xff]
  %v591 = vld [vmem:[%s1 + $0xfb0] sm:$0xff]
  %v592 = vld [vmem:[%s1 + $0xfb8] sm:$0xff]
  %v593 = vld [vmem:[%s1 + $0xfc0] sm:$0xff]
  %v594 = vld [vmem:[%s1 + $0xfc8] sm:$0xff]
  %v595 = vld [vmem:[%s1 + $0xfd0] sm:$0xff]
  %v596 = vld [vmem:[%s1 + $0xfd8] sm:$0xff]
  %v597 = vld [vmem:[%s1 + $0xfe0] sm:$0xff]
  %v598 = vld [vmem:[%s1 + $0xfe8] sm:$0xff]
  %v599 = vld [vmem:[%s1 + $0xff0] sm:$0xff]
  %v600 = vld [vmem:[%s1 + $0xff8] sm:$0xff]
  %v601 = vld [vmem:[%s1 + $0x1000] sm:$0xff]
  %v602 = vld [vmem:[%s1 + $0x1008] sm:$0xff]
  %v603 = vld [vmem:[%s1 + $0x1010] sm:$0xff]
  %v604 = vld [vmem:[%s1 + $0x1018] sm:$0xff]
  %v605 = vld [vmem:[%s1 + $0x1020] sm:$0xff]
  %v606 = vld [vmem:[%s1 + $0x1028] sm:$0xff]
  %v607 = vld [vmem:[%s1 + $0x1030] sm:$0xff]
  %v608 = vld [vmem:[%s1 + $0x1038] sm:$0xff]
  %v609 = vld [vmem:[%s1 + $0x1040] sm:$0xff]
  %v610 = vld [vmem:[%s1 + $0x1048] sm:$0xff]
  %v611 = vld [vmem:[%s1 + $0x1050] sm:$0xff]
  %v612 = vld [vmem:[%s1 + $0x1058] sm:$0xff]
  %v613 = vld [vmem:[%s1 + $0x1060] sm:$0xff]
  %v614 = vld [vmem:[%s1 + $0x1068] sm:$0xff]
  %v615 = vld [vmem:[%s1 + $0x1070] sm:$0xff]
  %v616 = vld [vmem:[%s1 + $0x1078] sm:$0xff]
  %v617 = vld [vmem:[%s1 + $0x1080] sm:$0xff]
  %v618 = vld [vmem:[%s1 + $0x1088] sm:$0xff]
  %v619 = vld [vmem:[%s1 + $0x1090] sm:$0xff]
  %v620 = vld [vmem:[%s1 + $0x1098] sm:$0xff]
  %v621 = vld [vmem:[%s1 + $0x10a0] sm:$0xff]
  %v622 = vld [vmem:[%s1 + $0x10a8] sm:$0xff]
  %v623 = vld [vmem:[%s1 + $0x10b0] sm:$0xff]
  %v624 = vld [vmem:[%s1 + $0x10b8] sm:$0xff]
  %v625 = vld [vmem:[%s1 + $0x10c0] sm:$0xff]
  %v626 = vld [vmem:[%s1 + $0x10c8] sm:$0xff]
  %v627 = vld [vmem:[%s1 + $0x10d0] sm:$0xff]
  %v628 = vld [vmem:[%s1 + $0x10d8] sm:$0xff]
  %v629 = vld [vmem:[%s1 + $0x10e0] sm:$0xff]
  %v630 = vld [vmem:[%s1 + $0x10e8] sm:$0xff]
  %v631 = vld [vmem:[%s1 + $0x10f0] sm:$0xff]
  %v632 = vld [vmem:[%s1 + $0x10f8] sm:$0xff]
  %v633 = vld [vmem:[%s1 + $0x1100] sm:$0xff]
  %v634 = vld [vmem:[%s1 + $0x1108] sm:$0xff]
  %v635 = vld [vmem:[%s1 + $0x1110] sm:$0xff]
  %v636 = vld [vmem:[%s1 + $0x1118] sm:$0xff]
  %v637 = vld [vmem:[%s1 + $0x1120] sm:$0xff]
  %v638 = vld [vmem:[%s1 + $0x1128] sm:$0xff]
  %v639 = vld [vmem:[%s1 + $0x1130] sm:$0xff]
  %v640 = vld [vmem:[%s1 + $0x1138] sm:$0xff]
  %v641 = vld [vmem:[%s1 + $0x1140] sm:$0xff]
  %v642 = vld [vmem:[%s1 + $0x1148] sm:$0xff]
  %v643 = vld [vmem:[%s1 + $0x1150] sm:$0xff]
  %v644 = vld [vmem:[%s1 + $0x1158] sm:$0xff]
  %v645 = vld [vmem:[%s1 + $0x1160] sm:$0xff]
  %v646 = vld [vmem:[%s1 + $0x1168] sm:$0xff]
  %v647 = vld [vmem:[%s1 + $0x1170] sm:$0xff]
  %v648 = vld [vmem:[%s1 + $0x1178] sm:$0xff]
  %v649 = vld [vmem:[%s1 + $0x1180] sm:$0xff]
  %v650 = vld [vmem:[%s1 + $0x1188] sm:$0xff]
  %v651 = vld [vmem:[%s1 + $0x1190] sm:$0xff]
  %v652 = vld [vmem:[%s1 + $0x1198] sm:$0xff]
  %v653 = vld [vmem:[%s1 + $0x11a0] sm:$0xff]
  %v654 = vld [vmem:[%s1 + $0x11a8] sm:$0xff]
  %v655 = vld [vmem:[%s1 + $0x11b0] sm:$0xff]
  %v656 = vld [vmem:[%s1 + $0x11b8] sm:$0xff]
  %v657 = vld [vmem:[%s1 + $0x11c0] sm:$0xff]
  %v658 = vld [vmem:[%s1 + $0x11c8] sm:$0xff]
  %v659 = vld [vmem:[%s1 + $0x11d0] sm:$0xff]
  %v660 = vld [vmem:[%s1 + $0x11d8] sm:$0xff]
  %v661 = vld [vmem:[%s1 + $0x11e0] sm:$0xff]
  %v662 = vld [vmem:[%s1 + $0x11e8] sm:$0xff]
  %v663 = vld [vmem:[%s1 + $0x11f0] sm:$0xff]
  %v664 = vld [vmem:[%s1 + $0x11f8] sm:$0xff]
  %665 = vmatpush.msra.mxu0 %v119
  %666 = vmatpush.msra.mxu0 %v117
  %667 = vmatpush.msra.mxu0 %v115
  %668 = vmatpush.msra.mxu0 %v113
  %669 = vmatpush.msra.mxu0 %v111
  %670 = vmatpush.msra.mxu0 %v109
  %671 = vmatpush.msra.mxu0 %v107
  %672 = vmatpush.msra.mxu0 %v105
  %673 = vmatpush.msra.mxu0 %v103
  %674 = vmatpush.msra.mxu0 %v101
  %675 = vmatpush.msra.mxu0 %v99
  %676 = vmatpush.msra.mxu0 %v97
  %677 = vmatpush.msra.mxu0 %v95
  %678 = vmatpush.msra.mxu0 %v93
  %679 = vmatpush.msra.mxu0 %v91
  %680 = vmatpush.msra.mxu0 %v89
  %681 = vmatmul.f32.gmra.mxu0 %v17
  %v682 = vpop.f32.mrf.mxu0
  %v683 = vadd.f32 0.0, %v682
  %684 = vmatmul.f32.gmra.mxu0 %v35
  %v685 = vpop.f32.mrf.mxu0
  %v686 = vadd.f32 0.0, %v685
  %687 = vmatmul.f32.gmra.mxu0 %v53
  %v688 = vpop.f32.mrf.mxu0
  %v689 = vadd.f32 0.0, %v688
  %690 = vmatmul.f32.gmra.mxu0 %v71
  %v691 = vpop.f32.mrf.mxu0
  %v692 = vadd.f32 0.0, %v691
  %693 = vdwg.mxu0
  %694 = vmatpush.msra.mxu0 %v151
  %695 = vmatpush.msra.mxu0 %v149
  %696 = vmatpush.msra.mxu0 %v147
  %697 = vmatpush.msra.mxu0 %v145
  %698 = vmatpush.msra.mxu0 %v143
  %699 = vmatpush.msra.mxu0 %v141
  %700 = vmatpush.msra.mxu0 %v139
  %701 = vmatpush.msra.mxu0 %v137
  %702 = vmatpush.msra.mxu0 %v135
  %703 = vmatpush.msra.mxu0 %v133
  %704 = vmatpush.msra.mxu0 %v131
  %705 = vmatpush.msra.mxu0 %v129
  %706 = vmatpush.msra.mxu0 %v127
  %707 = vmatpush.msra.mxu0 %v125
  %708 = vmatpush.msra.mxu0 %v123
  %709 = vmatpush.msra.mxu0 %v121
  %710 = vmatmul.f32.gmra.mxu0 %v18
  %v711 = vpop.f32.mrf.mxu0
  %v712 = vadd.f32 %v683, %v711
  %713 = vmatmul.f32.gmra.mxu0 %v36
  %v714 = vpop.f32.mrf.mxu0
  %v715 = vadd.f32 %v686, %v714
  %716 = vmatmul.f32.gmra.mxu0 %v54
  %v717 = vpop.f32.mrf.mxu0
  %v718 = vadd.f32 %v689, %v717
  %719 = vmatmul.f32.gmra.mxu0 %v72
  %v720 = vpop.f32.mrf.mxu0
  %v721 = vadd.f32 %v692, %v720
  %722 = vdwg.mxu0
  %723 = vmatpush.msra.mxu0 %v183
  %724 = vmatpush.msra.mxu0 %v181
  %725 = vmatpush.msra.mxu0 %v179
  %726 = vmatpush.msra.mxu0 %v177
  %727 = vmatpush.msra.mxu0 %v175
  %728 = vmatpush.msra.mxu0 %v173
  %729 = vmatpush.msra.mxu0 %v171
  %730 = vmatpush.msra.mxu0 %v169
  %731 = vmatpush.msra.mxu0 %v167
  %732 = vmatpush.msra.mxu0 %v165
  %733 = vmatpush.msra.mxu0 %v163
  %734 = vmatpush.msra.mxu0 %v161
  %735 = vmatpush.msra.mxu0 %v159
  %736 = vmatpush.msra.mxu0 %v157
  %737 = vmatpush.msra.mxu0 %v155
  %738 = vmatpush.msra.mxu0 %v153
  %739 = vmatmul.f32.gmra.mxu0 %v19
  %v740 = vpop.f32.mrf.mxu0
  %v741 = vadd.f32 %v712, %v740
  %742 = vmatmul.f32.gmra.mxu0 %v37
  %v743 = vpop.f32.mrf.mxu0
  %v744 = vadd.f32 %v715, %v743
  %745 = vmatmul.f32.gmra.mxu0 %v55
  %v746 = vpop.f32.mrf.mxu0
  %v747 = vadd.f32 %v718, %v746
  %748 = vmatmul.f32.gmra.mxu0 %v73
  %v749 = vpop.f32.mrf.mxu0
  %v750 = vadd.f32 %v721, %v749
  %751 = vdwg.mxu0
  %752 = vmatpush.msra.mxu0 %v215
  %753 = vmatpush.msra.mxu0 %v213
  %754 = vmatpush.msra.mxu0 %v211
  %755 = vmatpush.msra.mxu0 %v209
  %756 = vmatpush.msra.mxu0 %v207
  %757 = vmatpush.msra.mxu0 %v205
  %758 = vmatpush.msra.mxu0 %v203
  %759 = vmatpush.msra.mxu0 %v201
  %760 = vmatpush.msra.mxu0 %v199
  %761 = vmatpush.msra.mxu0 %v197
  %762 = vmatpush.msra.mxu0 %v195
  %763 = vmatpush.msra.mxu0 %v193
  %764 = vmatpush.msra.mxu0 %v191
  %765 = vmatpush.msra.mxu0 %v189
  %766 = vmatpush.msra.mxu0 %v187
  %767 = vmatpush.msra.mxu0 %v185
  %768 = vmatmul.f32.gmra.mxu0 %v20
  %v769 = vpop.f32.mrf.mxu0
  %v770 = vadd.f32 %v741, %v769
  %771 = vmatmul.f32.gmra.mxu0 %v38
  %v772 = vpop.f32.mrf.mxu0
  %v773 = vadd.f32 %v744, %v772
  %774 = vmatmul.f32.gmra.mxu0 %v56
  %v775 = vpop.f32.mrf.mxu0
  %v776 = vadd.f32 %v747, %v775
  %777 = vmatmul.f32.gmra.mxu0 %v74
  %v778 = vpop.f32.mrf.mxu0
  %v779 = vadd.f32 %v750, %v778
  %780 = vdwg.mxu0
  %781 = vmatpush.msra.mxu0 %v247
  %782 = vmatpush.msra.mxu0 %v245
  %783 = vmatpush.msra.mxu0 %v243
  %784 = vmatpush.msra.mxu0 %v241
  %785 = vmatpush.msra.mxu0 %v239
  %786 = vmatpush.msra.mxu0 %v237
  %787 = vmatpush.msra.mxu0 %v235
  %788 = vmatpush.msra.mxu0 %v233
  %789 = vmatpush.msra.mxu0 %v231
  %790 = vmatpush.msra.mxu0 %v229
  %791 = vmatpush.msra.mxu0 %v227
  %792 = vmatpush.msra.mxu0 %v225
  %793 = vmatpush.msra.mxu0 %v223
  %794 = vmatpush.msra.mxu0 %v221
  %795 = vmatpush.msra.mxu0 %v219
  %796 = vmatpush.msra.mxu0 %v217
  %797 = vmatmul.f32.gmra.mxu0 %v21
  %v798 = vpop.f32.mrf.mxu0
  %v799 = vadd.f32 %v770, %v798
  %800 = vmatmul.f32.gmra.mxu0 %v39
  %v801 = vpop.f32.mrf.mxu0
  %v802 = vadd.f32 %v773, %v801
  %803 = vmatmul.f32.gmra.mxu0 %v57
  %v804 = vpop.f32.mrf.mxu0
  %v805 = vadd.f32 %v776, %v804
  %806 = vmatmul.f32.gmra.mxu0 %v75
  %v807 = vpop.f32.mrf.mxu0
  %v808 = vadd.f32 %v779, %v807
  %809 = vdwg.mxu0
  %810 = vmatpush.msra.mxu0 %v279
  %811 = vmatpush.msra.mxu0 %v277
  %812 = vmatpush.msra.mxu0 %v275
  %813 = vmatpush.msra.mxu0 %v273
  %814 = vmatpush.msra.mxu0 %v271
  %815 = vmatpush.msra.mxu0 %v269
  %816 = vmatpush.msra.mxu0 %v267
  %817 = vmatpush.msra.mxu0 %v265
  %818 = vmatpush.msra.mxu0 %v263
  %819 = vmatpush.msra.mxu0 %v261
  %820 = vmatpush.msra.mxu0 %v259
  %821 = vmatpush.msra.mxu0 %v257
  %822 = vmatpush.msra.mxu0 %v255
  %823 = vmatpush.msra.mxu0 %v253
  %824 = vmatpush.msra.mxu0 %v251
  %825 = vmatpush.msra.mxu0 %v249
  %826 = vmatmul.f32.gmra.mxu0 %v22
  %v827 = vpop.f32.mrf.mxu0
  %v828 = vadd.f32 %v799, %v827
  %829 = vmatmul.f32.gmra.mxu0 %v40
  %v830 = vpop.f32.mrf.mxu0
  %v831 = vadd.f32 %v802, %v830
  %832 = vmatmul.f32.gmra.mxu0 %v58
  %v833 = vpop.f32.mrf.mxu0
  %v834 = vadd.f32 %v805, %v833
  %835 = vmatmul.f32.gmra.mxu0 %v76
  %v836 = vpop.f32.mrf.mxu0
  %v837 = vadd.f32 %v808, %v836
  %838 = vdwg.mxu0
  %839 = vmatpush.msra.mxu0 %v311
  %840 = vmatpush.msra.mxu0 %v309
  %841 = vmatpush.msra.mxu0 %v307
  %842 = vmatpush.msra.mxu0 %v305
  %843 = vmatpush.msra.mxu0 %v303
  %844 = vmatpush.msra.mxu0 %v301
  %845 = vmatpush.msra.mxu0 %v299
  %846 = vmatpush.msra.mxu0 %v297
  %847 = vmatpush.msra.mxu0 %v295
  %848 = vmatpush.msra.mxu0 %v293
  %849 = vmatpush.msra.mxu0 %v291
  %850 = vmatpush.msra.mxu0 %v289
  %851 = vmatpush.msra.mxu0 %v287
  %852 = vmatpush.msra.mxu0 %v285
  %853 = vmatpush.msra.mxu0 %v283
  %854 = vmatpush.msra.mxu0 %v281
  %855 = vmatmul.f32.gmra.mxu0 %v23
  %v856 = vpop.f32.mrf.mxu0
  %v857 = vadd.f32 %v828, %v856
  %858 = vmatmul.f32.gmra.mxu0 %v41
  %v859 = vpop.f32.mrf.mxu0
  %v860 = vadd.f32 %v831, %v859
  %861 = vmatmul.f32.gmra.mxu0 %v59
  %v862 = vpop.f32.mrf.mxu0
  %v863 = vadd.f32 %v834, %v862
  %864 = vmatmul.f32.gmra.mxu0 %v77
  %v865 = vpop.f32.mrf.mxu0
  %v866 = vadd.f32 %v837, %v865
  %867 = vdwg.mxu0
  %868 = vmatpush.msra.mxu0 %v343
  %869 = vmatpush.msra.mxu0 %v341
  %870 = vmatpush.msra.mxu0 %v339
  %871 = vmatpush.msra.mxu0 %v337
  %872 = vmatpush.msra.mxu0 %v335
  %873 = vmatpush.msra.mxu0 %v333
  %874 = vmatpush.msra.mxu0 %v331
  %875 = vmatpush.msra.mxu0 %v329
  %876 = vmatpush.msra.mxu0 %v327
  %877 = vmatpush.msra.mxu0 %v325
  %878 = vmatpush.msra.mxu0 %v323
  %879 = vmatpush.msra.mxu0 %v321
  %880 = vmatpush.msra.mxu0 %v319
  %881 = vmatpush.msra.mxu0 %v317
  %882 = vmatpush.msra.mxu0 %v315
  %883 = vmatpush.msra.mxu0 %v313
  %884 = vmatmul.f32.gmra.mxu0 %v24
  %v885 = vpop.f32.mrf.mxu0
  %v886 = vadd.f32 %v857, %v885
  %887 = vmatmul.f32.gmra.mxu0 %v42
  %v888 = vpop.f32.mrf.mxu0
  %v889 = vadd.f32 %v860, %v888
  %890 = vmatmul.f32.gmra.mxu0 %v60
  %v891 = vpop.f32.mrf.mxu0
  %v892 = vadd.f32 %v863, %v891
  %893 = vmatmul.f32.gmra.mxu0 %v78
  %v894 = vpop.f32.mrf.mxu0
  %v895 = vadd.f32 %v866, %v894
  %896 = vdwg.mxu0
  %897 = vmatpush.msra.mxu0 %v375
  %898 = vmatpush.msra.mxu0 %v373
  %899 = vmatpush.msra.mxu0 %v371
  %900 = vmatpush.msra.mxu0 %v369
  %901 = vmatpush.msra.mxu0 %v367
  %902 = vmatpush.msra.mxu0 %v365
  %903 = vmatpush.msra.mxu0 %v363
  %904 = vmatpush.msra.mxu0 %v361
  %905 = vmatpush.msra.mxu0 %v359
  %906 = vmatpush.msra.mxu0 %v357
  %907 = vmatpush.msra.mxu0 %v355
  %908 = vmatpush.msra.mxu0 %v353
  %909 = vmatpush.msra.mxu0 %v351
  %910 = vmatpush.msra.mxu0 %v349
  %911 = vmatpush.msra.mxu0 %v347
  %912 = vmatpush.msra.mxu0 %v345
  %913 = vmatmul.f32.gmra.mxu0 %v25
  %v914 = vpop.f32.mrf.mxu0
  %v915 = vadd.f32 %v886, %v914
  %916 = vmatmul.f32.gmra.mxu0 %v43
  %v917 = vpop.f32.mrf.mxu0
  %v918 = vadd.f32 %v889, %v917
  %919 = vmatmul.f32.gmra.mxu0 %v61
  %v920 = vpop.f32.mrf.mxu0
  %v921 = vadd.f32 %v892, %v920
  %922 = vmatmul.f32.gmra.mxu0 %v79
  %v923 = vpop.f32.mrf.mxu0
  %v924 = vadd.f32 %v895, %v923
  %925 = vdwg.mxu0
  %926 = vmatpush.msra.mxu0 %v407
  %927 = vmatpush.msra.mxu0 %v405
  %928 = vmatpush.msra.mxu0 %v403
  %929 = vmatpush.msra.mxu0 %v401
  %930 = vmatpush.msra.mxu0 %v399
  %931 = vmatpush.msra.mxu0 %v397
  %932 = vmatpush.msra.mxu0 %v395
  %933 = vmatpush.msra.mxu0 %v393
  %934 = vmatpush.msra.mxu0 %v391
  %935 = vmatpush.msra.mxu0 %v389
  %936 = vmatpush.msra.mxu0 %v387
  %937 = vmatpush.msra.mxu0 %v385
  %938 = vmatpush.msra.mxu0 %v383
  %939 = vmatpush.msra.mxu0 %v381
  %940 = vmatpush.msra.mxu0 %v379
  %941 = vmatpush.msra.mxu0 %v377
  %942 = vmatmul.f32.gmra.mxu0 %v26
  %v943 = vpop.f32.mrf.mxu0
  %v944 = vadd.f32 %v915, %v943
  %945 = vmatmul.f32.gmra.mxu0 %v44
  %v946 = vpop.f32.mrf.mxu0
  %v947 = vadd.f32 %v918, %v946
  %948 = vmatmul.f32.gmra.mxu0 %v62
  %v949 = vpop.f32.mrf.mxu0
  %v950 = vadd.f32 %v921, %v949
  %951 = vmatmul.f32.gmra.mxu0 %v80
  %v952 = vpop.f32.mrf.mxu0
  %v953 = vadd.f32 %v924, %v952
  %954 = vdwg.mxu0
  %955 = vmatpush.msra.mxu0 %v439
  %956 = vmatpush.msra.mxu0 %v437
  %957 = vmatpush.msra.mxu0 %v435
  %958 = vmatpush.msra.mxu0 %v433
  %959 = vmatpush.msra.mxu0 %v431
  %960 = vmatpush.msra.mxu0 %v429
  %961 = vmatpush.msra.mxu0 %v427
  %962 = vmatpush.msra.mxu0 %v425
  %963 = vmatpush.msra.mxu0 %v423
  %964 = vmatpush.msra.mxu0 %v421
  %965 = vmatpush.msra.mxu0 %v419
  %966 = vmatpush.msra.mxu0 %v417
  %967 = vmatpush.msra.mxu0 %v415
  %968 = vmatpush.msra.mxu0 %v413
  %969 = vmatpush.msra.mxu0 %v411
  %970 = vmatpush.msra.mxu0 %v409
  %971 = vmatmul.f32.gmra.mxu0 %v27
  %v972 = vpop.f32.mrf.mxu0
  %v973 = vadd.f32 %v944, %v972
  %974 = vmatmul.f32.gmra.mxu0 %v45
  %v975 = vpop.f32.mrf.mxu0
  %v976 = vadd.f32 %v947, %v975
  %977 = vmatmul.f32.gmra.mxu0 %v63
  %v978 = vpop.f32.mrf.mxu0
  %v979 = vadd.f32 %v950, %v978
  %980 = vmatmul.f32.gmra.mxu0 %v81
  %v981 = vpop.f32.mrf.mxu0
  %v982 = vadd.f32 %v953, %v981
  %983 = vdwg.mxu0
  %984 = vmatpush.msra.mxu0 %v471
  %985 = vmatpush.msra.mxu0 %v469
  %986 = vmatpush.msra.mxu0 %v467
  %987 = vmatpush.msra.mxu0 %v465
  %988 = vmatpush.msra.mxu0 %v463
  %989 = vmatpush.msra.mxu0 %v461
  %990 = vmatpush.msra.mxu0 %v459
  %991 = vmatpush.msra.mxu0 %v457
  %992 = vmatpush.msra.mxu0 %v455
  %993 = vmatpush.msra.mxu0 %v453
  %994 = vmatpush.msra.mxu0 %v451
  %995 = vmatpush.msra.mxu0 %v449
  %996 = vmatpush.msra.mxu0 %v447
  %997 = vmatpush.msra.mxu0 %v445
  %998 = vmatpush.msra.mxu0 %v443
  %999 = vmatpush.msra.mxu0 %v441
  %1000 = vmatmul.f32.gmra.mxu0 %v28
  %v1001 = vpop.f32.mrf.mxu0
  %v1002 = vadd.f32 %v973, %v1001
  %1003 = vmatmul.f32.gmra.mxu0 %v46
  %v1004 = vpop.f32.mrf.mxu0
  %v1005 = vadd.f32 %v976, %v1004
  %1006 = vmatmul.f32.gmra.mxu0 %v64
  %v1007 = vpop.f32.mrf.mxu0
  %v1008 = vadd.f32 %v979, %v1007
  %1009 = vmatmul.f32.gmra.mxu0 %v82
  %v1010 = vpop.f32.mrf.mxu0
  %v1011 = vadd.f32 %v982, %v1010
  %1012 = vdwg.mxu0
  %1013 = vmatpush.msra.mxu0 %v503
  %1014 = vmatpush.msra.mxu0 %v501
  %1015 = vmatpush.msra.mxu0 %v499
  %1016 = vmatpush.msra.mxu0 %v497
  %1017 = vmatpush.msra.mxu0 %v495
  %1018 = vmatpush.msra.mxu0 %v493
  %1019 = vmatpush.msra.mxu0 %v491
  %1020 = vmatpush.msra.mxu0 %v489
  %1021 = vmatpush.msra.mxu0 %v487
  %1022 = vmatpush.msra.mxu0 %v485
  %1023 = vmatpush.msra.mxu0 %v483
  %1024 = vmatpush.msra.mxu0 %v481
  %1025 = vmatpush.msra.mxu0 %v479
  %1026 = vmatpush.msra.mxu0 %v477
  %1027 = vmatpush.msra.mxu0 %v475
  %1028 = vmatpush.msra.mxu0 %v473
  %1029 = vmatmul.f32.gmra.mxu0 %v29
  %v1030 = vpop.f32.mrf.mxu0
  %v1031 = vadd.f32 %v1002, %v1030
  %1032 = vmatmul.f32.gmra.mxu0 %v47
  %v1033 = vpop.f32.mrf.mxu0
  %v1034 = vadd.f32 %v1005, %v1033
  %1035 = vmatmul.f32.gmra.mxu0 %v65
  %v1036 = vpop.f32.mrf.mxu0
  %v1037 = vadd.f32 %v1008, %v1036
  %1038 = vmatmul.f32.gmra.mxu0 %v83
  %v1039 = vpop.f32.mrf.mxu0
  %v1040 = vadd.f32 %v1011, %v1039
  %1041 = vdwg.mxu0
  %1042 = vmatpush.msra.mxu0 %v535
  %1043 = vmatpush.msra.mxu0 %v533
  %1044 = vmatpush.msra.mxu0 %v531
  %1045 = vmatpush.msra.mxu0 %v529
  %1046 = vmatpush.msra.mxu0 %v527
  %1047 = vmatpush.msra.mxu0 %v525
  %1048 = vmatpush.msra.mxu0 %v523
  %1049 = vmatpush.msra.mxu0 %v521
  %1050 = vmatpush.msra.mxu0 %v519
  %1051 = vmatpush.msra.mxu0 %v517
  %1052 = vmatpush.msra.mxu0 %v515
  %1053 = vmatpush.msra.mxu0 %v513
  %1054 = vmatpush.msra.mxu0 %v511
  %1055 = vmatpush.msra.mxu0 %v509
  %1056 = vmatpush.msra.mxu0 %v507
  %1057 = vmatpush.msra.mxu0 %v505
  %1058 = vmatmul.f32.gmra.mxu0 %v30
  %v1059 = vpop.f32.mrf.mxu0
  %v1060 = vadd.f32 %v1031, %v1059
  %1061 = vmatmul.f32.gmra.mxu0 %v48
  %v1062 = vpop.f32.mrf.mxu0
  %v1063 = vadd.f32 %v1034, %v1062
  %1064 = vmatmul.f32.gmra.mxu0 %v66
  %v1065 = vpop.f32.mrf.mxu0
  %v1066 = vadd.f32 %v1037, %v1065
  %1067 = vmatmul.f32.gmra.mxu0 %v84
  %v1068 = vpop.f32.mrf.mxu0
  %v1069 = vadd.f32 %v1040, %v1068
  %1070 = vdwg.mxu0
  %1071 = vmatpush.msra.mxu0 %v567
  %1072 = vmatpush.msra.mxu0 %v565
  %1073 = vmatpush.msra.mxu0 %v563
  %1074 = vmatpush.msra.mxu0 %v561
  %1075 = vmatpush.msra.mxu0 %v559
  %1076 = vmatpush.msra.mxu0 %v557
  %1077 = vmatpush.msra.mxu0 %v555
  %1078 = vmatpush.msra.mxu0 %v553
  %1079 = vmatpush.msra.mxu0 %v551
  %1080 = vmatpush.msra.mxu0 %v549
  %1081 = vmatpush.msra.mxu0 %v547
  %1082 = vmatpush.msra.mxu0 %v545
  %1083 = vmatpush.msra.mxu0 %v543
  %1084 = vmatpush.msra.mxu0 %v541
  %1085 = vmatpush.msra.mxu0 %v539
  %1086 = vmatpush.msra.mxu0 %v537
  %1087 = vmatmul.f32.gmra.mxu0 %v31
  %v1088 = vpop.f32.mrf.mxu0
  %v1089 = vadd.f32 %v1060, %v1088
  %1090 = vmatmul.f32.gmra.mxu0 %v49
  %v1091 = vpop.f32.mrf.mxu0
  %v1092 = vadd.f32 %v1063, %v1091
  %1093 = vmatmul.f32.gmra.mxu0 %v67
  %v1094 = vpop.f32.mrf.mxu0
  %v1095 = vadd.f32 %v1066, %v1094
  %1096 = vmatmul.f32.gmra.mxu0 %v85
  %v1097 = vpop.f32.mrf.mxu0
  %v1098 = vadd.f32 %v1069, %v1097
  %1099 = vdwg.mxu0
  %1100 = vmatpush.msra.mxu0 %v599
  %1101 = vmatpush.msra.mxu0 %v597
  %1102 = vmatpush.msra.mxu0 %v595
  %1103 = vmatpush.msra.mxu0 %v593
  %1104 = vmatpush.msra.mxu0 %v591
  %1105 = vmatpush.msra.mxu0 %v589
  %1106 = vmatpush.msra.mxu0 %v587
  %1107 = vmatpush.msra.mxu0 %v585
  %1108 = vmatpush.msra.mxu0 %v583
  %1109 = vmatpush.msra.mxu0 %v581
  %1110 = vmatpush.msra.mxu0 %v579
  %1111 = vmatpush.msra.mxu0 %v577
  %1112 = vmatpush.msra.mxu0 %v575
  %1113 = vmatpush.msra.mxu0 %v573
  %1114 = vmatpush.msra.mxu0 %v571
  %1115 = vmatpush.msra.mxu0 %v569
  %1116 = vmatmul.f32.gmra.mxu0 %v32
  %v1117 = vpop.f32.mrf.mxu0
  %v1118 = vadd.f32 %v1089, %v1117
  %1119 = vmatmul.f32.gmra.mxu0 %v50
  %v1120 = vpop.f32.mrf.mxu0
  %v1121 = vadd.f32 %v1092, %v1120
  %1122 = vmatmul.f32.gmra.mxu0 %v68
  %v1123 = vpop.f32.mrf.mxu0
  %v1124 = vadd.f32 %v1095, %v1123
  %1125 = vmatmul.f32.gmra.mxu0 %v86
  %v1126 = vpop.f32.mrf.mxu0
  %v1127 = vadd.f32 %v1098, %v1126
  %1128 = vdwg.mxu0
  %1129 = vmatpush.msra.mxu0 %v631
  %1130 = vmatpush.msra.mxu0 %v629
  %1131 = vmatpush.msra.mxu0 %v627
  %1132 = vmatpush.msra.mxu0 %v625
  %1133 = vmatpush.msra.mxu0 %v623
  %1134 = vmatpush.msra.mxu0 %v621
  %1135 = vmatpush.msra.mxu0 %v619
  %1136 = vmatpush.msra.mxu0 %v617
  %1137 = vmatpush.msra.mxu0 %v615
  %1138 = vmatpush.msra.mxu0 %v613
  %1139 = vmatpush.msra.mxu0 %v611
  %1140 = vmatpush.msra.mxu0 %v609
  %1141 = vmatpush.msra.mxu0 %v607
  %1142 = vmatpush.msra.mxu0 %v605
  %1143 = vmatpush.msra.mxu0 %v603
  %1144 = vmatpush.msra.mxu0 %v601
  %1145 = vmatmul.f32.gmra.mxu0 %v33
  %v1146 = vpop.f32.mrf.mxu0
  %v1147 = vadd.f32 %v1118, %v1146
  %1148 = vmatmul.f32.gmra.mxu0 %v51
  %v1149 = vpop.f32.mrf.mxu0
  %v1150 = vadd.f32 %v1121, %v1149
  %1151 = vmatmul.f32.gmra.mxu0 %v69
  %v1152 = vpop.f32.mrf.mxu0
  %v1153 = vadd.f32 %v1124, %v1152
  %1154 = vmatmul.f32.gmra.mxu0 %v87
  %v1155 = vpop.f32.mrf.mxu0
  %v1156 = vadd.f32 %v1127, %v1155
  %1157 = vdwg.mxu0
  %1158 = vmatpush.msra.mxu0 %v663
  %1159 = vmatpush.msra.mxu0 %v661
  %1160 = vmatpush.msra.mxu0 %v659
  %1161 = vmatpush.msra.mxu0 %v657
  %1162 = vmatpush.msra.mxu0 %v655
  %1163 = vmatpush.msra.mxu0 %v653
  %1164 = vmatpush.msra.mxu0 %v651
  %1165 = vmatpush.msra.mxu0 %v649
  %1166 = vmatpush.msra.mxu0 %v647
  %1167 = vmatpush.msra.mxu0 %v645
  %1168 = vmatpush.msra.mxu0 %v643
  %1169 = vmatpush.msra.mxu0 %v641
  %1170 = vmatpush.msra.mxu0 %v639
  %1171 = vmatpush.msra.mxu0 %v637
  %1172 = vmatpush.msra.mxu0 %v635
  %1173 = vmatpush.msra.mxu0 %v633
  %1174 = vmatmul.f32.gmra.mxu0 %v34
  %v1175 = vpop.f32.mrf.mxu0
  %v1176 = vadd.f32 %v1147, %v1175
  %1177 = vmatmul.f32.gmra.mxu0 %v52
  %v1178 = vpop.f32.mrf.mxu0
  %v1179 = vadd.f32 %v1150, %v1178
  %1180 = vmatmul.f32.gmra.mxu0 %v70
  %v1181 = vpop.f32.mrf.mxu0
  %v1182 = vadd.f32 %v1153, %v1181
  %1183 = vmatmul.f32.gmra.mxu0 %v88
  %v1184 = vpop.f32.mrf.mxu0
  %v1185 = vadd.f32 %v1156, %v1184
  %1186 = vdwg.mxu0
  %1187 = vmatpush.msra.mxu0 %v120
  %1188 = vmatpush.msra.mxu0 %v118
  %1189 = vmatpush.msra.mxu0 %v116
  %1190 = vmatpush.msra.mxu0 %v114
  %1191 = vmatpush.msra.mxu0 %v112
  %1192 = vmatpush.msra.mxu0 %v110
  %1193 = vmatpush.msra.mxu0 %v108
  %1194 = vmatpush.msra.mxu0 %v106
  %1195 = vmatpush.msra.mxu0 %v104
  %1196 = vmatpush.msra.mxu0 %v102
  %1197 = vmatpush.msra.mxu0 %v100
  %1198 = vmatpush.msra.mxu0 %v98
  %1199 = vmatpush.msra.mxu0 %v96
  %1200 = vmatpush.msra.mxu0 %v94
  %1201 = vmatpush.msra.mxu0 %v92
  %1202 = vmatpush.msra.mxu0 %v90
  %1203 = vmatmul.f32.gmra.mxu0 %v17
  %v1204 = vpop.f32.mrf.mxu0
  %v1205 = vadd.f32 0.0, %v1204
  %1206 = vmatmul.f32.gmra.mxu0 %v35
  %v1207 = vpop.f32.mrf.mxu0
  %v1208 = vadd.f32 0.0, %v1207
  %1209 = vmatmul.f32.gmra.mxu0 %v53
  %v1210 = vpop.f32.mrf.mxu0
  %v1211 = vadd.f32 0.0, %v1210
  %1212 = vmatmul.f32.gmra.mxu0 %v71
  %v1213 = vpop.f32.mrf.mxu0
  %v1214 = vadd.f32 0.0, %v1213
  %1215 = vdwg.mxu0
  %1216 = vmatpush.msra.mxu0 %v152
  %1217 = vmatpush.msra.mxu0 %v150
  %1218 = vmatpush.msra.mxu0 %v148
  %1219 = vmatpush.msra.mxu0 %v146
  %1220 = vmatpush.msra.mxu0 %v144
  %1221 = vmatpush.msra.mxu0 %v142
  %1222 = vmatpush.msra.mxu0 %v140
  %1223 = vmatpush.msra.mxu0 %v138
  %1224 = vmatpush.msra.mxu0 %v136
  %1225 = vmatpush.msra.mxu0 %v134
  %1226 = vmatpush.msra.mxu0 %v132
  %1227 = vmatpush.msra.mxu0 %v130
  %1228 = vmatpush.msra.mxu0 %v128
  %1229 = vmatpush.msra.mxu0 %v126
  %1230 = vmatpush.msra.mxu0 %v124
  %1231 = vmatpush.msra.mxu0 %v122
  %1232 = vmatmul.f32.gmra.mxu0 %v18
  %v1233 = vpop.f32.mrf.mxu0
  %v1234 = vadd.f32 %v1205, %v1233
  %1235 = vmatmul.f32.gmra.mxu0 %v36
  %v1236 = vpop.f32.mrf.mxu0
  %v1237 = vadd.f32 %v1208, %v1236
  %1238 = vmatmul.f32.gmra.mxu0 %v54
  %v1239 = vpop.f32.mrf.mxu0
  %v1240 = vadd.f32 %v1211, %v1239
  %1241 = vmatmul.f32.gmra.mxu0 %v72
  %v1242 = vpop.f32.mrf.mxu0
  %v1243 = vadd.f32 %v1214, %v1242
  %1244 = vdwg.mxu0
  %1245 = vmatpush.msra.mxu0 %v184
  %1246 = vmatpush.msra.mxu0 %v182
  %1247 = vmatpush.msra.mxu0 %v180
  %1248 = vmatpush.msra.mxu0 %v178
  %1249 = vmatpush.msra.mxu0 %v176
  %1250 = vmatpush.msra.mxu0 %v174
  %1251 = vmatpush.msra.mxu0 %v172
  %1252 = vmatpush.msra.mxu0 %v170
  %1253 = vmatpush.msra.mxu0 %v168
  %1254 = vmatpush.msra.mxu0 %v166
  %1255 = vmatpush.msra.mxu0 %v164
  %1256 = vmatpush.msra.mxu0 %v162
  %1257 = vmatpush.msra.mxu0 %v160
  %1258 = vmatpush.msra.mxu0 %v158
  %1259 = vmatpush.msra.mxu0 %v156
  %1260 = vmatpush.msra.mxu0 %v154
  %1261 = vmatmul.f32.gmra.mxu0 %v19
  %v1262 = vpop.f32.mrf.mxu0
  %v1263 = vadd.f32 %v1234, %v1262
  %1264 = vmatmul.f32.gmra.mxu0 %v37
  %v1265 = vpop.f32.mrf.mxu0
  %v1266 = vadd.f32 %v1237, %v1265
  %1267 = vmatmul.f32.gmra.mxu0 %v55
  %v1268 = vpop.f32.mrf.mxu0
  %v1269 = vadd.f32 %v1240, %v1268
  %1270 = vmatmul.f32.gmra.mxu0 %v73
  %v1271 = vpop.f32.mrf.mxu0
  %v1272 = vadd.f32 %v1243, %v1271
  %1273 = vdwg.mxu0
  %1274 = vmatpush.msra.mxu0 %v216
  %1275 = vmatpush.msra.mxu0 %v214
  %1276 = vmatpush.msra.mxu0 %v212
  %1277 = vmatpush.msra.mxu0 %v210
  %1278 = vmatpush.msra.mxu0 %v208
  %1279 = vmatpush.msra.mxu0 %v206
  %1280 = vmatpush.msra.mxu0 %v204
  %1281 = vmatpush.msra.mxu0 %v202
  %1282 = vmatpush.msra.mxu0 %v200
  %1283 = vmatpush.msra.mxu0 %v198
  %1284 = vmatpush.msra.mxu0 %v196
  %1285 = vmatpush.msra.mxu0 %v194
  %1286 = vmatpush.msra.mxu0 %v192
  %1287 = vmatpush.msra.mxu0 %v190
  %1288 = vmatpush.msra.mxu0 %v188
  %1289 = vmatpush.msra.mxu0 %v186
  %1290 = vmatmul.f32.gmra.mxu0 %v20
  %v1291 = vpop.f32.mrf.mxu0
  %v1292 = vadd.f32 %v1263, %v1291
  %1293 = vmatmul.f32.gmra.mxu0 %v38
  %v1294 = vpop.f32.mrf.mxu0
  %v1295 = vadd.f32 %v1266, %v1294
  %1296 = vmatmul.f32.gmra.mxu0 %v56
  %v1297 = vpop.f32.mrf.mxu0
  %v1298 = vadd.f32 %v1269, %v1297
  %1299 = vmatmul.f32.gmra.mxu0 %v74
  %v1300 = vpop.f32.mrf.mxu0
  %v1301 = vadd.f32 %v1272, %v1300
  %1302 = vdwg.mxu0
  %1303 = vmatpush.msra.mxu0 %v248
  %1304 = vmatpush.msra.mxu0 %v246
  %1305 = vmatpush.msra.mxu0 %v244
  %1306 = vmatpush.msra.mxu0 %v242
  %1307 = vmatpush.msra.mxu0 %v240
  %1308 = vmatpush.msra.mxu0 %v238
  %1309 = vmatpush.msra.mxu0 %v236
  %1310 = vmatpush.msra.mxu0 %v234
  %1311 = vmatpush.msra.mxu0 %v232
  %1312 = vmatpush.msra.mxu0 %v230
  %1313 = vmatpush.msra.mxu0 %v228
  %1314 = vmatpush.msra.mxu0 %v226
  %1315 = vmatpush.msra.mxu0 %v224
  %1316 = vmatpush.msra.mxu0 %v222
  %1317 = vmatpush.msra.mxu0 %v220
  %1318 = vmatpush.msra.mxu0 %v218
  %1319 = vmatmul.f32.gmra.mxu0 %v21
  %v1320 = vpop.f32.mrf.mxu0
  %v1321 = vadd.f32 %v1292, %v1320
  %1322 = vmatmul.f32.gmra.mxu0 %v39
  %v1323 = vpop.f32.mrf.mxu0
  %v1324 = vadd.f32 %v1295, %v1323
  %1325 = vmatmul.f32.gmra.mxu0 %v57
  %v1326 = vpop.f32.mrf.mxu0
  %v1327 = vadd.f32 %v1298, %v1326
  %1328 = vmatmul.f32.gmra.mxu0 %v75
  %v1329 = vpop.f32.mrf.mxu0
  %v1330 = vadd.f32 %v1301, %v1329
  %1331 = vdwg.mxu0
  %1332 = vmatpush.msra.mxu0 %v280
  %1333 = vmatpush.msra.mxu0 %v278
  %1334 = vmatpush.msra.mxu0 %v276
  %1335 = vmatpush.msra.mxu0 %v274
  %1336 = vmatpush.msra.mxu0 %v272
  %1337 = vmatpush.msra.mxu0 %v270
  %1338 = vmatpush.msra.mxu0 %v268
  %1339 = vmatpush.msra.mxu0 %v266
  %1340 = vmatpush.msra.mxu0 %v264
  %1341 = vmatpush.msra.mxu0 %v262
  %1342 = vmatpush.msra.mxu0 %v260
  %1343 = vmatpush.msra.mxu0 %v258
  %1344 = vmatpush.msra.mxu0 %v256
  %1345 = vmatpush.msra.mxu0 %v254
  %1346 = vmatpush.msra.mxu0 %v252
  %1347 = vmatpush.msra.mxu0 %v250
  %1348 = vmatmul.f32.gmra.mxu0 %v22
  %v1349 = vpop.f32.mrf.mxu0
  %v1350 = vadd.f32 %v1321, %v1349
  %1351 = vmatmul.f32.gmra.mxu0 %v40
  %v1352 = vpop.f32.mrf.mxu0
  %v1353 = vadd.f32 %v1324, %v1352
  %1354 = vmatmul.f32.gmra.mxu0 %v58
  %v1355 = vpop.f32.mrf.mxu0
  %v1356 = vadd.f32 %v1327, %v1355
  %1357 = vmatmul.f32.gmra.mxu0 %v76
  %v1358 = vpop.f32.mrf.mxu0
  %v1359 = vadd.f32 %v1330, %v1358
  %1360 = vdwg.mxu0
  %1361 = vmatpush.msra.mxu0 %v312
  %1362 = vmatpush.msra.mxu0 %v310
  %1363 = vmatpush.msra.mxu0 %v308
  %1364 = vmatpush.msra.mxu0 %v306
  %1365 = vmatpush.msra.mxu0 %v304
  %1366 = vmatpush.msra.mxu0 %v302
  %1367 = vmatpush.msra.mxu0 %v300
  %1368 = vmatpush.msra.mxu0 %v298
  %1369 = vmatpush.msra.mxu0 %v296
  %1370 = vmatpush.msra.mxu0 %v294
  %1371 = vmatpush.msra.mxu0 %v292
  %1372 = vmatpush.msra.mxu0 %v290
  %1373 = vmatpush.msra.mxu0 %v288
  %1374 = vmatpush.msra.mxu0 %v286
  %1375 = vmatpush.msra.mxu0 %v284
  %1376 = vmatpush.msra.mxu0 %v282
  %1377 = vmatmul.f32.gmra.mxu0 %v23
  %v1378 = vpop.f32.mrf.mxu0
  %v1379 = vadd.f32 %v1350, %v1378
  %1380 = vmatmul.f32.gmra.mxu0 %v41
  %v1381 = vpop.f32.mrf.mxu0
  %v1382 = vadd.f32 %v1353, %v1381
  %1383 = vmatmul.f32.gmra.mxu0 %v59
  %v1384 = vpop.f32.mrf.mxu0
  %v1385 = vadd.f32 %v1356, %v1384
  %1386 = vmatmul.f32.gmra.mxu0 %v77
  %v1387 = vpop.f32.mrf.mxu0
  %v1388 = vadd.f32 %v1359, %v1387
  %1389 = vdwg.mxu0
  %1390 = vmatpush.msra.mxu0 %v344
  %1391 = vmatpush.msra.mxu0 %v342
  %1392 = vmatpush.msra.mxu0 %v340
  %1393 = vmatpush.msra.mxu0 %v338
  %1394 = vmatpush.msra.mxu0 %v336
  %1395 = vmatpush.msra.mxu0 %v334
  %1396 = vmatpush.msra.mxu0 %v332
  %1397 = vmatpush.msra.mxu0 %v330
  %1398 = vmatpush.msra.mxu0 %v328
  %1399 = vmatpush.msra.mxu0 %v326
  %1400 = vmatpush.msra.mxu0 %v324
  %1401 = vmatpush.msra.mxu0 %v322
  %1402 = vmatpush.msra.mxu0 %v320
  %1403 = vmatpush.msra.mxu0 %v318
  %1404 = vmatpush.msra.mxu0 %v316
  %1405 = vmatpush.msra.mxu0 %v314
  %1406 = vmatmul.f32.gmra.mxu0 %v24
  %v1407 = vpop.f32.mrf.mxu0
  %v1408 = vadd.f32 %v1379, %v1407
  %1409 = vmatmul.f32.gmra.mxu0 %v42
  %v1410 = vpop.f32.mrf.mxu0
  %v1411 = vadd.f32 %v1382, %v1410
  %1412 = vmatmul.f32.gmra.mxu0 %v60
  %v1413 = vpop.f32.mrf.mxu0
  %v1414 = vadd.f32 %v1385, %v1413
  %1415 = vmatmul.f32.gmra.mxu0 %v78
  %v1416 = vpop.f32.mrf.mxu0
  %v1417 = vadd.f32 %v1388, %v1416
  %1418 = vdwg.mxu0
  %1419 = vmatpush.msra.mxu0 %v376
  %1420 = vmatpush.msra.mxu0 %v374
  %1421 = vmatpush.msra.mxu0 %v372
  %1422 = vmatpush.msra.mxu0 %v370
  %1423 = vmatpush.msra.mxu0 %v368
  %1424 = vmatpush.msra.mxu0 %v366
  %1425 = vmatpush.msra.mxu0 %v364
  %1426 = vmatpush.msra.mxu0 %v362
  %1427 = vmatpush.msra.mxu0 %v360
  %1428 = vmatpush.msra.mxu0 %v358
  %1429 = vmatpush.msra.mxu0 %v356
  %1430 = vmatpush.msra.mxu0 %v354
  %1431 = vmatpush.msra.mxu0 %v352
  %1432 = vmatpush.msra.mxu0 %v350
  %1433 = vmatpush.msra.mxu0 %v348
  %1434 = vmatpush.msra.mxu0 %v346
  %1435 = vmatmul.f32.gmra.mxu0 %v25
  %v1436 = vpop.f32.mrf.mxu0
  %v1437 = vadd.f32 %v1408, %v1436
  %1438 = vmatmul.f32.gmra.mxu0 %v43
  %v1439 = vpop.f32.mrf.mxu0
  %v1440 = vadd.f32 %v1411, %v1439
  %1441 = vmatmul.f32.gmra.mxu0 %v61
  %v1442 = vpop.f32.mrf.mxu0
  %v1443 = vadd.f32 %v1414, %v1442
  %1444 = vmatmul.f32.gmra.mxu0 %v79
  %v1445 = vpop.f32.mrf.mxu0
  %v1446 = vadd.f32 %v1417, %v1445
  %1447 = vdwg.mxu0
  %1448 = vmatpush.msra.mxu0 %v408
  %1449 = vmatpush.msra.mxu0 %v406
  %1450 = vmatpush.msra.mxu0 %v404
  %1451 = vmatpush.msra.mxu0 %v402
  %1452 = vmatpush.msra.mxu0 %v400
  %1453 = vmatpush.msra.mxu0 %v398
  %1454 = vmatpush.msra.mxu0 %v396
  %1455 = vmatpush.msra.mxu0 %v394
  %1456 = vmatpush.msra.mxu0 %v392
  %1457 = vmatpush.msra.mxu0 %v390
  %1458 = vmatpush.msra.mxu0 %v388
  %1459 = vmatpush.msra.mxu0 %v386
  %1460 = vmatpush.msra.mxu0 %v384
  %1461 = vmatpush.msra.mxu0 %v382
  %1462 = vmatpush.msra.mxu0 %v380
  %1463 = vmatpush.msra.mxu0 %v378
  %1464 = vmatmul.f32.gmra.mxu0 %v26
  %v1465 = vpop.f32.mrf.mxu0
  %v1466 = vadd.f32 %v1437, %v1465
  %1467 = vmatmul.f32.gmra.mxu0 %v44
  %v1468 = vpop.f32.mrf.mxu0
  %v1469 = vadd.f32 %v1440, %v1468
  %1470 = vmatmul.f32.gmra.mxu0 %v62
  %v1471 = vpop.f32.mrf.mxu0
  %v1472 = vadd.f32 %v1443, %v1471
  %1473 = vmatmul.f32.gmra.mxu0 %v80
  %v1474 = vpop.f32.mrf.mxu0
  %v1475 = vadd.f32 %v1446, %v1474
  %1476 = vdwg.mxu0
  %1477 = vmatpush.msra.mxu0 %v440
  %1478 = vmatpush.msra.mxu0 %v438
  %1479 = vmatpush.msra.mxu0 %v436
  %1480 = vmatpush.msra.mxu0 %v434
  %1481 = vmatpush.msra.mxu0 %v432
  %1482 = vmatpush.msra.mxu0 %v430
  %1483 = vmatpush.msra.mxu0 %v428
  %1484 = vmatpush.msra.mxu0 %v426
  %1485 = vmatpush.msra.mxu0 %v424
  %1486 = vmatpush.msra.mxu0 %v422
  %1487 = vmatpush.msra.mxu0 %v420
  %1488 = vmatpush.msra.mxu0 %v418
  %1489 = vmatpush.msra.mxu0 %v416
  %1490 = vmatpush.msra.mxu0 %v414
  %1491 = vmatpush.msra.mxu0 %v412
  %1492 = vmatpush.msra.mxu0 %v410
  %1493 = vmatmul.f32.gmra.mxu0 %v27
  %v1494 = vpop.f32.mrf.mxu0
  %v1495 = vadd.f32 %v1466, %v1494
  %1496 = vmatmul.f32.gmra.mxu0 %v45
  %v1497 = vpop.f32.mrf.mxu0
  %v1498 = vadd.f32 %v1469, %v1497
  %1499 = vmatmul.f32.gmra.mxu0 %v63
  %v1500 = vpop.f32.mrf.mxu0
  %v1501 = vadd.f32 %v1472, %v1500
  %1502 = vmatmul.f32.gmra.mxu0 %v81
  %v1503 = vpop.f32.mrf.mxu0
  %v1504 = vadd.f32 %v1475, %v1503
  %1505 = vdwg.mxu0
  %1506 = vmatpush.msra.mxu0 %v472
  %1507 = vmatpush.msra.mxu0 %v470
  %1508 = vmatpush.msra.mxu0 %v468
  %1509 = vmatpush.msra.mxu0 %v466
  %1510 = vmatpush.msra.mxu0 %v464
  %1511 = vmatpush.msra.mxu0 %v462
  %1512 = vmatpush.msra.mxu0 %v460
  %1513 = vmatpush.msra.mxu0 %v458
  %1514 = vmatpush.msra.mxu0 %v456
  %1515 = vmatpush.msra.mxu0 %v454
  %1516 = vmatpush.msra.mxu0 %v452
  %1517 = vmatpush.msra.mxu0 %v450
  %1518 = vmatpush.msra.mxu0 %v448
  %1519 = vmatpush.msra.mxu0 %v446
  %1520 = vmatpush.msra.mxu0 %v444
  %1521 = vmatpush.msra.mxu0 %v442
  %1522 = vmatmul.f32.gmra.mxu0 %v28
  %v1523 = vpop.f32.mrf.mxu0
  %v1524 = vadd.f32 %v1495, %v1523
  %1525 = vmatmul.f32.gmra.mxu0 %v46
  %v1526 = vpop.f32.mrf.mxu0
  %v1527 = vadd.f32 %v1498, %v1526
  %1528 = vmatmul.f32.gmra.mxu0 %v64
  %v1529 = vpop.f32.mrf.mxu0
  %v1530 = vadd.f32 %v1501, %v1529
  %1531 = vmatmul.f32.gmra.mxu0 %v82
  %v1532 = vpop.f32.mrf.mxu0
  %v1533 = vadd.f32 %v1504, %v1532
  %1534 = vdwg.mxu0
  %1535 = vmatpush.msra.mxu0 %v504
  %1536 = vmatpush.msra.mxu0 %v502
  %1537 = vmatpush.msra.mxu0 %v500
  %1538 = vmatpush.msra.mxu0 %v498
  %1539 = vmatpush.msra.mxu0 %v496
  %1540 = vmatpush.msra.mxu0 %v494
  %1541 = vmatpush.msra.mxu0 %v492
  %1542 = vmatpush.msra.mxu0 %v490
  %1543 = vmatpush.msra.mxu0 %v488
  %1544 = vmatpush.msra.mxu0 %v486
  %1545 = vmatpush.msra.mxu0 %v484
  %1546 = vmatpush.msra.mxu0 %v482
  %1547 = vmatpush.msra.mxu0 %v480
  %1548 = vmatpush.msra.mxu0 %v478
  %1549 = vmatpush.msra.mxu0 %v476
  %1550 = vmatpush.msra.mxu0 %v474
  %1551 = vmatmul.f32.gmra.mxu0 %v29
  %v1552 = vpop.f32.mrf.mxu0
  %v1553 = vadd.f32 %v1524, %v1552
  %1554 = vmatmul.f32.gmra.mxu0 %v47
  %v1555 = vpop.f32.mrf.mxu0
  %v1556 = vadd.f32 %v1527, %v1555
  %1557 = vmatmul.f32.gmra.mxu0 %v65
  %v1558 = vpop.f32.mrf.mxu0
  %v1559 = vadd.f32 %v1530, %v1558
  %1560 = vmatmul.f32.gmra.mxu0 %v83
  %v1561 = vpop.f32.mrf.mxu0
  %v1562 = vadd.f32 %v1533, %v1561
  %1563 = vdwg.mxu0
  %1564 = vmatpush.msra.mxu0 %v536
  %1565 = vmatpush.msra.mxu0 %v534
  %1566 = vmatpush.msra.mxu0 %v532
  %1567 = vmatpush.msra.mxu0 %v530
  %1568 = vmatpush.msra.mxu0 %v528
  %1569 = vmatpush.msra.mxu0 %v526
  %1570 = vmatpush.msra.mxu0 %v524
  %1571 = vmatpush.msra.mxu0 %v522
  %1572 = vmatpush.msra.mxu0 %v520
  %1573 = vmatpush.msra.mxu0 %v518
  %1574 = vmatpush.msra.mxu0 %v516
  %1575 = vmatpush.msra.mxu0 %v514
  %1576 = vmatpush.msra.mxu0 %v512
  %1577 = vmatpush.msra.mxu0 %v510
  %1578 = vmatpush.msra.mxu0 %v508
  %1579 = vmatpush.msra.mxu0 %v506
  %1580 = vmatmul.f32.gmra.mxu0 %v30
  %v1581 = vpop.f32.mrf.mxu0
  %v1582 = vadd.f32 %v1553, %v1581
  %1583 = vmatmul.f32.gmra.mxu0 %v48
  %v1584 = vpop.f32.mrf.mxu0
  %v1585 = vadd.f32 %v1556, %v1584
  %1586 = vmatmul.f32.gmra.mxu0 %v66
  %v1587 = vpop.f32.mrf.mxu0
  %v1588 = vadd.f32 %v1559, %v1587
  %1589 = vmatmul.f32.gmra.mxu0 %v84
  %v1590 = vpop.f32.mrf.mxu0
  %v1591 = vadd.f32 %v1562, %v1590
  %1592 = vdwg.mxu0
  %1593 = vmatpush.msra.mxu0 %v568
  %1594 = vmatpush.msra.mxu0 %v566
  %1595 = vmatpush.msra.mxu0 %v564
  %1596 = vmatpush.msra.mxu0 %v562
  %1597 = vmatpush.msra.mxu0 %v560
  %1598 = vmatpush.msra.mxu0 %v558
  %1599 = vmatpush.msra.mxu0 %v556
  %1600 = vmatpush.msra.mxu0 %v554
  %1601 = vmatpush.msra.mxu0 %v552
  %1602 = vmatpush.msra.mxu0 %v550
  %1603 = vmatpush.msra.mxu0 %v548
  %1604 = vmatpush.msra.mxu0 %v546
  %1605 = vmatpush.msra.mxu0 %v544
  %1606 = vmatpush.msra.mxu0 %v542
  %1607 = vmatpush.msra.mxu0 %v540
  %1608 = vmatpush.msra.mxu0 %v538
  %1609 = vmatmul.f32.gmra.mxu0 %v31
  %v1610 = vpop.f32.mrf.mxu0
  %v1611 = vadd.f32 %v1582, %v1610
  %1612 = vmatmul.f32.gmra.mxu0 %v49
  %v1613 = vpop.f32.mrf.mxu0
  %v1614 = vadd.f32 %v1585, %v1613
  %1615 = vmatmul.f32.gmra.mxu0 %v67
  %v1616 = vpop.f32.mrf.mxu0
  %v1617 = vadd.f32 %v1588, %v1616
  %1618 = vmatmul.f32.gmra.mxu0 %v85
  %v1619 = vpop.f32.mrf.mxu0
  %v1620 = vadd.f32 %v1591, %v1619
  %1621 = vdwg.mxu0
  %1622 = vmatpush.msra.mxu0 %v600
  %1623 = vmatpush.msra.mxu0 %v598
  %1624 = vmatpush.msra.mxu0 %v596
  %1625 = vmatpush.msra.mxu0 %v594
  %1626 = vmatpush.msra.mxu0 %v592
  %1627 = vmatpush.msra.mxu0 %v590
  %1628 = vmatpush.msra.mxu0 %v588
  %1629 = vmatpush.msra.mxu0 %v586
  %1630 = vmatpush.msra.mxu0 %v584
  %1631 = vmatpush.msra.mxu0 %v582
  %1632 = vmatpush.msra.mxu0 %v580
  %1633 = vmatpush.msra.mxu0 %v578
  %1634 = vmatpush.msra.mxu0 %v576
  %1635 = vmatpush.msra.mxu0 %v574
  %1636 = vmatpush.msra.mxu0 %v572
  %1637 = vmatpush.msra.mxu0 %v570
  %1638 = vmatmul.f32.gmra.mxu0 %v32
  %v1639 = vpop.f32.mrf.mxu0
  %v1640 = vadd.f32 %v1611, %v1639
  %1641 = vmatmul.f32.gmra.mxu0 %v50
  %v1642 = vpop.f32.mrf.mxu0
  %v1643 = vadd.f32 %v1614, %v1642
  %1644 = vmatmul.f32.gmra.mxu0 %v68
  %v1645 = vpop.f32.mrf.mxu0
  %v1646 = vadd.f32 %v1617, %v1645
  %1647 = vmatmul.f32.gmra.mxu0 %v86
  %v1648 = vpop.f32.mrf.mxu0
  %v1649 = vadd.f32 %v1620, %v1648
  %1650 = vdwg.mxu0
  %1651 = vmatpush.msra.mxu0 %v632
  %1652 = vmatpush.msra.mxu0 %v630
  %1653 = vmatpush.msra.mxu0 %v628
  %1654 = vmatpush.msra.mxu0 %v626
  %1655 = vmatpush.msra.mxu0 %v624
  %1656 = vmatpush.msra.mxu0 %v622
  %1657 = vmatpush.msra.mxu0 %v620
  %1658 = vmatpush.msra.mxu0 %v618
  %1659 = vmatpush.msra.mxu0 %v616
  %1660 = vmatpush.msra.mxu0 %v614
  %1661 = vmatpush.msra.mxu0 %v612
  %1662 = vmatpush.msra.mxu0 %v610
  %1663 = vmatpush.msra.mxu0 %v608
  %1664 = vmatpush.msra.mxu0 %v606
  %1665 = vmatpush.msra.mxu0 %v604
  %1666 = vmatpush.msra.mxu0 %v602
  %1667 = vmatmul.f32.gmra.mxu0 %v33
  %v1668 = vpop.f32.mrf.mxu0
  %v1669 = vadd.f32 %v1640, %v1668
  %1670 = vmatmul.f32.gmra.mxu0 %v51
  %v1671 = vpop.f32.mrf.mxu0
  %v1672 = vadd.f32 %v1643, %v1671
  %1673 = vmatmul.f32.gmra.mxu0 %v69
  %v1674 = vpop.f32.mrf.mxu0
  %v1675 = vadd.f32 %v1646, %v1674
  %1676 = vmatmul.f32.gmra.mxu0 %v87
  %v1677 = vpop.f32.mrf.mxu0
  %v1678 = vadd.f32 %v1649, %v1677
  %1679 = vdwg.mxu0
  %1680 = vmatpush.msra.mxu0 %v664
  %1681 = vmatpush.msra.mxu0 %v662
  %1682 = vmatpush.msra.mxu0 %v660
  %1683 = vmatpush.msra.mxu0 %v658
  %1684 = vmatpush.msra.mxu0 %v656
  %1685 = vmatpush.msra.mxu0 %v654
  %1686 = vmatpush.msra.mxu0 %v652
  %1687 = vmatpush.msra.mxu0 %v650
  %1688 = vmatpush.msra.mxu0 %v648
  %1689 = vmatpush.msra.mxu0 %v646
  %1690 = vmatpush.msra.mxu0 %v644
  %1691 = vmatpush.msra.mxu0 %v642
  %1692 = vmatpush.msra.mxu0 %v640
  %1693 = vmatpush.msra.mxu0 %v638
  %1694 = vmatpush.msra.mxu0 %v636
  %1695 = vmatpush.msra.mxu0 %v634
  %1696 = vmatmul.f32.gmra.mxu0 %v34
  %v1697 = vpop.f32.mrf.mxu0
  %v1698 = vadd.f32 %v1669, %v1697
  %1699 = vmatmul.f32.gmra.mxu0 %v52
  %v1700 = vpop.f32.mrf.mxu0
  %v1701 = vadd.f32 %v1672, %v1700
  %1702 = vmatmul.f32.gmra.mxu0 %v70
  %v1703 = vpop.f32.mrf.mxu0
  %v1704 = vadd.f32 %v1675, %v1703
  %1705 = vmatmul.f32.gmra.mxu0 %v88
  %v1706 = vpop.f32.mrf.mxu0
  %v1707 = vadd.f32 %v1678, %v1706
  %1708 = vdwg.mxu0
  %v1709 = vld [vmem:[%s2] sm:$0x3]
  %v1711 = vperm.slane %v1709, 0
  %v1712 = vperm.slane %v1709, 1
  %v1715 = vmul.f32 %v1176, %v1711
  %v1716 = vmul.f32 %v1698, %v1712
  %v1717 = vmul.f32 %v1179, %v1711
  %v1718 = vmul.f32 %v1701, %v1712
  %v1719 = vmul.f32 %v1182, %v1711
  %v1720 = vmul.f32 %v1704, %v1712
  %v1721 = vmul.f32 %v1185, %v1711
  %v1722 = vmul.f32 %v1707, %v1712
  %v1723 = vld [vmem:[%s3] sm:$0x3]
  %v1725 = vperm.slane %v1723, 0
  %v1726 = vperm.slane %v1723, 1
  %v1729 = vadd.f32 %v1715, %v1725
  %v1730 = vadd.f32 %v1716, %v1726
  %v1731 = vadd.f32 %v1717, %v1725
  %v1732 = vadd.f32 %v1718, %v1726
  %v1733 = vadd.f32 %v1719, %v1725
  %v1734 = vadd.f32 %v1720, %v1726
  %v1735 = vadd.f32 %v1721, %v1725
  %v1736 = vadd.f32 %v1722, %v1726
  %v1737 = vmax.f32 %v1729, 0.0
  %v1738 = vmax.f32 %v1730, 0.0
  %v1739 = vmax.f32 %v1731, 0.0
  %v1740 = vmax.f32 %v1732, 0.0
  %v1741 = vmax.f32 %v1733, 0.0
  %v1742 = vmax.f32 %v1734, 0.0
  %v1743 = vmax.f32 %v1735, 0.0
  %v1744 = vmax.f32 %v1736, 0.0
  %1745 = vst [vmem:[%s4] sm:$0xff] %v1737
  %1746 = vst [vmem:[%s4 + $0x8] sm:$0xff] %v1738
  %1747 = vst [vmem:[%s4 + $0x10] sm:$0xff] %v1739
  %1748 = vst [vmem:[%s4 + $0x18] sm:$0xff] %v1740
  %1749 = vst [vmem:[%s4 + $0x20] sm:$0xff] %v1741
  %1750 = vst [vmem:[%s4 + $0x28] sm:$0xff] %v1742
  %1751 = vst [vmem:[%s4 + $0x30] sm:$0xff] %v1743
  %1752 = vst [vmem:[%s4 + $0x38] sm:$0xff] %v1744
  // Predicated region
  $region18: #{macnet_forward.39} parent=0 // pred_check
    _
  $region19: #{macnet_forward.39} parent=0 // pred_check_branch
    %1754 = sbr.rel (0) target = $region21
  $region20: #{macnet_forward.39} parent=0 // pred_region
    _
  $region21: #{macnet_forward.39} parent=0 // pred_fallthru
    _
  // Predicated region
  $region22: #{macnet_forward.39} parent=0 // pred_check
    _
  $region23: #{macnet_forward.39} parent=0 // pred_check_branch
    %1756 = sbr.rel (0) target = $region25
  $region24: #{macnet_forward.39} parent=0 // pred_region
    _
  $region25: #{macnet_forward.39} parent=0 // pred_fallthru
    _

// kernel: macnet_forward.38
$region0: #{macnet_forward.38}
  #allocation0 [shape = 'u32[]', space=smem, size = 0x4, offset = 0x4, fixed_abs, tag = 'smem constant byte address 0x4 - core index']
  #allocation1 [shape = 'u32[72,128]{1,0:T(1,128)}', space=vmem, size = 0x9000, scoped, tag = 'internal scratch']
  %s0 = inlined_call_operand.vmem [shape: f32[32,2304], index: 0, kind: input, shape index: {}]
  %s1 = inlined_call_operand.vmem [shape: f32[2304,256], index: 1, kind: input, shape index: {}]
  %s2 = inlined_call_operand.vmem [shape: f32[1,256], index: 2, kind: input, shape index: {}]
  %s3 = inlined_call_operand.vmem [shape: f32[1,256], index: 3, kind: input, shape index: {}]
  %s4 = inlined_call_operand.vmem [shape: f32[32,256], index: 4, kind: input, shape index: {}]
  %s5 = inlined_call_operand.vmem [shape: f32[32,256], index: 5, kind: output, shape index: {}]
  %s6 = sld [smem:[#allocation0]]
  $region30: #{macnet_forward.38} parent=0
    _
  %s8 = ssub.s32 1, %s6
  %s9 = scalar_select 0, %s8, %s6
  // Predicated region
  $region2: #{macnet_forward.38} parent=0 // pred_check
    _
  $region3: #{macnet_forward.38} parent=0 // pred_check_branch
    %11 = sbr.rel (0) target = $region5
  $region4: #{macnet_forward.38} parent=0 // pred_region
    _
  $region5: #{macnet_forward.38} parent=0 // pred_fallthru
    _
  // Predicated region
  $region6: #{macnet_forward.38} parent=0 // pred_check
    _
  $region7: #{macnet_forward.38} parent=0 // pred_check_branch
    %13 = sbr.rel (0) target = $region9
  $region8: #{macnet_forward.38} parent=0 // pred_region
    _
  $region9: #{macnet_forward.38} parent=0 // pred_fallthru
    _
  // Predicated region
  $region10: #{macnet_forward.38} parent=0 // pred_check
    _
  $region11: #{macnet_forward.38} parent=0 // pred_check_branch
    %15 = sbr.rel (0) target = $region13
  $region12: #{macnet_forward.38} parent=0 // pred_region
    _
  $region13: #{macnet_forward.38} parent=0 // pred_fallthru
    _
  // Predicated region
  $region14: #{macnet_forward.38} parent=0 // pred_check
    _
  $region15: #{macnet_forward.38} parent=0 // pred_check_branch
    %17 = sbr.rel (0) target = $region17
  $region16: #{macnet_forward.38} parent=0 // pred_region
    _
  $region17: #{macnet_forward.38} parent=0 // pred_fallthru
    _
  // Predicated region
  $region18: #{macnet_forward.38} parent=0 // pred_check
    _
  $region19: #{macnet_forward.38} parent=0 // pred_check_branch
    %19 = sbr.rel (0) target = $region21
  $region20: #{macnet_forward.38} parent=0 // pred_region
    _
  $region21: #{macnet_forward.38} parent=0 // pred_fallthru
    _
  %v20 = vld [vmem:[%s0] sm:$0xff]
  %v21 = vld [vmem:[%s0 + $0x8] sm:$0xff]
  %v22 = vld [vmem:[%s0 + $0x10] sm:$0xff]
  %v23 = vld [vmem:[%s0 + $0x18] sm:$0xff]
  %v24 = vld [vmem:[%s0 + $0x20] sm:$0xff]
  %v25 = vld [vmem:[%s0 + $0x28] sm:$0xff]
  %v26 = vld [vmem:[%s0 + $0x30] sm:$0xff]
  %v27 = vld [vmem:[%s0 + $0x38] sm:$0xff]
  %v28 = vld [vmem:[%s0 + $0x40] sm:$0xff]
  %v29 = vld [vmem:[%s0 + $0x48] sm:$0xff]
  %v30 = vld [vmem:[%s0 + $0x50] sm:$0xff]
  %v31 = vld [vmem:[%s0 + $0x58] sm:$0xff]
  %v32 = vld [vmem:[%s0 + $0x60] sm:$0xff]
  %v33 = vld [vmem:[%s0 + $0x68] sm:$0xff]
  %v34 = vld [vmem:[%s0 + $0x70] sm:$0xff]
  %v35 = vld [vmem:[%s0 + $0x78] sm:$0xff]
  %v36 = vld [vmem:[%s0 + $0x80] sm:$0xff]
  %v37 = vld [vmem:[%s0 + $0x88] sm:$0xff]
  %v38 = vld [vmem:[%s0 + $0x90] sm:$0xff]
  %v39 = vld [vmem:[%s0 + $0x98] sm:$0xff]
  %v40 = vld [vmem:[%s0 + $0xa0] sm:$0xff]
  %v41 = vld [vmem:[%s0 + $0xa8] sm:$0xff]
  %v42 = vld [vmem:[%s0 + $0xb0] sm:$0xff]
  %v43 = vld [vmem:[%s0 + $0xb8] sm:$0xff]
  %v44 = vld [vmem:[%s0 + $0xc0] sm:$0xff]
  %v45 = vld [vmem:[%s0 + $0xc8] sm:$0xff]
  %v46 = vld [vmem:[%s0 + $0xd0] sm:$0xff]
  %v47 = vld [vmem:[%s0 + $0xd8] sm:$0xff]
  %v48 = vld [vmem:[%s0 + $0xe0] sm:$0xff]
  %v49 = vld [vmem:[%s0 + $0xe8] sm:$0xff]
  %v50 = vld [vmem:[%s0 + $0xf0] sm:$0xff]
  %v51 = vld [vmem:[%s0 + $0xf8] sm:$0xff]
  %v52 = vld [vmem:[%s0 + $0x100] sm:$0xff]
  %v53 = vld [vmem:[%s0 + $0x108] sm:$0xff]
  %v54 = vld [vmem:[%s0 + $0x110] sm:$0xff]
  %v55 = vld [vmem:[%s0 + $0x118] sm:$0xff]
  %v56 = vld [vmem:[%s0 + $0x120] sm:$0xff]
  %v57 = vld [vmem:[%s0 + $0x128] sm:$0xff]
  %v58 = vld [vmem:[%s0 + $0x130] sm:$0xff]
  %v59 = vld [vmem:[%s0 + $0x138] sm:$0xff]
  %v60 = vld [vmem:[%s0 + $0x140] sm:$0xff]
  %v61 = vld [vmem:[%s0 + $0x148] sm:$0xff]
  %v62 = vld [vmem:[%s0 + $0x150] sm:$0xff]
  %v63 = vld [vmem:[%s0 + $0x158] sm:$0xff]
  %v64 = vld [vmem:[%s0 + $0x160] sm:$0xff]
  %v65 = vld [vmem:[%s0 + $0x168] sm:$0xff]
  %v66 = vld [vmem:[%s0 + $0x170] sm:$0xff]
  %v67 = vld [vmem:[%s0 + $0x178] sm:$0xff]
  %v68 = vld [vmem:[%s0 + $0x180] sm:$0xff]
  %v69 = vld [vmem:[%s0 + $0x188] sm:$0xff]
  %v70 = vld [vmem:[%s0 + $0x190] sm:$0xff]
  %v71 = vld [vmem:[%s0 + $0x198] sm:$0xff]
  %v72 = vld [vmem:[%s0 + $0x1a0] sm:$0xff]
  %v73 = vld [vmem:[%s0 + $0x1a8] sm:$0xff]
  %v74 = vld [vmem:[%s0 + $0x1b0] sm:$0xff]
  %v75 = vld [vmem:[%s0 + $0x1b8] sm:$0xff]
  %v76 = vld [vmem:[%s0 + $0x1c0] sm:$0xff]
  %v77 = vld [vmem:[%s0 + $0x1c8] sm:$0xff]
  %v78 = vld [vmem:[%s0 + $0x1d0] sm:$0xff]
  %v79 = vld [vmem:[%s0 + $0x1d8] sm:$0xff]
  %v80 = vld [vmem:[%s0 + $0x1e0] sm:$0xff]
  %v81 = vld [vmem:[%s0 + $0x1e8] sm:$0xff]
  %v82 = vld [vmem:[%s0 + $0x1f0] sm:$0xff]
  %v83 = vld [vmem:[%s0 + $0x1f8] sm:$0xff]
  %v84 = vld [vmem:[%s0 + $0x200] sm:$0xff]
  %v85 = vld [vmem:[%s0 + $0x208] sm:$0xff]
  %v86 = vld [vmem:[%s0 + $0x210] sm:$0xff]
  %v87 = vld [vmem:[%s0 + $0x218] sm:$0xff]
  %v88 = vld [vmem:[%s0 + $0x220] sm:$0xff]
  %v89 = vld [vmem:[%s0 + $0x228] sm:$0xff]
  %v90 = vld [vmem:[%s0 + $0x230] sm:$0xff]
  %v91 = vld [vmem:[%s0 + $0x238] sm:$0xff]
  %v92 = vld [vmem:[%s1] sm:$0xff]
  %v93 = vld [vmem:[%s1 + $0x8] sm:$0xff]
  %v94 = vld [vmem:[%s1 + $0x10] sm:$0xff]
  %v95 = vld [vmem:[%s1 + $0x18] sm:$0xff]
  %v96 = vld [vmem:[%s1 + $0x20] sm:$0xff]
  %v97 = vld [vmem:[%s1 + $0x28] sm:$0xff]
  %v98 = vld [vmem:[%s1 + $0x30] sm:$0xff]
  %v99 = vld [vmem:[%s1 + $0x38] sm:$0xff]
  %v100 = vld [vmem:[%s1 + $0x40] sm:$0xff]
  %v101 = vld [vmem:[%s1 + $0x48] sm:$0xff]
  %v102 = vld [vmem:[%s1 + $0x50] sm:$0xff]
  %v103 = vld [vmem:[%s1 + $0x58] sm:$0xff]
  %v104 = vld [vmem:[%s1 + $0x60] sm:$0xff]
  %v105 = vld [vmem:[%s1 + $0x68] sm:$0xff]
  %v106 = vld [vmem:[%s1 + $0x70] sm:$0xff]
  %v107 = vld [vmem:[%s1 + $0x78] sm:$0xff]
  %v108 = vld [vmem:[%s1 + $0x80] sm:$0xff]
  %v109 = vld [vmem:[%s1 + $0x88] sm:$0xff]
  %v110 = vld [vmem:[%s1 + $0x90] sm:$0xff]
  %v111 = vld [vmem:[%s1 + $0x98] sm:$0xff]
  %v112 = vld [vmem:[%s1 + $0xa0] sm:$0xff]
  %v113 = vld [vmem:[%s1 + $0xa8] sm:$0xff]
  %v114 = vld [vmem:[%s1 + $0xb0] sm:$0xff]
  %v115 = vld [vmem:[%s1 + $0xb8] sm:$0xff]
  %v116 = vld [vmem:[%s1 + $0xc0] sm:$0xff]
  %v117 = vld [vmem:[%s1 + $0xc8] sm:$0xff]
  %v118 = vld [vmem:[%s1 + $0xd0] sm:$0xff]
  %v119 = vld [vmem:[%s1 + $0xd8] sm:$0xff]
  %v120 = vld [vmem:[%s1 + $0xe0] sm:$0xff]
  %v121 = vld [vmem:[%s1 + $0xe8] sm:$0xff]
  %v122 = vld [vmem:[%s1 + $0xf0] sm:$0xff]
  %v123 = vld [vmem:[%s1 + $0xf8] sm:$0xff]
  %v124 = vld [vmem:[%s1 + $0x100] sm:$0xff]
  %v125 = vld [vmem:[%s1 + $0x108] sm:$0xff]
  %v126 = vld [vmem:[%s1 + $0x110] sm:$0xff]
  %v127 = vld [vmem:[%s1 + $0x118] sm:$0xff]
  %v128 = vld [vmem:[%s1 + $0x120] sm:$0xff]
  %v129 = vld [vmem:[%s1 + $0x128] sm:$0xff]
  %v130 = vld [vmem:[%s1 + $0x130] sm:$0xff]
  %v131 = vld [vmem:[%s1 + $0x138] sm:$0xff]
  %v132 = vld [vmem:[%s1 + $0x140] sm:$0xff]
  %v133 = vld [vmem:[%s1 + $0x148] sm:$0xff]
  %v134 = vld [vmem:[%s1 + $0x150] sm:$0xff]
  %v135 = vld [vmem:[%s1 + $0x158] sm:$0xff]
  %v136 = vld [vmem:[%s1 + $0x160] sm:$0xff]
  %v137 = vld [vmem:[%s1 + $0x168] sm:$0xff]
  %v138 = vld [vmem:[%s1 + $0x170] sm:$0xff]
  %v139 = vld [vmem:[%s1 + $0x178] sm:$0xff]
  %v140 = vld [vmem:[%s1 + $0x180] sm:$0xff]
  %v141 = vld [vmem:[%s1 + $0x188] sm:$0xff]
  %v142 = vld [vmem:[%s1 + $0x190] sm:$0xff]
  %v143 = vld [vmem:[%s1 + $0x198] sm:$0xff]
  %v144 = vld [vmem:[%s1 + $0x1a0] sm:$0xff]
  %v145 = vld [vmem:[%s1 + $0x1a8] sm:$0xff]
  %v146 = vld [vmem:[%s1 + $0x1b0] sm:$0xff]
  %v147 = vld [vmem:[%s1 + $0x1b8] sm:$0xff]
  %v148 = vld [vmem:[%s1 + $0x1c0] sm:$0xff]
  %v149 = vld [vmem:[%s1 + $0x1c8] sm:$0xff]
  %v150 = vld [vmem:[%s1 + $0x1d0] sm:$0xff]
  %v151 = vld [vmem:[%s1 + $0x1d8] sm:$0xff]
  %v152 = vld [vmem:[%s1 + $0x1e0] sm:$0xff]
  %v153 = vld [vmem:[%s1 + $0x1e8] sm:$0xff]
  %v154 = vld [vmem:[%s1 + $0x1f0] sm:$0xff]
  %v155 = vld [vmem:[%s1 + $0x1f8] sm:$0xff]
  %v156 = vld [vmem:[%s1 + $0x200] sm:$0xff]
  %v157 = vld [vmem:[%s1 + $0x208] sm:$0xff]
  %v158 = vld [vmem:[%s1 + $0x210] sm:$0xff]
  %v159 = vld [vmem:[%s1 + $0x218] sm:$0xff]
  %v160 = vld [vmem:[%s1 + $0x220] sm:$0xff]
  %v161 = vld [vmem:[%s1 + $0x228] sm:$0xff]
  %v162 = vld [vmem:[%s1 + $0x230] sm:$0xff]
  %v163 = vld [vmem:[%s1 + $0x238] sm:$0xff]
  %v164 = vld [vmem:[%s1 + $0x240] sm:$0xff]
  %v165 = vld [vmem:[%s1 + $0x248] sm:$0xff]
  %v166 = vld [vmem:[%s1 + $0x250] sm:$0xff]
  %v167 = vld [vmem:[%s1 + $0x258] sm:$0xff]
  %v168 = vld [vmem:[%s1 + $0x260] sm:$0xff]
  %v169 = vld [vmem:[%s1 + $0x268] sm:$0xff]
  %v170 = vld [vmem:[%s1 + $0x270] sm:$0xff]
  %v171 = vld [vmem:[%s1 + $0x278] sm:$0xff]
  %v172 = vld [vmem:[%s1 + $0x280] sm:$0xff]
  %v173 = vld [vmem:[%s1 + $0x288] sm:$0xff]
  %v174 = vld [vmem:[%s1 + $0x290] sm:$0xff]
  %v175 = vld [vmem:[%s1 + $0x298] sm:$0xff]
  %v176 = vld [vmem:[%s1 + $0x2a0] sm:$0xff]
  %v177 = vld [vmem:[%s1 + $0x2a8] sm:$0xff]
  %v178 = vld [vmem:[%s1 + $0x2b0] sm:$0xff]
  %v179 = vld [vmem:[%s1 + $0x2b8] sm:$0xff]
  %v180 = vld [vmem:[%s1 + $0x2c0] sm:$0xff]
  %v181 = vld [vmem:[%s1 + $0x2c8] sm:$0xff]
  %v182 = vld [vmem:[%s1 + $0x2d0] sm:$0xff]
  %v183 = vld [vmem:[%s1 + $0x2d8] sm:$0xff]
  %v184 = vld [vmem:[%s1 + $0x2e0] sm:$0xff]
  %v185 = vld [vmem:[%s1 + $0x2e8] sm:$0xff]
  %v186 = vld [vmem:[%s1 + $0x2f0] sm:$0xff]
  %v187 = vld [vmem:[%s1 + $0x2f8] sm:$0xff]
  %v188 = vld [vmem:[%s1 + $0x300] sm:$0xff]
  %v189 = vld [vmem:[%s1 + $0x308] sm:$0xff]
  %v190 = vld [vmem:[%s1 + $0x310] sm:$0xff]
  %v191 = vld [vmem:[%s1 + $0x318] sm:$0xff]
  %v192 = vld [vmem:[%s1 + $0x320] sm:$0xff]
  %v193 = vld [vmem:[%s1 + $0x328] sm:$0xff]
  %v194 = vld [vmem:[%s1 + $0x330] sm:$0xff]
  %v195 = vld [vmem:[%s1 + $0x338] sm:$0xff]
  %v196 = vld [vmem:[%s1 + $0x340] sm:$0xff]
  %v197 = vld [vmem:[%s1 + $0x348] sm:$0xff]
  %v198 = vld [vmem:[%s1 + $0x350] sm:$0xff]
  %v199 = vld [vmem:[%s1 + $0x358] sm:$0xff]
  %v200 = vld [vmem:[%s1 + $0x360] sm:$0xff]
  %v201 = vld [vmem:[%s1 + $0x368] sm:$0xff]
  %v202 = vld [vmem:[%s1 + $0x370] sm:$0xff]
  %v203 = vld [vmem:[%s1 + $0x378] sm:$0xff]
  %v204 = vld [vmem:[%s1 + $0x380] sm:$0xff]
  %v205 = vld [vmem:[%s1 + $0x388] sm:$0xff]
  %v206 = vld [vmem:[%s1 + $0x390] sm:$0xff]
  %v207 = vld [vmem:[%s1 + $0x398] sm:$0xff]
  %v208 = vld [vmem:[%s1 + $0x3a0] sm:$0xff]
  %v209 = vld [vmem:[%s1 + $0x3a8] sm:$0xff]
  %v210 = vld [vmem:[%s1 + $0x3b0] sm:$0xff]
  %v211 = vld [vmem:[%s1 + $0x3b8] sm:$0xff]
  %v212 = vld [vmem:[%s1 + $0x3c0] sm:$0xff]
  %v213 = vld [vmem:[%s1 + $0x3c8] sm:$0xff]
  %v214 = vld [vmem:[%s1 + $0x3d0] sm:$0xff]
  %v215 = vld [vmem:[%s1 + $0x3d8] sm:$0xff]
  %v216 = vld [vmem:[%s1 + $0x3e0] sm:$0xff]
  %v217 = vld [vmem:[%s1 + $0x3e8] sm:$0xff]
  %v218 = vld [vmem:[%s1 + $0x3f0] sm:$0xff]
  %v219 = vld [vmem:[%s1 + $0x3f8] sm:$0xff]
  %v220 = vld [vmem:[%s1 + $0x400] sm:$0xff]
  %v221 = vld [vmem:[%s1 + $0x408] sm:$0xff]
  %v222 = vld [vmem:[%s1 + $0x410] sm:$0xff]
  %v223 = vld [vmem:[%s1 + $0x418] sm:$0xff]
  %v224 = vld [vmem:[%s1 + $0x420] sm:$0xff]
  %v225 = vld [vmem:[%s1 + $0x428] sm:$0xff]
  %v226 = vld [vmem:[%s1 + $0x430] sm:$0xff]
  %v227 = vld [vmem:[%s1 + $0x438] sm:$0xff]
  %v228 = vld [vmem:[%s1 + $0x440] sm:$0xff]
  %v229 = vld [vmem:[%s1 + $0x448] sm:$0xff]
  %v230 = vld [vmem:[%s1 + $0x450] sm:$0xff]
  %v231 = vld [vmem:[%s1 + $0x458] sm:$0xff]
  %v232 = vld [vmem:[%s1 + $0x460] sm:$0xff]
  %v233 = vld [vmem:[%s1 + $0x468] sm:$0xff]
  %v234 = vld [vmem:[%s1 + $0x470] sm:$0xff]
  %v235 = vld [vmem:[%s1 + $0x478] sm:$0xff]
  %v236 = vld [vmem:[%s1 + $0x480] sm:$0xff]
  %v237 = vld [vmem:[%s1 + $0x488] sm:$0xff]
  %v238 = vld [vmem:[%s1 + $0x490] sm:$0xff]
  %v239 = vld [vmem:[%s1 + $0x498] sm:$0xff]
  %v240 = vld [vmem:[%s1 + $0x4a0] sm:$0xff]
  %v241 = vld [vmem:[%s1 + $0x4a8] sm:$0xff]
  %v242 = vld [vmem:[%s1 + $0x4b0] sm:$0xff]
  %v243 = vld [vmem:[%s1 + $0x4b8] sm:$0xff]
  %v244 = vld [vmem:[%s1 + $0x4c0] sm:$0xff]
  %v245 = vld [vmem:[%s1 + $0x4c8] sm:$0xff]
  %v246 = vld [vmem:[%s1 + $0x4d0] sm:$0xff]
  %v247 = vld [vmem:[%s1 + $0x4d8] sm:$0xff]
  %v248 = vld [vmem:[%s1 + $0x4e0] sm:$0xff]
  %v249 = vld [vmem:[%s1 + $0x4e8] sm:$0xff]
  %v250 = vld [vmem:[%s1 + $0x4f0] sm:$0xff]
  %v251 = vld [vmem:[%s1 + $0x4f8] sm:$0xff]
  %v252 = vld [vmem:[%s1 + $0x500] sm:$0xff]
  %v253 = vld [vmem:[%s1 + $0x508] sm:$0xff]
  %v254 = vld [vmem:[%s1 + $0x510] sm:$0xff]
  %v255 = vld [vmem:[%s1 + $0x518] sm:$0xff]
  %v256 = vld [vmem:[%s1 + $0x520] sm:$0xff]
  %v257 = vld [vmem:[%s1 + $0x528] sm:$0xff]
  %v258 = vld [vmem:[%s1 + $0x530] sm:$0xff]
  %v259 = vld [vmem:[%s1 + $0x538] sm:$0xff]
  %v260 = vld [vmem:[%s1 + $0x540] sm:$0xff]
  %v261 = vld [vmem:[%s1 + $0x548] sm:$0xff]
  %v262 = vld [vmem:[%s1 + $0x550] sm:$0xff]
  %v263 = vld [vmem:[%s1 + $0x558] sm:$0xff]
  %v264 = vld [vmem:[%s1 + $0x560] sm:$0xff]
  %v265 = vld [vmem:[%s1 + $0x568] sm:$0xff]
  %v266 = vld [vmem:[%s1 + $0x570] sm:$0xff]
  %v267 = vld [vmem:[%s1 + $0x578] sm:$0xff]
  %v268 = vld [vmem:[%s1 + $0x580] sm:$0xff]
  %v269 = vld [vmem:[%s1 + $0x588] sm:$0xff]
  %v270 = vld [vmem:[%s1 + $0x590] sm:$0xff]
  %v271 = vld [vmem:[%s1 + $0x598] sm:$0xff]
  %v272 = vld [vmem:[%s1 + $0x5a0] sm:$0xff]
  %v273 = vld [vmem:[%s1 + $0x5a8] sm:$0xff]
  %v274 = vld [vmem:[%s1 + $0x5b0] sm:$0xff]
  %v275 = vld [vmem:[%s1 + $0x5b8] sm:$0xff]
  %v276 = vld [vmem:[%s1 + $0x5c0] sm:$0xff]
  %v277 = vld [vmem:[%s1 + $0x5c8] sm:$0xff]
  %v278 = vld [vmem:[%s1 + $0x5d0] sm:$0xff]
  %v279 = vld [vmem:[%s1 + $0x5d8] sm:$0xff]
  %v280 = vld [vmem:[%s1 + $0x5e0] sm:$0xff]
  %v281 = vld [vmem:[%s1 + $0x5e8] sm:$0xff]
  %v282 = vld [vmem:[%s1 + $0x5f0] sm:$0xff]
  %v283 = vld [vmem:[%s1 + $0x5f8] sm:$0xff]
  %v284 = vld [vmem:[%s1 + $0x600] sm:$0xff]
  %v285 = vld [vmem:[%s1 + $0x608] sm:$0xff]
  %v286 = vld [vmem:[%s1 + $0x610] sm:$0xff]
  %v287 = vld [vmem:[%s1 + $0x618] sm:$0xff]
  %v288 = vld [vmem:[%s1 + $0x620] sm:$0xff]
  %v289 = vld [vmem:[%s1 + $0x628] sm:$0xff]
  %v290 = vld [vmem:[%s1 + $0x630] sm:$0xff]
  %v291 = vld [vmem:[%s1 + $0x638] sm:$0xff]
  %v292 = vld [vmem:[%s1 + $0x640] sm:$0xff]
  %v293 = vld [vmem:[%s1 + $0x648] sm:$0xff]
  %v294 = vld [vmem:[%s1 + $0x650] sm:$0xff]
  %v295 = vld [vmem:[%s1 + $0x658] sm:$0xff]
  %v296 = vld [vmem:[%s1 + $0x660] sm:$0xff]
  %v297 = vld [vmem:[%s1 + $0x668] sm:$0xff]
  %v298 = vld [vmem:[%s1 + $0x670] sm:$0xff]
  %v299 = vld [vmem:[%s1 + $0x678] sm:$0xff]
  %v300 = vld [vmem:[%s1 + $0x680] sm:$0xff]
  %v301 = vld [vmem:[%s1 + $0x688] sm:$0xff]
  %v302 = vld [vmem:[%s1 + $0x690] sm:$0xff]
  %v303 = vld [vmem:[%s1 + $0x698] sm:$0xff]
  %v304 = vld [vmem:[%s1 + $0x6a0] sm:$0xff]
  %v305 = vld [vmem:[%s1 + $0x6a8] sm:$0xff]
  %v306 = vld [vmem:[%s1 + $0x6b0] sm:$0xff]
  %v307 = vld [vmem:[%s1 + $0x6b8] sm:$0xff]
  %v308 = vld [vmem:[%s1 + $0x6c0] sm:$0xff]
  %v309 = vld [vmem:[%s1 + $0x6c8] sm:$0xff]
  %v310 = vld [vmem:[%s1 + $0x6d0] sm:$0xff]
  %v311 = vld [vmem:[%s1 + $0x6d8] sm:$0xff]
  %v312 = vld [vmem:[%s1 + $0x6e0] sm:$0xff]
  %v313 = vld [vmem:[%s1 + $0x6e8] sm:$0xff]
  %v314 = vld [vmem:[%s1 + $0x6f0] sm:$0xff]
  %v315 = vld [vmem:[%s1 + $0x6f8] sm:$0xff]
  %v316 = vld [vmem:[%s1 + $0x700] sm:$0xff]
  %v317 = vld [vmem:[%s1 + $0x708] sm:$0xff]
  %v318 = vld [vmem:[%s1 + $0x710] sm:$0xff]
  %v319 = vld [vmem:[%s1 + $0x718] sm:$0xff]
  %v320 = vld [vmem:[%s1 + $0x720] sm:$0xff]
  %v321 = vld [vmem:[%s1 + $0x728] sm:$0xff]
  %v322 = vld [vmem:[%s1 + $0x730] sm:$0xff]
  %v323 = vld [vmem:[%s1 + $0x738] sm:$0xff]
  %v324 = vld [vmem:[%s1 + $0x740] sm:$0xff]
  %v325 = vld [vmem:[%s1 + $0x748] sm:$0xff]
  %v326 = vld [vmem:[%s1 + $0x750] sm:$0xff]
  %v327 = vld [vmem:[%s1 + $0x758] sm:$0xff]
  %v328 = vld [vmem:[%s1 + $0x760] sm:$0xff]
  %v329 = vld [vmem:[%s1 + $0x768] sm:$0xff]
  %v330 = vld [vmem:[%s1 + $0x770] sm:$0xff]
  %v331 = vld [vmem:[%s1 + $0x778] sm:$0xff]
  %v332 = vld [vmem:[%s1 + $0x780] sm:$0xff]
  %v333 = vld [vmem:[%s1 + $0x788] sm:$0xff]
  %v334 = vld [vmem:[%s1 + $0x790] sm:$0xff]
  %v335 = vld [vmem:[%s1 + $0x798] sm:$0xff]
  %v336 = vld [vmem:[%s1 + $0x7a0] sm:$0xff]
  %v337 = vld [vmem:[%s1 + $0x7a8] sm:$0xff]
  %v338 = vld [vmem:[%s1 + $0x7b0] sm:$0xff]
  %v339 = vld [vmem:[%s1 + $0x7b8] sm:$0xff]
  %v340 = vld [vmem:[%s1 + $0x7c0] sm:$0xff]
  %v341 = vld [vmem:[%s1 + $0x7c8] sm:$0xff]
  %v342 = vld [vmem:[%s1 + $0x7d0] sm:$0xff]
  %v343 = vld [vmem:[%s1 + $0x7d8] sm:$0xff]
  %v344 = vld [vmem:[%s1 + $0x7e0] sm:$0xff]
  %v345 = vld [vmem:[%s1 + $0x7e8] sm:$0xff]
  %v346 = vld [vmem:[%s1 + $0x7f0] sm:$0xff]
  %v347 = vld [vmem:[%s1 + $0x7f8] sm:$0xff]
  %v348 = vld [vmem:[%s1 + $0x800] sm:$0xff]
  %v349 = vld [vmem:[%s1 + $0x808] sm:$0xff]
  %v350 = vld [vmem:[%s1 + $0x810] sm:$0xff]
  %v351 = vld [vmem:[%s1 + $0x818] sm:$0xff]
  %v352 = vld [vmem:[%s1 + $0x820] sm:$0xff]
  %v353 = vld [vmem:[%s1 + $0x828] sm:$0xff]
  %v354 = vld [vmem:[%s1 + $0x830] sm:$0xff]
  %v355 = vld [vmem:[%s1 + $0x838] sm:$0xff]
  %v356 = vld [vmem:[%s1 + $0x840] sm:$0xff]
  %v357 = vld [vmem:[%s1 + $0x848] sm:$0xff]
  %v358 = vld [vmem:[%s1 + $0x850] sm:$0xff]
  %v359 = vld [vmem:[%s1 + $0x858] sm:$0xff]
  %v360 = vld [vmem:[%s1 + $0x860] sm:$0xff]
  %v361 = vld [vmem:[%s1 + $0x868] sm:$0xff]
  %v362 = vld [vmem:[%s1 + $0x870] sm:$0xff]
  %v363 = vld [vmem:[%s1 + $0x878] sm:$0xff]
  %v364 = vld [vmem:[%s1 + $0x880] sm:$0xff]
  %v365 = vld [vmem:[%s1 + $0x888] sm:$0xff]
  %v366 = vld [vmem:[%s1 + $0x890] sm:$0xff]
  %v367 = vld [vmem:[%s1 + $0x898] sm:$0xff]
  %v368 = vld [vmem:[%s1 + $0x8a0] sm:$0xff]
  %v369 = vld [vmem:[%s1 + $0x8a8] sm:$0xff]
  %v370 = vld [vmem:[%s1 + $0x8b0] sm:$0xff]
  %v371 = vld [vmem:[%s1 + $0x8b8] sm:$0xff]
  %v372 = vld [vmem:[%s1 + $0x8c0] sm:$0xff]
  %v373 = vld [vmem:[%s1 + $0x8c8] sm:$0xff]
  %v374 = vld [vmem:[%s1 + $0x8d0] sm:$0xff]
  %v375 = vld [vmem:[%s1 + $0x8d8] sm:$0xff]
  %v376 = vld [vmem:[%s1 + $0x8e0] sm:$0xff]
  %v377 = vld [vmem:[%s1 + $0x8e8] sm:$0xff]
  %v378 = vld [vmem:[%s1 + $0x8f0] sm:$0xff]
  %v379 = vld [vmem:[%s1 + $0x8f8] sm:$0xff]
  %v380 = vld [vmem:[%s1 + $0x900] sm:$0xff]
  %v381 = vld [vmem:[%s1 + $0x908] sm:$0xff]
  %v382 = vld [vmem:[%s1 + $0x910] sm:$0xff]
  %v383 = vld [vmem:[%s1 + $0x918] sm:$0xff]
  %v384 = vld [vmem:[%s1 + $0x920] sm:$0xff]
  %v385 = vld [vmem:[%s1 + $0x928] sm:$0xff]
  %v386 = vld [vmem:[%s1 + $0x930] sm:$0xff]
  %v387 = vld [vmem:[%s1 + $0x938] sm:$0xff]
  %v388 = vld [vmem:[%s1 + $0x940] sm:$0xff]
  %v389 = vld [vmem:[%s1 + $0x948] sm:$0xff]
  %v390 = vld [vmem:[%s1 + $0x950] sm:$0xff]
  %v391 = vld [vmem:[%s1 + $0x958] sm:$0xff]
  %v392 = vld [vmem:[%s1 + $0x960] sm:$0xff]
  %v393 = vld [vmem:[%s1 + $0x968] sm:$0xff]
  %v394 = vld [vmem:[%s1 + $0x970] sm:$0xff]
  %v395 = vld [vmem:[%s1 + $0x978] sm:$0xff]
  %v396 = vld [vmem:[%s1 + $0x980] sm:$0xff]
  %v397 = vld [vmem:[%s1 + $0x988] sm:$0xff]
  %v398 = vld [vmem:[%s1 + $0x990] sm:$0xff]
  %v399 = vld [vmem:[%s1 + $0x998] sm:$0xff]
  %v400 = vld [vmem:[%s1 + $0x9a0] sm:$0xff]
  %v401 = vld [vmem:[%s1 + $0x9a8] sm:$0xff]
  %v402 = vld [vmem:[%s1 + $0x9b0] sm:$0xff]
  %v403 = vld [vmem:[%s1 + $0x9b8] sm:$0xff]
  %v404 = vld [vmem:[%s1 + $0x9c0] sm:$0xff]
  %v405 = vld [vmem:[%s1 + $0x9c8] sm:$0xff]
  %v406 = vld [vmem:[%s1 + $0x9d0] sm:$0xff]
  %v407 = vld [vmem:[%s1 + $0x9d8] sm:$0xff]
  %v408 = vld [vmem:[%s1 + $0x9e0] sm:$0xff]
  %v409 = vld [vmem:[%s1 + $0x9e8] sm:$0xff]
  %v410 = vld [vmem:[%s1 + $0x9f0] sm:$0xff]
  %v411 = vld [vmem:[%s1 + $0x9f8] sm:$0xff]
  %v412 = vld [vmem:[%s1 + $0xa00] sm:$0xff]
  %v413 = vld [vmem:[%s1 + $0xa08] sm:$0xff]
  %v414 = vld [vmem:[%s1 + $0xa10] sm:$0xff]
  %v415 = vld [vmem:[%s1 + $0xa18] sm:$0xff]
  %v416 = vld [vmem:[%s1 + $0xa20] sm:$0xff]
  %v417 = vld [vmem:[%s1 + $0xa28] sm:$0xff]
  %v418 = vld [vmem:[%s1 + $0xa30] sm:$0xff]
  %v419 = vld [vmem:[%s1 + $0xa38] sm:$0xff]
  %v420 = vld [vmem:[%s1 + $0xa40] sm:$0xff]
  %v421 = vld [vmem:[%s1 + $0xa48] sm:$0xff]
  %v422 = vld [vmem:[%s1 + $0xa50] sm:$0xff]
  %v423 = vld [vmem:[%s1 + $0xa58] sm:$0xff]
  %v424 = vld [vmem:[%s1 + $0xa60] sm:$0xff]
  %v425 = vld [vmem:[%s1 + $0xa68] sm:$0xff]
  %v426 = vld [vmem:[%s1 + $0xa70] sm:$0xff]
  %v427 = vld [vmem:[%s1 + $0xa78] sm:$0xff]
  %v428 = vld [vmem:[%s1 + $0xa80] sm:$0xff]
  %v429 = vld [vmem:[%s1 + $0xa88] sm:$0xff]
  %v430 = vld [vmem:[%s1 + $0xa90] sm:$0xff]
  %v431 = vld [vmem:[%s1 + $0xa98] sm:$0xff]
  %v432 = vld [vmem:[%s1 + $0xaa0] sm:$0xff]
  %v433 = vld [vmem:[%s1 + $0xaa8] sm:$0xff]
  %v434 = vld [vmem:[%s1 + $0xab0] sm:$0xff]
  %v435 = vld [vmem:[%s1 + $0xab8] sm:$0xff]
  %v436 = vld [vmem:[%s1 + $0xac0] sm:$0xff]
  %v437 = vld [vmem:[%s1 + $0xac8] sm:$0xff]
  %v438 = vld [vmem:[%s1 + $0xad0] sm:$0xff]
  %v439 = vld [vmem:[%s1 + $0xad8] sm:$0xff]
  %v440 = vld [vmem:[%s1 + $0xae0] sm:$0xff]
  %v441 = vld [vmem:[%s1 + $0xae8] sm:$0xff]
  %v442 = vld [vmem:[%s1 + $0xaf0] sm:$0xff]
  %v443 = vld [vmem:[%s1 + $0xaf8] sm:$0xff]
  %v444 = vld [vmem:[%s1 + $0xb00] sm:$0xff]
  %v445 = vld [vmem:[%s1 + $0xb08] sm:$0xff]
  %v446 = vld [vmem:[%s1 + $0xb10] sm:$0xff]
  %v447 = vld [vmem:[%s1 + $0xb18] sm:$0xff]
  %v448 = vld [vmem:[%s1 + $0xb20] sm:$0xff]
  %v449 = vld [vmem:[%s1 + $0xb28] sm:$0xff]
  %v450 = vld [vmem:[%s1 + $0xb30] sm:$0xff]
  %v451 = vld [vmem:[%s1 + $0xb38] sm:$0xff]
  %v452 = vld [vmem:[%s1 + $0xb40] sm:$0xff]
  %v453 = vld [vmem:[%s1 + $0xb48] sm:$0xff]
  %v454 = vld [vmem:[%s1 + $0xb50] sm:$0xff]
  %v455 = vld [vmem:[%s1 + $0xb58] sm:$0xff]
  %v456 = vld [vmem:[%s1 + $0xb60] sm:$0xff]
  %v457 = vld [vmem:[%s1 + $0xb68] sm:$0xff]
  %v458 = vld [vmem:[%s1 + $0xb70] sm:$0xff]
  %v459 = vld [vmem:[%s1 + $0xb78] sm:$0xff]
  %v460 = vld [vmem:[%s1 + $0xb80] sm:$0xff]
  %v461 = vld [vmem:[%s1 + $0xb88] sm:$0xff]
  %v462 = vld [vmem:[%s1 + $0xb90] sm:$0xff]
  %v463 = vld [vmem:[%s1 + $0xb98] sm:$0xff]
  %v464 = vld [vmem:[%s1 + $0xba0] sm:$0xff]
  %v465 = vld [vmem:[%s1 + $0xba8] sm:$0xff]
  %v466 = vld [vmem:[%s1 + $0xbb0] sm:$0xff]
  %v467 = vld [vmem:[%s1 + $0xbb8] sm:$0xff]
  %v468 = vld [vmem:[%s1 + $0xbc0] sm:$0xff]
  %v469 = vld [vmem:[%s1 + $0xbc8] sm:$0xff]
  %v470 = vld [vmem:[%s1 + $0xbd0] sm:$0xff]
  %v471 = vld [vmem:[%s1 + $0xbd8] sm:$0xff]
  %v472 = vld [vmem:[%s1 + $0xbe0] sm:$0xff]
  %v473 = vld [vmem:[%s1 + $0xbe8] sm:$0xff]
  %v474 = vld [vmem:[%s1 + $0xbf0] sm:$0xff]
  %v475 = vld [vmem:[%s1 + $0xbf8] sm:$0xff]
  %v476 = vld [vmem:[%s1 + $0xc00] sm:$0xff]
  %v477 = vld [vmem:[%s1 + $0xc08] sm:$0xff]
  %v478 = vld [vmem:[%s1 + $0xc10] sm:$0xff]
  %v479 = vld [vmem:[%s1 + $0xc18] sm:$0xff]
  %v480 = vld [vmem:[%s1 + $0xc20] sm:$0xff]
  %v481 = vld [vmem:[%s1 + $0xc28] sm:$0xff]
  %v482 = vld [vmem:[%s1 + $0xc30] sm:$0xff]
  %v483 = vld [vmem:[%s1 + $0xc38] sm:$0xff]
  %v484 = vld [vmem:[%s1 + $0xc40] sm:$0xff]
  %v485 = vld [vmem:[%s1 + $0xc48] sm:$0xff]
  %v486 = vld [vmem:[%s1 + $0xc50] sm:$0xff]
  %v487 = vld [vmem:[%s1 + $0xc58] sm:$0xff]
  %v488 = vld [vmem:[%s1 + $0xc60] sm:$0xff]
  %v489 = vld [vmem:[%s1 + $0xc68] sm:$0xff]
  %v490 = vld [vmem:[%s1 + $0xc70] sm:$0xff]
  %v491 = vld [vmem:[%s1 + $0xc78] sm:$0xff]
  %v492 = vld [vmem:[%s1 + $0xc80] sm:$0xff]
  %v493 = vld [vmem:[%s1 + $0xc88] sm:$0xff]
  %v494 = vld [vmem:[%s1 + $0xc90] sm:$0xff]
  %v495 = vld [vmem:[%s1 + $0xc98] sm:$0xff]
  %v496 = vld [vmem:[%s1 + $0xca0] sm:$0xff]
  %v497 = vld [vmem:[%s1 + $0xca8] sm:$0xff]
  %v498 = vld [vmem:[%s1 + $0xcb0] sm:$0xff]
  %v499 = vld [vmem:[%s1 + $0xcb8] sm:$0xff]
  %v500 = vld [vmem:[%s1 + $0xcc0] sm:$0xff]
  %v501 = vld [vmem:[%s1 + $0xcc8] sm:$0xff]
  %v502 = vld [vmem:[%s1 + $0xcd0] sm:$0xff]
  %v503 = vld [vmem:[%s1 + $0xcd8] sm:$0xff]
  %v504 = vld [vmem:[%s1 + $0xce0] sm:$0xff]
  %v505 = vld [vmem:[%s1 + $0xce8] sm:$0xff]
  %v506 = vld [vmem:[%s1 + $0xcf0] sm:$0xff]
  %v507 = vld [vmem:[%s1 + $0xcf8] sm:$0xff]
  %v508 = vld [vmem:[%s1 + $0xd00] sm:$0xff]
  %v509 = vld [vmem:[%s1 + $0xd08] sm:$0xff]
  %v510 = vld [vmem:[%s1 + $0xd10] sm:$0xff]
  %v511 = vld [vmem:[%s1 + $0xd18] sm:$0xff]
  %v512 = vld [vmem:[%s1 + $0xd20] sm:$0xff]
  %v513 = vld [vmem:[%s1 + $0xd28] sm:$0xff]
  %v514 = vld [vmem:[%s1 + $0xd30] sm:$0xff]
  %v515 = vld [vmem:[%s1 + $0xd38] sm:$0xff]
  %v516 = vld [vmem:[%s1 + $0xd40] sm:$0xff]
  %v517 = vld [vmem:[%s1 + $0xd48] sm:$0xff]
  %v518 = vld [vmem:[%s1 + $0xd50] sm:$0xff]
  %v519 = vld [vmem:[%s1 + $0xd58] sm:$0xff]
  %v520 = vld [vmem:[%s1 + $0xd60] sm:$0xff]
  %v521 = vld [vmem:[%s1 + $0xd68] sm:$0xff]
  %v522 = vld [vmem:[%s1 + $0xd70] sm:$0xff]
  %v523 = vld [vmem:[%s1 + $0xd78] sm:$0xff]
  %v524 = vld [vmem:[%s1 + $0xd80] sm:$0xff]
  %v525 = vld [vmem:[%s1 + $0xd88] sm:$0xff]
  %v526 = vld [vmem:[%s1 + $0xd90] sm:$0xff]
  %v527 = vld [vmem:[%s1 + $0xd98] sm:$0xff]
  %v528 = vld [vmem:[%s1 + $0xda0] sm:$0xff]
  %v529 = vld [vmem:[%s1 + $0xda8] sm:$0xff]
  %v530 = vld [vmem:[%s1 + $0xdb0] sm:$0xff]
  %v531 = vld [vmem:[%s1 + $0xdb8] sm:$0xff]
  %v532 = vld [vmem:[%s1 + $0xdc0] sm:$0xff]
  %v533 = vld [vmem:[%s1 + $0xdc8] sm:$0xff]
  %v534 = vld [vmem:[%s1 + $0xdd0] sm:$0xff]
  %v535 = vld [vmem:[%s1 + $0xdd8] sm:$0xff]
  %v536 = vld [vmem:[%s1 + $0xde0] sm:$0xff]
  %v537 = vld [vmem:[%s1 + $0xde8] sm:$0xff]
  %v538 = vld [vmem:[%s1 + $0xdf0] sm:$0xff]
  %v539 = vld [vmem:[%s1 + $0xdf8] sm:$0xff]
  %v540 = vld [vmem:[%s1 + $0xe00] sm:$0xff]
  %v541 = vld [vmem:[%s1 + $0xe08] sm:$0xff]
  %v542 = vld [vmem:[%s1 + $0xe10] sm:$0xff]
  %v543 = vld [vmem:[%s1 + $0xe18] sm:$0xff]
  %v544 = vld [vmem:[%s1 + $0xe20] sm:$0xff]
  %v545 = vld [vmem:[%s1 + $0xe28] sm:$0xff]
  %v546 = vld [vmem:[%s1 + $0xe30] sm:$0xff]
  %v547 = vld [vmem:[%s1 + $0xe38] sm:$0xff]
  %v548 = vld [vmem:[%s1 + $0xe40] sm:$0xff]
  %v549 = vld [vmem:[%s1 + $0xe48] sm:$0xff]
  %v550 = vld [vmem:[%s1 + $0xe50] sm:$0xff]
  %v551 = vld [vmem:[%s1 + $0xe58] sm:$0xff]
  %v552 = vld [vmem:[%s1 + $0xe60] sm:$0xff]
  %v553 = vld [vmem:[%s1 + $0xe68] sm:$0xff]
  %v554 = vld [vmem:[%s1 + $0xe70] sm:$0xff]
  %v555 = vld [vmem:[%s1 + $0xe78] sm:$0xff]
  %v556 = vld [vmem:[%s1 + $0xe80] sm:$0xff]
  %v557 = vld [vmem:[%s1 + $0xe88] sm:$0xff]
  %v558 = vld [vmem:[%s1 + $0xe90] sm:$0xff]
  %v559 = vld [vmem:[%s1 + $0xe98] sm:$0xff]
  %v560 = vld [vmem:[%s1 + $0xea0] sm:$0xff]
  %v561 = vld [vmem:[%s1 + $0xea8] sm:$0xff]
  %v562 = vld [vmem:[%s1 + $0xeb0] sm:$0xff]
  %v563 = vld [vmem:[%s1 + $0xeb8] sm:$0xff]
  %v564 = vld [vmem:[%s1 + $0xec0] sm:$0xff]
  %v565 = vld [vmem:[%s1 + $0xec8] sm:$0xff]
  %v566 = vld [vmem:[%s1 + $0xed0] sm:$0xff]
  %v567 = vld [vmem:[%s1 + $0xed8] sm:$0xff]
  %v568 = vld [vmem:[%s1 + $0xee0] sm:$0xff]
  %v569 = vld [vmem:[%s1 + $0xee8] sm:$0xff]
  %v570 = vld [vmem:[%s1 + $0xef0] sm:$0xff]
  %v571 = vld [vmem:[%s1 + $0xef8] sm:$0xff]
  %v572 = vld [vmem:[%s1 + $0xf00] sm:$0xff]
  %v573 = vld [vmem:[%s1 + $0xf08] sm:$0xff]
  %v574 = vld [vmem:[%s1 + $0xf10] sm:$0xff]
  %v575 = vld [vmem:[%s1 + $0xf18] sm:$0xff]
  %v576 = vld [vmem:[%s1 + $0xf20] sm:$0xff]
  %v577 = vld [vmem:[%s1 + $0xf28] sm:$0xff]
  %v578 = vld [vmem:[%s1 + $0xf30] sm:$0xff]
  %v579 = vld [vmem:[%s1 + $0xf38] sm:$0xff]
  %v580 = vld [vmem:[%s1 + $0xf40] sm:$0xff]
  %v581 = vld [vmem:[%s1 + $0xf48] sm:$0xff]
  %v582 = vld [vmem:[%s1 + $0xf50] sm:$0xff]
  %v583 = vld [vmem:[%s1 + $0xf58] sm:$0xff]
  %v584 = vld [vmem:[%s1 + $0xf60] sm:$0xff]
  %v585 = vld [vmem:[%s1 + $0xf68] sm:$0xff]
  %v586 = vld [vmem:[%s1 + $0xf70] sm:$0xff]
  %v587 = vld [vmem:[%s1 + $0xf78] sm:$0xff]
  %v588 = vld [vmem:[%s1 + $0xf80] sm:$0xff]
  %v589 = vld [vmem:[%s1 + $0xf88] sm:$0xff]
  %v590 = vld [vmem:[%s1 + $0xf90] sm:$0xff]
  %v591 = vld [vmem:[%s1 + $0xf98] sm:$0xff]
  %v592 = vld [vmem:[%s1 + $0xfa0] sm:$0xff]
  %v593 = vld [vmem:[%s1 + $0xfa8] sm:$0xff]
  %v594 = vld [vmem:[%s1 + $0xfb0] sm:$0xff]
  %v595 = vld [vmem:[%s1 + $0xfb8] sm:$0xff]
  %v596 = vld [vmem:[%s1 + $0xfc0] sm:$0xff]
  %v597 = vld [vmem:[%s1 + $0xfc8] sm:$0xff]
  %v598 = vld [vmem:[%s1 + $0xfd0] sm:$0xff]
  %v599 = vld [vmem:[%s1 + $0xfd8] sm:$0xff]
  %v600 = vld [vmem:[%s1 + $0xfe0] sm:$0xff]
  %v601 = vld [vmem:[%s1 + $0xfe8] sm:$0xff]
  %v602 = vld [vmem:[%s1 + $0xff0] sm:$0xff]
  %v603 = vld [vmem:[%s1 + $0xff8] sm:$0xff]
  %v604 = vld [vmem:[%s1 + $0x1000] sm:$0xff]
  %v605 = vld [vmem:[%s1 + $0x1008] sm:$0xff]
  %v606 = vld [vmem:[%s1 + $0x1010] sm:$0xff]
  %v607 = vld [vmem:[%s1 + $0x1018] sm:$0xff]
  %v608 = vld [vmem:[%s1 + $0x1020] sm:$0xff]
  %v609 = vld [vmem:[%s1 + $0x1028] sm:$0xff]
  %v610 = vld [vmem:[%s1 + $0x1030] sm:$0xff]
  %v611 = vld [vmem:[%s1 + $0x1038] sm:$0xff]
  %v612 = vld [vmem:[%s1 + $0x1040] sm:$0xff]
  %v613 = vld [vmem:[%s1 + $0x1048] sm:$0xff]
  %v614 = vld [vmem:[%s1 + $0x1050] sm:$0xff]
  %v615 = vld [vmem:[%s1 + $0x1058] sm:$0xff]
  %v616 = vld [vmem:[%s1 + $0x1060] sm:$0xff]
  %v617 = vld [vmem:[%s1 + $0x1068] sm:$0xff]
  %v618 = vld [vmem:[%s1 + $0x1070] sm:$0xff]
  %v619 = vld [vmem:[%s1 + $0x1078] sm:$0xff]
  %v620 = vld [vmem:[%s1 + $0x1080] sm:$0xff]
  %v621 = vld [vmem:[%s1 + $0x1088] sm:$0xff]
  %v622 = vld [vmem:[%s1 + $0x1090] sm:$0xff]
  %v623 = vld [vmem:[%s1 + $0x1098] sm:$0xff]
  %v624 = vld [vmem:[%s1 + $0x10a0] sm:$0xff]
  %v625 = vld [vmem:[%s1 + $0x10a8] sm:$0xff]
  %v626 = vld [vmem:[%s1 + $0x10b0] sm:$0xff]
  %v627 = vld [vmem:[%s1 + $0x10b8] sm:$0xff]
  %v628 = vld [vmem:[%s1 + $0x10c0] sm:$0xff]
  %v629 = vld [vmem:[%s1 + $0x10c8] sm:$0xff]
  %v630 = vld [vmem:[%s1 + $0x10d0] sm:$0xff]
  %v631 = vld [vmem:[%s1 + $0x10d8] sm:$0xff]
  %v632 = vld [vmem:[%s1 + $0x10e0] sm:$0xff]
  %v633 = vld [vmem:[%s1 + $0x10e8] sm:$0xff]
  %v634 = vld [vmem:[%s1 + $0x10f0] sm:$0xff]
  %v635 = vld [vmem:[%s1 + $0x10f8] sm:$0xff]
  %v636 = vld [vmem:[%s1 + $0x1100] sm:$0xff]
  %v637 = vld [vmem:[%s1 + $0x1108] sm:$0xff]
  %v638 = vld [vmem:[%s1 + $0x1110] sm:$0xff]
  %v639 = vld [vmem:[%s1 + $0x1118] sm:$0xff]
  %v640 = vld [vmem:[%s1 + $0x1120] sm:$0xff]
  %v641 = vld [vmem:[%s1 + $0x1128] sm:$0xff]
  %v642 = vld [vmem:[%s1 + $0x1130] sm:$0xff]
  %v643 = vld [vmem:[%s1 + $0x1138] sm:$0xff]
  %v644 = vld [vmem:[%s1 + $0x1140] sm:$0xff]
  %v645 = vld [vmem:[%s1 + $0x1148] sm:$0xff]
  %v646 = vld [vmem:[%s1 + $0x1150] sm:$0xff]
  %v647 = vld [vmem:[%s1 + $0x1158] sm:$0xff]
  %v648 = vld [vmem:[%s1 + $0x1160] sm:$0xff]
  %v649 = vld [vmem:[%s1 + $0x1168] sm:$0xff]
  %v650 = vld [vmem:[%s1 + $0x1170] sm:$0xff]
  %v651 = vld [vmem:[%s1 + $0x1178] sm:$0xff]
  %v652 = vld [vmem:[%s1 + $0x1180] sm:$0xff]
  %v653 = vld [vmem:[%s1 + $0x1188] sm:$0xff]
  %v654 = vld [vmem:[%s1 + $0x1190] sm:$0xff]
  %v655 = vld [vmem:[%s1 + $0x1198] sm:$0xff]
  %v656 = vld [vmem:[%s1 + $0x11a0] sm:$0xff]
  %v657 = vld [vmem:[%s1 + $0x11a8] sm:$0xff]
  %v658 = vld [vmem:[%s1 + $0x11b0] sm:$0xff]
  %v659 = vld [vmem:[%s1 + $0x11b8] sm:$0xff]
  %v660 = vld [vmem:[%s1 + $0x11c0] sm:$0xff]
  %v661 = vld [vmem:[%s1 + $0x11c8] sm:$0xff]
  %v662 = vld [vmem:[%s1 + $0x11d0] sm:$0xff]
  %v663 = vld [vmem:[%s1 + $0x11d8] sm:$0xff]
  %v664 = vld [vmem:[%s1 + $0x11e0] sm:$0xff]
  %v665 = vld [vmem:[%s1 + $0x11e8] sm:$0xff]
  %v666 = vld [vmem:[%s1 + $0x11f0] sm:$0xff]
  %v667 = vld [vmem:[%s1 + $0x11f8] sm:$0xff]
  %668 = vmatpush.msra.mxu0 %v122
  %669 = vmatpush.msra.mxu0 %v120
  %670 = vmatpush.msra.mxu0 %v118
  %671 = vmatpush.msra.mxu0 %v116
  %672 = vmatpush.msra.mxu0 %v114
  %673 = vmatpush.msra.mxu0 %v112
  %674 = vmatpush.msra.mxu0 %v110
  %675 = vmatpush.msra.mxu0 %v108
  %676 = vmatpush.msra.mxu0 %v106
  %677 = vmatpush.msra.mxu0 %v104
  %678 = vmatpush.msra.mxu0 %v102
  %679 = vmatpush.msra.mxu0 %v100
  %680 = vmatpush.msra.mxu0 %v98
  %681 = vmatpush.msra.mxu0 %v96
  %682 = vmatpush.msra.mxu0 %v94
  %683 = vmatpush.msra.mxu0 %v92
  %684 = vmatmul.f32.gmra.mxu0 %v20
  %v685 = vpop.f32.mrf.mxu0
  %v686 = vadd.f32 0.0, %v685
  %687 = vmatmul.f32.gmra.mxu0 %v38
  %v688 = vpop.f32.mrf.mxu0
  %v689 = vadd.f32 0.0, %v688
  %690 = vmatmul.f32.gmra.mxu0 %v56
  %v691 = vpop.f32.mrf.mxu0
  %v692 = vadd.f32 0.0, %v691
  %693 = vmatmul.f32.gmra.mxu0 %v74
  %v694 = vpop.f32.mrf.mxu0
  %v695 = vadd.f32 0.0, %v694
  %696 = vdwg.mxu0
  %697 = vmatpush.msra.mxu0 %v154
  %698 = vmatpush.msra.mxu0 %v152
  %699 = vmatpush.msra.mxu0 %v150
  %700 = vmatpush.msra.mxu0 %v148
  %701 = vmatpush.msra.mxu0 %v146
  %702 = vmatpush.msra.mxu0 %v144
  %703 = vmatpush.msra.mxu0 %v142
  %704 = vmatpush.msra.mxu0 %v140
  %705 = vmatpush.msra.mxu0 %v138
  %706 = vmatpush.msra.mxu0 %v136
  %707 = vmatpush.msra.mxu0 %v134
  %708 = vmatpush.msra.mxu0 %v132
  %709 = vmatpush.msra.mxu0 %v130
  %710 = vmatpush.msra.mxu0 %v128
  %711 = vmatpush.msra.mxu0 %v126
  %712 = vmatpush.msra.mxu0 %v124
  %713 = vmatmul.f32.gmra.mxu0 %v21
  %v714 = vpop.f32.mrf.mxu0
  %v715 = vadd.f32 %v686, %v714
  %716 = vmatmul.f32.gmra.mxu0 %v39
  %v717 = vpop.f32.mrf.mxu0
  %v718 = vadd.f32 %v689, %v717
  %719 = vmatmul.f32.gmra.mxu0 %v57
  %v720 = vpop.f32.mrf.mxu0
  %v721 = vadd.f32 %v692, %v720
  %722 = vmatmul.f32.gmra.mxu0 %v75
  %v723 = vpop.f32.mrf.mxu0
  %v724 = vadd.f32 %v695, %v723
  %725 = vdwg.mxu0
  %726 = vmatpush.msra.mxu0 %v186
  %727 = vmatpush.msra.mxu0 %v184
  %728 = vmatpush.msra.mxu0 %v182
  %729 = vmatpush.msra.mxu0 %v180
  %730 = vmatpush.msra.mxu0 %v178
  %731 = vmatpush.msra.mxu0 %v176
  %732 = vmatpush.msra.mxu0 %v174
  %733 = vmatpush.msra.mxu0 %v172
  %734 = vmatpush.msra.mxu0 %v170
  %735 = vmatpush.msra.mxu0 %v168
  %736 = vmatpush.msra.mxu0 %v166
  %737 = vmatpush.msra.mxu0 %v164
  %738 = vmatpush.msra.mxu0 %v162
  %739 = vmatpush.msra.mxu0 %v160
  %740 = vmatpush.msra.mxu0 %v158
  %741 = vmatpush.msra.mxu0 %v156
  %742 = vmatmul.f32.gmra.mxu0 %v22
  %v743 = vpop.f32.mrf.mxu0
  %v744 = vadd.f32 %v715, %v743
  %745 = vmatmul.f32.gmra.mxu0 %v40
  %v746 = vpop.f32.mrf.mxu0
  %v747 = vadd.f32 %v718, %v746
  %748 = vmatmul.f32.gmra.mxu0 %v58
  %v749 = vpop.f32.mrf.mxu0
  %v750 = vadd.f32 %v721, %v749
  %751 = vmatmul.f32.gmra.mxu0 %v76
  %v752 = vpop.f32.mrf.mxu0
  %v753 = vadd.f32 %v724, %v752
  %754 = vdwg.mxu0
  %755 = vmatpush.msra.mxu0 %v218
  %756 = vmatpush.msra.mxu0 %v216
  %757 = vmatpush.msra.mxu0 %v214
  %758 = vmatpush.msra.mxu0 %v212
  %759 = vmatpush.msra.mxu0 %v210
  %760 = vmatpush.msra.mxu0 %v208
  %761 = vmatpush.msra.mxu0 %v206
  %762 = vmatpush.msra.mxu0 %v204
  %763 = vmatpush.msra.mxu0 %v202
  %764 = vmatpush.msra.mxu0 %v200
  %765 = vmatpush.msra.mxu0 %v198
  %766 = vmatpush.msra.mxu0 %v196
  %767 = vmatpush.msra.mxu0 %v194
  %768 = vmatpush.msra.mxu0 %v192
  %769 = vmatpush.msra.mxu0 %v190
  %770 = vmatpush.msra.mxu0 %v188
  %771 = vmatmul.f32.gmra.mxu0 %v23
  %v772 = vpop.f32.mrf.mxu0
  %v773 = vadd.f32 %v744, %v772
  %774 = vmatmul.f32.gmra.mxu0 %v41
  %v775 = vpop.f32.mrf.mxu0
  %v776 = vadd.f32 %v747, %v775
  %777 = vmatmul.f32.gmra.mxu0 %v59
  %v778 = vpop.f32.mrf.mxu0
  %v779 = vadd.f32 %v750, %v778
  %780 = vmatmul.f32.gmra.mxu0 %v77
  %v781 = vpop.f32.mrf.mxu0
  %v782 = vadd.f32 %v753, %v781
  %783 = vdwg.mxu0
  %784 = vmatpush.msra.mxu0 %v250
  %785 = vmatpush.msra.mxu0 %v248
  %786 = vmatpush.msra.mxu0 %v246
  %787 = vmatpush.msra.mxu0 %v244
  %788 = vmatpush.msra.mxu0 %v242
  %789 = vmatpush.msra.mxu0 %v240
  %790 = vmatpush.msra.mxu0 %v238
  %791 = vmatpush.msra.mxu0 %v236
  %792 = vmatpush.msra.mxu0 %v234
  %793 = vmatpush.msra.mxu0 %v232
  %794 = vmatpush.msra.mxu0 %v230
  %795 = vmatpush.msra.mxu0 %v228
  %796 = vmatpush.msra.mxu0 %v226
  %797 = vmatpush.msra.mxu0 %v224
  %798 = vmatpush.msra.mxu0 %v222
  %799 = vmatpush.msra.mxu0 %v220
  %800 = vmatmul.f32.gmra.mxu0 %v24
  %v801 = vpop.f32.mrf.mxu0
  %v802 = vadd.f32 %v773, %v801
  %803 = vmatmul.f32.gmra.mxu0 %v42
  %v804 = vpop.f32.mrf.mxu0
  %v805 = vadd.f32 %v776, %v804
  %806 = vmatmul.f32.gmra.mxu0 %v60
  %v807 = vpop.f32.mrf.mxu0
  %v808 = vadd.f32 %v779, %v807
  %809 = vmatmul.f32.gmra.mxu0 %v78
  %v810 = vpop.f32.mrf.mxu0
  %v811 = vadd.f32 %v782, %v810
  %812 = vdwg.mxu0
  %813 = vmatpush.msra.mxu0 %v282
  %814 = vmatpush.msra.mxu0 %v280
  %815 = vmatpush.msra.mxu0 %v278
  %816 = vmatpush.msra.mxu0 %v276
  %817 = vmatpush.msra.mxu0 %v274
  %818 = vmatpush.msra.mxu0 %v272
  %819 = vmatpush.msra.mxu0 %v270
  %820 = vmatpush.msra.mxu0 %v268
  %821 = vmatpush.msra.mxu0 %v266
  %822 = vmatpush.msra.mxu0 %v264
  %823 = vmatpush.msra.mxu0 %v262
  %824 = vmatpush.msra.mxu0 %v260
  %825 = vmatpush.msra.mxu0 %v258
  %826 = vmatpush.msra.mxu0 %v256
  %827 = vmatpush.msra.mxu0 %v254
  %828 = vmatpush.msra.mxu0 %v252
  %829 = vmatmul.f32.gmra.mxu0 %v25
  %v830 = vpop.f32.mrf.mxu0
  %v831 = vadd.f32 %v802, %v830
  %832 = vmatmul.f32.gmra.mxu0 %v43
  %v833 = vpop.f32.mrf.mxu0
  %v834 = vadd.f32 %v805, %v833
  %835 = vmatmul.f32.gmra.mxu0 %v61
  %v836 = vpop.f32.mrf.mxu0
  %v837 = vadd.f32 %v808, %v836
  %838 = vmatmul.f32.gmra.mxu0 %v79
  %v839 = vpop.f32.mrf.mxu0
  %v840 = vadd.f32 %v811, %v839
  %841 = vdwg.mxu0
  %842 = vmatpush.msra.mxu0 %v314
  %843 = vmatpush.msra.mxu0 %v312
  %844 = vmatpush.msra.mxu0 %v310
  %845 = vmatpush.msra.mxu0 %v308
  %846 = vmatpush.msra.mxu0 %v306
  %847 = vmatpush.msra.mxu0 %v304
  %848 = vmatpush.msra.mxu0 %v302
  %849 = vmatpush.msra.mxu0 %v300
  %850 = vmatpush.msra.mxu0 %v298
  %851 = vmatpush.msra.mxu0 %v296
  %852 = vmatpush.msra.mxu0 %v294
  %853 = vmatpush.msra.mxu0 %v292
  %854 = vmatpush.msra.mxu0 %v290
  %855 = vmatpush.msra.mxu0 %v288
  %856 = vmatpush.msra.mxu0 %v286
  %857 = vmatpush.msra.mxu0 %v284
  %858 = vmatmul.f32.gmra.mxu0 %v26
  %v859 = vpop.f32.mrf.mxu0
  %v860 = vadd.f32 %v831, %v859
  %861 = vmatmul.f32.gmra.mxu0 %v44
  %v862 = vpop.f32.mrf.mxu0
  %v863 = vadd.f32 %v834, %v862
  %864 = vmatmul.f32.gmra.mxu0 %v62
  %v865 = vpop.f32.mrf.mxu0
  %v866 = vadd.f32 %v837, %v865
  %867 = vmatmul.f32.gmra.mxu0 %v80
  %v868 = vpop.f32.mrf.mxu0
  %v869 = vadd.f32 %v840, %v868
  %870 = vdwg.mxu0
  %871 = vmatpush.msra.mxu0 %v346
  %872 = vmatpush.msra.mxu0 %v344
  %873 = vmatpush.msra.mxu0 %v342
  %874 = vmatpush.msra.mxu0 %v340
  %875 = vmatpush.msra.mxu0 %v338
  %876 = vmatpush.msra.mxu0 %v336
  %877 = vmatpush.msra.mxu0 %v334
  %878 = vmatpush.msra.mxu0 %v332
  %879 = vmatpush.msra.mxu0 %v330
  %880 = vmatpush.msra.mxu0 %v328
  %881 = vmatpush.msra.mxu0 %v326
  %882 = vmatpush.msra.mxu0 %v324
  %883 = vmatpush.msra.mxu0 %v322
  %884 = vmatpush.msra.mxu0 %v320
  %885 = vmatpush.msra.mxu0 %v318
  %886 = vmatpush.msra.mxu0 %v316
  %887 = vmatmul.f32.gmra.mxu0 %v27
  %v888 = vpop.f32.mrf.mxu0
  %v889 = vadd.f32 %v860, %v888
  %890 = vmatmul.f32.gmra.mxu0 %v45
  %v891 = vpop.f32.mrf.mxu0
  %v892 = vadd.f32 %v863, %v891
  %893 = vmatmul.f32.gmra.mxu0 %v63
  %v894 = vpop.f32.mrf.mxu0
  %v895 = vadd.f32 %v866, %v894
  %896 = vmatmul.f32.gmra.mxu0 %v81
  %v897 = vpop.f32.mrf.mxu0
  %v898 = vadd.f32 %v869, %v897
  %899 = vdwg.mxu0
  %900 = vmatpush.msra.mxu0 %v378
  %901 = vmatpush.msra.mxu0 %v376
  %902 = vmatpush.msra.mxu0 %v374
  %903 = vmatpush.msra.mxu0 %v372
  %904 = vmatpush.msra.mxu0 %v370
  %905 = vmatpush.msra.mxu0 %v368
  %906 = vmatpush.msra.mxu0 %v366
  %907 = vmatpush.msra.mxu0 %v364
  %908 = vmatpush.msra.mxu0 %v362
  %909 = vmatpush.msra.mxu0 %v360
  %910 = vmatpush.msra.mxu0 %v358
  %911 = vmatpush.msra.mxu0 %v356
  %912 = vmatpush.msra.mxu0 %v354
  %913 = vmatpush.msra.mxu0 %v352
  %914 = vmatpush.msra.mxu0 %v350
  %915 = vmatpush.msra.mxu0 %v348
  %916 = vmatmul.f32.gmra.mxu0 %v28
  %v917 = vpop.f32.mrf.mxu0
  %v918 = vadd.f32 %v889, %v917
  %919 = vmatmul.f32.gmra.mxu0 %v46
  %v920 = vpop.f32.mrf.mxu0
  %v921 = vadd.f32 %v892, %v920
  %922 = vmatmul.f32.gmra.mxu0 %v64
  %v923 = vpop.f32.mrf.mxu0
  %v924 = vadd.f32 %v895, %v923
  %925 = vmatmul.f32.gmra.mxu0 %v82
  %v926 = vpop.f32.mrf.mxu0
  %v927 = vadd.f32 %v898, %v926
  %928 = vdwg.mxu0
  %929 = vmatpush.msra.mxu0 %v410
  %930 = vmatpush.msra.mxu0 %v408
  %931 = vmatpush.msra.mxu0 %v406
  %932 = vmatpush.msra.mxu0 %v404
  %933 = vmatpush.msra.mxu0 %v402
  %934 = vmatpush.msra.mxu0 %v400
  %935 = vmatpush.msra.mxu0 %v398
  %936 = vmatpush.msra.mxu0 %v396
  %937 = vmatpush.msra.mxu0 %v394
  %938 = vmatpush.msra.mxu0 %v392
  %939 = vmatpush.msra.mxu0 %v390
  %940 = vmatpush.msra.mxu0 %v388
  %941 = vmatpush.msra.mxu0 %v386
  %942 = vmatpush.msra.mxu0 %v384
  %943 = vmatpush.msra.mxu0 %v382
  %944 = vmatpush.msra.mxu0 %v380
  %945 = vmatmul.f32.gmra.mxu0 %v29
  %v946 = vpop.f32.mrf.mxu0
  %v947 = vadd.f32 %v918, %v946
  %948 = vmatmul.f32.gmra.mxu0 %v47
  %v949 = vpop.f32.mrf.mxu0
  %v950 = vadd.f32 %v921, %v949
  %951 = vmatmul.f32.gmra.mxu0 %v65
  %v952 = vpop.f32.mrf.mxu0
  %v953 = vadd.f32 %v924, %v952
  %954 = vmatmul.f32.gmra.mxu0 %v83
  %v955 = vpop.f32.mrf.mxu0
  %v956 = vadd.f32 %v927, %v955
  %957 = vdwg.mxu0
  %958 = vmatpush.msra.mxu0 %v442
  %959 = vmatpush.msra.mxu0 %v440
  %960 = vmatpush.msra.mxu0 %v438
  %961 = vmatpush.msra.mxu0 %v436
  %962 = vmatpush.msra.mxu0 %v434
  %963 = vmatpush.msra.mxu0 %v432
  %964 = vmatpush.msra.mxu0 %v430
  %965 = vmatpush.msra.mxu0 %v428
  %966 = vmatpush.msra.mxu0 %v426
  %967 = vmatpush.msra.mxu0 %v424
  %968 = vmatpush.msra.mxu0 %v422
  %969 = vmatpush.msra.mxu0 %v420
  %970 = vmatpush.msra.mxu0 %v418
  %971 = vmatpush.msra.mxu0 %v416
  %972 = vmatpush.msra.mxu0 %v414
  %973 = vmatpush.msra.mxu0 %v412
  %974 = vmatmul.f32.gmra.mxu0 %v30
  %v975 = vpop.f32.mrf.mxu0
  %v976 = vadd.f32 %v947, %v975
  %977 = vmatmul.f32.gmra.mxu0 %v48
  %v978 = vpop.f32.mrf.mxu0
  %v979 = vadd.f32 %v950, %v978
  %980 = vmatmul.f32.gmra.mxu0 %v66
  %v981 = vpop.f32.mrf.mxu0
  %v982 = vadd.f32 %v953, %v981
  %983 = vmatmul.f32.gmra.mxu0 %v84
  %v984 = vpop.f32.mrf.mxu0
  %v985 = vadd.f32 %v956, %v984
  %986 = vdwg.mxu0
  %987 = vmatpush.msra.mxu0 %v474
  %988 = vmatpush.msra.mxu0 %v472
  %989 = vmatpush.msra.mxu0 %v470
  %990 = vmatpush.msra.mxu0 %v468
  %991 = vmatpush.msra.mxu0 %v466
  %992 = vmatpush.msra.mxu0 %v464
  %993 = vmatpush.msra.mxu0 %v462
  %994 = vmatpush.msra.mxu0 %v460
  %995 = vmatpush.msra.mxu0 %v458
  %996 = vmatpush.msra.mxu0 %v456
  %997 = vmatpush.msra.mxu0 %v454
  %998 = vmatpush.msra.mxu0 %v452
  %999 = vmatpush.msra.mxu0 %v450
  %1000 = vmatpush.msra.mxu0 %v448
  %1001 = vmatpush.msra.mxu0 %v446
  %1002 = vmatpush.msra.mxu0 %v444
  %1003 = vmatmul.f32.gmra.mxu0 %v31
  %v1004 = vpop.f32.mrf.mxu0
  %v1005 = vadd.f32 %v976, %v1004
  %1006 = vmatmul.f32.gmra.mxu0 %v49
  %v1007 = vpop.f32.mrf.mxu0
  %v1008 = vadd.f32 %v979, %v1007
  %1009 = vmatmul.f32.gmra.mxu0 %v67
  %v1010 = vpop.f32.mrf.mxu0
  %v1011 = vadd.f32 %v982, %v1010
  %1012 = vmatmul.f32.gmra.mxu0 %v85
  %v1013 = vpop.f32.mrf.mxu0
  %v1014 = vadd.f32 %v985, %v1013
  %1015 = vdwg.mxu0
  %1016 = vmatpush.msra.mxu0 %v506
  %1017 = vmatpush.msra.mxu0 %v504
  %1018 = vmatpush.msra.mxu0 %v502
  %1019 = vmatpush.msra.mxu0 %v500
  %1020 = vmatpush.msra.mxu0 %v498
  %1021 = vmatpush.msra.mxu0 %v496
  %1022 = vmatpush.msra.mxu0 %v494
  %1023 = vmatpush.msra.mxu0 %v492
  %1024 = vmatpush.msra.mxu0 %v490
  %1025 = vmatpush.msra.mxu0 %v488
  %1026 = vmatpush.msra.mxu0 %v486
  %1027 = vmatpush.msra.mxu0 %v484
  %1028 = vmatpush.msra.mxu0 %v482
  %1029 = vmatpush.msra.mxu0 %v480
  %1030 = vmatpush.msra.mxu0 %v478
  %1031 = vmatpush.msra.mxu0 %v476
  %1032 = vmatmul.f32.gmra.mxu0 %v32
  %v1033 = vpop.f32.mrf.mxu0
  %v1034 = vadd.f32 %v1005, %v1033
  %1035 = vmatmul.f32.gmra.mxu0 %v50
  %v1036 = vpop.f32.mrf.mxu0
  %v1037 = vadd.f32 %v1008, %v1036
  %1038 = vmatmul.f32.gmra.mxu0 %v68
  %v1039 = vpop.f32.mrf.mxu0
  %v1040 = vadd.f32 %v1011, %v1039
  %1041 = vmatmul.f32.gmra.mxu0 %v86
  %v1042 = vpop.f32.mrf.mxu0
  %v1043 = vadd.f32 %v1014, %v1042
  %1044 = vdwg.mxu0
  %1045 = vmatpush.msra.mxu0 %v538
  %1046 = vmatpush.msra.mxu0 %v536
  %1047 = vmatpush.msra.mxu0 %v534
  %1048 = vmatpush.msra.mxu0 %v532
  %1049 = vmatpush.msra.mxu0 %v530
  %1050 = vmatpush.msra.mxu0 %v528
  %1051 = vmatpush.msra.mxu0 %v526
  %1052 = vmatpush.msra.mxu0 %v524
  %1053 = vmatpush.msra.mxu0 %v522
  %1054 = vmatpush.msra.mxu0 %v520
  %1055 = vmatpush.msra.mxu0 %v518
  %1056 = vmatpush.msra.mxu0 %v516
  %1057 = vmatpush.msra.mxu0 %v514
  %1058 = vmatpush.msra.mxu0 %v512
  %1059 = vmatpush.msra.mxu0 %v510
  %1060 = vmatpush.msra.mxu0 %v508
  %1061 = vmatmul.f32.gmra.mxu0 %v33
  %v1062 = vpop.f32.mrf.mxu0
  %v1063 = vadd.f32 %v1034, %v1062
  %1064 = vmatmul.f32.gmra.mxu0 %v51
  %v1065 = vpop.f32.mrf.mxu0
  %v1066 = vadd.f32 %v1037, %v1065
  %1067 = vmatmul.f32.gmra.mxu0 %v69
  %v1068 = vpop.f32.mrf.mxu0
  %v1069 = vadd.f32 %v1040, %v1068
  %1070 = vmatmul.f32.gmra.mxu0 %v87
  %v1071 = vpop.f32.mrf.mxu0
  %v1072 = vadd.f32 %v1043, %v1071
  %1073 = vdwg.mxu0
  %1074 = vmatpush.msra.mxu0 %v570
  %1075 = vmatpush.msra.mxu0 %v568
  %1076 = vmatpush.msra.mxu0 %v566
  %1077 = vmatpush.msra.mxu0 %v564
  %1078 = vmatpush.msra.mxu0 %v562
  %1079 = vmatpush.msra.mxu0 %v560
  %1080 = vmatpush.msra.mxu0 %v558
  %1081 = vmatpush.msra.mxu0 %v556
  %1082 = vmatpush.msra.mxu0 %v554
  %1083 = vmatpush.msra.mxu0 %v552
  %1084 = vmatpush.msra.mxu0 %v550
  %1085 = vmatpush.msra.mxu0 %v548
  %1086 = vmatpush.msra.mxu0 %v546
  %1087 = vmatpush.msra.mxu0 %v544
  %1088 = vmatpush.msra.mxu0 %v542
  %1089 = vmatpush.msra.mxu0 %v540
  %1090 = vmatmul.f32.gmra.mxu0 %v34
  %v1091 = vpop.f32.mrf.mxu0
  %v1092 = vadd.f32 %v1063, %v1091
  %1093 = vmatmul.f32.gmra.mxu0 %v52
  %v1094 = vpop.f32.mrf.mxu0
  %v1095 = vadd.f32 %v1066, %v1094
  %1096 = vmatmul.f32.gmra.mxu0 %v70
  %v1097 = vpop.f32.mrf.mxu0
  %v1098 = vadd.f32 %v1069, %v1097
  %1099 = vmatmul.f32.gmra.mxu0 %v88
  %v1100 = vpop.f32.mrf.mxu0
  %v1101 = vadd.f32 %v1072, %v1100
  %1102 = vdwg.mxu0
  %1103 = vmatpush.msra.mxu0 %v602
  %1104 = vmatpush.msra.mxu0 %v600
  %1105 = vmatpush.msra.mxu0 %v598
  %1106 = vmatpush.msra.mxu0 %v596
  %1107 = vmatpush.msra.mxu0 %v594
  %1108 = vmatpush.msra.mxu0 %v592
  %1109 = vmatpush.msra.mxu0 %v590
  %1110 = vmatpush.msra.mxu0 %v588
  %1111 = vmatpush.msra.mxu0 %v586
  %1112 = vmatpush.msra.mxu0 %v584
  %1113 = vmatpush.msra.mxu0 %v582
  %1114 = vmatpush.msra.mxu0 %v580
  %1115 = vmatpush.msra.mxu0 %v578
  %1116 = vmatpush.msra.mxu0 %v576
  %1117 = vmatpush.msra.mxu0 %v574
  %1118 = vmatpush.msra.mxu0 %v572
  %1119 = vmatmul.f32.gmra.mxu0 %v35
  %v1120 = vpop.f32.mrf.mxu0
  %v1121 = vadd.f32 %v1092, %v1120
  %1122 = vmatmul.f32.gmra.mxu0 %v53
  %v1123 = vpop.f32.mrf.mxu0
  %v1124 = vadd.f32 %v1095, %v1123
  %1125 = vmatmul.f32.gmra.mxu0 %v71
  %v1126 = vpop.f32.mrf.mxu0
  %v1127 = vadd.f32 %v1098, %v1126
  %1128 = vmatmul.f32.gmra.mxu0 %v89
  %v1129 = vpop.f32.mrf.mxu0
  %v1130 = vadd.f32 %v1101, %v1129
  %1131 = vdwg.mxu0
  %1132 = vmatpush.msra.mxu0 %v634
  %1133 = vmatpush.msra.mxu0 %v632
  %1134 = vmatpush.msra.mxu0 %v630
  %1135 = vmatpush.msra.mxu0 %v628
  %1136 = vmatpush.msra.mxu0 %v626
  %1137 = vmatpush.msra.mxu0 %v624
  %1138 = vmatpush.msra.mxu0 %v622
  %1139 = vmatpush.msra.mxu0 %v620
  %1140 = vmatpush.msra.mxu0 %v618
  %1141 = vmatpush.msra.mxu0 %v616
  %1142 = vmatpush.msra.mxu0 %v614
  %1143 = vmatpush.msra.mxu0 %v612
  %1144 = vmatpush.msra.mxu0 %v610
  %1145 = vmatpush.msra.mxu0 %v608
  %1146 = vmatpush.msra.mxu0 %v606
  %1147 = vmatpush.msra.mxu0 %v604
  %1148 = vmatmul.f32.gmra.mxu0 %v36
  %v1149 = vpop.f32.mrf.mxu0
  %v1150 = vadd.f32 %v1121, %v1149
  %1151 = vmatmul.f32.gmra.mxu0 %v54
  %v1152 = vpop.f32.mrf.mxu0
  %v1153 = vadd.f32 %v1124, %v1152
  %1154 = vmatmul.f32.gmra.mxu0 %v72
  %v1155 = vpop.f32.mrf.mxu0
  %v1156 = vadd.f32 %v1127, %v1155
  %1157 = vmatmul.f32.gmra.mxu0 %v90
  %v1158 = vpop.f32.mrf.mxu0
  %v1159 = vadd.f32 %v1130, %v1158
  %1160 = vdwg.mxu0
  %1161 = vmatpush.msra.mxu0 %v666
  %1162 = vmatpush.msra.mxu0 %v664
  %1163 = vmatpush.msra.mxu0 %v662
  %1164 = vmatpush.msra.mxu0 %v660
  %1165 = vmatpush.msra.mxu0 %v658
  %1166 = vmatpush.msra.mxu0 %v656
  %1167 = vmatpush.msra.mxu0 %v654
  %1168 = vmatpush.msra.mxu0 %v652
  %1169 = vmatpush.msra.mxu0 %v650
  %1170 = vmatpush.msra.mxu0 %v648
  %1171 = vmatpush.msra.mxu0 %v646
  %1172 = vmatpush.msra.mxu0 %v644
  %1173 = vmatpush.msra.mxu0 %v642
  %1174 = vmatpush.msra.mxu0 %v640
  %1175 = vmatpush.msra.mxu0 %v638
  %1176 = vmatpush.msra.mxu0 %v636
  %1177 = vmatmul.f32.gmra.mxu0 %v37
  %v1178 = vpop.f32.mrf.mxu0
  %v1179 = vadd.f32 %v1150, %v1178
  %1180 = vmatmul.f32.gmra.mxu0 %v55
  %v1181 = vpop.f32.mrf.mxu0
  %v1182 = vadd.f32 %v1153, %v1181
  %1183 = vmatmul.f32.gmra.mxu0 %v73
  %v1184 = vpop.f32.mrf.mxu0
  %v1185 = vadd.f32 %v1156, %v1184
  %1186 = vmatmul.f32.gmra.mxu0 %v91
  %v1187 = vpop.f32.mrf.mxu0
  %v1188 = vadd.f32 %v1159, %v1187
  %1189 = vdwg.mxu0
  %1190 = vmatpush.msra.mxu0 %v123
  %1191 = vmatpush.msra.mxu0 %v121
  %1192 = vmatpush.msra.mxu0 %v119
  %1193 = vmatpush.msra.mxu0 %v117
  %1194 = vmatpush.msra.mxu0 %v115
  %1195 = vmatpush.msra.mxu0 %v113
  %1196 = vmatpush.msra.mxu0 %v111
  %1197 = vmatpush.msra.mxu0 %v109
  %1198 = vmatpush.msra.mxu0 %v107
  %1199 = vmatpush.msra.mxu0 %v105
  %1200 = vmatpush.msra.mxu0 %v103
  %1201 = vmatpush.msra.mxu0 %v101
  %1202 = vmatpush.msra.mxu0 %v99
  %1203 = vmatpush.msra.mxu0 %v97
  %1204 = vmatpush.msra.mxu0 %v95
  %1205 = vmatpush.msra.mxu0 %v93
  %1206 = vmatmul.f32.gmra.mxu0 %v20
  %v1207 = vpop.f32.mrf.mxu0
  %v1208 = vadd.f32 0.0, %v1207
  %1209 = vmatmul.f32.gmra.mxu0 %v38
  %v1210 = vpop.f32.mrf.mxu0
  %v1211 = vadd.f32 0.0, %v1210
  %1212 = vmatmul.f32.gmra.mxu0 %v56
  %v1213 = vpop.f32.mrf.mxu0
  %v1214 = vadd.f32 0.0, %v1213
  %1215 = vmatmul.f32.gmra.mxu0 %v74
  %v1216 = vpop.f32.mrf.mxu0
  %v1217 = vadd.f32 0.0, %v1216
  %1218 = vdwg.mxu0
  %1219 = vmatpush.msra.mxu0 %v155
  %1220 = vmatpush.msra.mxu0 %v153
  %1221 = vmatpush.msra.mxu0 %v151
  %1222 = vmatpush.msra.mxu0 %v149
  %1223 = vmatpush.msra.mxu0 %v147
  %1224 = vmatpush.msra.mxu0 %v145
  %1225 = vmatpush.msra.mxu0 %v143
  %1226 = vmatpush.msra.mxu0 %v141
  %1227 = vmatpush.msra.mxu0 %v139
  %1228 = vmatpush.msra.mxu0 %v137
  %1229 = vmatpush.msra.mxu0 %v135
  %1230 = vmatpush.msra.mxu0 %v133
  %1231 = vmatpush.msra.mxu0 %v131
  %1232 = vmatpush.msra.mxu0 %v129
  %1233 = vmatpush.msra.mxu0 %v127
  %1234 = vmatpush.msra.mxu0 %v125
  %1235 = vmatmul.f32.gmra.mxu0 %v21
  %v1236 = vpop.f32.mrf.mxu0
  %v1237 = vadd.f32 %v1208, %v1236
  %1238 = vmatmul.f32.gmra.mxu0 %v39
  %v1239 = vpop.f32.mrf.mxu0
  %v1240 = vadd.f32 %v1211, %v1239
  %1241 = vmatmul.f32.gmra.mxu0 %v57
  %v1242 = vpop.f32.mrf.mxu0
  %v1243 = vadd.f32 %v1214, %v1242
  %1244 = vmatmul.f32.gmra.mxu0 %v75
  %v1245 = vpop.f32.mrf.mxu0
  %v1246 = vadd.f32 %v1217, %v1245
  %1247 = vdwg.mxu0
  %1248 = vmatpush.msra.mxu0 %v187
  %1249 = vmatpush.msra.mxu0 %v185
  %1250 = vmatpush.msra.mxu0 %v183
  %1251 = vmatpush.msra.mxu0 %v181
  %1252 = vmatpush.msra.mxu0 %v179
  %1253 = vmatpush.msra.mxu0 %v177
  %1254 = vmatpush.msra.mxu0 %v175
  %1255 = vmatpush.msra.mxu0 %v173
  %1256 = vmatpush.msra.mxu0 %v171
  %1257 = vmatpush.msra.mxu0 %v169
  %1258 = vmatpush.msra.mxu0 %v167
  %1259 = vmatpush.msra.mxu0 %v165
  %1260 = vmatpush.msra.mxu0 %v163
  %1261 = vmatpush.msra.mxu0 %v161
  %1262 = vmatpush.msra.mxu0 %v159
  %1263 = vmatpush.msra.mxu0 %v157
  %1264 = vmatmul.f32.gmra.mxu0 %v22
  %v1265 = vpop.f32.mrf.mxu0
  %v1266 = vadd.f32 %v1237, %v1265
  %1267 = vmatmul.f32.gmra.mxu0 %v40
  %v1268 = vpop.f32.mrf.mxu0
  %v1269 = vadd.f32 %v1240, %v1268
  %1270 = vmatmul.f32.gmra.mxu0 %v58
  %v1271 = vpop.f32.mrf.mxu0
  %v1272 = vadd.f32 %v1243, %v1271
  %1273 = vmatmul.f32.gmra.mxu0 %v76
  %v1274 = vpop.f32.mrf.mxu0
  %v1275 = vadd.f32 %v1246, %v1274
  %1276 = vdwg.mxu0
  %1277 = vmatpush.msra.mxu0 %v219
  %1278 = vmatpush.msra.mxu0 %v217
  %1279 = vmatpush.msra.mxu0 %v215
  %1280 = vmatpush.msra.mxu0 %v213
  %1281 = vmatpush.msra.mxu0 %v211
  %1282 = vmatpush.msra.mxu0 %v209
  %1283 = vmatpush.msra.mxu0 %v207
  %1284 = vmatpush.msra.mxu0 %v205
  %1285 = vmatpush.msra.mxu0 %v203
  %1286 = vmatpush.msra.mxu0 %v201
  %1287 = vmatpush.msra.mxu0 %v199
  %1288 = vmatpush.msra.mxu0 %v197
  %1289 = vmatpush.msra.mxu0 %v195
  %1290 = vmatpush.msra.mxu0 %v193
  %1291 = vmatpush.msra.mxu0 %v191
  %1292 = vmatpush.msra.mxu0 %v189
  %1293 = vmatmul.f32.gmra.mxu0 %v23
  %v1294 = vpop.f32.mrf.mxu0
  %v1295 = vadd.f32 %v1266, %v1294
  %1296 = vmatmul.f32.gmra.mxu0 %v41
  %v1297 = vpop.f32.mrf.mxu0
  %v1298 = vadd.f32 %v1269, %v1297
  %1299 = vmatmul.f32.gmra.mxu0 %v59
  %v1300 = vpop.f32.mrf.mxu0
  %v1301 = vadd.f32 %v1272, %v1300
  %1302 = vmatmul.f32.gmra.mxu0 %v77
  %v1303 = vpop.f32.mrf.mxu0
  %v1304 = vadd.f32 %v1275, %v1303
  %1305 = vdwg.mxu0
  %1306 = vmatpush.msra.mxu0 %v251
  %1307 = vmatpush.msra.mxu0 %v249
  %1308 = vmatpush.msra.mxu0 %v247
  %1309 = vmatpush.msra.mxu0 %v245
  %1310 = vmatpush.msra.mxu0 %v243
  %1311 = vmatpush.msra.mxu0 %v241
  %1312 = vmatpush.msra.mxu0 %v239
  %1313 = vmatpush.msra.mxu0 %v237
  %1314 = vmatpush.msra.mxu0 %v235
  %1315 = vmatpush.msra.mxu0 %v233
  %1316 = vmatpush.msra.mxu0 %v231
  %1317 = vmatpush.msra.mxu0 %v229
  %1318 = vmatpush.msra.mxu0 %v227
  %1319 = vmatpush.msra.mxu0 %v225
  %1320 = vmatpush.msra.mxu0 %v223
  %1321 = vmatpush.msra.mxu0 %v221
  %1322 = vmatmul.f32.gmra.mxu0 %v24
  %v1323 = vpop.f32.mrf.mxu0
  %v1324 = vadd.f32 %v1295, %v1323
  %1325 = vmatmul.f32.gmra.mxu0 %v42
  %v1326 = vpop.f32.mrf.mxu0
  %v1327 = vadd.f32 %v1298, %v1326
  %1328 = vmatmul.f32.gmra.mxu0 %v60
  %v1329 = vpop.f32.mrf.mxu0
  %v1330 = vadd.f32 %v1301, %v1329
  %1331 = vmatmul.f32.gmra.mxu0 %v78
  %v1332 = vpop.f32.mrf.mxu0
  %v1333 = vadd.f32 %v1304, %v1332
  %1334 = vdwg.mxu0
  %1335 = vmatpush.msra.mxu0 %v283
  %1336 = vmatpush.msra.mxu0 %v281
  %1337 = vmatpush.msra.mxu0 %v279
  %1338 = vmatpush.msra.mxu0 %v277
  %1339 = vmatpush.msra.mxu0 %v275
  %1340 = vmatpush.msra.mxu0 %v273
  %1341 = vmatpush.msra.mxu0 %v271
  %1342 = vmatpush.msra.mxu0 %v269
  %1343 = vmatpush.msra.mxu0 %v267
  %1344 = vmatpush.msra.mxu0 %v265
  %1345 = vmatpush.msra.mxu0 %v263
  %1346 = vmatpush.msra.mxu0 %v261
  %1347 = vmatpush.msra.mxu0 %v259
  %1348 = vmatpush.msra.mxu0 %v257
  %1349 = vmatpush.msra.mxu0 %v255
  %1350 = vmatpush.msra.mxu0 %v253
  %1351 = vmatmul.f32.gmra.mxu0 %v25
  %v1352 = vpop.f32.mrf.mxu0
  %v1353 = vadd.f32 %v1324, %v1352
  %1354 = vmatmul.f32.gmra.mxu0 %v43
  %v1355 = vpop.f32.mrf.mxu0
  %v1356 = vadd.f32 %v1327, %v1355
  %1357 = vmatmul.f32.gmra.mxu0 %v61
  %v1358 = vpop.f32.mrf.mxu0
  %v1359 = vadd.f32 %v1330, %v1358
  %1360 = vmatmul.f32.gmra.mxu0 %v79
  %v1361 = vpop.f32.mrf.mxu0
  %v1362 = vadd.f32 %v1333, %v1361
  %1363 = vdwg.mxu0
  %1364 = vmatpush.msra.mxu0 %v315
  %1365 = vmatpush.msra.mxu0 %v313
  %1366 = vmatpush.msra.mxu0 %v311
  %1367 = vmatpush.msra.mxu0 %v309
  %1368 = vmatpush.msra.mxu0 %v307
  %1369 = vmatpush.msra.mxu0 %v305
  %1370 = vmatpush.msra.mxu0 %v303
  %1371 = vmatpush.msra.mxu0 %v301
  %1372 = vmatpush.msra.mxu0 %v299
  %1373 = vmatpush.msra.mxu0 %v297
  %1374 = vmatpush.msra.mxu0 %v295
  %1375 = vmatpush.msra.mxu0 %v293
  %1376 = vmatpush.msra.mxu0 %v291
  %1377 = vmatpush.msra.mxu0 %v289
  %1378 = vmatpush.msra.mxu0 %v287
  %1379 = vmatpush.msra.mxu0 %v285
  %1380 = vmatmul.f32.gmra.mxu0 %v26
  %v1381 = vpop.f32.mrf.mxu0
  %v1382 = vadd.f32 %v1353, %v1381
  %1383 = vmatmul.f32.gmra.mxu0 %v44
  %v1384 = vpop.f32.mrf.mxu0
  %v1385 = vadd.f32 %v1356, %v1384
  %1386 = vmatmul.f32.gmra.mxu0 %v62
  %v1387 = vpop.f32.mrf.mxu0
  %v1388 = vadd.f32 %v1359, %v1387
  %1389 = vmatmul.f32.gmra.mxu0 %v80
  %v1390 = vpop.f32.mrf.mxu0
  %v1391 = vadd.f32 %v1362, %v1390
  %1392 = vdwg.mxu0
  %1393 = vmatpush.msra.mxu0 %v347
  %1394 = vmatpush.msra.mxu0 %v345
  %1395 = vmatpush.msra.mxu0 %v343
  %1396 = vmatpush.msra.mxu0 %v341
  %1397 = vmatpush.msra.mxu0 %v339
  %1398 = vmatpush.msra.mxu0 %v337
  %1399 = vmatpush.msra.mxu0 %v335
  %1400 = vmatpush.msra.mxu0 %v333
  %1401 = vmatpush.msra.mxu0 %v331
  %1402 = vmatpush.msra.mxu0 %v329
  %1403 = vmatpush.msra.mxu0 %v327
  %1404 = vmatpush.msra.mxu0 %v325
  %1405 = vmatpush.msra.mxu0 %v323
  %1406 = vmatpush.msra.mxu0 %v321
  %1407 = vmatpush.msra.mxu0 %v319
  %1408 = vmatpush.msra.mxu0 %v317
  %1409 = vmatmul.f32.gmra.mxu0 %v27
  %v1410 = vpop.f32.mrf.mxu0
  %v1411 = vadd.f32 %v1382, %v1410
  %1412 = vmatmul.f32.gmra.mxu0 %v45
  %v1413 = vpop.f32.mrf.mxu0
  %v1414 = vadd.f32 %v1385, %v1413
  %1415 = vmatmul.f32.gmra.mxu0 %v63
  %v1416 = vpop.f32.mrf.mxu0
  %v1417 = vadd.f32 %v1388, %v1416
  %1418 = vmatmul.f32.gmra.mxu0 %v81
  %v1419 = vpop.f32.mrf.mxu0
  %v1420 = vadd.f32 %v1391, %v1419
  %1421 = vdwg.mxu0
  %1422 = vmatpush.msra.mxu0 %v379
  %1423 = vmatpush.msra.mxu0 %v377
  %1424 = vmatpush.msra.mxu0 %v375
  %1425 = vmatpush.msra.mxu0 %v373
  %1426 = vmatpush.msra.mxu0 %v371
  %1427 = vmatpush.msra.mxu0 %v369
  %1428 = vmatpush.msra.mxu0 %v367
  %1429 = vmatpush.msra.mxu0 %v365
  %1430 = vmatpush.msra.mxu0 %v363
  %1431 = vmatpush.msra.mxu0 %v361
  %1432 = vmatpush.msra.mxu0 %v359
  %1433 = vmatpush.msra.mxu0 %v357
  %1434 = vmatpush.msra.mxu0 %v355
  %1435 = vmatpush.msra.mxu0 %v353
  %1436 = vmatpush.msra.mxu0 %v351
  %1437 = vmatpush.msra.mxu0 %v349
  %1438 = vmatmul.f32.gmra.mxu0 %v28
  %v1439 = vpop.f32.mrf.mxu0
  %v1440 = vadd.f32 %v1411, %v1439
  %1441 = vmatmul.f32.gmra.mxu0 %v46
  %v1442 = vpop.f32.mrf.mxu0
  %v1443 = vadd.f32 %v1414, %v1442
  %1444 = vmatmul.f32.gmra.mxu0 %v64
  %v1445 = vpop.f32.mrf.mxu0
  %v1446 = vadd.f32 %v1417, %v1445
  %1447 = vmatmul.f32.gmra.mxu0 %v82
  %v1448 = vpop.f32.mrf.mxu0
  %v1449 = vadd.f32 %v1420, %v1448
  %1450 = vdwg.mxu0
  %1451 = vmatpush.msra.mxu0 %v411
  %1452 = vmatpush.msra.mxu0 %v409
  %1453 = vmatpush.msra.mxu0 %v407
  %1454 = vmatpush.msra.mxu0 %v405
  %1455 = vmatpush.msra.mxu0 %v403
  %1456 = vmatpush.msra.mxu0 %v401
  %1457 = vmatpush.msra.mxu0 %v399
  %1458 = vmatpush.msra.mxu0 %v397
  %1459 = vmatpush.msra.mxu0 %v395
  %1460 = vmatpush.msra.mxu0 %v393
  %1461 = vmatpush.msra.mxu0 %v391
  %1462 = vmatpush.msra.mxu0 %v389
  %1463 = vmatpush.msra.mxu0 %v387
  %1464 = vmatpush.msra.mxu0 %v385
  %1465 = vmatpush.msra.mxu0 %v383
  %1466 = vmatpush.msra.mxu0 %v381
  %1467 = vmatmul.f32.gmra.mxu0 %v29
  %v1468 = vpop.f32.mrf.mxu0
  %v1469 = vadd.f32 %v1440, %v1468
  %1470 = vmatmul.f32.gmra.mxu0 %v47
  %v1471 = vpop.f32.mrf.mxu0
  %v1472 = vadd.f32 %v1443, %v1471
  %1473 = vmatmul.f32.gmra.mxu0 %v65
  %v1474 = vpop.f32.mrf.mxu0
  %v1475 = vadd.f32 %v1446, %v1474
  %1476 = vmatmul.f32.gmra.mxu0 %v83
  %v1477 = vpop.f32.mrf.mxu0
  %v1478 = vadd.f32 %v1449, %v1477
  %1479 = vdwg.mxu0
  %1480 = vmatpush.msra.mxu0 %v443
  %1481 = vmatpush.msra.mxu0 %v441
  %1482 = vmatpush.msra.mxu0 %v439
  %1483 = vmatpush.msra.mxu0 %v437
  %1484 = vmatpush.msra.mxu0 %v435
  %1485 = vmatpush.msra.mxu0 %v433
  %1486 = vmatpush.msra.mxu0 %v431
  %1487 = vmatpush.msra.mxu0 %v429
  %1488 = vmatpush.msra.mxu0 %v427
  %1489 = vmatpush.msra.mxu0 %v425
  %1490 = vmatpush.msra.mxu0 %v423
  %1491 = vmatpush.msra.mxu0 %v421
  %1492 = vmatpush.msra.mxu0 %v419
  %1493 = vmatpush.msra.mxu0 %v417
  %1494 = vmatpush.msra.mxu0 %v415
  %1495 = vmatpush.msra.mxu0 %v413
  %1496 = vmatmul.f32.gmra.mxu0 %v30
  %v1497 = vpop.f32.mrf.mxu0
  %v1498 = vadd.f32 %v1469, %v1497
  %1499 = vmatmul.f32.gmra.mxu0 %v48
  %v1500 = vpop.f32.mrf.mxu0
  %v1501 = vadd.f32 %v1472, %v1500
  %1502 = vmatmul.f32.gmra.mxu0 %v66
  %v1503 = vpop.f32.mrf.mxu0
  %v1504 = vadd.f32 %v1475, %v1503
  %1505 = vmatmul.f32.gmra.mxu0 %v84
  %v1506 = vpop.f32.mrf.mxu0
  %v1507 = vadd.f32 %v1478, %v1506
  %1508 = vdwg.mxu0
  %1509 = vmatpush.msra.mxu0 %v475
  %1510 = vmatpush.msra.mxu0 %v473
  %1511 = vmatpush.msra.mxu0 %v471
  %1512 = vmatpush.msra.mxu0 %v469
  %1513 = vmatpush.msra.mxu0 %v467
  %1514 = vmatpush.msra.mxu0 %v465
  %1515 = vmatpush.msra.mxu0 %v463
  %1516 = vmatpush.msra.mxu0 %v461
  %1517 = vmatpush.msra.mxu0 %v459
  %1518 = vmatpush.msra.mxu0 %v457
  %1519 = vmatpush.msra.mxu0 %v455
  %1520 = vmatpush.msra.mxu0 %v453
  %1521 = vmatpush.msra.mxu0 %v451
  %1522 = vmatpush.msra.mxu0 %v449
  %1523 = vmatpush.msra.mxu0 %v447
  %1524 = vmatpush.msra.mxu0 %v445
  %1525 = vmatmul.f32.gmra.mxu0 %v31
  %v1526 = vpop.f32.mrf.mxu0
  %v1527 = vadd.f32 %v1498, %v1526
  %1528 = vmatmul.f32.gmra.mxu0 %v49
  %v1529 = vpop.f32.mrf.mxu0
  %v1530 = vadd.f32 %v1501, %v1529
  %1531 = vmatmul.f32.gmra.mxu0 %v67
  %v1532 = vpop.f32.mrf.mxu0
  %v1533 = vadd.f32 %v1504, %v1532
  %1534 = vmatmul.f32.gmra.mxu0 %v85
  %v1535 = vpop.f32.mrf.mxu0
  %v1536 = vadd.f32 %v1507, %v1535
  %1537 = vdwg.mxu0
  %1538 = vmatpush.msra.mxu0 %v507
  %1539 = vmatpush.msra.mxu0 %v505
  %1540 = vmatpush.msra.mxu0 %v503
  %1541 = vmatpush.msra.mxu0 %v501
  %1542 = vmatpush.msra.mxu0 %v499
  %1543 = vmatpush.msra.mxu0 %v497
  %1544 = vmatpush.msra.mxu0 %v495
  %1545 = vmatpush.msra.mxu0 %v493
  %1546 = vmatpush.msra.mxu0 %v491
  %1547 = vmatpush.msra.mxu0 %v489
  %1548 = vmatpush.msra.mxu0 %v487
  %1549 = vmatpush.msra.mxu0 %v485
  %1550 = vmatpush.msra.mxu0 %v483
  %1551 = vmatpush.msra.mxu0 %v481
  %1552 = vmatpush.msra.mxu0 %v479
  %1553 = vmatpush.msra.mxu0 %v477
  %1554 = vmatmul.f32.gmra.mxu0 %v32
  %v1555 = vpop.f32.mrf.mxu0
  %v1556 = vadd.f32 %v1527, %v1555
  %1557 = vmatmul.f32.gmra.mxu0 %v50
  %v1558 = vpop.f32.mrf.mxu0
  %v1559 = vadd.f32 %v1530, %v1558
  %1560 = vmatmul.f32.gmra.mxu0 %v68
  %v1561 = vpop.f32.mrf.mxu0
  %v1562 = vadd.f32 %v1533, %v1561
  %1563 = vmatmul.f32.gmra.mxu0 %v86
  %v1564 = vpop.f32.mrf.mxu0
  %v1565 = vadd.f32 %v1536, %v1564
  %1566 = vdwg.mxu0
  %1567 = vmatpush.msra.mxu0 %v539
  %1568 = vmatpush.msra.mxu0 %v537
  %1569 = vmatpush.msra.mxu0 %v535
  %1570 = vmatpush.msra.mxu0 %v533
  %1571 = vmatpush.msra.mxu0 %v531
  %1572 = vmatpush.msra.mxu0 %v529
  %1573 = vmatpush.msra.mxu0 %v527
  %1574 = vmatpush.msra.mxu0 %v525
  %1575 = vmatpush.msra.mxu0 %v523
  %1576 = vmatpush.msra.mxu0 %v521
  %1577 = vmatpush.msra.mxu0 %v519
  %1578 = vmatpush.msra.mxu0 %v517
  %1579 = vmatpush.msra.mxu0 %v515
  %1580 = vmatpush.msra.mxu0 %v513
  %1581 = vmatpush.msra.mxu0 %v511
  %1582 = vmatpush.msra.mxu0 %v509
  %1583 = vmatmul.f32.gmra.mxu0 %v33
  %v1584 = vpop.f32.mrf.mxu0
  %v1585 = vadd.f32 %v1556, %v1584
  %1586 = vmatmul.f32.gmra.mxu0 %v51
  %v1587 = vpop.f32.mrf.mxu0
  %v1588 = vadd.f32 %v1559, %v1587
  %1589 = vmatmul.f32.gmra.mxu0 %v69
  %v1590 = vpop.f32.mrf.mxu0
  %v1591 = vadd.f32 %v1562, %v1590
  %1592 = vmatmul.f32.gmra.mxu0 %v87
  %v1593 = vpop.f32.mrf.mxu0
  %v1594 = vadd.f32 %v1565, %v1593
  %1595 = vdwg.mxu0
  %1596 = vmatpush.msra.mxu0 %v571
  %1597 = vmatpush.msra.mxu0 %v569
  %1598 = vmatpush.msra.mxu0 %v567
  %1599 = vmatpush.msra.mxu0 %v565
  %1600 = vmatpush.msra.mxu0 %v563
  %1601 = vmatpush.msra.mxu0 %v561
  %1602 = vmatpush.msra.mxu0 %v559
  %1603 = vmatpush.msra.mxu0 %v557
  %1604 = vmatpush.msra.mxu0 %v555
  %1605 = vmatpush.msra.mxu0 %v553
  %1606 = vmatpush.msra.mxu0 %v551
  %1607 = vmatpush.msra.mxu0 %v549
  %1608 = vmatpush.msra.mxu0 %v547
  %1609 = vmatpush.msra.mxu0 %v545
  %1610 = vmatpush.msra.mxu0 %v543
  %1611 = vmatpush.msra.mxu0 %v541
  %1612 = vmatmul.f32.gmra.mxu0 %v34
  %v1613 = vpop.f32.mrf.mxu0
  %v1614 = vadd.f32 %v1585, %v1613
  %1615 = vmatmul.f32.gmra.mxu0 %v52
  %v1616 = vpop.f32.mrf.mxu0
  %v1617 = vadd.f32 %v1588, %v1616
  %1618 = vmatmul.f32.gmra.mxu0 %v70
  %v1619 = vpop.f32.mrf.mxu0
  %v1620 = vadd.f32 %v1591, %v1619
  %1621 = vmatmul.f32.gmra.mxu0 %v88
  %v1622 = vpop.f32.mrf.mxu0
  %v1623 = vadd.f32 %v1594, %v1622
  %1624 = vdwg.mxu0
  %1625 = vmatpush.msra.mxu0 %v603
  %1626 = vmatpush.msra.mxu0 %v601
  %1627 = vmatpush.msra.mxu0 %v599
  %1628 = vmatpush.msra.mxu0 %v597
  %1629 = vmatpush.msra.mxu0 %v595
  %1630 = vmatpush.msra.mxu0 %v593
  %1631 = vmatpush.msra.mxu0 %v591
  %1632 = vmatpush.msra.mxu0 %v589
  %1633 = vmatpush.msra.mxu0 %v587
  %1634 = vmatpush.msra.mxu0 %v585
  %1635 = vmatpush.msra.mxu0 %v583
  %1636 = vmatpush.msra.mxu0 %v581
  %1637 = vmatpush.msra.mxu0 %v579
  %1638 = vmatpush.msra.mxu0 %v577
  %1639 = vmatpush.msra.mxu0 %v575
  %1640 = vmatpush.msra.mxu0 %v573
  %1641 = vmatmul.f32.gmra.mxu0 %v35
  %v1642 = vpop.f32.mrf.mxu0
  %v1643 = vadd.f32 %v1614, %v1642
  %1644 = vmatmul.f32.gmra.mxu0 %v53
  %v1645 = vpop.f32.mrf.mxu0
  %v1646 = vadd.f32 %v1617, %v1645
  %1647 = vmatmul.f32.gmra.mxu0 %v71
  %v1648 = vpop.f32.mrf.mxu0
  %v1649 = vadd.f32 %v1620, %v1648
  %1650 = vmatmul.f32.gmra.mxu0 %v89
  %v1651 = vpop.f32.mrf.mxu0
  %v1652 = vadd.f32 %v1623, %v1651
  %1653 = vdwg.mxu0
  %1654 = vmatpush.msra.mxu0 %v635
  %1655 = vmatpush.msra.mxu0 %v633
  %1656 = vmatpush.msra.mxu0 %v631
  %1657 = vmatpush.msra.mxu0 %v629
  %1658 = vmatpush.msra.mxu0 %v627
  %1659 = vmatpush.msra.mxu0 %v625
  %1660 = vmatpush.msra.mxu0 %v623
  %1661 = vmatpush.msra.mxu0 %v621
  %1662 = vmatpush.msra.mxu0 %v619
  %1663 = vmatpush.msra.mxu0 %v617
  %1664 = vmatpush.msra.mxu0 %v615
  %1665 = vmatpush.msra.mxu0 %v613
  %1666 = vmatpush.msra.mxu0 %v611
  %1667 = vmatpush.msra.mxu0 %v609
  %1668 = vmatpush.msra.mxu0 %v607
  %1669 = vmatpush.msra.mxu0 %v605
  %1670 = vmatmul.f32.gmra.mxu0 %v36
  %v1671 = vpop.f32.mrf.mxu0
  %v1672 = vadd.f32 %v1643, %v1671
  %1673 = vmatmul.f32.gmra.mxu0 %v54
  %v1674 = vpop.f32.mrf.mxu0
  %v1675 = vadd.f32 %v1646, %v1674
  %1676 = vmatmul.f32.gmra.mxu0 %v72
  %v1677 = vpop.f32.mrf.mxu0
  %v1678 = vadd.f32 %v1649, %v1677
  %1679 = vmatmul.f32.gmra.mxu0 %v90
  %v1680 = vpop.f32.mrf.mxu0
  %v1681 = vadd.f32 %v1652, %v1680
  %1682 = vdwg.mxu0
  %1683 = vmatpush.msra.mxu0 %v667
  %1684 = vmatpush.msra.mxu0 %v665
  %1685 = vmatpush.msra.mxu0 %v663
  %1686 = vmatpush.msra.mxu0 %v661
  %1687 = vmatpush.msra.mxu0 %v659
  %1688 = vmatpush.msra.mxu0 %v657
  %1689 = vmatpush.msra.mxu0 %v655
  %1690 = vmatpush.msra.mxu0 %v653
  %1691 = vmatpush.msra.mxu0 %v651
  %1692 = vmatpush.msra.mxu0 %v649
  %1693 = vmatpush.msra.mxu0 %v647
  %1694 = vmatpush.msra.mxu0 %v645
  %1695 = vmatpush.msra.mxu0 %v643
  %1696 = vmatpush.msra.mxu0 %v641
  %1697 = vmatpush.msra.mxu0 %v639
  %1698 = vmatpush.msra.mxu0 %v637
  %1699 = vmatmul.f32.gmra.mxu0 %v37
  %v1700 = vpop.f32.mrf.mxu0
  %v1701 = vadd.f32 %v1672, %v1700
  %1702 = vmatmul.f32.gmra.mxu0 %v55
  %v1703 = vpop.f32.mrf.mxu0
  %v1704 = vadd.f32 %v1675, %v1703
  %1705 = vmatmul.f32.gmra.mxu0 %v73
  %v1706 = vpop.f32.mrf.mxu0
  %v1707 = vadd.f32 %v1678, %v1706
  %1708 = vmatmul.f32.gmra.mxu0 %v91
  %v1709 = vpop.f32.mrf.mxu0
  %v1710 = vadd.f32 %v1681, %v1709
  %1711 = vdwg.mxu0
  %v1712 = vld [vmem:[%s2] sm:$0x3]
  %v1714 = vperm.slane %v1712, 0
  %v1715 = vperm.slane %v1712, 1
  %v1718 = vmul.f32 %v1179, %v1714
  %v1719 = vmul.f32 %v1701, %v1715
  %v1720 = vmul.f32 %v1182, %v1714
  %v1721 = vmul.f32 %v1704, %v1715
  %v1722 = vmul.f32 %v1185, %v1714
  %v1723 = vmul.f32 %v1707, %v1715
  %v1724 = vmul.f32 %v1188, %v1714
  %v1725 = vmul.f32 %v1710, %v1715
  %v1726 = vld [vmem:[%s3] sm:$0x3]
  %v1728 = vperm.slane %v1726, 0
  %v1729 = vperm.slane %v1726, 1
  %v1732 = vadd.f32 %v1718, %v1728
  %v1733 = vadd.f32 %v1719, %v1729
  %v1734 = vadd.f32 %v1720, %v1728
  %v1735 = vadd.f32 %v1721, %v1729
  %v1736 = vadd.f32 %v1722, %v1728
  %v1737 = vadd.f32 %v1723, %v1729
  %v1738 = vadd.f32 %v1724, %v1728
  %v1739 = vadd.f32 %v1725, %v1729
  %v1740 = vld [vmem:[%s4] sm:$0xff]
  %v1741 = vld [vmem:[%s4 + $0x8] sm:$0xff]
  %v1742 = vld [vmem:[%s4 + $0x10] sm:$0xff]
  %v1743 = vld [vmem:[%s4 + $0x18] sm:$0xff]
  %v1744 = vld [vmem:[%s4 + $0x20] sm:$0xff]
  %v1745 = vld [vmem:[%s4 + $0x28] sm:$0xff]
  %v1746 = vld [vmem:[%s4 + $0x30] sm:$0xff]
  %v1747 = vld [vmem:[%s4 + $0x38] sm:$0xff]
  %v1748 = vadd.f32 %v1732, %v1740
  %v1749 = vadd.f32 %v1733, %v1741
  %v1750 = vadd.f32 %v1734, %v1742
  %v1751 = vadd.f32 %v1735, %v1743
  %v1752 = vadd.f32 %v1736, %v1744
  %v1753 = vadd.f32 %v1737, %v1745
  %v1754 = vadd.f32 %v1738, %v1746
  %v1755 = vadd.f32 %v1739, %v1747
  %v1756 = vmax.f32 %v1748, 0.0
  %v1757 = vmax.f32 %v1749, 0.0
  %v1758 = vmax.f32 %v1750, 0.0
  %v1759 = vmax.f32 %v1751, 0.0
  %v1760 = vmax.f32 %v1752, 0.0
  %v1761 = vmax.f32 %v1753, 0.0
  %v1762 = vmax.f32 %v1754, 0.0
  %v1763 = vmax.f32 %v1755, 0.0
  %1764 = vst [vmem:[%s5] sm:$0xff] %v1756
  %1765 = vst [vmem:[%s5 + $0x8] sm:$0xff] %v1757
  %1766 = vst [vmem:[%s5 + $0x10] sm:$0xff] %v1758
  %1767 = vst [vmem:[%s5 + $0x18] sm:$0xff] %v1759
  %1768 = vst [vmem:[%s5 + $0x20] sm:$0xff] %v1760
  %1769 = vst [vmem:[%s5 + $0x28] sm:$0xff] %v1761
  %1770 = vst [vmem:[%s5 + $0x30] sm:$0xff] %v1762
  %1771 = vst [vmem:[%s5 + $0x38] sm:$0xff] %v1763
  // Predicated region
  $region22: #{macnet_forward.38} parent=0 // pred_check
    _
  $region23: #{macnet_forward.38} parent=0 // pred_check_branch
    %1773 = sbr.rel (0) target = $region25
  $region24: #{macnet_forward.38} parent=0 // pred_region
    _
  $region25: #{macnet_forward.38} parent=0 // pred_fallthru
    _
  // Predicated region
  $region26: #{macnet_forward.38} parent=0 // pred_check
    _
  $region27: #{macnet_forward.38} parent=0 // pred_check_branch
    %1775 = sbr.rel (0) target = $region29
  $region28: #{macnet_forward.38} parent=0 // pred_region
    _
  $region29: #{macnet_forward.38} parent=0 // pred_fallthru
    _

</llo_original>
